<compile_context>
chip_gen: v7x
topology: tpu7x:2x2x1
jax: 0.10.0
libtpu: 0.0.40
codegen_flags: <defaults>
</compile_context>

<pallas_src>
import functools

import jax
import jax.numpy as jnp
from jax.experimental import pallas as pl
from jax.experimental.pallas import tpu as pltpu


def _round_up(x, m):
    return (x + m - 1) // m * m


def _pad_gate_cols(w, H, H_p):
    """Pad last axis 4H -> 4*H_p, each gate's H real cols at the start of its slot."""
    lead = w.shape[:-1]
    w4 = w.reshape(*lead, 4, H)
    w4 = jnp.pad(w4, [(0, 0)] * len(lead) + [(0, 0), (0, H_p - H)])
    return w4.reshape(*lead, 4 * H_p)


def _vmem_limit(t_chunk, B_p, H_p):
    """Scoped-VMEM budget derived from the actual blocks (double-buffered I/O)."""
    G = 4 * H_p
    xg_blk = t_chunk * B_p * G * 2        # bf16
    y_blk = t_chunk * B_p * H_p * 2       # bf16
    whh = H_p * G * 2                     # bf16
    hf = B_p * H_p * 4                    # f32
    bounds = 2 * B_p * 128 * 4            # lo/hi, lane-padded int32
    scratch = 2 * B_p * H_p * 4           # h/c f32
    need = 2 * (xg_blk + y_blk + whh + hf + bounds) + scratch
    return int(min(max(2 * need, 8 << 20), 48 << 20))


# ----------------------------------------------------------------------------
# Pallas kernel: one bidirectional LSTM layer.
# grid = (2, n_chunks): axis 0 = direction (parallel, fwd/bwd -> 2 TCs on v7x),
# axis 1 = time chunk (arbitrary, h/c carried in scratch).
# The backward direction's xg is pre-reversed in time by the wrapper, so both
# directions walk kernel-steps 0..T_p-1 with static addressing.
# ----------------------------------------------------------------------------
def _bilstm_kernel(lo_ref, hi_ref, xg_ref, whh_ref, y_ref, hf_ref, h_sc, c_sc,
                   *, t_chunk, H_p):
    """lo_ref/hi_ref: (B_p, 1) int32   valid window [lo, hi) in kernel-step time
       xg_ref:  (t_chunk, B_p, 4Hp) bf16  precomputed x @ W_ih^T + b (hoisted)
       whh_ref: (Hp, 4Hp) bf16           recurrent weights (MXU operand)
       y_ref:   (t_chunk, B_p, Hp) bf16  per-step hidden (next layer's input)
       hf_ref:  (B_p, Hp) f32            final hidden h_n for this direction
       h_sc/c_sc: (B_p, Hp) f32          carried state (persists across chunks)
    """
    tc = pl.program_id(1)

    @pl.when(tc == 0)
    def _():
        h_sc[...] = jnp.zeros_like(h_sc)
        c_sc[...] = jnp.zeros_like(c_sc)

    lo = lo_ref[...]                       # loaded once per chunk
    hi = hi_ref[...]
    base = tc * t_chunk

    @pl.loop(0, t_chunk, unroll=True)      # bounded unroll: one chunk only
    def _(t):
        gates = (xg_ref[t].astype(jnp.float32) +
                 jnp.dot(h_sc[...].astype(jnp.bfloat16), whh_ref[...],
                         preferred_element_type=jnp.float32))
        # PyTorch gate order i, f, g, o; each slice lane-aligned (H_p % 128 == 0).
        # sigmoid(x) = 0.5*(1 + tanh(0.5*x)): one EUP pass instead of exp + recip.
        i_g = 0.5 * (1.0 + jnp.tanh(0.5 * gates[:, 0 * H_p:1 * H_p]))
        f_g = 0.5 * (1.0 + jnp.tanh(0.5 * gates[:, 1 * H_p:2 * H_p]))
        g_g = jnp.tanh(gates[:, 2 * H_p:3 * H_p])
        o_g = 0.5 * (1.0 + jnp.tanh(0.5 * gates[:, 3 * H_p:4 * H_p]))
        c_new = f_g * c_sc[...] + i_g * g_g
        h_new = o_g * jnp.tanh(c_new)
        # packed-sequence mask: update only inside this row's valid window
        t_glob = base + t
        valid = (t_glob >= lo) & (t_glob < hi)          # (B_p, 1)
        h_upd = jnp.where(valid, h_new, h_sc[...])
        c_upd = jnp.where(valid, c_new, c_sc[...])
        h_sc[...] = h_upd
        c_sc[...] = c_upd
        y_ref[t] = h_upd.astype(y_ref.dtype)

    hf_ref[...] = h_sc[...]                # resident output; flushed per direction


def bilstm_layer(xg, whh, lo, hi, *, t_chunk, n_chunks, B_p, H_p):
    """xg: (2, T_p, B_p, 4Hp) bf16 (bwd pre-reversed in time), whh: (2, Hp, 4Hp) bf16,
    lo/hi: (2, B_p, 1) int32.  Returns y (2, T_p, B_p, Hp) bf16 (bwd in reversed
    kernel-step order) and h_final (2, B_p, Hp) f32."""
    G = 4 * H_p
    T_p = t_chunk * n_chunks
    kernel = functools.partial(_bilstm_kernel, t_chunk=t_chunk, H_p=H_p)
    y, h_fin = pl.pallas_call(
        kernel,
        out_shape=(jax.ShapeDtypeStruct((2, T_p, B_p, H_p), jnp.bfloat16),
                   jax.ShapeDtypeStruct((2, B_p, H_p), jnp.float32)),
        grid_spec=pltpu.PrefetchScalarGridSpec(
            num_scalar_prefetch=0,
            grid=(2, n_chunks),                                   # (direction, time chunk)
            in_specs=[
                pl.BlockSpec((None, B_p, 1), lambda d, tc: (d, 0, 0)),            # lo
                pl.BlockSpec((None, B_p, 1), lambda d, tc: (d, 0, 0)),            # hi
                pl.BlockSpec((None, t_chunk, B_p, G), lambda d, tc: (d, tc, 0, 0)),  # xg
                pl.BlockSpec((None, H_p, G), lambda d, tc: (d, 0, 0)),            # W_hh^T
            ],
            out_specs=[
                pl.BlockSpec((None, t_chunk, B_p, H_p), lambda d, tc: (d, tc, 0, 0)),  # y
                pl.BlockSpec((None, B_p, H_p), lambda d, tc: (d, 0, 0)),               # h_n
            ],
            scratch_shapes=[pltpu.VMEM((B_p, H_p), jnp.float32),   # h state (carried)
                            pltpu.VMEM((B_p, H_p), jnp.float32)],  # c state (carried)
        ),
        compiler_params=pltpu.CompilerParams(
            dimension_semantics=("parallel", "arbitrary"),
            vmem_limit_bytes=_vmem_limit(t_chunk, B_p, H_p)),
    )(lo, hi, xg, whh)
    return y, h_fin


# ----------------------------------------------------------------------------
# Full forward pass (embedding gather, hoisted bf16 X@W_ih, fc head are XLA glue)
# ----------------------------------------------------------------------------
def lstm_net_forward(text, text_lengths, params, *, hid_dim, t_chunk=8):
    T, B = text.shape
    H = hid_dim
    H_p = _round_up(H, 128)       # lane-aligned hidden (padded units stay exactly 0)
    B_p = _round_up(B, 16)        # sublane-aligned batch for bf16 packing
    T_p = _round_up(T, t_chunk)   # time padded to a whole number of chunks
    n_chunks = T_p // t_chunk

    lens = jnp.pad(text_lengths.astype(jnp.int32), (0, B_p - B))          # (B_p,)
    # valid kernel-step window [lo, hi): fwd = [0, len); bwd (pre-reversed time)
    # = [T_p - len, T_p). Padded rows (len=0) are never valid -> stay zero.
    lo = jnp.stack([jnp.zeros_like(lens), T_p - lens], axis=0)[..., None]  # (2,B_p,1)
    hi = jnp.stack([lens, jnp.full_like(lens, T_p)], axis=0)[..., None]    # (2,B_p,1)

    x = params["embedding"][text].astype(jnp.bfloat16)                    # (T, B, E)
    x = jnp.pad(x, ((0, T_p - T), (0, B_p - B), (0, 0)))                  # (T_p, B_p, E)

    # actual-order / time-reversed views of the current layer's inputs
    y_f, y_b = x, x
    y_f_rev = jnp.flip(x, axis=0)
    y_b_rev = y_f_rev

    h_fin = None
    for li, layer in enumerate(params["lstm"]):
        xg_dirs, whh_dirs = [], []
        for dname in ("fwd", "bwd"):
            w_ih, w_hh, bias = layer[dname]
            bias_p = _pad_gate_cols(bias, H, H_p)                         # (4Hp,) f32
            whh_p = jnp.pad(_pad_gate_cols(w_hh, H, H_p),
                            ((0, H_p - H), (0, 0))).astype(jnp.bfloat16)  # (Hp, 4Hp)
            if li == 0:
                wih_p = _pad_gate_cols(w_ih, H, H_p).astype(jnp.bfloat16)  # (E, 4Hp)
                src = y_f if dname == "fwd" else y_f_rev
                xg = jnp.einsum("tbd,dg->tbg", src, wih_p,
                                preferred_element_type=jnp.float32) + bias_p
            else:
                # input is [y_fwd | y_bwd]: split W_ih rows -> no concat materialization
                w_top = jnp.pad(_pad_gate_cols(w_ih[:H], H, H_p),
                                ((0, H_p - H), (0, 0))).astype(jnp.bfloat16)
                w_bot = jnp.pad(_pad_gate_cols(w_ih[H:], H, H_p),
                                ((0, H_p - H), (0, 0))).astype(jnp.bfloat16)
                if dname == "fwd":
                    a, b2 = y_f, y_b
                else:                         # pre-reversed time for the bwd direction
                    a, b2 = y_f_rev, y_b_rev
                xg = (jnp.einsum("tbd,dg->tbg", a, w_top,
                                 preferred_element_type=jnp.float32)
                      + jnp.einsum("tbd,dg->tbg", b2, w_bot,
                                   preferred_element_type=jnp.float32)
                      + bias_p)
            xg_dirs.append(xg.astype(jnp.bfloat16))     # bf16 storage: half DMA bytes
            whh_dirs.append(whh_p)
        xg = jnp.stack(xg_dirs, axis=0)                 # (2, T_p, B_p, 4Hp) bf16
        whh = jnp.stack(whh_dirs, axis=0)               # (2, Hp, 4Hp) bf16
        y, h_fin = bilstm_layer(xg, whh, lo, hi, t_chunk=t_chunk,
                                n_chunks=n_chunks, B_p=B_p, H_p=H_p)
        # fwd y is in actual time order; bwd y comes back in reversed order.
        y_f, y_f_rev = y[0], jnp.flip(y[0], axis=0)
        y_b_rev, y_b = y[1], jnp.flip(y[1], axis=0)
        # NOTE: fwd y at positions t >= length holds the last valid state (PyTorch's
        # pad_packed emits zeros); h_n / logits are unaffected since the next layer
        # masks updates at those positions.

    # hidden = cat(hidden[-2], hidden[-1]) == cat(last-layer fwd, last-layer bwd)
    hidden = jnp.concatenate([h_fin[0, :B, :H], h_fin[1, :B, :H]], axis=-1)  # (B, 2H)
    # dropout -> fc1 -> fc2 -> dropout : dropout is identity at eval; head stays in
    # plain XLA (pallas_call launch overhead would dwarf the (B,2H)x(2H,H) compute).
    z = hidden @ params["fc1_w"] + params["fc1_b"]
    return z @ params["fc2_w"] + params["fc2_b"]


# ----------------------------------------------------------------------------
# Deterministic parameter construction
# ----------------------------------------------------------------------------
def init_params(key, vocab_size, embed_dim, hid_dim, out_dim, num_layers, pad_index):
    keys = iter(jax.random.split(key, 64))

    def nrm(shape, scale=0.1):
        return (scale * jax.random.normal(next(keys), shape)).astype(jnp.float32)

    emb = nrm((vocab_size, embed_dim))
    emb = emb.at[pad_index].set(0.0)                       # padding_idx row is zero

    lstm_layers = []
    for l in range(num_layers):
        in_dim = embed_dim if l == 0 else 2 * hid_dim
        layer = {}
        for d in ("fwd", "bwd"):
            layer[d] = (nrm((in_dim, 4 * hid_dim)),        # W_ih^T  (x @ W)
                        nrm((hid_dim, 4 * hid_dim)),       # W_hh^T
                        nrm((4 * hid_dim,)))               # b_ih + b_hh merged
        lstm_layers.append(layer)

    return {
        "embedding": emb,
        "lstm": lstm_layers,
        "fc1_w": nrm((2 * hid_dim, hid_dim)),
        "fc1_b": nrm((hid_dim,)),
        "fc2_w": nrm((hid_dim, out_dim)),
        "fc2_b": nrm((out_dim,)),
    }


if __name__ == "__main__":
    # small shapes consistent with the module
    VOCAB, EMBED, HID, OUT = 50, 32, 32, 9
    NUM_LAYERS, PAD_IDX = 2, 0
    SEQ_LEN, BATCH = 8, 2

    key = jax.random.PRNGKey(0)
    k_tok, k_par = jax.random.split(key)

    # lengths sorted descending (pack_padded_sequence enforce_sorted=True)
    text_lengths = jnp.array([8, 5], dtype=jnp.int32)
    text = jax.random.randint(k_tok, (SEQ_LEN, BATCH), 1, VOCAB, dtype=jnp.int32)
    t_idx = jnp.arange(SEQ_LEN)[:, None]
    text = jnp.where(t_idx < text_lengths[None, :], text, PAD_IDX)

    params = init_params(k_par, VOCAB, EMBED, HID, OUT, NUM_LAYERS, PAD_IDX)

    run = jax.jit(lambda t, tl, p: lstm_net_forward(t, tl, p, hid_dim=HID))
    out = run(text, text_lengths, params)
    out = jax.block_until_ready(out)
    assert out.shape == (BATCH, OUT) and out.dtype == jnp.float32
    print("KERNEL_OK")
</pallas_src>

<mosaic_0001>
module attributes {stable_mosaic.version = 11 : i64} {
  func.func @_bilstm_kernel(%arg0: i32, %arg1: i32, %arg2: memref<1x16x1xi32, #tpu.memory_space<vmem>>, %arg3: memref<1x16x1xi32, #tpu.memory_space<vmem>>, %arg4: memref<1x8x16x512xbf16, #tpu.memory_space<vmem>>, %arg5: memref<1x128x512xbf16, #tpu.memory_space<vmem>>, %arg6: memref<1x8x16x128xbf16, #tpu.memory_space<vmem>>, %arg7: memref<1x16x128xf32, #tpu.memory_space<vmem>>, %arg8: memref<16x128xf32, #tpu.memory_space<vmem>>, %arg9: memref<16x128xf32, #tpu.memory_space<vmem>>) attributes {dimension_semantics = [#tpu.dimension_semantics<parallel>, #tpu.dimension_semantics<arbitrary>], iteration_bounds = array<i64: 2, 1>, scalar_prefetch = 0 : i64, scratch_operands = 2 : i64, tpu.core_type = #tpu.core_type<tc>, window_params = [{transform_indices = @transform_0, window_bounds = array<i64: 1, 16, 1>}, {transform_indices = @transform_1, window_bounds = array<i64: 1, 16, 1>}, {transform_indices = @transform_2, window_bounds = array<i64: 1, 8, 16, 512>}, {transform_indices = @transform_3, window_bounds = array<i64: 1, 128, 512>}, {transform_indices = @transform_4, window_bounds = array<i64: 1, 8, 16, 128>}, {transform_indices = @transform_5, window_bounds = array<i64: 1, 16, 128>}]} {
    %c0_i32 = arith.constant 0 : i32
    %0 = arith.cmpi eq, %arg1, %c0_i32 : i32
    %1 = arith.extui %0 : i1 to i32
    %c0_i32_0 = arith.constant 0 : i32
    %2 = arith.cmpi ne, %1, %c0_i32_0 : i32
    scf.if %2 {
      %cst_276 = arith.constant 0.000000e+00 : f32
      %532 = vector.broadcast %cst_276 : f32 to vector<16x128xf32>
      %c0_277 = arith.constant 0 : index
      %c0_278 = arith.constant 0 : index
      %533 = vector.load %arg8[%c0_277, %c0_278] : memref<16x128xf32, #tpu.memory_space<vmem>>, vector<16x128xf32>
      tpu.vector_store %arg8[%c0_277, %c0_278], %532 {strides = array<i32>} : memref<16x128xf32, #tpu.memory_space<vmem>>, vector<16x128xf32>,
      %cst_279 = arith.constant 0.000000e+00 : f32
      %534 = vector.broadcast %cst_279 : f32 to vector<16x128xf32>
      %c0_280 = arith.constant 0 : index
      %c0_281 = arith.constant 0 : index
      %535 = vector.load %arg9[%c0_280, %c0_281] : memref<16x128xf32, #tpu.memory_space<vmem>>, vector<16x128xf32>
      tpu.vector_store %arg9[%c0_280, %c0_281], %534 {strides = array<i32>} : memref<16x128xf32, #tpu.memory_space<vmem>>, vector<16x128xf32>,
    } else {
    }
    %c0 = arith.constant 0 : index
    %c0_1 = arith.constant 0 : index
    %c0_2 = arith.constant 0 : index
    %3 = vector.load %arg2[%c0, %c0_1, %c0_2] : memref<1x16x1xi32, #tpu.memory_space<vmem>>, vector<1x16x1xi32>
    %4 = vector.shape_cast %3 : vector<1x16x1xi32> to vector<16x1xi32>
    %c0_3 = arith.constant 0 : index
    %c0_4 = arith.constant 0 : index
    %c0_5 = arith.constant 0 : index
    %5 = vector.load %arg3[%c0_3, %c0_4, %c0_5] : memref<1x16x1xi32, #tpu.memory_space<vmem>>, vector<1x16x1xi32>
    %6 = vector.shape_cast %5 : vector<1x16x1xi32> to vector<16x1xi32>
    %c8_i32 = arith.constant 8 : i32
    %7 = arith.muli %arg1, %c8_i32 : i32
    %c0_i32_6 = arith.constant 0 : i32
    %c1_i32 = arith.constant 1 : i32
    %8 = arith.muli %c0_i32_6, %c1_i32 : i32
    %c0_i32_7 = arith.constant 0 : i32
    %9 = arith.addi %c0_i32_7, %8 : i32
    %c0_8 = arith.constant 0 : index
    %10 = arith.index_cast %9 : i32 to index
    %c0_9 = arith.constant 0 : index
    %c0_10 = arith.constant 0 : index
    %11 = vector.load %arg4[%c0_8, %10, %c0_9, %c0_10] : memref<1x8x16x512xbf16, #tpu.memory_space<vmem>>, vector<1x1x16x512xbf16>
    %12 = vector.shape_cast %11 : vector<1x1x16x512xbf16> to vector<16x512xbf16>
    %13 = arith.extf %12 : vector<16x512xbf16> to vector<16x512xf32>
    %c0_11 = arith.constant 0 : index
    %c0_12 = arith.constant 0 : index
    %14 = vector.load %arg8[%c0_11, %c0_12] : memref<16x128xf32, #tpu.memory_space<vmem>>, vector<16x128xf32>
    %15 = arith.truncf %14 : vector<16x128xf32> to vector<16x128xbf16>
    %c0_13 = arith.constant 0 : index
    %c0_14 = arith.constant 0 : index
    %c0_15 = arith.constant 0 : index
    %16 = vector.load %arg5[%c0_13, %c0_14, %c0_15] : memref<1x128x512xbf16, #tpu.memory_space<vmem>>, vector<1x128x512xbf16>
    %17 = vector.shape_cast %16 : vector<1x128x512xbf16> to vector<128x512xbf16>
    %cst = arith.constant dense<0.000000e+00> : vector<16x512xf32>
    %18 = tpu.matmul %15, %17, %cst {dimension_numbers = #tpu.dot_dimension_numbers<[1], [0], [0], [1], [0, 0, 1, 1], [], []>} : vector<16x128xbf16>, vector<128x512xbf16>, vector<16x512xf32> -> vector<16x512xf32>
    %19 = arith.addf %13, %18 : vector<16x512xf32>
    %20 = vector.extract_strided_slice %19 {offsets = [0, 0], sizes = [16, 128], strides = [1, 1]} : vector<16x512xf32> to vector<16x128xf32>
    %cst_16 = arith.constant 5.000000e-01 : f32
    %21 = vector.broadcast %cst_16 : f32 to vector<16x128xf32>
    %22 = arith.mulf %21, %20 : vector<16x128xf32>
    %23 = math.tanh %22 : vector<16x128xf32>
    %cst_17 = arith.constant 1.000000e+00 : f32
    %24 = vector.broadcast %cst_17 : f32 to vector<16x128xf32>
    %25 = arith.addf %24, %23 : vector<16x128xf32>
    %cst_18 = arith.constant 5.000000e-01 : f32
    %26 = vector.broadcast %cst_18 : f32 to vector<16x128xf32>
    %27 = arith.mulf %26, %25 : vector<16x128xf32>
    %28 = vector.extract_strided_slice %19 {offsets = [0, 128], sizes = [16, 128], strides = [1, 1]} : vector<16x512xf32> to vector<16x128xf32>
    %cst_19 = arith.constant 5.000000e-01 : f32
    %29 = vector.broadcast %cst_19 : f32 to vector<16x128xf32>
    %30 = arith.mulf %29, %28 : vector<16x128xf32>
    %31 = math.tanh %30 : vector<16x128xf32>
    %cst_20 = arith.constant 1.000000e+00 : f32
    %32 = vector.broadcast %cst_20 : f32 to vector<16x128xf32>
    %33 = arith.addf %32, %31 : vector<16x128xf32>
    %cst_21 = arith.constant 5.000000e-01 : f32
    %34 = vector.broadcast %cst_21 : f32 to vector<16x128xf32>
    %35 = arith.mulf %34, %33 : vector<16x128xf32>
    %36 = vector.extract_strided_slice %19 {offsets = [0, 256], sizes = [16, 128], strides = [1, 1]} : vector<16x512xf32> to vector<16x128xf32>
    %37 = math.tanh %36 : vector<16x128xf32>
    %38 = vector.extract_strided_slice %19 {offsets = [0, 384], sizes = [16, 128], strides = [1, 1]} : vector<16x512xf32> to vector<16x128xf32>
    %cst_22 = arith.constant 5.000000e-01 : f32
    %39 = vector.broadcast %cst_22 : f32 to vector<16x128xf32>
    %40 = arith.mulf %39, %38 : vector<16x128xf32>
    %41 = math.tanh %40 : vector<16x128xf32>
    %cst_23 = arith.constant 1.000000e+00 : f32
    %42 = vector.broadcast %cst_23 : f32 to vector<16x128xf32>
    %43 = arith.addf %42, %41 : vector<16x128xf32>
    %cst_24 = arith.constant 5.000000e-01 : f32
    %44 = vector.broadcast %cst_24 : f32 to vector<16x128xf32>
    %45 = arith.mulf %44, %43 : vector<16x128xf32>
    %c0_25 = arith.constant 0 : index
    %c0_26 = arith.constant 0 : index
    %46 = vector.load %arg9[%c0_25, %c0_26] : memref<16x128xf32, #tpu.memory_space<vmem>>, vector<16x128xf32>
    %47 = arith.mulf %35, %46 : vector<16x128xf32>
    %48 = arith.mulf %27, %37 : vector<16x128xf32>
    %49 = arith.addf %47, %48 : vector<16x128xf32>
    %50 = math.tanh %49 : vector<16x128xf32>
    %51 = arith.mulf %45, %50 : vector<16x128xf32>
    %52 = arith.addi %7, %9 : i32
    %53 = vector.broadcast %52 : i32 to vector<16x1xi32>
    %54 = arith.cmpi sge, %53, %4 : vector<16x1xi32>
    %55 = vector.broadcast %52 : i32 to vector<16x1xi32>
    %56 = arith.cmpi slt, %55, %6 : vector<16x1xi32>
    %57 = arith.andi %54, %56 : vector<16x1xi1>
    %c0_27 = arith.constant 0 : index
    %c0_28 = arith.constant 0 : index
    %58 = vector.load %arg8[%c0_27, %c0_28] : memref<16x128xf32, #tpu.memory_space<vmem>>, vector<16x128xf32>
    %59 = vector.shape_cast %57 : vector<16x1xi1> to vector<16x1xi1>
    %60 = vector.broadcast %59 : vector<16x1xi1> to vector<16x128xi1>
    %61 = arith.select %60, %51, %58 : vector<16x128xi1>, vector<16x128xf32>
    %c0_29 = arith.constant 0 : index
    %c0_30 = arith.constant 0 : index
    %62 = vector.load %arg9[%c0_29, %c0_30] : memref<16x128xf32, #tpu.memory_space<vmem>>, vector<16x128xf32>
    %63 = vector.shape_cast %57 : vector<16x1xi1> to vector<16x1xi1>
    %64 = vector.broadcast %63 : vector<16x1xi1> to vector<16x128xi1>
    %65 = arith.select %64, %49, %62 : vector<16x128xi1>, vector<16x128xf32>
    %c0_31 = arith.constant 0 : index
    %c0_32 = arith.constant 0 : index
    %66 = vector.load %arg8[%c0_31, %c0_32] : memref<16x128xf32, #tpu.memory_space<vmem>>, vector<16x128xf32>
    tpu.vector_store %arg8[%c0_31, %c0_32], %61 {strides = array<i32>} : memref<16x128xf32, #tpu.memory_space<vmem>>, vector<16x128xf32>,
    %c0_33 = arith.constant 0 : index
    %c0_34 = arith.constant 0 : index
    %67 = vector.load %arg9[%c0_33, %c0_34] : memref<16x128xf32, #tpu.memory_space<vmem>>, vector<16x128xf32>
    tpu.vector_store %arg9[%c0_33, %c0_34], %65 {strides = array<i32>} : memref<16x128xf32, #tpu.memory_space<vmem>>, vector<16x128xf32>,
    %68 = arith.truncf %61 : vector<16x128xf32> to vector<16x128xbf16>
    %c0_35 = arith.constant 0 : index
    %69 = arith.index_cast %9 : i32 to index
    %c0_36 = arith.constant 0 : index
    %c0_37 = arith.constant 0 : index
    %70 = vector.load %arg6[%c0_35, %69, %c0_36, %c0_37] : memref<1x8x16x128xbf16, #tpu.memory_space<vmem>>, vector<1x1x16x128xbf16>
    %71 = vector.shape_cast %70 : vector<1x1x16x128xbf16> to vector<16x128xbf16>
    %72 = vector.shape_cast %68 : vector<16x128xbf16> to vector<1x1x16x128xbf16>
    tpu.vector_store %arg6[%c0_35, %69, %c0_36, %c0_37], %72 {strides = array<i32>} : memref<1x8x16x128xbf16, #tpu.memory_space<vmem>>, vector<1x1x16x128xbf16>,
    %c1_i32_38 = arith.constant 1 : i32
    %c1_i32_39 = arith.constant 1 : i32
    %73 = arith.muli %c1_i32_38, %c1_i32_39 : i32
    %c0_i32_40 = arith.constant 0 : i32
    %74 = arith.addi %c0_i32_40, %73 : i32
    %c0_41 = arith.constant 0 : index
    %75 = arith.index_cast %74 : i32 to index
    %c0_42 = arith.constant 0 : index
    %c0_43 = arith.constant 0 : index
    %76 = vector.load %arg4[%c0_41, %75, %c0_42, %c0_43] : memref<1x8x16x512xbf16, #tpu.memory_space<vmem>>, vector<1x1x16x512xbf16>
    %77 = vector.shape_cast %76 : vector<1x1x16x512xbf16> to vector<16x512xbf16>
    %78 = arith.extf %77 : vector<16x512xbf16> to vector<16x512xf32>
    %c0_44 = arith.constant 0 : index
    %c0_45 = arith.constant 0 : index
    %79 = vector.load %arg8[%c0_44, %c0_45] : memref<16x128xf32, #tpu.memory_space<vmem>>, vector<16x128xf32>
    %80 = arith.truncf %79 : vector<16x128xf32> to vector<16x128xbf16>
    %c0_46 = arith.constant 0 : index
    %c0_47 = arith.constant 0 : index
    %c0_48 = arith.constant 0 : index
    %81 = vector.load %arg5[%c0_46, %c0_47, %c0_48] : memref<1x128x512xbf16, #tpu.memory_space<vmem>>, vector<1x128x512xbf16>
    %82 = vector.shape_cast %81 : vector<1x128x512xbf16> to vector<128x512xbf16>
    %cst_49 = arith.constant dense<0.000000e+00> : vector<16x512xf32>
    %83 = tpu.matmul %80, %82, %cst_49 {dimension_numbers = #tpu.dot_dimension_numbers<[1], [0], [0], [1], [0, 0, 1, 1], [], []>} : vector<16x128xbf16>, vector<128x512xbf16>, vector<16x512xf32> -> vector<16x512xf32>
    %84 = arith.addf %78, %83 : vector<16x512xf32>
    %85 = vector.extract_strided_slice %84 {offsets = [0, 0], sizes = [16, 128], strides = [1, 1]} : vector<16x512xf32> to vector<16x128xf32>
    %cst_50 = arith.constant 5.000000e-01 : f32
    %86 = vector.broadcast %cst_50 : f32 to vector<16x128xf32>
    %87 = arith.mulf %86, %85 : vector<16x128xf32>
    %88 = math.tanh %87 : vector<16x128xf32>
    %cst_51 = arith.constant 1.000000e+00 : f32
    %89 = vector.broadcast %cst_51 : f32 to vector<16x128xf32>
    %90 = arith.addf %89, %88 : vector<16x128xf32>
    %cst_52 = arith.constant 5.000000e-01 : f32
    %91 = vector.broadcast %cst_52 : f32 to vector<16x128xf32>
    %92 = arith.mulf %91, %90 : vector<16x128xf32>
    %93 = vector.extract_strided_slice %84 {offsets = [0, 128], sizes = [16, 128], strides = [1, 1]} : vector<16x512xf32> to vector<16x128xf32>
    %cst_53 = arith.constant 5.000000e-01 : f32
    %94 = vector.broadcast %cst_53 : f32 to vector<16x128xf32>
    %95 = arith.mulf %94, %93 : vector<16x128xf32>
    %96 = math.tanh %95 : vector<16x128xf32>
    %cst_54 = arith.constant 1.000000e+00 : f32
    %97 = vector.broadcast %cst_54 : f32 to vector<16x128xf32>
    %98 = arith.addf %97, %96 : vector<16x128xf32>
    %cst_55 = arith.constant 5.000000e-01 : f32
    %99 = vector.broadcast %cst_55 : f32 to vector<16x128xf32>
    %100 = arith.mulf %99, %98 : vector<16x128xf32>
    %101 = vector.extract_strided_slice %84 {offsets = [0, 256], sizes = [16, 128], strides = [1, 1]} : vector<16x512xf32> to vector<16x128xf32>
    %102 = math.tanh %101 : vector<16x128xf32>
    %103 = vector.extract_strided_slice %84 {offsets = [0, 384], sizes = [16, 128], strides = [1, 1]} : vector<16x512xf32> to vector<16x128xf32>
    %cst_56 = arith.constant 5.000000e-01 : f32
    %104 = vector.broadcast %cst_56 : f32 to vector<16x128xf32>
    %105 = arith.mulf %104, %103 : vector<16x128xf32>
    %106 = math.tanh %105 : vector<16x128xf32>
    %cst_57 = arith.constant 1.000000e+00 : f32
    %107 = vector.broadcast %cst_57 : f32 to vector<16x128xf32>
    %108 = arith.addf %107, %106 : vector<16x128xf32>
    %cst_58 = arith.constant 5.000000e-01 : f32
    %109 = vector.broadcast %cst_58 : f32 to vector<16x128xf32>
    %110 = arith.mulf %109, %108 : vector<16x128xf32>
    %c0_59 = arith.constant 0 : index
    %c0_60 = arith.constant 0 : index
    %111 = vector.load %arg9[%c0_59, %c0_60] : memref<16x128xf32, #tpu.memory_space<vmem>>, vector<16x128xf32>
    %112 = arith.mulf %100, %111 : vector<16x128xf32>
    %113 = arith.mulf %92, %102 : vector<16x128xf32>
    %114 = arith.addf %112, %113 : vector<16x128xf32>
    %115 = math.tanh %114 : vector<16x128xf32>
    %116 = arith.mulf %110, %115 : vector<16x128xf32>
    %117 = arith.addi %7, %74 : i32
    %118 = vector.broadcast %117 : i32 to vector<16x1xi32>
    %119 = arith.cmpi sge, %118, %4 : vector<16x1xi32>
    %120 = vector.broadcast %117 : i32 to vector<16x1xi32>
    %121 = arith.cmpi slt, %120, %6 : vector<16x1xi32>
    %122 = arith.andi %119, %121 : vector<16x1xi1>
    %c0_61 = arith.constant 0 : index
    %c0_62 = arith.constant 0 : index
    %123 = vector.load %arg8[%c0_61, %c0_62] : memref<16x128xf32, #tpu.memory_space<vmem>>, vector<16x128xf32>
    %124 = vector.shape_cast %122 : vector<16x1xi1> to vector<16x1xi1>
    %125 = vector.broadcast %124 : vector<16x1xi1> to vector<16x128xi1>
    %126 = arith.select %125, %116, %123 : vector<16x128xi1>, vector<16x128xf32>
    %c0_63 = arith.constant 0 : index
    %c0_64 = arith.constant 0 : index
    %127 = vector.load %arg9[%c0_63, %c0_64] : memref<16x128xf32, #tpu.memory_space<vmem>>, vector<16x128xf32>
    %128 = vector.shape_cast %122 : vector<16x1xi1> to vector<16x1xi1>
    %129 = vector.broadcast %128 : vector<16x1xi1> to vector<16x128xi1>
    %130 = arith.select %129, %114, %127 : vector<16x128xi1>, vector<16x128xf32>
    %c0_65 = arith.constant 0 : index
    %c0_66 = arith.constant 0 : index
    %131 = vector.load %arg8[%c0_65, %c0_66] : memref<16x128xf32, #tpu.memory_space<vmem>>, vector<16x128xf32>
    tpu.vector_store %arg8[%c0_65, %c0_66], %126 {strides = array<i32>} : memref<16x128xf32, #tpu.memory_space<vmem>>, vector<16x128xf32>,
    %c0_67 = arith.constant 0 : index
    %c0_68 = arith.constant 0 : index
    %132 = vector.load %arg9[%c0_67, %c0_68] : memref<16x128xf32, #tpu.memory_space<vmem>>, vector<16x128xf32>
    tpu.vector_store %arg9[%c0_67, %c0_68], %130 {strides = array<i32>} : memref<16x128xf32, #tpu.memory_space<vmem>>, vector<16x128xf32>,
    %133 = arith.truncf %126 : vector<16x128xf32> to vector<16x128xbf16>
    %c0_69 = arith.constant 0 : index
    %134 = arith.index_cast %74 : i32 to index
    %c0_70 = arith.constant 0 : index
    %c0_71 = arith.constant 0 : index
    %135 = vector.load %arg6[%c0_69, %134, %c0_70, %c0_71] : memref<1x8x16x128xbf16, #tpu.memory_space<vmem>>, vector<1x1x16x128xbf16>
    %136 = vector.shape_cast %135 : vector<1x1x16x128xbf16> to vector<16x128xbf16>
    %137 = vector.shape_cast %133 : vector<16x128xbf16> to vector<1x1x16x128xbf16>
    tpu.vector_store %arg6[%c0_69, %134, %c0_70, %c0_71], %137 {strides = array<i32>} : memref<1x8x16x128xbf16, #tpu.memory_space<vmem>>, vector<1x1x16x128xbf16>,
    %c2_i32 = arith.constant 2 : i32
    %c1_i32_72 = arith.constant 1 : i32
    %138 = arith.muli %c2_i32, %c1_i32_72 : i32
    %c0_i32_73 = arith.constant 0 : i32
    %139 = arith.addi %c0_i32_73, %138 : i32
    %c0_74 = arith.constant 0 : index
    %140 = arith.index_cast %139 : i32 to index
    %c0_75 = arith.constant 0 : index
    %c0_76 = arith.constant 0 : index
    %141 = vector.load %arg4[%c0_74, %140, %c0_75, %c0_76] : memref<1x8x16x512xbf16, #tpu.memory_space<vmem>>, vector<1x1x16x512xbf16>
    %142 = vector.shape_cast %141 : vector<1x1x16x512xbf16> to vector<16x512xbf16>
    %143 = arith.extf %142 : vector<16x512xbf16> to vector<16x512xf32>
    %c0_77 = arith.constant 0 : index
    %c0_78 = arith.constant 0 : index
    %144 = vector.load %arg8[%c0_77, %c0_78] : memref<16x128xf32, #tpu.memory_space<vmem>>, vector<16x128xf32>
    %145 = arith.truncf %144 : vector<16x128xf32> to vector<16x128xbf16>
    %c0_79 = arith.constant 0 : index
    %c0_80 = arith.constant 0 : index
    %c0_81 = arith.constant 0 : index
    %146 = vector.load %arg5[%c0_79, %c0_80, %c0_81] : memref<1x128x512xbf16, #tpu.memory_space<vmem>>, vector<1x128x512xbf16>
    %147 = vector.shape_cast %146 : vector<1x128x512xbf16> to vector<128x512xbf16>
    %cst_82 = arith.constant dense<0.000000e+00> : vector<16x512xf32>
    %148 = tpu.matmul %145, %147, %cst_82 {dimension_numbers = #tpu.dot_dimension_numbers<[1], [0], [0], [1], [0, 0, 1, 1], [], []>} : vector<16x128xbf16>, vector<128x512xbf16>, vector<16x512xf32> -> vector<16x512xf32>
    %149 = arith.addf %143, %148 : vector<16x512xf32>
    %150 = vector.extract_strided_slice %149 {offsets = [0, 0], sizes = [16, 128], strides = [1, 1]} : vector<16x512xf32> to vector<16x128xf32>
    %cst_83 = arith.constant 5.000000e-01 : f32
    %151 = vector.broadcast %cst_83 : f32 to vector<16x128xf32>
    %152 = arith.mulf %151, %150 : vector<16x128xf32>
    %153 = math.tanh %152 : vector<16x128xf32>
    %cst_84 = arith.constant 1.000000e+00 : f32
    %154 = vector.broadcast %cst_84 : f32 to vector<16x128xf32>
    %155 = arith.addf %154, %153 : vector<16x128xf32>
    %cst_85 = arith.constant 5.000000e-01 : f32
    %156 = vector.broadcast %cst_85 : f32 to vector<16x128xf32>
    %157 = arith.mulf %156, %155 : vector<16x128xf32>
    %158 = vector.extract_strided_slice %149 {offsets = [0, 128], sizes = [16, 128], strides = [1, 1]} : vector<16x512xf32> to vector<16x128xf32>
    %cst_86 = arith.constant 5.000000e-01 : f32
    %159 = vector.broadcast %cst_86 : f32 to vector<16x128xf32>
    %160 = arith.mulf %159, %158 : vector<16x128xf32>
    %161 = math.tanh %160 : vector<16x128xf32>
    %cst_87 = arith.constant 1.000000e+00 : f32
    %162 = vector.broadcast %cst_87 : f32 to vector<16x128xf32>
    %163 = arith.addf %162, %161 : vector<16x128xf32>
    %cst_88 = arith.constant 5.000000e-01 : f32
    %164 = vector.broadcast %cst_88 : f32 to vector<16x128xf32>
    %165 = arith.mulf %164, %163 : vector<16x128xf32>
    %166 = vector.extract_strided_slice %149 {offsets = [0, 256], sizes = [16, 128], strides = [1, 1]} : vector<16x512xf32> to vector<16x128xf32>
    %167 = math.tanh %166 : vector<16x128xf32>
    %168 = vector.extract_strided_slice %149 {offsets = [0, 384], sizes = [16, 128], strides = [1, 1]} : vector<16x512xf32> to vector<16x128xf32>
    %cst_89 = arith.constant 5.000000e-01 : f32
    %169 = vector.broadcast %cst_89 : f32 to vector<16x128xf32>
    %170 = arith.mulf %169, %168 : vector<16x128xf32>
    %171 = math.tanh %170 : vector<16x128xf32>
    %cst_90 = arith.constant 1.000000e+00 : f32
    %172 = vector.broadcast %cst_90 : f32 to vector<16x128xf32>
    %173 = arith.addf %172, %171 : vector<16x128xf32>
    %cst_91 = arith.constant 5.000000e-01 : f32
    %174 = vector.broadcast %cst_91 : f32 to vector<16x128xf32>
    %175 = arith.mulf %174, %173 : vector<16x128xf32>
    %c0_92 = arith.constant 0 : index
    %c0_93 = arith.constant 0 : index
    %176 = vector.load %arg9[%c0_92, %c0_93] : memref<16x128xf32, #tpu.memory_space<vmem>>, vector<16x128xf32>
    %177 = arith.mulf %165, %176 : vector<16x128xf32>
    %178 = arith.mulf %157, %167 : vector<16x128xf32>
    %179 = arith.addf %177, %178 : vector<16x128xf32>
    %180 = math.tanh %179 : vector<16x128xf32>
    %181 = arith.mulf %175, %180 : vector<16x128xf32>
    %182 = arith.addi %7, %139 : i32
    %183 = vector.broadcast %182 : i32 to vector<16x1xi32>
    %184 = arith.cmpi sge, %183, %4 : vector<16x1xi32>
    %185 = vector.broadcast %182 : i32 to vector<16x1xi32>
    %186 = arith.cmpi slt, %185, %6 : vector<16x1xi32>
    %187 = arith.andi %184, %186 : vector<16x1xi1>
    %c0_94 = arith.constant 0 : index
    %c0_95 = arith.constant 0 : index
    %188 = vector.load %arg8[%c0_94, %c0_95] : memref<16x128xf32, #tpu.memory_space<vmem>>, vector<16x128xf32>
    %189 = vector.shape_cast %187 : vector<16x1xi1> to vector<16x1xi1>
    %190 = vector.broadcast %189 : vector<16x1xi1> to vector<16x128xi1>
    %191 = arith.select %190, %181, %188 : vector<16x128xi1>, vector<16x128xf32>
    %c0_96 = arith.constant 0 : index
    %c0_97 = arith.constant 0 : index
    %192 = vector.load %arg9[%c0_96, %c0_97] : memref<16x128xf32, #tpu.memory_space<vmem>>, vector<16x128xf32>
    %193 = vector.shape_cast %187 : vector<16x1xi1> to vector<16x1xi1>
    %194 = vector.broadcast %193 : vector<16x1xi1> to vector<16x128xi1>
    %195 = arith.select %194, %179, %192 : vector<16x128xi1>, vector<16x128xf32>
    %c0_98 = arith.constant 0 : index
    %c0_99 = arith.constant 0 : index
    %196 = vector.load %arg8[%c0_98, %c0_99] : memref<16x128xf32, #tpu.memory_space<vmem>>, vector<16x128xf32>
    tpu.vector_store %arg8[%c0_98, %c0_99], %191 {strides = array<i32>} : memref<16x128xf32, #tpu.memory_space<vmem>>, vector<16x128xf32>,
    %c0_100 = arith.constant 0 : index
    %c0_101 = arith.constant 0 : index
    %197 = vector.load %arg9[%c0_100, %c0_101] : memref<16x128xf32, #tpu.memory_space<vmem>>, vector<16x128xf32>
    tpu.vector_store %arg9[%c0_100, %c0_101], %195 {strides = array<i32>} : memref<16x128xf32, #tpu.memory_space<vmem>>, vector<16x128xf32>,
    %198 = arith.truncf %191 : vector<16x128xf32> to vector<16x128xbf16>
    %c0_102 = arith.constant 0 : index
    %199 = arith.index_cast %139 : i32 to index
    %c0_103 = arith.constant 0 : index
    %c0_104 = arith.constant 0 : index
    %200 = vector.load %arg6[%c0_102, %199, %c0_103, %c0_104] : memref<1x8x16x128xbf16, #tpu.memory_space<vmem>>, vector<1x1x16x128xbf16>
    %201 = vector.shape_cast %200 : vector<1x1x16x128xbf16> to vector<16x128xbf16>
    %202 = vector.shape_cast %198 : vector<16x128xbf16> to vector<1x1x16x128xbf16>
    tpu.vector_store %arg6[%c0_102, %199, %c0_103, %c0_104], %202 {strides = array<i32>} : memref<1x8x16x128xbf16, #tpu.memory_space<vmem>>, vector<1x1x16x128xbf16>,
    %c3_i32 = arith.constant 3 : i32
    %c1_i32_105 = arith.constant 1 : i32
    %203 = arith.muli %c3_i32, %c1_i32_105 : i32
    %c0_i32_106 = arith.constant 0 : i32
    %204 = arith.addi %c0_i32_106, %203 : i32
    %c0_107 = arith.constant 0 : index
    %205 = arith.index_cast %204 : i32 to index
    %c0_108 = arith.constant 0 : index
    %c0_109 = arith.constant 0 : index
    %206 = vector.load %arg4[%c0_107, %205, %c0_108, %c0_109] : memref<1x8x16x512xbf16, #tpu.memory_space<vmem>>, vector<1x1x16x512xbf16>
    %207 = vector.shape_cast %206 : vector<1x1x16x512xbf16> to vector<16x512xbf16>
    %208 = arith.extf %207 : vector<16x512xbf16> to vector<16x512xf32>
    %c0_110 = arith.constant 0 : index
    %c0_111 = arith.constant 0 : index
    %209 = vector.load %arg8[%c0_110, %c0_111] : memref<16x128xf32, #tpu.memory_space<vmem>>, vector<16x128xf32>
    %210 = arith.truncf %209 : vector<16x128xf32> to vector<16x128xbf16>
    %c0_112 = arith.constant 0 : index
    %c0_113 = arith.constant 0 : index
    %c0_114 = arith.constant 0 : index
    %211 = vector.load %arg5[%c0_112, %c0_113, %c0_114] : memref<1x128x512xbf16, #tpu.memory_space<vmem>>, vector<1x128x512xbf16>
    %212 = vector.shape_cast %211 : vector<1x128x512xbf16> to vector<128x512xbf16>
    %cst_115 = arith.constant dense<0.000000e+00> : vector<16x512xf32>
    %213 = tpu.matmul %210, %212, %cst_115 {dimension_numbers = #tpu.dot_dimension_numbers<[1], [0], [0], [1], [0, 0, 1, 1], [], []>} : vector<16x128xbf16>, vector<128x512xbf16>, vector<16x512xf32> -> vector<16x512xf32>
    %214 = arith.addf %208, %213 : vector<16x512xf32>
    %215 = vector.extract_strided_slice %214 {offsets = [0, 0], sizes = [16, 128], strides = [1, 1]} : vector<16x512xf32> to vector<16x128xf32>
    %cst_116 = arith.constant 5.000000e-01 : f32
    %216 = vector.broadcast %cst_116 : f32 to vector<16x128xf32>
    %217 = arith.mulf %216, %215 : vector<16x128xf32>
    %218 = math.tanh %217 : vector<16x128xf32>
    %cst_117 = arith.constant 1.000000e+00 : f32
    %219 = vector.broadcast %cst_117 : f32 to vector<16x128xf32>
    %220 = arith.addf %219, %218 : vector<16x128xf32>
    %cst_118 = arith.constant 5.000000e-01 : f32
    %221 = vector.broadcast %cst_118 : f32 to vector<16x128xf32>
    %222 = arith.mulf %221, %220 : vector<16x128xf32>
    %223 = vector.extract_strided_slice %214 {offsets = [0, 128], sizes = [16, 128], strides = [1, 1]} : vector<16x512xf32> to vector<16x128xf32>
    %cst_119 = arith.constant 5.000000e-01 : f32
    %224 = vector.broadcast %cst_119 : f32 to vector<16x128xf32>
    %225 = arith.mulf %224, %223 : vector<16x128xf32>
    %226 = math.tanh %225 : vector<16x128xf32>
    %cst_120 = arith.constant 1.000000e+00 : f32
    %227 = vector.broadcast %cst_120 : f32 to vector<16x128xf32>
    %228 = arith.addf %227, %226 : vector<16x128xf32>
    %cst_121 = arith.constant 5.000000e-01 : f32
    %229 = vector.broadcast %cst_121 : f32 to vector<16x128xf32>
    %230 = arith.mulf %229, %228 : vector<16x128xf32>
    %231 = vector.extract_strided_slice %214 {offsets = [0, 256], sizes = [16, 128], strides = [1, 1]} : vector<16x512xf32> to vector<16x128xf32>
    %232 = math.tanh %231 : vector<16x128xf32>
    %233 = vector.extract_strided_slice %214 {offsets = [0, 384], sizes = [16, 128], strides = [1, 1]} : vector<16x512xf32> to vector<16x128xf32>
    %cst_122 = arith.constant 5.000000e-01 : f32
    %234 = vector.broadcast %cst_122 : f32 to vector<16x128xf32>
    %235 = arith.mulf %234, %233 : vector<16x128xf32>
    %236 = math.tanh %235 : vector<16x128xf32>
    %cst_123 = arith.constant 1.000000e+00 : f32
    %237 = vector.broadcast %cst_123 : f32 to vector<16x128xf32>
    %238 = arith.addf %237, %236 : vector<16x128xf32>
    %cst_124 = arith.constant 5.000000e-01 : f32
    %239 = vector.broadcast %cst_124 : f32 to vector<16x128xf32>
    %240 = arith.mulf %239, %238 : vector<16x128xf32>
    %c0_125 = arith.constant 0 : index
    %c0_126 = arith.constant 0 : index
    %241 = vector.load %arg9[%c0_125, %c0_126] : memref<16x128xf32, #tpu.memory_space<vmem>>, vector<16x128xf32>
    %242 = arith.mulf %230, %241 : vector<16x128xf32>
    %243 = arith.mulf %222, %232 : vector<16x128xf32>
    %244 = arith.addf %242, %243 : vector<16x128xf32>
    %245 = math.tanh %244 : vector<16x128xf32>
    %246 = arith.mulf %240, %245 : vector<16x128xf32>
    %247 = arith.addi %7, %204 : i32
    %248 = vector.broadcast %247 : i32 to vector<16x1xi32>
    %249 = arith.cmpi sge, %248, %4 : vector<16x1xi32>
    %250 = vector.broadcast %247 : i32 to vector<16x1xi32>
    %251 = arith.cmpi slt, %250, %6 : vector<16x1xi32>
    %252 = arith.andi %249, %251 : vector<16x1xi1>
    %c0_127 = arith.constant 0 : index
    %c0_128 = arith.constant 0 : index
    %253 = vector.load %arg8[%c0_127, %c0_128] : memref<16x128xf32, #tpu.memory_space<vmem>>, vector<16x128xf32>
    %254 = vector.shape_cast %252 : vector<16x1xi1> to vector<16x1xi1>
    %255 = vector.broadcast %254 : vector<16x1xi1> to vector<16x128xi1>
    %256 = arith.select %255, %246, %253 : vector<16x128xi1>, vector<16x128xf32>
    %c0_129 = arith.constant 0 : index
    %c0_130 = arith.constant 0 : index
    %257 = vector.load %arg9[%c0_129, %c0_130] : memref<16x128xf32, #tpu.memory_space<vmem>>, vector<16x128xf32>
    %258 = vector.shape_cast %252 : vector<16x1xi1> to vector<16x1xi1>
    %259 = vector.broadcast %258 : vector<16x1xi1> to vector<16x128xi1>
    %260 = arith.select %259, %244, %257 : vector<16x128xi1>, vector<16x128xf32>
    %c0_131 = arith.constant 0 : index
    %c0_132 = arith.constant 0 : index
    %261 = vector.load %arg8[%c0_131, %c0_132] : memref<16x128xf32, #tpu.memory_space<vmem>>, vector<16x128xf32>
    tpu.vector_store %arg8[%c0_131, %c0_132], %256 {strides = array<i32>} : memref<16x128xf32, #tpu.memory_space<vmem>>, vector<16x128xf32>,
    %c0_133 = arith.constant 0 : index
    %c0_134 = arith.constant 0 : index
    %262 = vector.load %arg9[%c0_133, %c0_134] : memref<16x128xf32, #tpu.memory_space<vmem>>, vector<16x128xf32>
    tpu.vector_store %arg9[%c0_133, %c0_134], %260 {strides = array<i32>} : memref<16x128xf32, #tpu.memory_space<vmem>>, vector<16x128xf32>,
    %263 = arith.truncf %256 : vector<16x128xf32> to vector<16x128xbf16>
    %c0_135 = arith.constant 0 : index
    %264 = arith.index_cast %204 : i32 to index
    %c0_136 = arith.constant 0 : index
    %c0_137 = arith.constant 0 : index
    %265 = vector.load %arg6[%c0_135, %264, %c0_136, %c0_137] : memref<1x8x16x128xbf16, #tpu.memory_space<vmem>>, vector<1x1x16x128xbf16>
    %266 = vector.shape_cast %265 : vector<1x1x16x128xbf16> to vector<16x128xbf16>
    %267 = vector.shape_cast %263 : vector<16x128xbf16> to vector<1x1x16x128xbf16>
    tpu.vector_store %arg6[%c0_135, %264, %c0_136, %c0_137], %267 {strides = array<i32>} : memref<1x8x16x128xbf16, #tpu.memory_space<vmem>>, vector<1x1x16x128xbf16>,
    %c4_i32 = arith.constant 4 : i32
    %c1_i32_138 = arith.constant 1 : i32
    %268 = arith.muli %c4_i32, %c1_i32_138 : i32
    %c0_i32_139 = arith.constant 0 : i32
    %269 = arith.addi %c0_i32_139, %268 : i32
    %c0_140 = arith.constant 0 : index
    %270 = arith.index_cast %269 : i32 to index
    %c0_141 = arith.constant 0 : index
    %c0_142 = arith.constant 0 : index
    %271 = vector.load %arg4[%c0_140, %270, %c0_141, %c0_142] : memref<1x8x16x512xbf16, #tpu.memory_space<vmem>>, vector<1x1x16x512xbf16>
    %272 = vector.shape_cast %271 : vector<1x1x16x512xbf16> to vector<16x512xbf16>
    %273 = arith.extf %272 : vector<16x512xbf16> to vector<16x512xf32>
    %c0_143 = arith.constant 0 : index
    %c0_144 = arith.constant 0 : index
    %274 = vector.load %arg8[%c0_143, %c0_144] : memref<16x128xf32, #tpu.memory_space<vmem>>, vector<16x128xf32>
    %275 = arith.truncf %274 : vector<16x128xf32> to vector<16x128xbf16>
    %c0_145 = arith.constant 0 : index
    %c0_146 = arith.constant 0 : index
    %c0_147 = arith.constant 0 : index
    %276 = vector.load %arg5[%c0_145, %c0_146, %c0_147] : memref<1x128x512xbf16, #tpu.memory_space<vmem>>, vector<1x128x512xbf16>
    %277 = vector.shape_cast %276 : vector<1x128x512xbf16> to vector<128x512xbf16>
    %cst_148 = arith.constant dense<0.000000e+00> : vector<16x512xf32>
    %278 = tpu.matmul %275, %277, %cst_148 {dimension_numbers = #tpu.dot_dimension_numbers<[1], [0], [0], [1], [0, 0, 1, 1], [], []>} : vector<16x128xbf16>, vector<128x512xbf16>, vector<16x512xf32> -> vector<16x512xf32>
    %279 = arith.addf %273, %278 : vector<16x512xf32>
    %280 = vector.extract_strided_slice %279 {offsets = [0, 0], sizes = [16, 128], strides = [1, 1]} : vector<16x512xf32> to vector<16x128xf32>
    %cst_149 = arith.constant 5.000000e-01 : f32
    %281 = vector.broadcast %cst_149 : f32 to vector<16x128xf32>
    %282 = arith.mulf %281, %280 : vector<16x128xf32>
    %283 = math.tanh %282 : vector<16x128xf32>
    %cst_150 = arith.constant 1.000000e+00 : f32
    %284 = vector.broadcast %cst_150 : f32 to vector<16x128xf32>
    %285 = arith.addf %284, %283 : vector<16x128xf32>
    %cst_151 = arith.constant 5.000000e-01 : f32
    %286 = vector.broadcast %cst_151 : f32 to vector<16x128xf32>
    %287 = arith.mulf %286, %285 : vector<16x128xf32>
    %288 = vector.extract_strided_slice %279 {offsets = [0, 128], sizes = [16, 128], strides = [1, 1]} : vector<16x512xf32> to vector<16x128xf32>
    %cst_152 = arith.constant 5.000000e-01 : f32
    %289 = vector.broadcast %cst_152 : f32 to vector<16x128xf32>
    %290 = arith.mulf %289, %288 : vector<16x128xf32>
    %291 = math.tanh %290 : vector<16x128xf32>
    %cst_153 = arith.constant 1.000000e+00 : f32
    %292 = vector.broadcast %cst_153 : f32 to vector<16x128xf32>
    %293 = arith.addf %292, %291 : vector<16x128xf32>
    %cst_154 = arith.constant 5.000000e-01 : f32
    %294 = vector.broadcast %cst_154 : f32 to vector<16x128xf32>
    %295 = arith.mulf %294, %293 : vector<16x128xf32>
    %296 = vector.extract_strided_slice %279 {offsets = [0, 256], sizes = [16, 128], strides = [1, 1]} : vector<16x512xf32> to vector<16x128xf32>
    %297 = math.tanh %296 : vector<16x128xf32>
    %298 = vector.extract_strided_slice %279 {offsets = [0, 384], sizes = [16, 128], strides = [1, 1]} : vector<16x512xf32> to vector<16x128xf32>
    %cst_155 = arith.constant 5.000000e-01 : f32
    %299 = vector.broadcast %cst_155 : f32 to vector<16x128xf32>
    %300 = arith.mulf %299, %298 : vector<16x128xf32>
    %301 = math.tanh %300 : vector<16x128xf32>
    %cst_156 = arith.constant 1.000000e+00 : f32
    %302 = vector.broadcast %cst_156 : f32 to vector<16x128xf32>
    %303 = arith.addf %302, %301 : vector<16x128xf32>
    %cst_157 = arith.constant 5.000000e-01 : f32
    %304 = vector.broadcast %cst_157 : f32 to vector<16x128xf32>
    %305 = arith.mulf %304, %303 : vector<16x128xf32>
    %c0_158 = arith.constant 0 : index
    %c0_159 = arith.constant 0 : index
    %306 = vector.load %arg9[%c0_158, %c0_159] : memref<16x128xf32, #tpu.memory_space<vmem>>, vector<16x128xf32>
    %307 = arith.mulf %295, %306 : vector<16x128xf32>
    %308 = arith.mulf %287, %297 : vector<16x128xf32>
    %309 = arith.addf %307, %308 : vector<16x128xf32>
    %310 = math.tanh %309 : vector<16x128xf32>
    %311 = arith.mulf %305, %310 : vector<16x128xf32>
    %312 = arith.addi %7, %269 : i32
    %313 = vector.broadcast %312 : i32 to vector<16x1xi32>
    %314 = arith.cmpi sge, %313, %4 : vector<16x1xi32>
    %315 = vector.broadcast %312 : i32 to vector<16x1xi32>
    %316 = arith.cmpi slt, %315, %6 : vector<16x1xi32>
    %317 = arith.andi %314, %316 : vector<16x1xi1>
    %c0_160 = arith.constant 0 : index
    %c0_161 = arith.constant 0 : index
    %318 = vector.load %arg8[%c0_160, %c0_161] : memref<16x128xf32, #tpu.memory_space<vmem>>, vector<16x128xf32>
    %319 = vector.shape_cast %317 : vector<16x1xi1> to vector<16x1xi1>
    %320 = vector.broadcast %319 : vector<16x1xi1> to vector<16x128xi1>
    %321 = arith.select %320, %311, %318 : vector<16x128xi1>, vector<16x128xf32>
    %c0_162 = arith.constant 0 : index
    %c0_163 = arith.constant 0 : index
    %322 = vector.load %arg9[%c0_162, %c0_163] : memref<16x128xf32, #tpu.memory_space<vmem>>, vector<16x128xf32>
    %323 = vector.shape_cast %317 : vector<16x1xi1> to vector<16x1xi1>
    %324 = vector.broadcast %323 : vector<16x1xi1> to vector<16x128xi1>
    %325 = arith.select %324, %309, %322 : vector<16x128xi1>, vector<16x128xf32>
    %c0_164 = arith.constant 0 : index
    %c0_165 = arith.constant 0 : index
    %326 = vector.load %arg8[%c0_164, %c0_165] : memref<16x128xf32, #tpu.memory_space<vmem>>, vector<16x128xf32>
    tpu.vector_store %arg8[%c0_164, %c0_165], %321 {strides = array<i32>} : memref<16x128xf32, #tpu.memory_space<vmem>>, vector<16x128xf32>,
    %c0_166 = arith.constant 0 : index
    %c0_167 = arith.constant 0 : index
    %327 = vector.load %arg9[%c0_166, %c0_167] : memref<16x128xf32, #tpu.memory_space<vmem>>, vector<16x128xf32>
    tpu.vector_store %arg9[%c0_166, %c0_167], %325 {strides = array<i32>} : memref<16x128xf32, #tpu.memory_space<vmem>>, vector<16x128xf32>,
    %328 = arith.truncf %321 : vector<16x128xf32> to vector<16x128xbf16>
    %c0_168 = arith.constant 0 : index
    %329 = arith.index_cast %269 : i32 to index
    %c0_169 = arith.constant 0 : index
    %c0_170 = arith.constant 0 : index
    %330 = vector.load %arg6[%c0_168, %329, %c0_169, %c0_170] : memref<1x8x16x128xbf16, #tpu.memory_space<vmem>>, vector<1x1x16x128xbf16>
    %331 = vector.shape_cast %330 : vector<1x1x16x128xbf16> to vector<16x128xbf16>
    %332 = vector.shape_cast %328 : vector<16x128xbf16> to vector<1x1x16x128xbf16>
    tpu.vector_store %arg6[%c0_168, %329, %c0_169, %c0_170], %332 {strides = array<i32>} : memref<1x8x16x128xbf16, #tpu.memory_space<vmem>>, vector<1x1x16x128xbf16>,
    %c5_i32 = arith.constant 5 : i32
    %c1_i32_171 = arith.constant 1 : i32
    %333 = arith.muli %c5_i32, %c1_i32_171 : i32
    %c0_i32_172 = arith.constant 0 : i32
    %334 = arith.addi %c0_i32_172, %333 : i32
    %c0_173 = arith.constant 0 : index
    %335 = arith.index_cast %334 : i32 to index
    %c0_174 = arith.constant 0 : index
    %c0_175 = arith.constant 0 : index
    %336 = vector.load %arg4[%c0_173, %335, %c0_174, %c0_175] : memref<1x8x16x512xbf16, #tpu.memory_space<vmem>>, vector<1x1x16x512xbf16>
    %337 = vector.shape_cast %336 : vector<1x1x16x512xbf16> to vector<16x512xbf16>
    %338 = arith.extf %337 : vector<16x512xbf16> to vector<16x512xf32>
    %c0_176 = arith.constant 0 : index
    %c0_177 = arith.constant 0 : index
    %339 = vector.load %arg8[%c0_176, %c0_177] : memref<16x128xf32, #tpu.memory_space<vmem>>, vector<16x128xf32>
    %340 = arith.truncf %339 : vector<16x128xf32> to vector<16x128xbf16>
    %c0_178 = arith.constant 0 : index
    %c0_179 = arith.constant 0 : index
    %c0_180 = arith.constant 0 : index
    %341 = vector.load %arg5[%c0_178, %c0_179, %c0_180] : memref<1x128x512xbf16, #tpu.memory_space<vmem>>, vector<1x128x512xbf16>
    %342 = vector.shape_cast %341 : vector<1x128x512xbf16> to vector<128x512xbf16>
    %cst_181 = arith.constant dense<0.000000e+00> : vector<16x512xf32>
    %343 = tpu.matmul %340, %342, %cst_181 {dimension_numbers = #tpu.dot_dimension_numbers<[1], [0], [0], [1], [0, 0, 1, 1], [], []>} : vector<16x128xbf16>, vector<128x512xbf16>, vector<16x512xf32> -> vector<16x512xf32>
    %344 = arith.addf %338, %343 : vector<16x512xf32>
    %345 = vector.extract_strided_slice %344 {offsets = [0, 0], sizes = [16, 128], strides = [1, 1]} : vector<16x512xf32> to vector<16x128xf32>
    %cst_182 = arith.constant 5.000000e-01 : f32
    %346 = vector.broadcast %cst_182 : f32 to vector<16x128xf32>
    %347 = arith.mulf %346, %345 : vector<16x128xf32>
    %348 = math.tanh %347 : vector<16x128xf32>
    %cst_183 = arith.constant 1.000000e+00 : f32
    %349 = vector.broadcast %cst_183 : f32 to vector<16x128xf32>
    %350 = arith.addf %349, %348 : vector<16x128xf32>
    %cst_184 = arith.constant 5.000000e-01 : f32
    %351 = vector.broadcast %cst_184 : f32 to vector<16x128xf32>
    %352 = arith.mulf %351, %350 : vector<16x128xf32>
    %353 = vector.extract_strided_slice %344 {offsets = [0, 128], sizes = [16, 128], strides = [1, 1]} : vector<16x512xf32> to vector<16x128xf32>
    %cst_185 = arith.constant 5.000000e-01 : f32
    %354 = vector.broadcast %cst_185 : f32 to vector<16x128xf32>
    %355 = arith.mulf %354, %353 : vector<16x128xf32>
    %356 = math.tanh %355 : vector<16x128xf32>
    %cst_186 = arith.constant 1.000000e+00 : f32
    %357 = vector.broadcast %cst_186 : f32 to vector<16x128xf32>
    %358 = arith.addf %357, %356 : vector<16x128xf32>
    %cst_187 = arith.constant 5.000000e-01 : f32
    %359 = vector.broadcast %cst_187 : f32 to vector<16x128xf32>
    %360 = arith.mulf %359, %358 : vector<16x128xf32>
    %361 = vector.extract_strided_slice %344 {offsets = [0, 256], sizes = [16, 128], strides = [1, 1]} : vector<16x512xf32> to vector<16x128xf32>
    %362 = math.tanh %361 : vector<16x128xf32>
    %363 = vector.extract_strided_slice %344 {offsets = [0, 384], sizes = [16, 128], strides = [1, 1]} : vector<16x512xf32> to vector<16x128xf32>
    %cst_188 = arith.constant 5.000000e-01 : f32
    %364 = vector.broadcast %cst_188 : f32 to vector<16x128xf32>
    %365 = arith.mulf %364, %363 : vector<16x128xf32>
    %366 = math.tanh %365 : vector<16x128xf32>
    %cst_189 = arith.constant 1.000000e+00 : f32
    %367 = vector.broadcast %cst_189 : f32 to vector<16x128xf32>
    %368 = arith.addf %367, %366 : vector<16x128xf32>
    %cst_190 = arith.constant 5.000000e-01 : f32
    %369 = vector.broadcast %cst_190 : f32 to vector<16x128xf32>
    %370 = arith.mulf %369, %368 : vector<16x128xf32>
    %c0_191 = arith.constant 0 : index
    %c0_192 = arith.constant 0 : index
    %371 = vector.load %arg9[%c0_191, %c0_192] : memref<16x128xf32, #tpu.memory_space<vmem>>, vector<16x128xf32>
    %372 = arith.mulf %360, %371 : vector<16x128xf32>
    %373 = arith.mulf %352, %362 : vector<16x128xf32>
    %374 = arith.addf %372, %373 : vector<16x128xf32>
    %375 = math.tanh %374 : vector<16x128xf32>
    %376 = arith.mulf %370, %375 : vector<16x128xf32>
    %377 = arith.addi %7, %334 : i32
    %378 = vector.broadcast %377 : i32 to vector<16x1xi32>
    %379 = arith.cmpi sge, %378, %4 : vector<16x1xi32>
    %380 = vector.broadcast %377 : i32 to vector<16x1xi32>
    %381 = arith.cmpi slt, %380, %6 : vector<16x1xi32>
    %382 = arith.andi %379, %381 : vector<16x1xi1>
    %c0_193 = arith.constant 0 : index
    %c0_194 = arith.constant 0 : index
    %383 = vector.load %arg8[%c0_193, %c0_194] : memref<16x128xf32, #tpu.memory_space<vmem>>, vector<16x128xf32>
    %384 = vector.shape_cast %382 : vector<16x1xi1> to vector<16x1xi1>
    %385 = vector.broadcast %384 : vector<16x1xi1> to vector<16x128xi1>
    %386 = arith.select %385, %376, %383 : vector<16x128xi1>, vector<16x128xf32>
    %c0_195 = arith.constant 0 : index
    %c0_196 = arith.constant 0 : index
    %387 = vector.load %arg9[%c0_195, %c0_196] : memref<16x128xf32, #tpu.memory_space<vmem>>, vector<16x128xf32>
    %388 = vector.shape_cast %382 : vector<16x1xi1> to vector<16x1xi1>
    %389 = vector.broadcast %388 : vector<16x1xi1> to vector<16x128xi1>
    %390 = arith.select %389, %374, %387 : vector<16x128xi1>, vector<16x128xf32>
    %c0_197 = arith.constant 0 : index
    %c0_198 = arith.constant 0 : index
    %391 = vector.load %arg8[%c0_197, %c0_198] : memref<16x128xf32, #tpu.memory_space<vmem>>, vector<16x128xf32>
    tpu.vector_store %arg8[%c0_197, %c0_198], %386 {strides = array<i32>} : memref<16x128xf32, #tpu.memory_space<vmem>>, vector<16x128xf32>,
    %c0_199 = arith.constant 0 : index
    %c0_200 = arith.constant 0 : index
    %392 = vector.load %arg9[%c0_199, %c0_200] : memref<16x128xf32, #tpu.memory_space<vmem>>, vector<16x128xf32>
    tpu.vector_store %arg9[%c0_199, %c0_200], %390 {strides = array<i32>} : memref<16x128xf32, #tpu.memory_space<vmem>>, vector<16x128xf32>,
    %393 = arith.truncf %386 : vector<16x128xf32> to vector<16x128xbf16>
    %c0_201 = arith.constant 0 : index
    %394 = arith.index_cast %334 : i32 to index
    %c0_202 = arith.constant 0 : index
    %c0_203 = arith.constant 0 : index
    %395 = vector.load %arg6[%c0_201, %394, %c0_202, %c0_203] : memref<1x8x16x128xbf16, #tpu.memory_space<vmem>>, vector<1x1x16x128xbf16>
    %396 = vector.shape_cast %395 : vector<1x1x16x128xbf16> to vector<16x128xbf16>
    %397 = vector.shape_cast %393 : vector<16x128xbf16> to vector<1x1x16x128xbf16>
    tpu.vector_store %arg6[%c0_201, %394, %c0_202, %c0_203], %397 {strides = array<i32>} : memref<1x8x16x128xbf16, #tpu.memory_space<vmem>>, vector<1x1x16x128xbf16>,
    %c6_i32 = arith.constant 6 : i32
    %c1_i32_204 = arith.constant 1 : i32
    %398 = arith.muli %c6_i32, %c1_i32_204 : i32
    %c0_i32_205 = arith.constant 0 : i32
    %399 = arith.addi %c0_i32_205, %398 : i32
    %c0_206 = arith.constant 0 : index
    %400 = arith.index_cast %399 : i32 to index
    %c0_207 = arith.constant 0 : index
    %c0_208 = arith.constant 0 : index
    %401 = vector.load %arg4[%c0_206, %400, %c0_207, %c0_208] : memref<1x8x16x512xbf16, #tpu.memory_space<vmem>>, vector<1x1x16x512xbf16>
    %402 = vector.shape_cast %401 : vector<1x1x16x512xbf16> to vector<16x512xbf16>
    %403 = arith.extf %402 : vector<16x512xbf16> to vector<16x512xf32>
    %c0_209 = arith.constant 0 : index
    %c0_210 = arith.constant 0 : index
    %404 = vector.load %arg8[%c0_209, %c0_210] : memref<16x128xf32, #tpu.memory_space<vmem>>, vector<16x128xf32>
    %405 = arith.truncf %404 : vector<16x128xf32> to vector<16x128xbf16>
    %c0_211 = arith.constant 0 : index
    %c0_212 = arith.constant 0 : index
    %c0_213 = arith.constant 0 : index
    %406 = vector.load %arg5[%c0_211, %c0_212, %c0_213] : memref<1x128x512xbf16, #tpu.memory_space<vmem>>, vector<1x128x512xbf16>
    %407 = vector.shape_cast %406 : vector<1x128x512xbf16> to vector<128x512xbf16>
    %cst_214 = arith.constant dense<0.000000e+00> : vector<16x512xf32>
    %408 = tpu.matmul %405, %407, %cst_214 {dimension_numbers = #tpu.dot_dimension_numbers<[1], [0], [0], [1], [0, 0, 1, 1], [], []>} : vector<16x128xbf16>, vector<128x512xbf16>, vector<16x512xf32> -> vector<16x512xf32>
    %409 = arith.addf %403, %408 : vector<16x512xf32>
    %410 = vector.extract_strided_slice %409 {offsets = [0, 0], sizes = [16, 128], strides = [1, 1]} : vector<16x512xf32> to vector<16x128xf32>
    %cst_215 = arith.constant 5.000000e-01 : f32
    %411 = vector.broadcast %cst_215 : f32 to vector<16x128xf32>
    %412 = arith.mulf %411, %410 : vector<16x128xf32>
    %413 = math.tanh %412 : vector<16x128xf32>
    %cst_216 = arith.constant 1.000000e+00 : f32
    %414 = vector.broadcast %cst_216 : f32 to vector<16x128xf32>
    %415 = arith.addf %414, %413 : vector<16x128xf32>
    %cst_217 = arith.constant 5.000000e-01 : f32
    %416 = vector.broadcast %cst_217 : f32 to vector<16x128xf32>
    %417 = arith.mulf %416, %415 : vector<16x128xf32>
    %418 = vector.extract_strided_slice %409 {offsets = [0, 128], sizes = [16, 128], strides = [1, 1]} : vector<16x512xf32> to vector<16x128xf32>
    %cst_218 = arith.constant 5.000000e-01 : f32
    %419 = vector.broadcast %cst_218 : f32 to vector<16x128xf32>
    %420 = arith.mulf %419, %418 : vector<16x128xf32>
    %421 = math.tanh %420 : vector<16x128xf32>
    %cst_219 = arith.constant 1.000000e+00 : f32
    %422 = vector.broadcast %cst_219 : f32 to vector<16x128xf32>
    %423 = arith.addf %422, %421 : vector<16x128xf32>
    %cst_220 = arith.constant 5.000000e-01 : f32
    %424 = vector.broadcast %cst_220 : f32 to vector<16x128xf32>
    %425 = arith.mulf %424, %423 : vector<16x128xf32>
    %426 = vector.extract_strided_slice %409 {offsets = [0, 256], sizes = [16, 128], strides = [1, 1]} : vector<16x512xf32> to vector<16x128xf32>
    %427 = math.tanh %426 : vector<16x128xf32>
    %428 = vector.extract_strided_slice %409 {offsets = [0, 384], sizes = [16, 128], strides = [1, 1]} : vector<16x512xf32> to vector<16x128xf32>
    %cst_221 = arith.constant 5.000000e-01 : f32
    %429 = vector.broadcast %cst_221 : f32 to vector<16x128xf32>
    %430 = arith.mulf %429, %428 : vector<16x128xf32>
    %431 = math.tanh %430 : vector<16x128xf32>
    %cst_222 = arith.constant 1.000000e+00 : f32
    %432 = vector.broadcast %cst_222 : f32 to vector<16x128xf32>
    %433 = arith.addf %432, %431 : vector<16x128xf32>
    %cst_223 = arith.constant 5.000000e-01 : f32
    %434 = vector.broadcast %cst_223 : f32 to vector<16x128xf32>
    %435 = arith.mulf %434, %433 : vector<16x128xf32>
    %c0_224 = arith.constant 0 : index
    %c0_225 = arith.constant 0 : index
    %436 = vector.load %arg9[%c0_224, %c0_225] : memref<16x128xf32, #tpu.memory_space<vmem>>, vector<16x128xf32>
    %437 = arith.mulf %425, %436 : vector<16x128xf32>
    %438 = arith.mulf %417, %427 : vector<16x128xf32>
    %439 = arith.addf %437, %438 : vector<16x128xf32>
    %440 = math.tanh %439 : vector<16x128xf32>
    %441 = arith.mulf %435, %440 : vector<16x128xf32>
    %442 = arith.addi %7, %399 : i32
    %443 = vector.broadcast %442 : i32 to vector<16x1xi32>
    %444 = arith.cmpi sge, %443, %4 : vector<16x1xi32>
    %445 = vector.broadcast %442 : i32 to vector<16x1xi32>
    %446 = arith.cmpi slt, %445, %6 : vector<16x1xi32>
    %447 = arith.andi %444, %446 : vector<16x1xi1>
    %c0_226 = arith.constant 0 : index
    %c0_227 = arith.constant 0 : index
    %448 = vector.load %arg8[%c0_226, %c0_227] : memref<16x128xf32, #tpu.memory_space<vmem>>, vector<16x128xf32>
    %449 = vector.shape_cast %447 : vector<16x1xi1> to vector<16x1xi1>
    %450 = vector.broadcast %449 : vector<16x1xi1> to vector<16x128xi1>
    %451 = arith.select %450, %441, %448 : vector<16x128xi1>, vector<16x128xf32>
    %c0_228 = arith.constant 0 : index
    %c0_229 = arith.constant 0 : index
    %452 = vector.load %arg9[%c0_228, %c0_229] : memref<16x128xf32, #tpu.memory_space<vmem>>, vector<16x128xf32>
    %453 = vector.shape_cast %447 : vector<16x1xi1> to vector<16x1xi1>
    %454 = vector.broadcast %453 : vector<16x1xi1> to vector<16x128xi1>
    %455 = arith.select %454, %439, %452 : vector<16x128xi1>, vector<16x128xf32>
    %c0_230 = arith.constant 0 : index
    %c0_231 = arith.constant 0 : index
    %456 = vector.load %arg8[%c0_230, %c0_231] : memref<16x128xf32, #tpu.memory_space<vmem>>, vector<16x128xf32>
    tpu.vector_store %arg8[%c0_230, %c0_231], %451 {strides = array<i32>} : memref<16x128xf32, #tpu.memory_space<vmem>>, vector<16x128xf32>,
    %c0_232 = arith.constant 0 : index
    %c0_233 = arith.constant 0 : index
    %457 = vector.load %arg9[%c0_232, %c0_233] : memref<16x128xf32, #tpu.memory_space<vmem>>, vector<16x128xf32>
    tpu.vector_store %arg9[%c0_232, %c0_233], %455 {strides = array<i32>} : memref<16x128xf32, #tpu.memory_space<vmem>>, vector<16x128xf32>,
    %458 = arith.truncf %451 : vector<16x128xf32> to vector<16x128xbf16>
    %c0_234 = arith.constant 0 : index
    %459 = arith.index_cast %399 : i32 to index
    %c0_235 = arith.constant 0 : index
    %c0_236 = arith.constant 0 : index
    %460 = vector.load %arg6[%c0_234, %459, %c0_235, %c0_236] : memref<1x8x16x128xbf16, #tpu.memory_space<vmem>>, vector<1x1x16x128xbf16>
    %461 = vector.shape_cast %460 : vector<1x1x16x128xbf16> to vector<16x128xbf16>
    %462 = vector.shape_cast %458 : vector<16x128xbf16> to vector<1x1x16x128xbf16>
    tpu.vector_store %arg6[%c0_234, %459, %c0_235, %c0_236], %462 {strides = array<i32>} : memref<1x8x16x128xbf16, #tpu.memory_space<vmem>>, vector<1x1x16x128xbf16>,
    %c7_i32 = arith.constant 7 : i32
    %c1_i32_237 = arith.constant 1 : i32
    %463 = arith.muli %c7_i32, %c1_i32_237 : i32
    %c0_i32_238 = arith.constant 0 : i32
    %464 = arith.addi %c0_i32_238, %463 : i32
    %c0_239 = arith.constant 0 : index
    %465 = arith.index_cast %464 : i32 to index
    %c0_240 = arith.constant 0 : index
    %c0_241 = arith.constant 0 : index
    %466 = vector.load %arg4[%c0_239, %465, %c0_240, %c0_241] : memref<1x8x16x512xbf16, #tpu.memory_space<vmem>>, vector<1x1x16x512xbf16>
    %467 = vector.shape_cast %466 : vector<1x1x16x512xbf16> to vector<16x512xbf16>
    %468 = arith.extf %467 : vector<16x512xbf16> to vector<16x512xf32>
    %c0_242 = arith.constant 0 : index
    %c0_243 = arith.constant 0 : index
    %469 = vector.load %arg8[%c0_242, %c0_243] : memref<16x128xf32, #tpu.memory_space<vmem>>, vector<16x128xf32>
    %470 = arith.truncf %469 : vector<16x128xf32> to vector<16x128xbf16>
    %c0_244 = arith.constant 0 : index
    %c0_245 = arith.constant 0 : index
    %c0_246 = arith.constant 0 : index
    %471 = vector.load %arg5[%c0_244, %c0_245, %c0_246] : memref<1x128x512xbf16, #tpu.memory_space<vmem>>, vector<1x128x512xbf16>
    %472 = vector.shape_cast %471 : vector<1x128x512xbf16> to vector<128x512xbf16>
    %cst_247 = arith.constant dense<0.000000e+00> : vector<16x512xf32>
    %473 = tpu.matmul %470, %472, %cst_247 {dimension_numbers = #tpu.dot_dimension_numbers<[1], [0], [0], [1], [0, 0, 1, 1], [], []>} : vector<16x128xbf16>, vector<128x512xbf16>, vector<16x512xf32> -> vector<16x512xf32>
    %474 = arith.addf %468, %473 : vector<16x512xf32>
    %475 = vector.extract_strided_slice %474 {offsets = [0, 0], sizes = [16, 128], strides = [1, 1]} : vector<16x512xf32> to vector<16x128xf32>
    %cst_248 = arith.constant 5.000000e-01 : f32
    %476 = vector.broadcast %cst_248 : f32 to vector<16x128xf32>
    %477 = arith.mulf %476, %475 : vector<16x128xf32>
    %478 = math.tanh %477 : vector<16x128xf32>
    %cst_249 = arith.constant 1.000000e+00 : f32
    %479 = vector.broadcast %cst_249 : f32 to vector<16x128xf32>
    %480 = arith.addf %479, %478 : vector<16x128xf32>
    %cst_250 = arith.constant 5.000000e-01 : f32
    %481 = vector.broadcast %cst_250 : f32 to vector<16x128xf32>
    %482 = arith.mulf %481, %480 : vector<16x128xf32>
    %483 = vector.extract_strided_slice %474 {offsets = [0, 128], sizes = [16, 128], strides = [1, 1]} : vector<16x512xf32> to vector<16x128xf32>
    %cst_251 = arith.constant 5.000000e-01 : f32
    %484 = vector.broadcast %cst_251 : f32 to vector<16x128xf32>
    %485 = arith.mulf %484, %483 : vector<16x128xf32>
    %486 = math.tanh %485 : vector<16x128xf32>
    %cst_252 = arith.constant 1.000000e+00 : f32
    %487 = vector.broadcast %cst_252 : f32 to vector<16x128xf32>
    %488 = arith.addf %487, %486 : vector<16x128xf32>
    %cst_253 = arith.constant 5.000000e-01 : f32
    %489 = vector.broadcast %cst_253 : f32 to vector<16x128xf32>
    %490 = arith.mulf %489, %488 : vector<16x128xf32>
    %491 = vector.extract_strided_slice %474 {offsets = [0, 256], sizes = [16, 128], strides = [1, 1]} : vector<16x512xf32> to vector<16x128xf32>
    %492 = math.tanh %491 : vector<16x128xf32>
    %493 = vector.extract_strided_slice %474 {offsets = [0, 384], sizes = [16, 128], strides = [1, 1]} : vector<16x512xf32> to vector<16x128xf32>
    %cst_254 = arith.constant 5.000000e-01 : f32
    %494 = vector.broadcast %cst_254 : f32 to vector<16x128xf32>
    %495 = arith.mulf %494, %493 : vector<16x128xf32>
    %496 = math.tanh %495 : vector<16x128xf32>
    %cst_255 = arith.constant 1.000000e+00 : f32
    %497 = vector.broadcast %cst_255 : f32 to vector<16x128xf32>
    %498 = arith.addf %497, %496 : vector<16x128xf32>
    %cst_256 = arith.constant 5.000000e-01 : f32
    %499 = vector.broadcast %cst_256 : f32 to vector<16x128xf32>
    %500 = arith.mulf %499, %498 : vector<16x128xf32>
    %c0_257 = arith.constant 0 : index
    %c0_258 = arith.constant 0 : index
    %501 = vector.load %arg9[%c0_257, %c0_258] : memref<16x128xf32, #tpu.memory_space<vmem>>, vector<16x128xf32>
    %502 = arith.mulf %490, %501 : vector<16x128xf32>
    %503 = arith.mulf %482, %492 : vector<16x128xf32>
    %504 = arith.addf %502, %503 : vector<16x128xf32>
    %505 = math.tanh %504 : vector<16x128xf32>
    %506 = arith.mulf %500, %505 : vector<16x128xf32>
    %507 = arith.addi %7, %464 : i32
    %508 = vector.broadcast %507 : i32 to vector<16x1xi32>
    %509 = arith.cmpi sge, %508, %4 : vector<16x1xi32>
    %510 = vector.broadcast %507 : i32 to vector<16x1xi32>
    %511 = arith.cmpi slt, %510, %6 : vector<16x1xi32>
    %512 = arith.andi %509, %511 : vector<16x1xi1>
    %c0_259 = arith.constant 0 : index
    %c0_260 = arith.constant 0 : index
    %513 = vector.load %arg8[%c0_259, %c0_260] : memref<16x128xf32, #tpu.memory_space<vmem>>, vector<16x128xf32>
    %514 = vector.shape_cast %512 : vector<16x1xi1> to vector<16x1xi1>
    %515 = vector.broadcast %514 : vector<16x1xi1> to vector<16x128xi1>
    %516 = arith.select %515, %506, %513 : vector<16x128xi1>, vector<16x128xf32>
    %c0_261 = arith.constant 0 : index
    %c0_262 = arith.constant 0 : index
    %517 = vector.load %arg9[%c0_261, %c0_262] : memref<16x128xf32, #tpu.memory_space<vmem>>, vector<16x128xf32>
    %518 = vector.shape_cast %512 : vector<16x1xi1> to vector<16x1xi1>
    %519 = vector.broadcast %518 : vector<16x1xi1> to vector<16x128xi1>
    %520 = arith.select %519, %504, %517 : vector<16x128xi1>, vector<16x128xf32>
    %c0_263 = arith.constant 0 : index
    %c0_264 = arith.constant 0 : index
    %521 = vector.load %arg8[%c0_263, %c0_264] : memref<16x128xf32, #tpu.memory_space<vmem>>, vector<16x128xf32>
    tpu.vector_store %arg8[%c0_263, %c0_264], %516 {strides = array<i32>} : memref<16x128xf32, #tpu.memory_space<vmem>>, vector<16x128xf32>,
    %c0_265 = arith.constant 0 : index
    %c0_266 = arith.constant 0 : index
    %522 = vector.load %arg9[%c0_265, %c0_266] : memref<16x128xf32, #tpu.memory_space<vmem>>, vector<16x128xf32>
    tpu.vector_store %arg9[%c0_265, %c0_266], %520 {strides = array<i32>} : memref<16x128xf32, #tpu.memory_space<vmem>>, vector<16x128xf32>,
    %523 = arith.truncf %516 : vector<16x128xf32> to vector<16x128xbf16>
    %c0_267 = arith.constant 0 : index
    %524 = arith.index_cast %464 : i32 to index
    %c0_268 = arith.constant 0 : index
    %c0_269 = arith.constant 0 : index
    %525 = vector.load %arg6[%c0_267, %524, %c0_268, %c0_269] : memref<1x8x16x128xbf16, #tpu.memory_space<vmem>>, vector<1x1x16x128xbf16>
    %526 = vector.shape_cast %525 : vector<1x1x16x128xbf16> to vector<16x128xbf16>
    %527 = vector.shape_cast %523 : vector<16x128xbf16> to vector<1x1x16x128xbf16>
    tpu.vector_store %arg6[%c0_267, %524, %c0_268, %c0_269], %527 {strides = array<i32>} : memref<1x8x16x128xbf16, #tpu.memory_space<vmem>>, vector<1x1x16x128xbf16>,
    %c8_i32_270 = arith.constant 8 : i32
    %c0_271 = arith.constant 0 : index
    %c0_272 = arith.constant 0 : index
    %528 = vector.load %arg8[%c0_271, %c0_272] : memref<16x128xf32, #tpu.memory_space<vmem>>, vector<16x128xf32>
    %c0_273 = arith.constant 0 : index
    %c0_274 = arith.constant 0 : index
    %c0_275 = arith.constant 0 : index
    %529 = vector.load %arg7[%c0_273, %c0_274, %c0_275] : memref<1x16x128xf32, #tpu.memory_space<vmem>>, vector<1x16x128xf32>
    %530 = vector.shape_cast %529 : vector<1x16x128xf32> to vector<16x128xf32>
    %531 = vector.shape_cast %528 : vector<16x128xf32> to vector<1x16x128xf32>
    tpu.vector_store %arg7[%c0_273, %c0_274, %c0_275], %531 {strides = array<i32>} : memref<1x16x128xf32, #tpu.memory_space<vmem>>, vector<1x16x128xf32>,
    return
  }
  func.func @transform_0(%arg0: i32, %arg1: i32) -> (i32, i32, i32) {
    %c0_i32 = arith.constant 0 : i32
    %c0_i32_0 = arith.constant 0 : i32
    %c0_i32_1 = arith.constant 0 : i32
    return %arg0, %c0_i32, %c0_i32_0 : i32, i32, i32
  }
  func.func @transform_1(%arg0: i32, %arg1: i32) -> (i32, i32, i32) {
    %c0_i32 = arith.constant 0 : i32
    %c0_i32_0 = arith.constant 0 : i32
    %c0_i32_1 = arith.constant 0 : i32
    return %arg0, %c0_i32, %c0_i32_0 : i32, i32, i32
  }
  func.func @transform_2(%arg0: i32, %arg1: i32) -> (i32, i32, i32, i32) {
    %c0_i32 = arith.constant 0 : i32
    %c0_i32_0 = arith.constant 0 : i32
    %c0_i32_1 = arith.constant 0 : i32
    return %arg0, %arg1, %c0_i32, %c0_i32_0 : i32, i32, i32, i32
  }
  func.func @transform_3(%arg0: i32, %arg1: i32) -> (i32, i32, i32) {
    %c0_i32 = arith.constant 0 : i32
    %c0_i32_0 = arith.constant 0 : i32
    %c0_i32_1 = arith.constant 0 : i32
    return %arg0, %c0_i32, %c0_i32_0 : i32, i32, i32
  }
  func.func @transform_4(%arg0: i32, %arg1: i32) -> (i32, i32, i32, i32) {
    %c0_i32 = arith.constant 0 : i32
    %c0_i32_0 = arith.constant 0 : i32
    %c0_i32_1 = arith.constant 0 : i32
    return %arg0, %arg1, %c0_i32, %c0_i32_0 : i32, i32, i32, i32
  }
  func.func @transform_5(%arg0: i32, %arg1: i32) -> (i32, i32, i32) {
    %c0_i32 = arith.constant 0 : i32
    %c0_i32_0 = arith.constant 0 : i32
    %c0_i32_1 = arith.constant 0 : i32
    return %arg0, %c0_i32, %c0_i32_0 : i32, i32, i32
  }
}

module attributes {stable_mosaic.version = 11 : i64} {
  func.func @_bilstm_kernel(%arg0: i32, %arg1: i32, %arg2: memref<1x16x1xi32, #tpu.memory_space<vmem>>, %arg3: memref<1x16x1xi32, #tpu.memory_space<vmem>>, %arg4: memref<1x8x16x512xbf16, #tpu.memory_space<vmem>>, %arg5: memref<1x128x512xbf16, #tpu.memory_space<vmem>>, %arg6: memref<1x8x16x128xbf16, #tpu.memory_space<vmem>>, %arg7: memref<1x16x128xf32, #tpu.memory_space<vmem>>, %arg8: memref<16x128xf32, #tpu.memory_space<vmem>>, %arg9: memref<16x128xf32, #tpu.memory_space<vmem>>) attributes {dimension_semantics = [#tpu.dimension_semantics<parallel>, #tpu.dimension_semantics<arbitrary>], iteration_bounds = array<i64: 2, 1>, scalar_prefetch = 0 : i64, scratch_operands = 2 : i64, tpu.core_type = #tpu.core_type<tc>, window_params = [{transform_indices = @transform_0, window_bounds = array<i64: 1, 16, 1>}, {transform_indices = @transform_1, window_bounds = array<i64: 1, 16, 1>}, {transform_indices = @transform_2, window_bounds = array<i64: 1, 8, 16, 512>}, {transform_indices = @transform_3, window_bounds = array<i64: 1, 128, 512>}, {transform_indices = @transform_4, window_bounds = array<i64: 1, 8, 16, 128>}, {transform_indices = @transform_5, window_bounds = array<i64: 1, 16, 128>}]} {
    %c0_i32 = arith.constant 0 : i32
    %0 = arith.cmpi eq, %arg1, %c0_i32 : i32
    %1 = arith.extui %0 : i1 to i32
    %c0_i32_0 = arith.constant 0 : i32
    %2 = arith.cmpi ne, %1, %c0_i32_0 : i32
    scf.if %2 {
      %cst_276 = arith.constant 0.000000e+00 : f32
      %532 = vector.broadcast %cst_276 : f32 to vector<16x128xf32>
      %c0_277 = arith.constant 0 : index
      %c0_278 = arith.constant 0 : index
      %533 = vector.load %arg8[%c0_277, %c0_278] : memref<16x128xf32, #tpu.memory_space<vmem>>, vector<16x128xf32>
      tpu.vector_store %arg8[%c0_277, %c0_278], %532 {strides = array<i32>} : memref<16x128xf32, #tpu.memory_space<vmem>>, vector<16x128xf32>,
      %cst_279 = arith.constant 0.000000e+00 : f32
      %534 = vector.broadcast %cst_279 : f32 to vector<16x128xf32>
      %c0_280 = arith.constant 0 : index
      %c0_281 = arith.constant 0 : index
      %535 = vector.load %arg9[%c0_280, %c0_281] : memref<16x128xf32, #tpu.memory_space<vmem>>, vector<16x128xf32>
      tpu.vector_store %arg9[%c0_280, %c0_281], %534 {strides = array<i32>} : memref<16x128xf32, #tpu.memory_space<vmem>>, vector<16x128xf32>,
    } else {
    }
    %c0 = arith.constant 0 : index
    %c0_1 = arith.constant 0 : index
    %c0_2 = arith.constant 0 : index
    %3 = vector.load %arg2[%c0, %c0_1, %c0_2] : memref<1x16x1xi32, #tpu.memory_space<vmem>>, vector<1x16x1xi32>
    %4 = vector.shape_cast %3 : vector<1x16x1xi32> to vector<16x1xi32>
    %c0_3 = arith.constant 0 : index
    %c0_4 = arith.constant 0 : index
    %c0_5 = arith.constant 0 : index
    %5 = vector.load %arg3[%c0_3, %c0_4, %c0_5] : memref<1x16x1xi32, #tpu.memory_space<vmem>>, vector<1x16x1xi32>
    %6 = vector.shape_cast %5 : vector<1x16x1xi32> to vector<16x1xi32>
    %c8_i32 = arith.constant 8 : i32
    %7 = arith.muli %arg1, %c8_i32 : i32
    %c0_i32_6 = arith.constant 0 : i32
    %c1_i32 = arith.constant 1 : i32
    %8 = arith.muli %c0_i32_6, %c1_i32 : i32
    %c0_i32_7 = arith.constant 0 : i32
    %9 = arith.addi %c0_i32_7, %8 : i32
    %c0_8 = arith.constant 0 : index
    %10 = arith.index_cast %9 : i32 to index
    %c0_9 = arith.constant 0 : index
    %c0_10 = arith.constant 0 : index
    %11 = vector.load %arg4[%c0_8, %10, %c0_9, %c0_10] : memref<1x8x16x512xbf16, #tpu.memory_space<vmem>>, vector<1x1x16x512xbf16>
    %12 = vector.shape_cast %11 : vector<1x1x16x512xbf16> to vector<16x512xbf16>
    %13 = arith.extf %12 : vector<16x512xbf16> to vector<16x512xf32>
    %c0_11 = arith.constant 0 : index
    %c0_12 = arith.constant 0 : index
    %14 = vector.load %arg8[%c0_11, %c0_12] : memref<16x128xf32, #tpu.memory_space<vmem>>, vector<16x128xf32>
    %15 = arith.truncf %14 : vector<16x128xf32> to vector<16x128xbf16>
    %c0_13 = arith.constant 0 : index
    %c0_14 = arith.constant 0 : index
    %c0_15 = arith.constant 0 : index
    %16 = vector.load %arg5[%c0_13, %c0_14, %c0_15] : memref<1x128x512xbf16, #tpu.memory_space<vmem>>, vector<1x128x512xbf16>
    %17 = vector.shape_cast %16 : vector<1x128x512xbf16> to vector<128x512xbf16>
    %cst = arith.constant dense<0.000000e+00> : vector<16x512xf32>
    %18 = tpu.matmul %15, %17, %cst {dimension_numbers = #tpu.dot_dimension_numbers<[1], [0], [0], [1], [0, 0, 1, 1], [], []>} : vector<16x128xbf16>, vector<128x512xbf16>, vector<16x512xf32> -> vector<16x512xf32>
    %19 = arith.addf %13, %18 : vector<16x512xf32>
    %20 = vector.extract_strided_slice %19 {offsets = [0, 0], sizes = [16, 128], strides = [1, 1]} : vector<16x512xf32> to vector<16x128xf32>
    %cst_16 = arith.constant 5.000000e-01 : f32
    %21 = vector.broadcast %cst_16 : f32 to vector<16x128xf32>
    %22 = arith.mulf %21, %20 : vector<16x128xf32>
    %23 = math.tanh %22 : vector<16x128xf32>
    %cst_17 = arith.constant 1.000000e+00 : f32
    %24 = vector.broadcast %cst_17 : f32 to vector<16x128xf32>
    %25 = arith.addf %24, %23 : vector<16x128xf32>
    %cst_18 = arith.constant 5.000000e-01 : f32
    %26 = vector.broadcast %cst_18 : f32 to vector<16x128xf32>
    %27 = arith.mulf %26, %25 : vector<16x128xf32>
    %28 = vector.extract_strided_slice %19 {offsets = [0, 128], sizes = [16, 128], strides = [1, 1]} : vector<16x512xf32> to vector<16x128xf32>
    %cst_19 = arith.constant 5.000000e-01 : f32
    %29 = vector.broadcast %cst_19 : f32 to vector<16x128xf32>
    %30 = arith.mulf %29, %28 : vector<16x128xf32>
    %31 = math.tanh %30 : vector<16x128xf32>
    %cst_20 = arith.constant 1.000000e+00 : f32
    %32 = vector.broadcast %cst_20 : f32 to vector<16x128xf32>
    %33 = arith.addf %32, %31 : vector<16x128xf32>
    %cst_21 = arith.constant 5.000000e-01 : f32
    %34 = vector.broadcast %cst_21 : f32 to vector<16x128xf32>
    %35 = arith.mulf %34, %33 : vector<16x128xf32>
    %36 = vector.extract_strided_slice %19 {offsets = [0, 256], sizes = [16, 128], strides = [1, 1]} : vector<16x512xf32> to vector<16x128xf32>
    %37 = math.tanh %36 : vector<16x128xf32>
    %38 = vector.extract_strided_slice %19 {offsets = [0, 384], sizes = [16, 128], strides = [1, 1]} : vector<16x512xf32> to vector<16x128xf32>
    %cst_22 = arith.constant 5.000000e-01 : f32
    %39 = vector.broadcast %cst_22 : f32 to vector<16x128xf32>
    %40 = arith.mulf %39, %38 : vector<16x128xf32>
    %41 = math.tanh %40 : vector<16x128xf32>
    %cst_23 = arith.constant 1.000000e+00 : f32
    %42 = vector.broadcast %cst_23 : f32 to vector<16x128xf32>
    %43 = arith.addf %42, %41 : vector<16x128xf32>
    %cst_24 = arith.constant 5.000000e-01 : f32
    %44 = vector.broadcast %cst_24 : f32 to vector<16x128xf32>
    %45 = arith.mulf %44, %43 : vector<16x128xf32>
    %c0_25 = arith.constant 0 : index
    %c0_26 = arith.constant 0 : index
    %46 = vector.load %arg9[%c0_25, %c0_26] : memref<16x128xf32, #tpu.memory_space<vmem>>, vector<16x128xf32>
    %47 = arith.mulf %35, %46 : vector<16x128xf32>
    %48 = arith.mulf %27, %37 : vector<16x128xf32>
    %49 = arith.addf %47, %48 : vector<16x128xf32>
    %50 = math.tanh %49 : vector<16x128xf32>
    %51 = arith.mulf %45, %50 : vector<16x128xf32>
    %52 = arith.addi %7, %9 : i32
    %53 = vector.broadcast %52 : i32 to vector<16x1xi32>
    %54 = arith.cmpi sge, %53, %4 : vector<16x1xi32>
    %55 = vector.broadcast %52 : i32 to vector<16x1xi32>
    %56 = arith.cmpi slt, %55, %6 : vector<16x1xi32>
    %57 = arith.andi %54, %56 : vector<16x1xi1>
    %c0_27 = arith.constant 0 : index
    %c0_28 = arith.constant 0 : index
    %58 = vector.load %arg8[%c0_27, %c0_28] : memref<16x128xf32, #tpu.memory_space<vmem>>, vector<16x128xf32>
    %59 = vector.shape_cast %57 : vector<16x1xi1> to vector<16x1xi1>
    %60 = vector.broadcast %59 : vector<16x1xi1> to vector<16x128xi1>
    %61 = arith.select %60, %51, %58 : vector<16x128xi1>, vector<16x128xf32>
    %c0_29 = arith.constant 0 : index
    %c0_30 = arith.constant 0 : index
    %62 = vector.load %arg9[%c0_29, %c0_30] : memref<16x128xf32, #tpu.memory_space<vmem>>, vector<16x128xf32>
    %63 = vector.shape_cast %57 : vector<16x1xi1> to vector<16x1xi1>
    %64 = vector.broadcast %63 : vector<16x1xi1> to vector<16x128xi1>
    %65 = arith.select %64, %49, %62 : vector<16x128xi1>, vector<16x128xf32>
    %c0_31 = arith.constant 0 : index
    %c0_32 = arith.constant 0 : index
    %66 = vector.load %arg8[%c0_31, %c0_32] : memref<16x128xf32, #tpu.memory_space<vmem>>, vector<16x128xf32>
    tpu.vector_store %arg8[%c0_31, %c0_32], %61 {strides = array<i32>} : memref<16x128xf32, #tpu.memory_space<vmem>>, vector<16x128xf32>,
    %c0_33 = arith.constant 0 : index
    %c0_34 = arith.constant 0 : index
    %67 = vector.load %arg9[%c0_33, %c0_34] : memref<16x128xf32, #tpu.memory_space<vmem>>, vector<16x128xf32>
    tpu.vector_store %arg9[%c0_33, %c0_34], %65 {strides = array<i32>} : memref<16x128xf32, #tpu.memory_space<vmem>>, vector<16x128xf32>,
    %68 = arith.truncf %61 : vector<16x128xf32> to vector<16x128xbf16>
    %c0_35 = arith.constant 0 : index
    %69 = arith.index_cast %9 : i32 to index
    %c0_36 = arith.constant 0 : index
    %c0_37 = arith.constant 0 : index
    %70 = vector.load %arg6[%c0_35, %69, %c0_36, %c0_37] : memref<1x8x16x128xbf16, #tpu.memory_space<vmem>>, vector<1x1x16x128xbf16>
    %71 = vector.shape_cast %70 : vector<1x1x16x128xbf16> to vector<16x128xbf16>
    %72 = vector.shape_cast %68 : vector<16x128xbf16> to vector<1x1x16x128xbf16>
    tpu.vector_store %arg6[%c0_35, %69, %c0_36, %c0_37], %72 {strides = array<i32>} : memref<1x8x16x128xbf16, #tpu.memory_space<vmem>>, vector<1x1x16x128xbf16>,
    %c1_i32_38 = arith.constant 1 : i32
    %c1_i32_39 = arith.constant 1 : i32
    %73 = arith.muli %c1_i32_38, %c1_i32_39 : i32
    %c0_i32_40 = arith.constant 0 : i32
    %74 = arith.addi %c0_i32_40, %73 : i32
    %c0_41 = arith.constant 0 : index
    %75 = arith.index_cast %74 : i32 to index
    %c0_42 = arith.constant 0 : index
    %c0_43 = arith.constant 0 : index
    %76 = vector.load %arg4[%c0_41, %75, %c0_42, %c0_43] : memref<1x8x16x512xbf16, #tpu.memory_space<vmem>>, vector<1x1x16x512xbf16>
    %77 = vector.shape_cast %76 : vector<1x1x16x512xbf16> to vector<16x512xbf16>
    %78 = arith.extf %77 : vector<16x512xbf16> to vector<16x512xf32>
    %c0_44 = arith.constant 0 : index
    %c0_45 = arith.constant 0 : index
    %79 = vector.load %arg8[%c0_44, %c0_45] : memref<16x128xf32, #tpu.memory_space<vmem>>, vector<16x128xf32>
    %80 = arith.truncf %79 : vector<16x128xf32> to vector<16x128xbf16>
    %c0_46 = arith.constant 0 : index
    %c0_47 = arith.constant 0 : index
    %c0_48 = arith.constant 0 : index
    %81 = vector.load %arg5[%c0_46, %c0_47, %c0_48] : memref<1x128x512xbf16, #tpu.memory_space<vmem>>, vector<1x128x512xbf16>
    %82 = vector.shape_cast %81 : vector<1x128x512xbf16> to vector<128x512xbf16>
    %cst_49 = arith.constant dense<0.000000e+00> : vector<16x512xf32>
    %83 = tpu.matmul %80, %82, %cst_49 {dimension_numbers = #tpu.dot_dimension_numbers<[1], [0], [0], [1], [0, 0, 1, 1], [], []>} : vector<16x128xbf16>, vector<128x512xbf16>, vector<16x512xf32> -> vector<16x512xf32>
    %84 = arith.addf %78, %83 : vector<16x512xf32>
    %85 = vector.extract_strided_slice %84 {offsets = [0, 0], sizes = [16, 128], strides = [1, 1]} : vector<16x512xf32> to vector<16x128xf32>
    %cst_50 = arith.constant 5.000000e-01 : f32
    %86 = vector.broadcast %cst_50 : f32 to vector<16x128xf32>
    %87 = arith.mulf %86, %85 : vector<16x128xf32>
    %88 = math.tanh %87 : vector<16x128xf32>
    %cst_51 = arith.constant 1.000000e+00 : f32
    %89 = vector.broadcast %cst_51 : f32 to vector<16x128xf32>
    %90 = arith.addf %89, %88 : vector<16x128xf32>
    %cst_52 = arith.constant 5.000000e-01 : f32
    %91 = vector.broadcast %cst_52 : f32 to vector<16x128xf32>
    %92 = arith.mulf %91, %90 : vector<16x128xf32>
    %93 = vector.extract_strided_slice %84 {offsets = [0, 128], sizes = [16, 128], strides = [1, 1]} : vector<16x512xf32> to vector<16x128xf32>
    %cst_53 = arith.constant 5.000000e-01 : f32
    %94 = vector.broadcast %cst_53 : f32 to vector<16x128xf32>
    %95 = arith.mulf %94, %93 : vector<16x128xf32>
    %96 = math.tanh %95 : vector<16x128xf32>
    %cst_54 = arith.constant 1.000000e+00 : f32
    %97 = vector.broadcast %cst_54 : f32 to vector<16x128xf32>
    %98 = arith.addf %97, %96 : vector<16x128xf32>
    %cst_55 = arith.constant 5.000000e-01 : f32
    %99 = vector.broadcast %cst_55 : f32 to vector<16x128xf32>
    %100 = arith.mulf %99, %98 : vector<16x128xf32>
    %101 = vector.extract_strided_slice %84 {offsets = [0, 256], sizes = [16, 128], strides = [1, 1]} : vector<16x512xf32> to vector<16x128xf32>
    %102 = math.tanh %101 : vector<16x128xf32>
    %103 = vector.extract_strided_slice %84 {offsets = [0, 384], sizes = [16, 128], strides = [1, 1]} : vector<16x512xf32> to vector<16x128xf32>
    %cst_56 = arith.constant 5.000000e-01 : f32
    %104 = vector.broadcast %cst_56 : f32 to vector<16x128xf32>
    %105 = arith.mulf %104, %103 : vector<16x128xf32>
    %106 = math.tanh %105 : vector<16x128xf32>
    %cst_57 = arith.constant 1.000000e+00 : f32
    %107 = vector.broadcast %cst_57 : f32 to vector<16x128xf32>
    %108 = arith.addf %107, %106 : vector<16x128xf32>
    %cst_58 = arith.constant 5.000000e-01 : f32
    %109 = vector.broadcast %cst_58 : f32 to vector<16x128xf32>
    %110 = arith.mulf %109, %108 : vector<16x128xf32>
    %c0_59 = arith.constant 0 : index
    %c0_60 = arith.constant 0 : index
    %111 = vector.load %arg9[%c0_59, %c0_60] : memref<16x128xf32, #tpu.memory_space<vmem>>, vector<16x128xf32>
    %112 = arith.mulf %100, %111 : vector<16x128xf32>
    %113 = arith.mulf %92, %102 : vector<16x128xf32>
    %114 = arith.addf %112, %113 : vector<16x128xf32>
    %115 = math.tanh %114 : vector<16x128xf32>
    %116 = arith.mulf %110, %115 : vector<16x128xf32>
    %117 = arith.addi %7, %74 : i32
    %118 = vector.broadcast %117 : i32 to vector<16x1xi32>
    %119 = arith.cmpi sge, %118, %4 : vector<16x1xi32>
    %120 = vector.broadcast %117 : i32 to vector<16x1xi32>
    %121 = arith.cmpi slt, %120, %6 : vector<16x1xi32>
    %122 = arith.andi %119, %121 : vector<16x1xi1>
    %c0_61 = arith.constant 0 : index
    %c0_62 = arith.constant 0 : index
    %123 = vector.load %arg8[%c0_61, %c0_62] : memref<16x128xf32, #tpu.memory_space<vmem>>, vector<16x128xf32>
    %124 = vector.shape_cast %122 : vector<16x1xi1> to vector<16x1xi1>
    %125 = vector.broadcast %124 : vector<16x1xi1> to vector<16x128xi1>
    %126 = arith.select %125, %116, %123 : vector<16x128xi1>, vector<16x128xf32>
    %c0_63 = arith.constant 0 : index
    %c0_64 = arith.constant 0 : index
    %127 = vector.load %arg9[%c0_63, %c0_64] : memref<16x128xf32, #tpu.memory_space<vmem>>, vector<16x128xf32>
    %128 = vector.shape_cast %122 : vector<16x1xi1> to vector<16x1xi1>
    %129 = vector.broadcast %128 : vector<16x1xi1> to vector<16x128xi1>
    %130 = arith.select %129, %114, %127 : vector<16x128xi1>, vector<16x128xf32>
    %c0_65 = arith.constant 0 : index
    %c0_66 = arith.constant 0 : index
    %131 = vector.load %arg8[%c0_65, %c0_66] : memref<16x128xf32, #tpu.memory_space<vmem>>, vector<16x128xf32>
    tpu.vector_store %arg8[%c0_65, %c0_66], %126 {strides = array<i32>} : memref<16x128xf32, #tpu.memory_space<vmem>>, vector<16x128xf32>,
    %c0_67 = arith.constant 0 : index
    %c0_68 = arith.constant 0 : index
    %132 = vector.load %arg9[%c0_67, %c0_68] : memref<16x128xf32, #tpu.memory_space<vmem>>, vector<16x128xf32>
    tpu.vector_store %arg9[%c0_67, %c0_68], %130 {strides = array<i32>} : memref<16x128xf32, #tpu.memory_space<vmem>>, vector<16x128xf32>,
    %133 = arith.truncf %126 : vector<16x128xf32> to vector<16x128xbf16>
    %c0_69 = arith.constant 0 : index
    %134 = arith.index_cast %74 : i32 to index
    %c0_70 = arith.constant 0 : index
    %c0_71 = arith.constant 0 : index
    %135 = vector.load %arg6[%c0_69, %134, %c0_70, %c0_71] : memref<1x8x16x128xbf16, #tpu.memory_space<vmem>>, vector<1x1x16x128xbf16>
    %136 = vector.shape_cast %135 : vector<1x1x16x128xbf16> to vector<16x128xbf16>
    %137 = vector.shape_cast %133 : vector<16x128xbf16> to vector<1x1x16x128xbf16>
    tpu.vector_store %arg6[%c0_69, %134, %c0_70, %c0_71], %137 {strides = array<i32>} : memref<1x8x16x128xbf16, #tpu.memory_space<vmem>>, vector<1x1x16x128xbf16>,
    %c2_i32 = arith.constant 2 : i32
    %c1_i32_72 = arith.constant 1 : i32
    %138 = arith.muli %c2_i32, %c1_i32_72 : i32
    %c0_i32_73 = arith.constant 0 : i32
    %139 = arith.addi %c0_i32_73, %138 : i32
    %c0_74 = arith.constant 0 : index
    %140 = arith.index_cast %139 : i32 to index
    %c0_75 = arith.constant 0 : index
    %c0_76 = arith.constant 0 : index
    %141 = vector.load %arg4[%c0_74, %140, %c0_75, %c0_76] : memref<1x8x16x512xbf16, #tpu.memory_space<vmem>>, vector<1x1x16x512xbf16>
    %142 = vector.shape_cast %141 : vector<1x1x16x512xbf16> to vector<16x512xbf16>
    %143 = arith.extf %142 : vector<16x512xbf16> to vector<16x512xf32>
    %c0_77 = arith.constant 0 : index
    %c0_78 = arith.constant 0 : index
    %144 = vector.load %arg8[%c0_77, %c0_78] : memref<16x128xf32, #tpu.memory_space<vmem>>, vector<16x128xf32>
    %145 = arith.truncf %144 : vector<16x128xf32> to vector<16x128xbf16>
    %c0_79 = arith.constant 0 : index
    %c0_80 = arith.constant 0 : index
    %c0_81 = arith.constant 0 : index
    %146 = vector.load %arg5[%c0_79, %c0_80, %c0_81] : memref<1x128x512xbf16, #tpu.memory_space<vmem>>, vector<1x128x512xbf16>
    %147 = vector.shape_cast %146 : vector<1x128x512xbf16> to vector<128x512xbf16>
    %cst_82 = arith.constant dense<0.000000e+00> : vector<16x512xf32>
    %148 = tpu.matmul %145, %147, %cst_82 {dimension_numbers = #tpu.dot_dimension_numbers<[1], [0], [0], [1], [0, 0, 1, 1], [], []>} : vector<16x128xbf16>, vector<128x512xbf16>, vector<16x512xf32> -> vector<16x512xf32>
    %149 = arith.addf %143, %148 : vector<16x512xf32>
    %150 = vector.extract_strided_slice %149 {offsets = [0, 0], sizes = [16, 128], strides = [1, 1]} : vector<16x512xf32> to vector<16x128xf32>
    %cst_83 = arith.constant 5.000000e-01 : f32
    %151 = vector.broadcast %cst_83 : f32 to vector<16x128xf32>
    %152 = arith.mulf %151, %150 : vector<16x128xf32>
    %153 = math.tanh %152 : vector<16x128xf32>
    %cst_84 = arith.constant 1.000000e+00 : f32
    %154 = vector.broadcast %cst_84 : f32 to vector<16x128xf32>
    %155 = arith.addf %154, %153 : vector<16x128xf32>
    %cst_85 = arith.constant 5.000000e-01 : f32
    %156 = vector.broadcast %cst_85 : f32 to vector<16x128xf32>
    %157 = arith.mulf %156, %155 : vector<16x128xf32>
    %158 = vector.extract_strided_slice %149 {offsets = [0, 128], sizes = [16, 128], strides = [1, 1]} : vector<16x512xf32> to vector<16x128xf32>
    %cst_86 = arith.constant 5.000000e-01 : f32
    %159 = vector.broadcast %cst_86 : f32 to vector<16x128xf32>
    %160 = arith.mulf %159, %158 : vector<16x128xf32>
    %161 = math.tanh %160 : vector<16x128xf32>
    %cst_87 = arith.constant 1.000000e+00 : f32
    %162 = vector.broadcast %cst_87 : f32 to vector<16x128xf32>
    %163 = arith.addf %162, %161 : vector<16x128xf32>
    %cst_88 = arith.constant 5.000000e-01 : f32
    %164 = vector.broadcast %cst_88 : f32 to vector<16x128xf32>
    %165 = arith.mulf %164, %163 : vector<16x128xf32>
    %166 = vector.extract_strided_slice %149 {offsets = [0, 256], sizes = [16, 128], strides = [1, 1]} : vector<16x512xf32> to vector<16x128xf32>
    %167 = math.tanh %166 : vector<16x128xf32>
    %168 = vector.extract_strided_slice %149 {offsets = [0, 384], sizes = [16, 128], strides = [1, 1]} : vector<16x512xf32> to vector<16x128xf32>
    %cst_89 = arith.constant 5.000000e-01 : f32
    %169 = vector.broadcast %cst_89 : f32 to vector<16x128xf32>
    %170 = arith.mulf %169, %168 : vector<16x128xf32>
    %171 = math.tanh %170 : vector<16x128xf32>
    %cst_90 = arith.constant 1.000000e+00 : f32
    %172 = vector.broadcast %cst_90 : f32 to vector<16x128xf32>
    %173 = arith.addf %172, %171 : vector<16x128xf32>
    %cst_91 = arith.constant 5.000000e-01 : f32
    %174 = vector.broadcast %cst_91 : f32 to vector<16x128xf32>
    %175 = arith.mulf %174, %173 : vector<16x128xf32>
    %c0_92 = arith.constant 0 : index
    %c0_93 = arith.constant 0 : index
    %176 = vector.load %arg9[%c0_92, %c0_93] : memref<16x128xf32, #tpu.memory_space<vmem>>, vector<16x128xf32>
    %177 = arith.mulf %165, %176 : vector<16x128xf32>
    %178 = arith.mulf %157, %167 : vector<16x128xf32>
    %179 = arith.addf %177, %178 : vector<16x128xf32>
    %180 = math.tanh %179 : vector<16x128xf32>
    %181 = arith.mulf %175, %180 : vector<16x128xf32>
    %182 = arith.addi %7, %139 : i32
    %183 = vector.broadcast %182 : i32 to vector<16x1xi32>
    %184 = arith.cmpi sge, %183, %4 : vector<16x1xi32>
    %185 = vector.broadcast %182 : i32 to vector<16x1xi32>
    %186 = arith.cmpi slt, %185, %6 : vector<16x1xi32>
    %187 = arith.andi %184, %186 : vector<16x1xi1>
    %c0_94 = arith.constant 0 : index
    %c0_95 = arith.constant 0 : index
    %188 = vector.load %arg8[%c0_94, %c0_95] : memref<16x128xf32, #tpu.memory_space<vmem>>, vector<16x128xf32>
    %189 = vector.shape_cast %187 : vector<16x1xi1> to vector<16x1xi1>
    %190 = vector.broadcast %189 : vector<16x1xi1> to vector<16x128xi1>
    %191 = arith.select %190, %181, %188 : vector<16x128xi1>, vector<16x128xf32>
    %c0_96 = arith.constant 0 : index
    %c0_97 = arith.constant 0 : index
    %192 = vector.load %arg9[%c0_96, %c0_97] : memref<16x128xf32, #tpu.memory_space<vmem>>, vector<16x128xf32>
    %193 = vector.shape_cast %187 : vector<16x1xi1> to vector<16x1xi1>
    %194 = vector.broadcast %193 : vector<16x1xi1> to vector<16x128xi1>
    %195 = arith.select %194, %179, %192 : vector<16x128xi1>, vector<16x128xf32>
    %c0_98 = arith.constant 0 : index
    %c0_99 = arith.constant 0 : index
    %196 = vector.load %arg8[%c0_98, %c0_99] : memref<16x128xf32, #tpu.memory_space<vmem>>, vector<16x128xf32>
    tpu.vector_store %arg8[%c0_98, %c0_99], %191 {strides = array<i32>} : memref<16x128xf32, #tpu.memory_space<vmem>>, vector<16x128xf32>,
    %c0_100 = arith.constant 0 : index
    %c0_101 = arith.constant 0 : index
    %197 = vector.load %arg9[%c0_100, %c0_101] : memref<16x128xf32, #tpu.memory_space<vmem>>, vector<16x128xf32>
    tpu.vector_store %arg9[%c0_100, %c0_101], %195 {strides = array<i32>} : memref<16x128xf32, #tpu.memory_space<vmem>>, vector<16x128xf32>,
    %198 = arith.truncf %191 : vector<16x128xf32> to vector<16x128xbf16>
    %c0_102 = arith.constant 0 : index
    %199 = arith.index_cast %139 : i32 to index
    %c0_103 = arith.constant 0 : index
    %c0_104 = arith.constant 0 : index
    %200 = vector.load %arg6[%c0_102, %199, %c0_103, %c0_104] : memref<1x8x16x128xbf16, #tpu.memory_space<vmem>>, vector<1x1x16x128xbf16>
    %201 = vector.shape_cast %200 : vector<1x1x16x128xbf16> to vector<16x128xbf16>
    %202 = vector.shape_cast %198 : vector<16x128xbf16> to vector<1x1x16x128xbf16>
    tpu.vector_store %arg6[%c0_102, %199, %c0_103, %c0_104], %202 {strides = array<i32>} : memref<1x8x16x128xbf16, #tpu.memory_space<vmem>>, vector<1x1x16x128xbf16>,
    %c3_i32 = arith.constant 3 : i32
    %c1_i32_105 = arith.constant 1 : i32
    %203 = arith.muli %c3_i32, %c1_i32_105 : i32
    %c0_i32_106 = arith.constant 0 : i32
    %204 = arith.addi %c0_i32_106, %203 : i32
    %c0_107 = arith.constant 0 : index
    %205 = arith.index_cast %204 : i32 to index
    %c0_108 = arith.constant 0 : index
    %c0_109 = arith.constant 0 : index
    %206 = vector.load %arg4[%c0_107, %205, %c0_108, %c0_109] : memref<1x8x16x512xbf16, #tpu.memory_space<vmem>>, vector<1x1x16x512xbf16>
    %207 = vector.shape_cast %206 : vector<1x1x16x512xbf16> to vector<16x512xbf16>
    %208 = arith.extf %207 : vector<16x512xbf16> to vector<16x512xf32>
    %c0_110 = arith.constant 0 : index
    %c0_111 = arith.constant 0 : index
    %209 = vector.load %arg8[%c0_110, %c0_111] : memref<16x128xf32, #tpu.memory_space<vmem>>, vector<16x128xf32>
    %210 = arith.truncf %209 : vector<16x128xf32> to vector<16x128xbf16>
    %c0_112 = arith.constant 0 : index
    %c0_113 = arith.constant 0 : index
    %c0_114 = arith.constant 0 : index
    %211 = vector.load %arg5[%c0_112, %c0_113, %c0_114] : memref<1x128x512xbf16, #tpu.memory_space<vmem>>, vector<1x128x512xbf16>
    %212 = vector.shape_cast %211 : vector<1x128x512xbf16> to vector<128x512xbf16>
    %cst_115 = arith.constant dense<0.000000e+00> : vector<16x512xf32>
    %213 = tpu.matmul %210, %212, %cst_115 {dimension_numbers = #tpu.dot_dimension_numbers<[1], [0], [0], [1], [0, 0, 1, 1], [], []>} : vector<16x128xbf16>, vector<128x512xbf16>, vector<16x512xf32> -> vector<16x512xf32>
    %214 = arith.addf %208, %213 : vector<16x512xf32>
    %215 = vector.extract_strided_slice %214 {offsets = [0, 0], sizes = [16, 128], strides = [1, 1]} : vector<16x512xf32> to vector<16x128xf32>
    %cst_116 = arith.constant 5.000000e-01 : f32
    %216 = vector.broadcast %cst_116 : f32 to vector<16x128xf32>
    %217 = arith.mulf %216, %215 : vector<16x128xf32>
    %218 = math.tanh %217 : vector<16x128xf32>
    %cst_117 = arith.constant 1.000000e+00 : f32
    %219 = vector.broadcast %cst_117 : f32 to vector<16x128xf32>
    %220 = arith.addf %219, %218 : vector<16x128xf32>
    %cst_118 = arith.constant 5.000000e-01 : f32
    %221 = vector.broadcast %cst_118 : f32 to vector<16x128xf32>
    %222 = arith.mulf %221, %220 : vector<16x128xf32>
    %223 = vector.extract_strided_slice %214 {offsets = [0, 128], sizes = [16, 128], strides = [1, 1]} : vector<16x512xf32> to vector<16x128xf32>
    %cst_119 = arith.constant 5.000000e-01 : f32
    %224 = vector.broadcast %cst_119 : f32 to vector<16x128xf32>
    %225 = arith.mulf %224, %223 : vector<16x128xf32>
    %226 = math.tanh %225 : vector<16x128xf32>
    %cst_120 = arith.constant 1.000000e+00 : f32
    %227 = vector.broadcast %cst_120 : f32 to vector<16x128xf32>
    %228 = arith.addf %227, %226 : vector<16x128xf32>
    %cst_121 = arith.constant 5.000000e-01 : f32
    %229 = vector.broadcast %cst_121 : f32 to vector<16x128xf32>
    %230 = arith.mulf %229, %228 : vector<16x128xf32>
    %231 = vector.extract_strided_slice %214 {offsets = [0, 256], sizes = [16, 128], strides = [1, 1]} : vector<16x512xf32> to vector<16x128xf32>
    %232 = math.tanh %231 : vector<16x128xf32>
    %233 = vector.extract_strided_slice %214 {offsets = [0, 384], sizes = [16, 128], strides = [1, 1]} : vector<16x512xf32> to vector<16x128xf32>
    %cst_122 = arith.constant 5.000000e-01 : f32
    %234 = vector.broadcast %cst_122 : f32 to vector<16x128xf32>
    %235 = arith.mulf %234, %233 : vector<16x128xf32>
    %236 = math.tanh %235 : vector<16x128xf32>
    %cst_123 = arith.constant 1.000000e+00 : f32
    %237 = vector.broadcast %cst_123 : f32 to vector<16x128xf32>
    %238 = arith.addf %237, %236 : vector<16x128xf32>
    %cst_124 = arith.constant 5.000000e-01 : f32
    %239 = vector.broadcast %cst_124 : f32 to vector<16x128xf32>
    %240 = arith.mulf %239, %238 : vector<16x128xf32>
    %c0_125 = arith.constant 0 : index
    %c0_126 = arith.constant 0 : index
    %241 = vector.load %arg9[%c0_125, %c0_126] : memref<16x128xf32, #tpu.memory_space<vmem>>, vector<16x128xf32>
    %242 = arith.mulf %230, %241 : vector<16x128xf32>
    %243 = arith.mulf %222, %232 : vector<16x128xf32>
    %244 = arith.addf %242, %243 : vector<16x128xf32>
    %245 = math.tanh %244 : vector<16x128xf32>
    %246 = arith.mulf %240, %245 : vector<16x128xf32>
    %247 = arith.addi %7, %204 : i32
    %248 = vector.broadcast %247 : i32 to vector<16x1xi32>
    %249 = arith.cmpi sge, %248, %4 : vector<16x1xi32>
    %250 = vector.broadcast %247 : i32 to vector<16x1xi32>
    %251 = arith.cmpi slt, %250, %6 : vector<16x1xi32>
    %252 = arith.andi %249, %251 : vector<16x1xi1>
    %c0_127 = arith.constant 0 : index
    %c0_128 = arith.constant 0 : index
    %253 = vector.load %arg8[%c0_127, %c0_128] : memref<16x128xf32, #tpu.memory_space<vmem>>, vector<16x128xf32>
    %254 = vector.shape_cast %252 : vector<16x1xi1> to vector<16x1xi1>
    %255 = vector.broadcast %254 : vector<16x1xi1> to vector<16x128xi1>
    %256 = arith.select %255, %246, %253 : vector<16x128xi1>, vector<16x128xf32>
    %c0_129 = arith.constant 0 : index
    %c0_130 = arith.constant 0 : index
    %257 = vector.load %arg9[%c0_129, %c0_130] : memref<16x128xf32, #tpu.memory_space<vmem>>, vector<16x128xf32>
    %258 = vector.shape_cast %252 : vector<16x1xi1> to vector<16x1xi1>
    %259 = vector.broadcast %258 : vector<16x1xi1> to vector<16x128xi1>
    %260 = arith.select %259, %244, %257 : vector<16x128xi1>, vector<16x128xf32>
    %c0_131 = arith.constant 0 : index
    %c0_132 = arith.constant 0 : index
    %261 = vector.load %arg8[%c0_131, %c0_132] : memref<16x128xf32, #tpu.memory_space<vmem>>, vector<16x128xf32>
    tpu.vector_store %arg8[%c0_131, %c0_132], %256 {strides = array<i32>} : memref<16x128xf32, #tpu.memory_space<vmem>>, vector<16x128xf32>,
    %c0_133 = arith.constant 0 : index
    %c0_134 = arith.constant 0 : index
    %262 = vector.load %arg9[%c0_133, %c0_134] : memref<16x128xf32, #tpu.memory_space<vmem>>, vector<16x128xf32>
    tpu.vector_store %arg9[%c0_133, %c0_134], %260 {strides = array<i32>} : memref<16x128xf32, #tpu.memory_space<vmem>>, vector<16x128xf32>,
    %263 = arith.truncf %256 : vector<16x128xf32> to vector<16x128xbf16>
    %c0_135 = arith.constant 0 : index
    %264 = arith.index_cast %204 : i32 to index
    %c0_136 = arith.constant 0 : index
    %c0_137 = arith.constant 0 : index
    %265 = vector.load %arg6[%c0_135, %264, %c0_136, %c0_137] : memref<1x8x16x128xbf16, #tpu.memory_space<vmem>>, vector<1x1x16x128xbf16>
    %266 = vector.shape_cast %265 : vector<1x1x16x128xbf16> to vector<16x128xbf16>
    %267 = vector.shape_cast %263 : vector<16x128xbf16> to vector<1x1x16x128xbf16>
    tpu.vector_store %arg6[%c0_135, %264, %c0_136, %c0_137], %267 {strides = array<i32>} : memref<1x8x16x128xbf16, #tpu.memory_space<vmem>>, vector<1x1x16x128xbf16>,
    %c4_i32 = arith.constant 4 : i32
    %c1_i32_138 = arith.constant 1 : i32
    %268 = arith.muli %c4_i32, %c1_i32_138 : i32
    %c0_i32_139 = arith.constant 0 : i32
    %269 = arith.addi %c0_i32_139, %268 : i32
    %c0_140 = arith.constant 0 : index
    %270 = arith.index_cast %269 : i32 to index
    %c0_141 = arith.constant 0 : index
    %c0_142 = arith.constant 0 : index
    %271 = vector.load %arg4[%c0_140, %270, %c0_141, %c0_142] : memref<1x8x16x512xbf16, #tpu.memory_space<vmem>>, vector<1x1x16x512xbf16>
    %272 = vector.shape_cast %271 : vector<1x1x16x512xbf16> to vector<16x512xbf16>
    %273 = arith.extf %272 : vector<16x512xbf16> to vector<16x512xf32>
    %c0_143 = arith.constant 0 : index
    %c0_144 = arith.constant 0 : index
    %274 = vector.load %arg8[%c0_143, %c0_144] : memref<16x128xf32, #tpu.memory_space<vmem>>, vector<16x128xf32>
    %275 = arith.truncf %274 : vector<16x128xf32> to vector<16x128xbf16>
    %c0_145 = arith.constant 0 : index
    %c0_146 = arith.constant 0 : index
    %c0_147 = arith.constant 0 : index
    %276 = vector.load %arg5[%c0_145, %c0_146, %c0_147] : memref<1x128x512xbf16, #tpu.memory_space<vmem>>, vector<1x128x512xbf16>
    %277 = vector.shape_cast %276 : vector<1x128x512xbf16> to vector<128x512xbf16>
    %cst_148 = arith.constant dense<0.000000e+00> : vector<16x512xf32>
    %278 = tpu.matmul %275, %277, %cst_148 {dimension_numbers = #tpu.dot_dimension_numbers<[1], [0], [0], [1], [0, 0, 1, 1], [], []>} : vector<16x128xbf16>, vector<128x512xbf16>, vector<16x512xf32> -> vector<16x512xf32>
    %279 = arith.addf %273, %278 : vector<16x512xf32>
    %280 = vector.extract_strided_slice %279 {offsets = [0, 0], sizes = [16, 128], strides = [1, 1]} : vector<16x512xf32> to vector<16x128xf32>
    %cst_149 = arith.constant 5.000000e-01 : f32
    %281 = vector.broadcast %cst_149 : f32 to vector<16x128xf32>
    %282 = arith.mulf %281, %280 : vector<16x128xf32>
    %283 = math.tanh %282 : vector<16x128xf32>
    %cst_150 = arith.constant 1.000000e+00 : f32
    %284 = vector.broadcast %cst_150 : f32 to vector<16x128xf32>
    %285 = arith.addf %284, %283 : vector<16x128xf32>
    %cst_151 = arith.constant 5.000000e-01 : f32
    %286 = vector.broadcast %cst_151 : f32 to vector<16x128xf32>
    %287 = arith.mulf %286, %285 : vector<16x128xf32>
    %288 = vector.extract_strided_slice %279 {offsets = [0, 128], sizes = [16, 128], strides = [1, 1]} : vector<16x512xf32> to vector<16x128xf32>
    %cst_152 = arith.constant 5.000000e-01 : f32
    %289 = vector.broadcast %cst_152 : f32 to vector<16x128xf32>
    %290 = arith.mulf %289, %288 : vector<16x128xf32>
    %291 = math.tanh %290 : vector<16x128xf32>
    %cst_153 = arith.constant 1.000000e+00 : f32
    %292 = vector.broadcast %cst_153 : f32 to vector<16x128xf32>
    %293 = arith.addf %292, %291 : vector<16x128xf32>
    %cst_154 = arith.constant 5.000000e-01 : f32
    %294 = vector.broadcast %cst_154 : f32 to vector<16x128xf32>
    %295 = arith.mulf %294, %293 : vector<16x128xf32>
    %296 = vector.extract_strided_slice %279 {offsets = [0, 256], sizes = [16, 128], strides = [1, 1]} : vector<16x512xf32> to vector<16x128xf32>
    %297 = math.tanh %296 : vector<16x128xf32>
    %298 = vector.extract_strided_slice %279 {offsets = [0, 384], sizes = [16, 128], strides = [1, 1]} : vector<16x512xf32> to vector<16x128xf32>
    %cst_155 = arith.constant 5.000000e-01 : f32
    %299 = vector.broadcast %cst_155 : f32 to vector<16x128xf32>
    %300 = arith.mulf %299, %298 : vector<16x128xf32>
    %301 = math.tanh %300 : vector<16x128xf32>
    %cst_156 = arith.constant 1.000000e+00 : f32
    %302 = vector.broadcast %cst_156 : f32 to vector<16x128xf32>
    %303 = arith.addf %302, %301 : vector<16x128xf32>
    %cst_157 = arith.constant 5.000000e-01 : f32
    %304 = vector.broadcast %cst_157 : f32 to vector<16x128xf32>
    %305 = arith.mulf %304, %303 : vector<16x128xf32>
    %c0_158 = arith.constant 0 : index
    %c0_159 = arith.constant 0 : index
    %306 = vector.load %arg9[%c0_158, %c0_159] : memref<16x128xf32, #tpu.memory_space<vmem>>, vector<16x128xf32>
    %307 = arith.mulf %295, %306 : vector<16x128xf32>
    %308 = arith.mulf %287, %297 : vector<16x128xf32>
    %309 = arith.addf %307, %308 : vector<16x128xf32>
    %310 = math.tanh %309 : vector<16x128xf32>
    %311 = arith.mulf %305, %310 : vector<16x128xf32>
    %312 = arith.addi %7, %269 : i32
    %313 = vector.broadcast %312 : i32 to vector<16x1xi32>
    %314 = arith.cmpi sge, %313, %4 : vector<16x1xi32>
    %315 = vector.broadcast %312 : i32 to vector<16x1xi32>
    %316 = arith.cmpi slt, %315, %6 : vector<16x1xi32>
    %317 = arith.andi %314, %316 : vector<16x1xi1>
    %c0_160 = arith.constant 0 : index
    %c0_161 = arith.constant 0 : index
    %318 = vector.load %arg8[%c0_160, %c0_161] : memref<16x128xf32, #tpu.memory_space<vmem>>, vector<16x128xf32>
    %319 = vector.shape_cast %317 : vector<16x1xi1> to vector<16x1xi1>
    %320 = vector.broadcast %319 : vector<16x1xi1> to vector<16x128xi1>
    %321 = arith.select %320, %311, %318 : vector<16x128xi1>, vector<16x128xf32>
    %c0_162 = arith.constant 0 : index
    %c0_163 = arith.constant 0 : index
    %322 = vector.load %arg9[%c0_162, %c0_163] : memref<16x128xf32, #tpu.memory_space<vmem>>, vector<16x128xf32>
    %323 = vector.shape_cast %317 : vector<16x1xi1> to vector<16x1xi1>
    %324 = vector.broadcast %323 : vector<16x1xi1> to vector<16x128xi1>
    %325 = arith.select %324, %309, %322 : vector<16x128xi1>, vector<16x128xf32>
    %c0_164 = arith.constant 0 : index
    %c0_165 = arith.constant 0 : index
    %326 = vector.load %arg8[%c0_164, %c0_165] : memref<16x128xf32, #tpu.memory_space<vmem>>, vector<16x128xf32>
    tpu.vector_store %arg8[%c0_164, %c0_165], %321 {strides = array<i32>} : memref<16x128xf32, #tpu.memory_space<vmem>>, vector<16x128xf32>,
    %c0_166 = arith.constant 0 : index
    %c0_167 = arith.constant 0 : index
    %327 = vector.load %arg9[%c0_166, %c0_167] : memref<16x128xf32, #tpu.memory_space<vmem>>, vector<16x128xf32>
    tpu.vector_store %arg9[%c0_166, %c0_167], %325 {strides = array<i32>} : memref<16x128xf32, #tpu.memory_space<vmem>>, vector<16x128xf32>,
    %328 = arith.truncf %321 : vector<16x128xf32> to vector<16x128xbf16>
    %c0_168 = arith.constant 0 : index
    %329 = arith.index_cast %269 : i32 to index
    %c0_169 = arith.constant 0 : index
    %c0_170 = arith.constant 0 : index
    %330 = vector.load %arg6[%c0_168, %329, %c0_169, %c0_170] : memref<1x8x16x128xbf16, #tpu.memory_space<vmem>>, vector<1x1x16x128xbf16>
    %331 = vector.shape_cast %330 : vector<1x1x16x128xbf16> to vector<16x128xbf16>
    %332 = vector.shape_cast %328 : vector<16x128xbf16> to vector<1x1x16x128xbf16>
    tpu.vector_store %arg6[%c0_168, %329, %c0_169, %c0_170], %332 {strides = array<i32>} : memref<1x8x16x128xbf16, #tpu.memory_space<vmem>>, vector<1x1x16x128xbf16>,
    %c5_i32 = arith.constant 5 : i32
    %c1_i32_171 = arith.constant 1 : i32
    %333 = arith.muli %c5_i32, %c1_i32_171 : i32
    %c0_i32_172 = arith.constant 0 : i32
    %334 = arith.addi %c0_i32_172, %333 : i32
    %c0_173 = arith.constant 0 : index
    %335 = arith.index_cast %334 : i32 to index
    %c0_174 = arith.constant 0 : index
    %c0_175 = arith.constant 0 : index
    %336 = vector.load %arg4[%c0_173, %335, %c0_174, %c0_175] : memref<1x8x16x512xbf16, #tpu.memory_space<vmem>>, vector<1x1x16x512xbf16>
    %337 = vector.shape_cast %336 : vector<1x1x16x512xbf16> to vector<16x512xbf16>
    %338 = arith.extf %337 : vector<16x512xbf16> to vector<16x512xf32>
    %c0_176 = arith.constant 0 : index
    %c0_177 = arith.constant 0 : index
    %339 = vector.load %arg8[%c0_176, %c0_177] : memref<16x128xf32, #tpu.memory_space<vmem>>, vector<16x128xf32>
    %340 = arith.truncf %339 : vector<16x128xf32> to vector<16x128xbf16>
    %c0_178 = arith.constant 0 : index
    %c0_179 = arith.constant 0 : index
    %c0_180 = arith.constant 0 : index
    %341 = vector.load %arg5[%c0_178, %c0_179, %c0_180] : memref<1x128x512xbf16, #tpu.memory_space<vmem>>, vector<1x128x512xbf16>
    %342 = vector.shape_cast %341 : vector<1x128x512xbf16> to vector<128x512xbf16>
    %cst_181 = arith.constant dense<0.000000e+00> : vector<16x512xf32>
    %343 = tpu.matmul %340, %342, %cst_181 {dimension_numbers = #tpu.dot_dimension_numbers<[1], [0], [0], [1], [0, 0, 1, 1], [], []>} : vector<16x128xbf16>, vector<128x512xbf16>, vector<16x512xf32> -> vector<16x512xf32>
    %344 = arith.addf %338, %343 : vector<16x512xf32>
    %345 = vector.extract_strided_slice %344 {offsets = [0, 0], sizes = [16, 128], strides = [1, 1]} : vector<16x512xf32> to vector<16x128xf32>
    %cst_182 = arith.constant 5.000000e-01 : f32
    %346 = vector.broadcast %cst_182 : f32 to vector<16x128xf32>
    %347 = arith.mulf %346, %345 : vector<16x128xf32>
    %348 = math.tanh %347 : vector<16x128xf32>
    %cst_183 = arith.constant 1.000000e+00 : f32
    %349 = vector.broadcast %cst_183 : f32 to vector<16x128xf32>
    %350 = arith.addf %349, %348 : vector<16x128xf32>
    %cst_184 = arith.constant 5.000000e-01 : f32
    %351 = vector.broadcast %cst_184 : f32 to vector<16x128xf32>
    %352 = arith.mulf %351, %350 : vector<16x128xf32>
    %353 = vector.extract_strided_slice %344 {offsets = [0, 128], sizes = [16, 128], strides = [1, 1]} : vector<16x512xf32> to vector<16x128xf32>
    %cst_185 = arith.constant 5.000000e-01 : f32
    %354 = vector.broadcast %cst_185 : f32 to vector<16x128xf32>
    %355 = arith.mulf %354, %353 : vector<16x128xf32>
    %356 = math.tanh %355 : vector<16x128xf32>
    %cst_186 = arith.constant 1.000000e+00 : f32
    %357 = vector.broadcast %cst_186 : f32 to vector<16x128xf32>
    %358 = arith.addf %357, %356 : vector<16x128xf32>
    %cst_187 = arith.constant 5.000000e-01 : f32
    %359 = vector.broadcast %cst_187 : f32 to vector<16x128xf32>
    %360 = arith.mulf %359, %358 : vector<16x128xf32>
    %361 = vector.extract_strided_slice %344 {offsets = [0, 256], sizes = [16, 128], strides = [1, 1]} : vector<16x512xf32> to vector<16x128xf32>
    %362 = math.tanh %361 : vector<16x128xf32>
    %363 = vector.extract_strided_slice %344 {offsets = [0, 384], sizes = [16, 128], strides = [1, 1]} : vector<16x512xf32> to vector<16x128xf32>
    %cst_188 = arith.constant 5.000000e-01 : f32
    %364 = vector.broadcast %cst_188 : f32 to vector<16x128xf32>
    %365 = arith.mulf %364, %363 : vector<16x128xf32>
    %366 = math.tanh %365 : vector<16x128xf32>
    %cst_189 = arith.constant 1.000000e+00 : f32
    %367 = vector.broadcast %cst_189 : f32 to vector<16x128xf32>
    %368 = arith.addf %367, %366 : vector<16x128xf32>
    %cst_190 = arith.constant 5.000000e-01 : f32
    %369 = vector.broadcast %cst_190 : f32 to vector<16x128xf32>
    %370 = arith.mulf %369, %368 : vector<16x128xf32>
    %c0_191 = arith.constant 0 : index
    %c0_192 = arith.constant 0 : index
    %371 = vector.load %arg9[%c0_191, %c0_192] : memref<16x128xf32, #tpu.memory_space<vmem>>, vector<16x128xf32>
    %372 = arith.mulf %360, %371 : vector<16x128xf32>
    %373 = arith.mulf %352, %362 : vector<16x128xf32>
    %374 = arith.addf %372, %373 : vector<16x128xf32>
    %375 = math.tanh %374 : vector<16x128xf32>
    %376 = arith.mulf %370, %375 : vector<16x128xf32>
    %377 = arith.addi %7, %334 : i32
    %378 = vector.broadcast %377 : i32 to vector<16x1xi32>
    %379 = arith.cmpi sge, %378, %4 : vector<16x1xi32>
    %380 = vector.broadcast %377 : i32 to vector<16x1xi32>
    %381 = arith.cmpi slt, %380, %6 : vector<16x1xi32>
    %382 = arith.andi %379, %381 : vector<16x1xi1>
    %c0_193 = arith.constant 0 : index
    %c0_194 = arith.constant 0 : index
    %383 = vector.load %arg8[%c0_193, %c0_194] : memref<16x128xf32, #tpu.memory_space<vmem>>, vector<16x128xf32>
    %384 = vector.shape_cast %382 : vector<16x1xi1> to vector<16x1xi1>
    %385 = vector.broadcast %384 : vector<16x1xi1> to vector<16x128xi1>
    %386 = arith.select %385, %376, %383 : vector<16x128xi1>, vector<16x128xf32>
    %c0_195 = arith.constant 0 : index
    %c0_196 = arith.constant 0 : index
    %387 = vector.load %arg9[%c0_195, %c0_196] : memref<16x128xf32, #tpu.memory_space<vmem>>, vector<16x128xf32>
    %388 = vector.shape_cast %382 : vector<16x1xi1> to vector<16x1xi1>
    %389 = vector.broadcast %388 : vector<16x1xi1> to vector<16x128xi1>
    %390 = arith.select %389, %374, %387 : vector<16x128xi1>, vector<16x128xf32>
    %c0_197 = arith.constant 0 : index
    %c0_198 = arith.constant 0 : index
    %391 = vector.load %arg8[%c0_197, %c0_198] : memref<16x128xf32, #tpu.memory_space<vmem>>, vector<16x128xf32>
    tpu.vector_store %arg8[%c0_197, %c0_198], %386 {strides = array<i32>} : memref<16x128xf32, #tpu.memory_space<vmem>>, vector<16x128xf32>,
    %c0_199 = arith.constant 0 : index
    %c0_200 = arith.constant 0 : index
    %392 = vector.load %arg9[%c0_199, %c0_200] : memref<16x128xf32, #tpu.memory_space<vmem>>, vector<16x128xf32>
    tpu.vector_store %arg9[%c0_199, %c0_200], %390 {strides = array<i32>} : memref<16x128xf32, #tpu.memory_space<vmem>>, vector<16x128xf32>,
    %393 = arith.truncf %386 : vector<16x128xf32> to vector<16x128xbf16>
    %c0_201 = arith.constant 0 : index
    %394 = arith.index_cast %334 : i32 to index
    %c0_202 = arith.constant 0 : index
    %c0_203 = arith.constant 0 : index
    %395 = vector.load %arg6[%c0_201, %394, %c0_202, %c0_203] : memref<1x8x16x128xbf16, #tpu.memory_space<vmem>>, vector<1x1x16x128xbf16>
    %396 = vector.shape_cast %395 : vector<1x1x16x128xbf16> to vector<16x128xbf16>
    %397 = vector.shape_cast %393 : vector<16x128xbf16> to vector<1x1x16x128xbf16>
    tpu.vector_store %arg6[%c0_201, %394, %c0_202, %c0_203], %397 {strides = array<i32>} : memref<1x8x16x128xbf16, #tpu.memory_space<vmem>>, vector<1x1x16x128xbf16>,
    %c6_i32 = arith.constant 6 : i32
    %c1_i32_204 = arith.constant 1 : i32
    %398 = arith.muli %c6_i32, %c1_i32_204 : i32
    %c0_i32_205 = arith.constant 0 : i32
    %399 = arith.addi %c0_i32_205, %398 : i32
    %c0_206 = arith.constant 0 : index
    %400 = arith.index_cast %399 : i32 to index
    %c0_207 = arith.constant 0 : index
    %c0_208 = arith.constant 0 : index
    %401 = vector.load %arg4[%c0_206, %400, %c0_207, %c0_208] : memref<1x8x16x512xbf16, #tpu.memory_space<vmem>>, vector<1x1x16x512xbf16>
    %402 = vector.shape_cast %401 : vector<1x1x16x512xbf16> to vector<16x512xbf16>
    %403 = arith.extf %402 : vector<16x512xbf16> to vector<16x512xf32>
    %c0_209 = arith.constant 0 : index
    %c0_210 = arith.constant 0 : index
    %404 = vector.load %arg8[%c0_209, %c0_210] : memref<16x128xf32, #tpu.memory_space<vmem>>, vector<16x128xf32>
    %405 = arith.truncf %404 : vector<16x128xf32> to vector<16x128xbf16>
    %c0_211 = arith.constant 0 : index
    %c0_212 = arith.constant 0 : index
    %c0_213 = arith.constant 0 : index
    %406 = vector.load %arg5[%c0_211, %c0_212, %c0_213] : memref<1x128x512xbf16, #tpu.memory_space<vmem>>, vector<1x128x512xbf16>
    %407 = vector.shape_cast %406 : vector<1x128x512xbf16> to vector<128x512xbf16>
    %cst_214 = arith.constant dense<0.000000e+00> : vector<16x512xf32>
    %408 = tpu.matmul %405, %407, %cst_214 {dimension_numbers = #tpu.dot_dimension_numbers<[1], [0], [0], [1], [0, 0, 1, 1], [], []>} : vector<16x128xbf16>, vector<128x512xbf16>, vector<16x512xf32> -> vector<16x512xf32>
    %409 = arith.addf %403, %408 : vector<16x512xf32>
    %410 = vector.extract_strided_slice %409 {offsets = [0, 0], sizes = [16, 128], strides = [1, 1]} : vector<16x512xf32> to vector<16x128xf32>
    %cst_215 = arith.constant 5.000000e-01 : f32
    %411 = vector.broadcast %cst_215 : f32 to vector<16x128xf32>
    %412 = arith.mulf %411, %410 : vector<16x128xf32>
    %413 = math.tanh %412 : vector<16x128xf32>
    %cst_216 = arith.constant 1.000000e+00 : f32
    %414 = vector.broadcast %cst_216 : f32 to vector<16x128xf32>
    %415 = arith.addf %414, %413 : vector<16x128xf32>
    %cst_217 = arith.constant 5.000000e-01 : f32
    %416 = vector.broadcast %cst_217 : f32 to vector<16x128xf32>
    %417 = arith.mulf %416, %415 : vector<16x128xf32>
    %418 = vector.extract_strided_slice %409 {offsets = [0, 128], sizes = [16, 128], strides = [1, 1]} : vector<16x512xf32> to vector<16x128xf32>
    %cst_218 = arith.constant 5.000000e-01 : f32
    %419 = vector.broadcast %cst_218 : f32 to vector<16x128xf32>
    %420 = arith.mulf %419, %418 : vector<16x128xf32>
    %421 = math.tanh %420 : vector<16x128xf32>
    %cst_219 = arith.constant 1.000000e+00 : f32
    %422 = vector.broadcast %cst_219 : f32 to vector<16x128xf32>
    %423 = arith.addf %422, %421 : vector<16x128xf32>
    %cst_220 = arith.constant 5.000000e-01 : f32
    %424 = vector.broadcast %cst_220 : f32 to vector<16x128xf32>
    %425 = arith.mulf %424, %423 : vector<16x128xf32>
    %426 = vector.extract_strided_slice %409 {offsets = [0, 256], sizes = [16, 128], strides = [1, 1]} : vector<16x512xf32> to vector<16x128xf32>
    %427 = math.tanh %426 : vector<16x128xf32>
    %428 = vector.extract_strided_slice %409 {offsets = [0, 384], sizes = [16, 128], strides = [1, 1]} : vector<16x512xf32> to vector<16x128xf32>
    %cst_221 = arith.constant 5.000000e-01 : f32
    %429 = vector.broadcast %cst_221 : f32 to vector<16x128xf32>
    %430 = arith.mulf %429, %428 : vector<16x128xf32>
    %431 = math.tanh %430 : vector<16x128xf32>
    %cst_222 = arith.constant 1.000000e+00 : f32
    %432 = vector.broadcast %cst_222 : f32 to vector<16x128xf32>
    %433 = arith.addf %432, %431 : vector<16x128xf32>
    %cst_223 = arith.constant 5.000000e-01 : f32
    %434 = vector.broadcast %cst_223 : f32 to vector<16x128xf32>
    %435 = arith.mulf %434, %433 : vector<16x128xf32>
    %c0_224 = arith.constant 0 : index
    %c0_225 = arith.constant 0 : index
    %436 = vector.load %arg9[%c0_224, %c0_225] : memref<16x128xf32, #tpu.memory_space<vmem>>, vector<16x128xf32>
    %437 = arith.mulf %425, %436 : vector<16x128xf32>
    %438 = arith.mulf %417, %427 : vector<16x128xf32>
    %439 = arith.addf %437, %438 : vector<16x128xf32>
    %440 = math.tanh %439 : vector<16x128xf32>
    %441 = arith.mulf %435, %440 : vector<16x128xf32>
    %442 = arith.addi %7, %399 : i32
    %443 = vector.broadcast %442 : i32 to vector<16x1xi32>
    %444 = arith.cmpi sge, %443, %4 : vector<16x1xi32>
    %445 = vector.broadcast %442 : i32 to vector<16x1xi32>
    %446 = arith.cmpi slt, %445, %6 : vector<16x1xi32>
    %447 = arith.andi %444, %446 : vector<16x1xi1>
    %c0_226 = arith.constant 0 : index
    %c0_227 = arith.constant 0 : index
    %448 = vector.load %arg8[%c0_226, %c0_227] : memref<16x128xf32, #tpu.memory_space<vmem>>, vector<16x128xf32>
    %449 = vector.shape_cast %447 : vector<16x1xi1> to vector<16x1xi1>
    %450 = vector.broadcast %449 : vector<16x1xi1> to vector<16x128xi1>
    %451 = arith.select %450, %441, %448 : vector<16x128xi1>, vector<16x128xf32>
    %c0_228 = arith.constant 0 : index
    %c0_229 = arith.constant 0 : index
    %452 = vector.load %arg9[%c0_228, %c0_229] : memref<16x128xf32, #tpu.memory_space<vmem>>, vector<16x128xf32>
    %453 = vector.shape_cast %447 : vector<16x1xi1> to vector<16x1xi1>
    %454 = vector.broadcast %453 : vector<16x1xi1> to vector<16x128xi1>
    %455 = arith.select %454, %439, %452 : vector<16x128xi1>, vector<16x128xf32>
    %c0_230 = arith.constant 0 : index
    %c0_231 = arith.constant 0 : index
    %456 = vector.load %arg8[%c0_230, %c0_231] : memref<16x128xf32, #tpu.memory_space<vmem>>, vector<16x128xf32>
    tpu.vector_store %arg8[%c0_230, %c0_231], %451 {strides = array<i32>} : memref<16x128xf32, #tpu.memory_space<vmem>>, vector<16x128xf32>,
    %c0_232 = arith.constant 0 : index
    %c0_233 = arith.constant 0 : index
    %457 = vector.load %arg9[%c0_232, %c0_233] : memref<16x128xf32, #tpu.memory_space<vmem>>, vector<16x128xf32>
    tpu.vector_store %arg9[%c0_232, %c0_233], %455 {strides = array<i32>} : memref<16x128xf32, #tpu.memory_space<vmem>>, vector<16x128xf32>,
    %458 = arith.truncf %451 : vector<16x128xf32> to vector<16x128xbf16>
    %c0_234 = arith.constant 0 : index
    %459 = arith.index_cast %399 : i32 to index
    %c0_235 = arith.constant 0 : index
    %c0_236 = arith.constant 0 : index
    %460 = vector.load %arg6[%c0_234, %459, %c0_235, %c0_236] : memref<1x8x16x128xbf16, #tpu.memory_space<vmem>>, vector<1x1x16x128xbf16>
    %461 = vector.shape_cast %460 : vector<1x1x16x128xbf16> to vector<16x128xbf16>
    %462 = vector.shape_cast %458 : vector<16x128xbf16> to vector<1x1x16x128xbf16>
    tpu.vector_store %arg6[%c0_234, %459, %c0_235, %c0_236], %462 {strides = array<i32>} : memref<1x8x16x128xbf16, #tpu.memory_space<vmem>>, vector<1x1x16x128xbf16>,
    %c7_i32 = arith.constant 7 : i32
    %c1_i32_237 = arith.constant 1 : i32
    %463 = arith.muli %c7_i32, %c1_i32_237 : i32
    %c0_i32_238 = arith.constant 0 : i32
    %464 = arith.addi %c0_i32_238, %463 : i32
    %c0_239 = arith.constant 0 : index
    %465 = arith.index_cast %464 : i32 to index
    %c0_240 = arith.constant 0 : index
    %c0_241 = arith.constant 0 : index
    %466 = vector.load %arg4[%c0_239, %465, %c0_240, %c0_241] : memref<1x8x16x512xbf16, #tpu.memory_space<vmem>>, vector<1x1x16x512xbf16>
    %467 = vector.shape_cast %466 : vector<1x1x16x512xbf16> to vector<16x512xbf16>
    %468 = arith.extf %467 : vector<16x512xbf16> to vector<16x512xf32>
    %c0_242 = arith.constant 0 : index
    %c0_243 = arith.constant 0 : index
    %469 = vector.load %arg8[%c0_242, %c0_243] : memref<16x128xf32, #tpu.memory_space<vmem>>, vector<16x128xf32>
    %470 = arith.truncf %469 : vector<16x128xf32> to vector<16x128xbf16>
    %c0_244 = arith.constant 0 : index
    %c0_245 = arith.constant 0 : index
    %c0_246 = arith.constant 0 : index
    %471 = vector.load %arg5[%c0_244, %c0_245, %c0_246] : memref<1x128x512xbf16, #tpu.memory_space<vmem>>, vector<1x128x512xbf16>
    %472 = vector.shape_cast %471 : vector<1x128x512xbf16> to vector<128x512xbf16>
    %cst_247 = arith.constant dense<0.000000e+00> : vector<16x512xf32>
    %473 = tpu.matmul %470, %472, %cst_247 {dimension_numbers = #tpu.dot_dimension_numbers<[1], [0], [0], [1], [0, 0, 1, 1], [], []>} : vector<16x128xbf16>, vector<128x512xbf16>, vector<16x512xf32> -> vector<16x512xf32>
    %474 = arith.addf %468, %473 : vector<16x512xf32>
    %475 = vector.extract_strided_slice %474 {offsets = [0, 0], sizes = [16, 128], strides = [1, 1]} : vector<16x512xf32> to vector<16x128xf32>
    %cst_248 = arith.constant 5.000000e-01 : f32
    %476 = vector.broadcast %cst_248 : f32 to vector<16x128xf32>
    %477 = arith.mulf %476, %475 : vector<16x128xf32>
    %478 = math.tanh %477 : vector<16x128xf32>
    %cst_249 = arith.constant 1.000000e+00 : f32
    %479 = vector.broadcast %cst_249 : f32 to vector<16x128xf32>
    %480 = arith.addf %479, %478 : vector<16x128xf32>
    %cst_250 = arith.constant 5.000000e-01 : f32
    %481 = vector.broadcast %cst_250 : f32 to vector<16x128xf32>
    %482 = arith.mulf %481, %480 : vector<16x128xf32>
    %483 = vector.extract_strided_slice %474 {offsets = [0, 128], sizes = [16, 128], strides = [1, 1]} : vector<16x512xf32> to vector<16x128xf32>
    %cst_251 = arith.constant 5.000000e-01 : f32
    %484 = vector.broadcast %cst_251 : f32 to vector<16x128xf32>
    %485 = arith.mulf %484, %483 : vector<16x128xf32>
    %486 = math.tanh %485 : vector<16x128xf32>
    %cst_252 = arith.constant 1.000000e+00 : f32
    %487 = vector.broadcast %cst_252 : f32 to vector<16x128xf32>
    %488 = arith.addf %487, %486 : vector<16x128xf32>
    %cst_253 = arith.constant 5.000000e-01 : f32
    %489 = vector.broadcast %cst_253 : f32 to vector<16x128xf32>
    %490 = arith.mulf %489, %488 : vector<16x128xf32>
    %491 = vector.extract_strided_slice %474 {offsets = [0, 256], sizes = [16, 128], strides = [1, 1]} : vector<16x512xf32> to vector<16x128xf32>
    %492 = math.tanh %491 : vector<16x128xf32>
    %493 = vector.extract_strided_slice %474 {offsets = [0, 384], sizes = [16, 128], strides = [1, 1]} : vector<16x512xf32> to vector<16x128xf32>
    %cst_254 = arith.constant 5.000000e-01 : f32
    %494 = vector.broadcast %cst_254 : f32 to vector<16x128xf32>
    %495 = arith.mulf %494, %493 : vector<16x128xf32>
    %496 = math.tanh %495 : vector<16x128xf32>
    %cst_255 = arith.constant 1.000000e+00 : f32
    %497 = vector.broadcast %cst_255 : f32 to vector<16x128xf32>
    %498 = arith.addf %497, %496 : vector<16x128xf32>
    %cst_256 = arith.constant 5.000000e-01 : f32
    %499 = vector.broadcast %cst_256 : f32 to vector<16x128xf32>
    %500 = arith.mulf %499, %498 : vector<16x128xf32>
    %c0_257 = arith.constant 0 : index
    %c0_258 = arith.constant 0 : index
    %501 = vector.load %arg9[%c0_257, %c0_258] : memref<16x128xf32, #tpu.memory_space<vmem>>, vector<16x128xf32>
    %502 = arith.mulf %490, %501 : vector<16x128xf32>
    %503 = arith.mulf %482, %492 : vector<16x128xf32>
    %504 = arith.addf %502, %503 : vector<16x128xf32>
    %505 = math.tanh %504 : vector<16x128xf32>
    %506 = arith.mulf %500, %505 : vector<16x128xf32>
    %507 = arith.addi %7, %464 : i32
    %508 = vector.broadcast %507 : i32 to vector<16x1xi32>
    %509 = arith.cmpi sge, %508, %4 : vector<16x1xi32>
    %510 = vector.broadcast %507 : i32 to vector<16x1xi32>
    %511 = arith.cmpi slt, %510, %6 : vector<16x1xi32>
    %512 = arith.andi %509, %511 : vector<16x1xi1>
    %c0_259 = arith.constant 0 : index
    %c0_260 = arith.constant 0 : index
    %513 = vector.load %arg8[%c0_259, %c0_260] : memref<16x128xf32, #tpu.memory_space<vmem>>, vector<16x128xf32>
    %514 = vector.shape_cast %512 : vector<16x1xi1> to vector<16x1xi1>
    %515 = vector.broadcast %514 : vector<16x1xi1> to vector<16x128xi1>
    %516 = arith.select %515, %506, %513 : vector<16x128xi1>, vector<16x128xf32>
    %c0_261 = arith.constant 0 : index
    %c0_262 = arith.constant 0 : index
    %517 = vector.load %arg9[%c0_261, %c0_262] : memref<16x128xf32, #tpu.memory_space<vmem>>, vector<16x128xf32>
    %518 = vector.shape_cast %512 : vector<16x1xi1> to vector<16x1xi1>
    %519 = vector.broadcast %518 : vector<16x1xi1> to vector<16x128xi1>
    %520 = arith.select %519, %504, %517 : vector<16x128xi1>, vector<16x128xf32>
    %c0_263 = arith.constant 0 : index
    %c0_264 = arith.constant 0 : index
    %521 = vector.load %arg8[%c0_263, %c0_264] : memref<16x128xf32, #tpu.memory_space<vmem>>, vector<16x128xf32>
    tpu.vector_store %arg8[%c0_263, %c0_264], %516 {strides = array<i32>} : memref<16x128xf32, #tpu.memory_space<vmem>>, vector<16x128xf32>,
    %c0_265 = arith.constant 0 : index
    %c0_266 = arith.constant 0 : index
    %522 = vector.load %arg9[%c0_265, %c0_266] : memref<16x128xf32, #tpu.memory_space<vmem>>, vector<16x128xf32>
    tpu.vector_store %arg9[%c0_265, %c0_266], %520 {strides = array<i32>} : memref<16x128xf32, #tpu.memory_space<vmem>>, vector<16x128xf32>,
    %523 = arith.truncf %516 : vector<16x128xf32> to vector<16x128xbf16>
    %c0_267 = arith.constant 0 : index
    %524 = arith.index_cast %464 : i32 to index
    %c0_268 = arith.constant 0 : index
    %c0_269 = arith.constant 0 : index
    %525 = vector.load %arg6[%c0_267, %524, %c0_268, %c0_269] : memref<1x8x16x128xbf16, #tpu.memory_space<vmem>>, vector<1x1x16x128xbf16>
    %526 = vector.shape_cast %525 : vector<1x1x16x128xbf16> to vector<16x128xbf16>
    %527 = vector.shape_cast %523 : vector<16x128xbf16> to vector<1x1x16x128xbf16>
    tpu.vector_store %arg6[%c0_267, %524, %c0_268, %c0_269], %527 {strides = array<i32>} : memref<1x8x16x128xbf16, #tpu.memory_space<vmem>>, vector<1x1x16x128xbf16>,
    %c8_i32_270 = arith.constant 8 : i32
    %c0_271 = arith.constant 0 : index
    %c0_272 = arith.constant 0 : index
    %528 = vector.load %arg8[%c0_271, %c0_272] : memref<16x128xf32, #tpu.memory_space<vmem>>, vector<16x128xf32>
    %c0_273 = arith.constant 0 : index
    %c0_274 = arith.constant 0 : index
    %c0_275 = arith.constant 0 : index
    %529 = vector.load %arg7[%c0_273, %c0_274, %c0_275] : memref<1x16x128xf32, #tpu.memory_space<vmem>>, vector<1x16x128xf32>
    %530 = vector.shape_cast %529 : vector<1x16x128xf32> to vector<16x128xf32>
    %531 = vector.shape_cast %528 : vector<16x128xf32> to vector<1x16x128xf32>
    tpu.vector_store %arg7[%c0_273, %c0_274, %c0_275], %531 {strides = array<i32>} : memref<1x16x128xf32, #tpu.memory_space<vmem>>, vector<1x16x128xf32>,
    return
  }
  func.func @transform_0(%arg0: i32, %arg1: i32) -> (i32, i32, i32) {
    %c0_i32 = arith.constant 0 : i32
    %c0_i32_0 = arith.constant 0 : i32
    %c0_i32_1 = arith.constant 0 : i32
    return %arg0, %c0_i32, %c0_i32_0 : i32, i32, i32
  }
  func.func @transform_1(%arg0: i32, %arg1: i32) -> (i32, i32, i32) {
    %c0_i32 = arith.constant 0 : i32
    %c0_i32_0 = arith.constant 0 : i32
    %c0_i32_1 = arith.constant 0 : i32
    return %arg0, %c0_i32, %c0_i32_0 : i32, i32, i32
  }
  func.func @transform_2(%arg0: i32, %arg1: i32) -> (i32, i32, i32, i32) {
    %c0_i32 = arith.constant 0 : i32
    %c0_i32_0 = arith.constant 0 : i32
    %c0_i32_1 = arith.constant 0 : i32
    return %arg0, %arg1, %c0_i32, %c0_i32_0 : i32, i32, i32, i32
  }
  func.func @transform_3(%arg0: i32, %arg1: i32) -> (i32, i32, i32) {
    %c0_i32 = arith.constant 0 : i32
    %c0_i32_0 = arith.constant 0 : i32
    %c0_i32_1 = arith.constant 0 : i32
    return %arg0, %c0_i32, %c0_i32_0 : i32, i32, i32
  }
  func.func @transform_4(%arg0: i32, %arg1: i32) -> (i32, i32, i32, i32) {
    %c0_i32 = arith.constant 0 : i32
    %c0_i32_0 = arith.constant 0 : i32
    %c0_i32_1 = arith.constant 0 : i32
    return %arg0, %arg1, %c0_i32, %c0_i32_0 : i32, i32, i32, i32
  }
  func.func @transform_5(%arg0: i32, %arg1: i32) -> (i32, i32, i32) {
    %c0_i32 = arith.constant 0 : i32
    %c0_i32_0 = arith.constant 0 : i32
    %c0_i32_1 = arith.constant 0 : i32
    return %arg0, %c0_i32, %c0_i32_0 : i32, i32, i32
  }
}

</mosaic_0001>

<llo_original>
// kernel: _lambda_.3
$region0: #{_lambda_.3}
  #allocation0 [shape = 'u32[]', space=smem, size = 0x4, offset = 0x4, fixed_abs, tag = 'smem constant byte address 0x4 - core index']
  #allocation1 [shape = 'u32[144,128]{1,0:T(1,128)}', space=vmem, size = 0x12000, scoped, tag = 'internal scratch']
  #allocation2 [shape = 'f32[16,128]{1,0:T(8,128)}', space=vmem, size = 0x2000, scoped, tag = 'scratch operand']
  #allocation3 [shape = 'f32[16,128]{1,0:T(8,128)}', space=vmem, size = 0x2000, scoped, tag = 'scratch operand']
  %s0 = inlined_call_operand.vmem [shape: s32[2,16,1], index: 0, kind: input, shape index: {}]
  %s1 = inlined_call_operand.vmem [shape: s32[2,16,1], index: 1, kind: input, shape index: {}]
  %s2 = inlined_call_operand.vmem [shape: bf16[2,8,16,512], index: 2, kind: input, shape index: {}]
  %s3 = inlined_call_operand.vmem [shape: bf16[2,128,512], index: 3, kind: input, shape index: {}]
  %s4 = inlined_call_operand.hbm [shape: bf16[2,8,16,128], index: 4, kind: output, shape index: {0}]
  %s5 = inlined_call_operand.vmem [shape: f32[2,16,128], index: 5, kind: output, shape index: {1}]
  %6 = xla_tuple %s4, %s5
  %s7 = sld [smem:[#allocation0]]
  $region61: #{_lambda_.3} parent=0
    _
  %s9 = ssub.s32 1, %s7
  %s10 = scalar_select 0, %s9, %s7
  $region1: #{_lambda_.3} parent=0
    #allocation4 [shape = 'u8[65536]{0}', space=vmem, size = 0x10000, scoped, tag = 'output window, operand 0']
    #allocation5 [shape = 's32[2]{0}', space=sflag, size = 0x8, scoped, tag = 'scoped memory for _lambda_.3']
    %11 = vsyncpa [#allocation5], 0
    %s12 = scalar_lea.sflag [#allocation5], 1
    %13 = vsyncpa %s12, 0
    loop: start=0, step=1, limit=4
    $region2: #{_lambda_.3} parent=1 // loop_pre_header
      _
    $region3: #{_lambda_.3} parent=1 // loop_header
      %s15 = sphi 0, %s19
      %p16 = scmp.ge.s32.totalorder %s15, 4
      %s22 = sphi 0, %s34
      %s23 = sphi 0, %s30
      %s24 = sphi 0, %s22
      %s25 = sphi 0, %s23
      %s26 = sphi 0, %s24
      %s27 = sphi 0, %s25
      %s37 = sphi 0, %s39
      %s40 = sphi 0, %s37
      %s41 = sphi 0, %s40
      %s57 = sphi 0, %s41
      %s63 = sphi 0, %s65
      %s66 = sphi 0, %s63
      %s67 = sphi 0, %s66
      %s83 = sphi 0, %s67
      %s91 = sphi 0, %s93
      %s94 = sphi 0, %s91
      %s95 = sphi 0, %s94
      %s111 = sphi 0, %s95
      %s117 = sphi 0, %s119
      %s120 = sphi 0, %s117
      %s121 = sphi 0, %s120
      %s137 = sphi 0, %s121
      %s145 = sphi 0, %s147
      %s148 = sphi 0, %s145
      %s149 = sphi 0, %s148
      %s165 = sphi 0, %s149
      %s171 = sphi 0, %s173
      %s174 = sphi 0, %s171
      %s175 = sphi 0, %s174
      %s191 = sphi 0, %s175
    $region4: #{_lambda_.3} parent=1 // loop_header_branch
      %18 = sbr.rel (%p16) target = $region8
    $region5: #{_lambda_.3} parent=1 // loop_body
      %s20 = ssub.s32 %s15, 1
      %s21 = ssub.s32 %s15, 2
      %s28 = sadd.s32 1, %s23
      %p29 = scmp.ge.s32.totalorder %s28, 1
      %s30 = scalar_select %p29, 0, %s28
      %s31 = sadd.s32 1, %s22
      %s32 = scalar_select %p29, %s31, %s22
      %p33 = scmp.ge.s32.totalorder %s32, 2
      %s34 = scalar_select %p33, 0, %s32
      %s35 = ssub.s32 %s22, %s34
      %p36 = scmp.eq.s32.totalorder %s35, 0
      %s38 = sadd.s32 %s37, 1
      %s39 = scalar_select %p36, %s37, %s38
      %p42 = pneg %p36
      %p43 = scmp.eq.s32.totalorder %s15, 1
      %p44 = por %p42, %p43
      %p45 = scmp.ne.s32.totalorder %s37, %s40
      %p46 = scmp.eq.s32.totalorder %s15, 0
      %p47 = por %p45, %p46
      %p48 = scmp.ne.s32.totalorder %s37, %s40
      %p49 = scmp.eq.s32.totalorder %s20, 1
      %p50 = por %p48, %p49
      %p51 = scmp.ne.s32.totalorder %s40, %s41
      %p52 = scmp.eq.s32.totalorder %s20, 0
      %p53 = por %p51, %p52
      %p54 = scmp.ne.s32.totalorder %s40, %s41
      %p55 = scmp.eq.s32.totalorder %s21, 1
      %p56 = por %p54, %p55
      %p58 = scmp.ne.s32.totalorder %s41, %s57
      %p59 = scmp.eq.s32.totalorder %s21, 0
      %p60 = por %p58, %p59
      %s61 = ssub.s32 %s22, %s34
      %p62 = scmp.eq.s32.totalorder %s61, 0
      %s64 = sadd.s32 %s63, 1
      %s65 = scalar_select %p62, %s63, %s64
      %p68 = pneg %p62
      %p69 = scmp.eq.s32.totalorder %s15, 1
      %p70 = por %p68, %p69
      %p71 = scmp.ne.s32.totalorder %s63, %s66
      %p72 = scmp.eq.s32.totalorder %s15, 0
      %p73 = por %p71, %p72
      %p74 = scmp.ne.s32.totalorder %s63, %s66
      %p75 = scmp.eq.s32.totalorder %s20, 1
      %p76 = por %p74, %p75
      %p77 = scmp.ne.s32.totalorder %s66, %s67
      %p78 = scmp.eq.s32.totalorder %s20, 0
      %p79 = por %p77, %p78
      %p80 = scmp.ne.s32.totalorder %s66, %s67
      %p81 = scmp.eq.s32.totalorder %s21, 1
      %p82 = por %p80, %p81
      %p84 = scmp.ne.s32.totalorder %s67, %s83
      %p85 = scmp.eq.s32.totalorder %s21, 0
      %p86 = por %p84, %p85
      %s87 = ssub.s32 %s22, %s34
      %s88 = ssub.s32 %s23, %s30
      %s89 = sor.u32 %s87, %s88
      %p90 = scmp.eq.s32.totalorder %s89, 0
      %s92 = sadd.s32 %s91, 1
      %s93 = scalar_select %p90, %s91, %s92
      %p96 = pneg %p90
      %p97 = scmp.eq.s32.totalorder %s15, 1
      %p98 = por %p96, %p97
      %p99 = scmp.ne.s32.totalorder %s91, %s94
      %p100 = scmp.eq.s32.totalorder %s15, 0
      %p101 = por %p99, %p100
      %p102 = scmp.ne.s32.totalorder %s91, %s94
      %p103 = scmp.eq.s32.totalorder %s20, 1
      %p104 = por %p102, %p103
      %p105 = scmp.ne.s32.totalorder %s94, %s95
      %p106 = scmp.eq.s32.totalorder %s20, 0
      %p107 = por %p105, %p106
      %p108 = scmp.ne.s32.totalorder %s94, %s95
      %p109 = scmp.eq.s32.totalorder %s21, 1
      %p110 = por %p108, %p109
      %p112 = scmp.ne.s32.totalorder %s95, %s111
      %p113 = scmp.eq.s32.totalorder %s21, 0
      %p114 = por %p112, %p113
      %s115 = ssub.s32 %s22, %s34
      %p116 = scmp.eq.s32.totalorder %s115, 0
      %s118 = sadd.s32 %s117, 1
      %s119 = scalar_select %p116, %s117, %s118
      %p122 = pneg %p116
      %p123 = scmp.eq.s32.totalorder %s15, 1
      %p124 = por %p122, %p123
      %p125 = scmp.ne.s32.totalorder %s117, %s120
      %p126 = scmp.eq.s32.totalorder %s15, 0
      %p127 = por %p125, %p126
      %p128 = scmp.ne.s32.totalorder %s117, %s120
      %p129 = scmp.eq.s32.totalorder %s20, 1
      %p130 = por %p128, %p129
      %p131 = scmp.ne.s32.totalorder %s120, %s121
      %p132 = scmp.eq.s32.totalorder %s20, 0
      %p133 = por %p131, %p132
      %p134 = scmp.ne.s32.totalorder %s120, %s121
      %p135 = scmp.eq.s32.totalorder %s21, 1
      %p136 = por %p134, %p135
      %p138 = scmp.ne.s32.totalorder %s121, %s137
      %p139 = scmp.eq.s32.totalorder %s21, 0
      %p140 = por %p138, %p139
      %s141 = ssub.s32 %s22, %s34
      %s142 = ssub.s32 %s23, %s30
      %s143 = sor.u32 %s141, %s142
      %p144 = scmp.eq.s32.totalorder %s143, 0
      %s146 = sadd.s32 %s145, 1
      %s147 = scalar_select %p144, %s145, %s146
      %p150 = pneg %p144
      %p151 = scmp.eq.s32.totalorder %s15, 1
      %p152 = por %p150, %p151
      %p153 = scmp.ne.s32.totalorder %s145, %s148
      %p154 = scmp.eq.s32.totalorder %s15, 0
      %p155 = por %p153, %p154
      %p156 = scmp.ne.s32.totalorder %s145, %s148
      %p157 = scmp.eq.s32.totalorder %s20, 1
      %p158 = por %p156, %p157
      %p159 = scmp.ne.s32.totalorder %s148, %s149
      %p160 = scmp.eq.s32.totalorder %s20, 0
      %p161 = por %p159, %p160
      %p162 = scmp.ne.s32.totalorder %s148, %s149
      %p163 = scmp.eq.s32.totalorder %s21, 1
      %p164 = por %p162, %p163
      %p166 = scmp.ne.s32.totalorder %s149, %s165
      %p167 = scmp.eq.s32.totalorder %s21, 0
      %p168 = por %p166, %p167
      %s169 = ssub.s32 %s22, %s34
      %p170 = scmp.eq.s32.totalorder %s169, 0
      %s172 = sadd.s32 %s171, 1
      %s173 = scalar_select %p170, %s171, %s172
      %p176 = pneg %p170
      %p177 = scmp.eq.s32.totalorder %s15, 1
      %p178 = por %p176, %p177
      %p179 = scmp.ne.s32.totalorder %s171, %s174
      %p180 = scmp.eq.s32.totalorder %s15, 0
      %p181 = por %p179, %p180
      %p182 = scmp.ne.s32.totalorder %s171, %s174
      %p183 = scmp.eq.s32.totalorder %s20, 1
      %p184 = por %p182, %p183
      %p185 = scmp.ne.s32.totalorder %s174, %s175
      %p186 = scmp.eq.s32.totalorder %s20, 0
      %p187 = por %p185, %p186
      %p188 = scmp.ne.s32.totalorder %s174, %s175
      %p189 = scmp.eq.s32.totalorder %s21, 1
      %p190 = por %p188, %p189
      %p192 = scmp.ne.s32.totalorder %s175, %s191
      %p193 = scmp.eq.s32.totalorder %s21, 0
      %p194 = por %p192, %p193
      %p195 = scmp.le.s32.totalorder 1, %s15
      %p196 = scmp.lt.s32.totalorder %s15, 3
      %p197 = pnand %p195, %p196
      %p198 = pneg %p197
      // Predicated region
      $region9: #{_lambda_.3} parent=5 // pred_check
        _
      $region10: #{_lambda_.3} parent=5 // pred_check_branch
        %200 = sbr.rel (%p197) target = $region12
      $region11: #{_lambda_.3} parent=5 // pred_region
        %s201 = ssub.s32 %s15, 1
      $region12: #{_lambda_.3} parent=5 // pred_fallthru
        _
      %p202 = scmp.lt.s32.totalorder %s15, 2
      // Predicated region
      $region13: #{_lambda_.3} parent=5 // pred_check
        %p203 = pneg %p202
      $region14: #{_lambda_.3} parent=5 // pred_check_branch
        %205 = sbr.rel (%p203) target = $region16
      $region15: #{_lambda_.3} parent=5 // pred_region
        // Predicated region
        $region17: #{_lambda_.3} parent=15 // pred_check
          %p206 = pneg %p47
        $region18: #{_lambda_.3} parent=15 // pred_check_branch
          %208 = sbr.rel (%p206) target = $region20
        $region19: #{_lambda_.3} parent=15 // pred_region
          %p209 = scmp.lt.s32.totalorder %s22, 1
          %s210 = scalar_select %p209, %s22, 1
          %s211 = smul.addr %s210, 2
          %s212 = smul.addr %s211, 8
          %s213 = scalar_lea.vmem %s0, %s212
        $region20: #{_lambda_.3} parent=15 // pred_fallthru
          _
        // Predicated region
        $region21: #{_lambda_.3} parent=15 // pred_check
          %p214 = pneg %p73
        $region22: #{_lambda_.3} parent=15 // pred_check_branch
          %216 = sbr.rel (%p214) target = $region24
        $region23: #{_lambda_.3} parent=15 // pred_region
          %p217 = scmp.lt.s32.totalorder %s22, 1
          %s218 = scalar_select %p217, %s22, 1
          %s219 = smul.addr %s218, 2
          %s220 = smul.addr %s219, 8
          %s221 = scalar_lea.vmem %s1, %s220
        $region24: #{_lambda_.3} parent=15 // pred_fallthru
          _
        // Predicated region
        $region25: #{_lambda_.3} parent=15 // pred_check
          %p222 = pneg %p101
        $region26: #{_lambda_.3} parent=15 // pred_check_branch
          %224 = sbr.rel (%p222) target = $region28
        $region27: #{_lambda_.3} parent=15 // pred_region
          %s225 = smul.u32 8, %s23
          %p226 = scmp.lt.s32.totalorder %s22, 1
          %s227 = scalar_select %p226, %s22, 1
          %p228 = scmp.lt.s32.totalorder %s225, 7
          %s229 = scalar_select %p228, %s225, 7
          %s230 = smul.addr %s229, 8
          %s231 = smul.addr %s227, 64
          %s232 = sadd.s32 %s230, %s231
          %s233 = smul.addr %s232, 4
          %s234 = scalar_lea.vmem %s2, %s233
          %s235 = smul.u32 8, %s23
        $region28: #{_lambda_.3} parent=15 // pred_fallthru
          _
        // Predicated region
        $region29: #{_lambda_.3} parent=15 // pred_check
          %p236 = pneg %p127
        $region30: #{_lambda_.3} parent=15 // pred_check_branch
          %238 = sbr.rel (%p236) target = $region32
        $region31: #{_lambda_.3} parent=15 // pred_region
          %p239 = scmp.lt.s32.totalorder %s22, 1
          %s240 = scalar_select %p239, %s22, 1
          %s241 = smul.addr %s240, 64
          %s242 = smul.addr %s241, 4
          %s243 = scalar_lea.vmem %s3, %s242
        $region32: #{_lambda_.3} parent=15 // pred_fallthru
          _
      $region16: #{_lambda_.3} parent=5 // pred_fallthru
        _
      %p244 = scmp.le.s32.totalorder 1, %s15
      %p245 = scmp.lt.s32.totalorder %s15, 3
      %p246 = pnand %p244, %p245
      %p247 = pneg %p246
      // Predicated region
      $region33: #{_lambda_.3} parent=5 // pred_check
        _
      $region34: #{_lambda_.3} parent=5 // pred_check_branch
        %249 = sbr.rel (%p246) target = $region36
      $region35: #{_lambda_.3} parent=5 // pred_region
        %s250 = ssub.s32 %s15, 1
        %p251 = scmp.lt.s32.totalorder %s24, 1
        %s252 = scalar_select %p251, %s24, 1
        %s253 = smul.addr %s252, 2
        %s254 = smul.addr %s253, 8
        %s255 = scalar_lea.vmem %s0, %s254
        %p256 = pneg %p53
        %p257 = pneg %p50
        %p258 = scmp.lt.s32.totalorder %s24, 1
        %s259 = scalar_select %p258, %s24, 1
        %s260 = smul.addr %s259, 2
        %s261 = smul.addr %s260, 8
        %s262 = scalar_lea.vmem %s1, %s261
        %p263 = pneg %p79
        %p264 = pneg %p76
        %s265 = smul.u32 8, %s25
        %p266 = scmp.lt.s32.totalorder %s24, 1
        %s267 = scalar_select %p266, %s24, 1
        %p268 = scmp.lt.s32.totalorder %s265, 7
        %s269 = scalar_select %p268, %s265, 7
        %s270 = smul.addr %s269, 8
        %s271 = smul.addr %s267, 64
        %s272 = sadd.s32 %s270, %s271
        %s273 = smul.addr %s272, 4
        %s274 = scalar_lea.vmem %s2, %s273
        %p275 = pneg %p107
        %p276 = pneg %p104
        %p277 = scmp.lt.s32.totalorder %s24, 1
        %s278 = scalar_select %p277, %s24, 1
        %s279 = smul.addr %s278, 64
        %s280 = smul.addr %s279, 4
        %s281 = scalar_lea.vmem %s3, %s280
        %p282 = pneg %p133
        %p283 = pneg %p130
        %p284 = pneg %p161
        %p285 = pneg %p158
        %s286 = sand.u32 %s148, 1
        %s287 = scalar_lea.sflag [#allocation5], %s286
        %s288 = sand.u32 %s148, 1
        %s289 = smul.addr %s288, 64
        %s290 = scalar_lea.vmem [#allocation4], %s289
        %p291 = pneg %p187
        %p292 = pneg %p184
        %p293 = scmp.lt.s32.totalorder %s24, 1
        %s294 = scalar_select %p293, %s24, 1
        %s295 = smul.addr %s294, 2
        %s296 = smul.addr %s295, 8
        %s297 = scalar_lea.vmem %s5, %s296
        %p298 = scmp.lt.s32.totalorder %s24, 1
        %s299 = scalar_select %p298, %s24, 1
        %s300 = smul.addr %s299, 2
        %s301 = smul.addr %s300, 8
        %s302 = scalar_lea.vmem %s0, %s301
        %p303 = scmp.lt.s32.totalorder %s24, 1
        %s304 = scalar_select %p303, %s24, 1
        %s305 = smul.addr %s304, 2
        %s306 = smul.addr %s305, 8
        %s307 = scalar_lea.vmem %s1, %s306
        %s308 = smul.u32 8, %s25
        %p309 = scmp.lt.s32.totalorder %s24, 1
        %s310 = scalar_select %p309, %s24, 1
        %p311 = scmp.lt.s32.totalorder %s308, 7
        %s312 = scalar_select %p311, %s308, 7
        %s313 = smul.addr %s312, 8
        %s314 = smul.addr %s310, 64
        %s315 = sadd.s32 %s313, %s314
        %s316 = smul.addr %s315, 4
        %s317 = scalar_lea.vmem %s2, %s316
        %s318 = smul.u32 8, %s25
        %p319 = scmp.lt.s32.totalorder %s24, 1
        %s320 = scalar_select %p319, %s24, 1
        %s321 = smul.addr %s320, 64
        %s322 = smul.addr %s321, 4
        %s323 = scalar_lea.vmem %s3, %s322
        %s324 = smul.u32 8, %s25
        %p325 = scmp.lt.s32.totalorder %s24, 1
        %s326 = scalar_select %p325, %s24, 1
        %s327 = smul.addr %s326, 2
        %s328 = smul.addr %s327, 8
        %s329 = scalar_lea.vmem %s5, %s328
        %p331 = scmp.eq.s32.totalorder %s25, 0
        // Predicated region
        $region37: #{_lambda_.3} parent=35 // pred_check
          %p332 = pneg %p331
        $region38: #{_lambda_.3} parent=35 // pred_check_branch
          %334 = sbr.rel (%p332) target = $region40
        $region39: #{_lambda_.3} parent=35 // pred_region
          %335 = vst [vmem:[#allocation2] sm:$0xff] 0.0
          %336 = vst [vmem:[#allocation2 + $0x8] sm:$0xff] 0.0
          %337 = vst [vmem:[#allocation3] sm:$0xff] 0.0
          %338 = vst [vmem:[#allocation3 + $0x8] sm:$0xff] 0.0
        $region40: #{_lambda_.3} parent=35 // pred_fallthru
          _
        %v339 = vld [vmem:[%s302] sm:$0xff]
        %v340 = vld [vmem:[%s302 + $0x8] sm:$0xff]
        %v341 = vld [vmem:[%s307] sm:$0xff]
        %v342 = vld [vmem:[%s307 + $0x8] sm:$0xff]
        %s343 = smul.u32 %s25, 8
        %v344 = vld [vmem:[%s317] sm:$0xff]
        %v345 = vld [vmem:[%s317 + $0x8] sm:$0xff]
        %v346 = vld [vmem:[%s317 + $0x10] sm:$0xff]
        %v347 = vld [vmem:[%s317 + $0x18] sm:$0xff]
        %v348 = vunpack.c.l.bf16 %v344
        %v349 = vunpack.c.h.bf16 %v344
        %v350 = vunpack.c.l.bf16 %v345
        %v351 = vunpack.c.h.bf16 %v345
        %v352 = vunpack.c.l.bf16 %v346
        %v353 = vunpack.c.h.bf16 %v346
        %v354 = vunpack.c.l.bf16 %v347
        %v355 = vunpack.c.h.bf16 %v347
        %v356 = vld [vmem:[#allocation2] sm:$0xff]
        %v357 = vld [vmem:[#allocation2 + $0x8] sm:$0xff]
        %v358 = vpack.c.bf16 %v357, %v356
        %v359 = vld [vmem:[%s323] sm:$0xff]
        %v360 = vld [vmem:[%s323 + $0x8] sm:$0xff]
        %v361 = vld [vmem:[%s323 + $0x10] sm:$0xff]
        %v362 = vld [vmem:[%s323 + $0x18] sm:$0xff]
        %v363 = vld [vmem:[%s323 + $0x20] sm:$0xff]
        %v364 = vld [vmem:[%s323 + $0x28] sm:$0xff]
        %v365 = vld [vmem:[%s323 + $0x30] sm:$0xff]
        %v366 = vld [vmem:[%s323 + $0x38] sm:$0xff]
        %v367 = vld [vmem:[%s323 + $0x40] sm:$0xff]
        %v368 = vld [vmem:[%s323 + $0x48] sm:$0xff]
        %v369 = vld [vmem:[%s323 + $0x50] sm:$0xff]
        %v370 = vld [vmem:[%s323 + $0x58] sm:$0xff]
        %v371 = vld [vmem:[%s323 + $0x60] sm:$0xff]
        %v372 = vld [vmem:[%s323 + $0x68] sm:$0xff]
        %v373 = vld [vmem:[%s323 + $0x70] sm:$0xff]
        %v374 = vld [vmem:[%s323 + $0x78] sm:$0xff]
        %v375 = vld [vmem:[%s323 + $0x80] sm:$0xff]
        %v376 = vld [vmem:[%s323 + $0x88] sm:$0xff]
        %v377 = vld [vmem:[%s323 + $0x90] sm:$0xff]
        %v378 = vld [vmem:[%s323 + $0x98] sm:$0xff]
        %v379 = vld [vmem:[%s323 + $0xa0] sm:$0xff]
        %v380 = vld [vmem:[%s323 + $0xa8] sm:$0xff]
        %v381 = vld [vmem:[%s323 + $0xb0] sm:$0xff]
        %v382 = vld [vmem:[%s323 + $0xb8] sm:$0xff]
        %v383 = vld [vmem:[%s323 + $0xc0] sm:$0xff]
        %v384 = vld [vmem:[%s323 + $0xc8] sm:$0xff]
        %v385 = vld [vmem:[%s323 + $0xd0] sm:$0xff]
        %v386 = vld [vmem:[%s323 + $0xd8] sm:$0xff]
        %v387 = vld [vmem:[%s323 + $0xe0] sm:$0xff]
        %v388 = vld [vmem:[%s323 + $0xe8] sm:$0xff]
        %v389 = vld [vmem:[%s323 + $0xf0] sm:$0xff]
        %v390 = vld [vmem:[%s323 + $0xf8] sm:$0xff]
        %v423 = vunpack.c.l.b16 %v359
        %v424 = vunpack.c.h.b16 %v359
        %v425 = vunpack.c.l.b16 %v360
        %v426 = vunpack.c.h.b16 %v360
        %v427 = vunpack.c.l.b16 %v361
        %v428 = vunpack.c.h.b16 %v361
        %v429 = vunpack.c.l.b16 %v362
        %v430 = vunpack.c.h.b16 %v362
        %v431 = vunpack.c.l.b16 %v363
        %v432 = vunpack.c.h.b16 %v363
        %v433 = vunpack.c.l.b16 %v364
        %v434 = vunpack.c.h.b16 %v364
        %v435 = vunpack.c.l.b16 %v365
        %v436 = vunpack.c.h.b16 %v365
        %v437 = vunpack.c.l.b16 %v366
        %v438 = vunpack.c.h.b16 %v366
        %v439 = vunpack.c.l.b16 %v367
        %v440 = vunpack.c.h.b16 %v367
        %v441 = vunpack.c.l.b16 %v368
        %v442 = vunpack.c.h.b16 %v368
        %v443 = vunpack.c.l.b16 %v369
        %v444 = vunpack.c.h.b16 %v369
        %v445 = vunpack.c.l.b16 %v370
        %v446 = vunpack.c.h.b16 %v370
        %v447 = vunpack.c.l.b16 %v371
        %v448 = vunpack.c.h.b16 %v371
        %v449 = vunpack.c.l.b16 %v372
        %v450 = vunpack.c.h.b16 %v372
        %v451 = vunpack.c.l.b16 %v373
        %v452 = vunpack.c.h.b16 %v373
        %v453 = vunpack.c.l.b16 %v374
        %v454 = vunpack.c.h.b16 %v374
        %v455 = vunpack.c.l.b16 %v375
        %v456 = vunpack.c.h.b16 %v375
        %v457 = vunpack.c.l.b16 %v376
        %v458 = vunpack.c.h.b16 %v376
        %v459 = vunpack.c.l.b16 %v377
        %v460 = vunpack.c.h.b16 %v377
        %v461 = vunpack.c.l.b16 %v378
        %v462 = vunpack.c.h.b16 %v378
        %v463 = vunpack.c.l.b16 %v379
        %v464 = vunpack.c.h.b16 %v379
        %v465 = vunpack.c.l.b16 %v380
        %v466 = vunpack.c.h.b16 %v380
        %v467 = vunpack.c.l.b16 %v381
        %v468 = vunpack.c.h.b16 %v381
        %v469 = vunpack.c.l.b16 %v382
        %v470 = vunpack.c.h.b16 %v382
        %v471 = vunpack.c.l.b16 %v383
        %v472 = vunpack.c.h.b16 %v383
        %v473 = vunpack.c.l.b16 %v384
        %v474 = vunpack.c.h.b16 %v384
        %v475 = vunpack.c.l.b16 %v385
        %v476 = vunpack.c.h.b16 %v385
        %v477 = vunpack.c.l.b16 %v386
        %v478 = vunpack.c.h.b16 %v386
        %v479 = vunpack.c.l.b16 %v387
        %v480 = vunpack.c.h.b16 %v387
        %v481 = vunpack.c.l.b16 %v388
        %v482 = vunpack.c.h.b16 %v388
        %v483 = vunpack.c.l.b16 %v389
        %v484 = vunpack.c.h.b16 %v389
        %v485 = vunpack.c.l.b16 %v390
        %v486 = vunpack.c.h.b16 %v390
        %v487 = vpack.c.b16 %v427, %v423
        %v488 = vpack.c.b16 %v428, %v424
        %v489 = vpack.c.b16 %v429, %v425
        %v490 = vpack.c.b16 %v430, %v426
        %v491 = vpack.c.b16 %v435, %v431
        %v492 = vpack.c.b16 %v436, %v432
        %v493 = vpack.c.b16 %v437, %v433
        %v494 = vpack.c.b16 %v438, %v434
        %v495 = vpack.c.b16 %v443, %v439
        %v496 = vpack.c.b16 %v444, %v440
        %v497 = vpack.c.b16 %v445, %v441
        %v498 = vpack.c.b16 %v446, %v442
        %v499 = vpack.c.b16 %v451, %v447
        %v500 = vpack.c.b16 %v452, %v448
        %v501 = vpack.c.b16 %v453, %v449
        %v502 = vpack.c.b16 %v454, %v450
        %v503 = vpack.c.b16 %v459, %v455
        %v504 = vpack.c.b16 %v460, %v456
        %v505 = vpack.c.b16 %v461, %v457
        %v506 = vpack.c.b16 %v462, %v458
        %v507 = vpack.c.b16 %v467, %v463
        %v508 = vpack.c.b16 %v468, %v464
        %v509 = vpack.c.b16 %v469, %v465
        %v510 = vpack.c.b16 %v470, %v466
        %v511 = vpack.c.b16 %v475, %v471
        %v512 = vpack.c.b16 %v476, %v472
        %v513 = vpack.c.b16 %v477, %v473
        %v514 = vpack.c.b16 %v478, %v474
        %v515 = vpack.c.b16 %v483, %v479
        %v516 = vpack.c.b16 %v484, %v480
        %v517 = vpack.c.b16 %v485, %v481
        %v518 = vpack.c.b16 %v486, %v482
        %551 = vmatprep.subr.bf16.mxu0 %v488
        %552 = vmatpush1.bf16.msra.mxu0 %v487
        %553 = vmatprep.subr.bf16.mxu0 %v492
        %554 = vmatpush1.bf16.msra.mxu0 %v491
        %555 = vmatprep.subr.bf16.mxu0 %v496
        %556 = vmatpush1.bf16.msra.mxu0 %v495
        %557 = vmatprep.subr.bf16.mxu0 %v500
        %558 = vmatpush1.bf16.msra.mxu0 %v499
        %559 = vmatprep.subr.bf16.mxu0 %v504
        %560 = vmatpush1.bf16.msra.mxu0 %v503
        %561 = vmatprep.subr.bf16.mxu0 %v508
        %562 = vmatpush1.bf16.msra.mxu0 %v507
        %563 = vmatprep.subr.bf16.mxu0 %v512
        %564 = vmatpush1.bf16.msra.mxu0 %v511
        %565 = vmatprep.subr.bf16.mxu0 %v516
        %566 = vmatpush1.bf16.msra.mxu0 %v515
        %567 = vmatprep.subr.bf16.mxu0 0
        %568 = vmatpush1.bf16.msra.mxu0 0
        %569 = vmatprep.subr.bf16.mxu0 0
        %570 = vmatpush1.bf16.msra.mxu0 0
        %571 = vmatprep.subr.bf16.mxu0 0
        %572 = vmatpush1.bf16.msra.mxu0 0
        %573 = vmatprep.subr.bf16.mxu0 0
        %574 = vmatpush1.bf16.msra.mxu0 0
        %575 = vmatprep.subr.bf16.mxu0 0
        %576 = vmatpush1.bf16.msra.mxu0 0
        %577 = vmatprep.subr.bf16.mxu0 0
        %578 = vmatpush1.bf16.msra.mxu0 0
        %579 = vmatprep.subr.bf16.mxu0 0
        %580 = vmatpush1.bf16.msra.mxu0 0
        %581 = vmatprep.subr.bf16.mxu0 0
        %582 = vmatpush1.bf16.msra.mxu0 0
        %583 = vmatprep.mubr.bf16.mxu0 0
        %584 = vmatmul.mubr.bf16.gmra.mrb[0].mxu0 %v358
        %v585 = vpop.f32.mrb[0].mxu0
        %v586 = vadd.f32 0.0, %v585
        %v587 = vpop.f32.mrb[0].mxu0
        %v588 = vadd.f32 0.0, %v587
        %v589 = vpop.f32.mrb[0].mxu0
        %v590 = vadd.f32 0.0, %v589
        %v591 = vpop.f32.mrb[0].mxu0
        %v592 = vadd.f32 0.0, %v591
        %593 = vdwg.mxu0
        %594 = vmatprep.subr.bf16.mxu0 %v490
        %595 = vmatpush1.bf16.msra.mxu0 %v489
        %596 = vmatprep.subr.bf16.mxu0 %v494
        %597 = vmatpush1.bf16.msra.mxu0 %v493
        %598 = vmatprep.subr.bf16.mxu0 %v498
        %599 = vmatpush1.bf16.msra.mxu0 %v497
        %600 = vmatprep.subr.bf16.mxu0 %v502
        %601 = vmatpush1.bf16.msra.mxu0 %v501
        %602 = vmatprep.subr.bf16.mxu0 %v506
        %603 = vmatpush1.bf16.msra.mxu0 %v505
        %604 = vmatprep.subr.bf16.mxu0 %v510
        %605 = vmatpush1.bf16.msra.mxu0 %v509
        %606 = vmatprep.subr.bf16.mxu0 %v514
        %607 = vmatpush1.bf16.msra.mxu0 %v513
        %608 = vmatprep.subr.bf16.mxu0 %v518
        %609 = vmatpush1.bf16.msra.mxu0 %v517
        %610 = vmatprep.subr.bf16.mxu0 0
        %611 = vmatpush1.bf16.msra.mxu0 0
        %612 = vmatprep.subr.bf16.mxu0 0
        %613 = vmatpush1.bf16.msra.mxu0 0
        %614 = vmatprep.subr.bf16.mxu0 0
        %615 = vmatpush1.bf16.msra.mxu0 0
        %616 = vmatprep.subr.bf16.mxu0 0
        %617 = vmatpush1.bf16.msra.mxu0 0
        %618 = vmatprep.subr.bf16.mxu0 0
        %619 = vmatpush1.bf16.msra.mxu0 0
        %620 = vmatprep.subr.bf16.mxu0 0
        %621 = vmatpush1.bf16.msra.mxu0 0
        %622 = vmatprep.subr.bf16.mxu0 0
        %623 = vmatpush1.bf16.msra.mxu0 0
        %624 = vmatprep.subr.bf16.mxu0 0
        %625 = vmatpush1.bf16.msra.mxu0 0
        %626 = vmatprep.mubr.bf16.mxu0 0
        %627 = vmatmul.mubr.bf16.gmra.mrb[0].mxu0 %v358
        %v628 = vpop.f32.mrb[0].mxu0
        %v629 = vadd.f32 0.0, %v628
        %v630 = vpop.f32.mrb[0].mxu0
        %v631 = vadd.f32 0.0, %v630
        %v632 = vpop.f32.mrb[0].mxu0
        %v633 = vadd.f32 0.0, %v632
        %v634 = vpop.f32.mrb[0].mxu0
        %v635 = vadd.f32 0.0, %v634
        %636 = vdwg.mxu0
        %v637 = vadd.f32 %v348, %v586
        %v638 = vadd.f32 %v349, %v588
        %v639 = vadd.f32 %v350, %v629
        %v640 = vadd.f32 %v351, %v631
        %v641 = vadd.f32 %v352, %v590
        %v642 = vadd.f32 %v353, %v592
        %v643 = vadd.f32 %v354, %v633
        %v644 = vadd.f32 %v355, %v635
        %v645 = vmul.f32 %v637, 0.5
        %v646 = vmul.f32 %v641, 0.5
        %v647 = vtanh.pop %v645
        %v648 = vtanh.pop %v646
        %v649 = vadd.f32 %v647, 1.0
        %v650 = vadd.f32 %v648, 1.0
        %v651 = vmul.f32 %v649, 0.5
        %v652 = vmul.f32 %v650, 0.5
        %v653 = vmul.f32 %v638, 0.5
        %v654 = vmul.f32 %v642, 0.5
        %v655 = vtanh.pop %v653
        %v656 = vtanh.pop %v654
        %v657 = vadd.f32 %v655, 1.0
        %v658 = vadd.f32 %v656, 1.0
        %v659 = vmul.f32 %v657, 0.5
        %v660 = vmul.f32 %v658, 0.5
        %v661 = vtanh.pop %v639
        %v662 = vtanh.pop %v643
        %v663 = vmul.f32 %v640, 0.5
        %v664 = vmul.f32 %v644, 0.5
        %v665 = vtanh.pop %v663
        %v666 = vtanh.pop %v664
        %v667 = vadd.f32 %v665, 1.0
        %v668 = vadd.f32 %v666, 1.0
        %v669 = vmul.f32 %v667, 0.5
        %v670 = vmul.f32 %v668, 0.5
        %v671 = vld [vmem:[#allocation3] sm:$0xff]
        %v672 = vld [vmem:[#allocation3 + $0x8] sm:$0xff]
        %v673 = vmul.f32 %v659, %v671
        %v674 = vmul.f32 %v660, %v672
        %v675 = vmul.f32 %v651, %v661
        %v676 = vmul.f32 %v652, %v662
        %v677 = vadd.f32 %v673, %v675
        %v678 = vadd.f32 %v674, %v676
        %v679 = vtanh.pop %v677
        %v680 = vtanh.pop %v678
        %v681 = vmul.f32 %v669, %v679
        %v682 = vmul.f32 %v670, %v680
        %v683 = vstv %s343
        %vm684 = vcmp.ge.s32.totalorder %v683, %v339
        %vm685 = vcmp.ge.s32.totalorder %v683, %v340
        %vm686 = vcmp.lt.s32.totalorder %v683, %v341
        %vm687 = vcmp.lt.s32.totalorder %v683, %v342
        %vm688 = vmand %vm684, %vm686
        %vm689 = vmand %vm685, %vm687
        %v690 = vsel %vm688, 1, 0
        %v691 = vsel %vm689, 1, 0
        %692 = vset.pattern.permute.xlu0 0
        %693 = vperm.xlu0 %692, %v690
        %v694 = vpop.permute.xlu0 %693
        %695 = vset.pattern.permute.xlu0 0
        %696 = vperm.xlu0 %695, %v691
        %v697 = vpop.permute.xlu0 %696
        %vm698 = vcmp.eq.s32.totalorder %v694, 1
        %vm699 = vcmp.eq.s32.totalorder %v697, 1
        %v700 = vsel %vm698, %v681, %v356
        %v701 = vsel %vm699, %v682, %v357
        %v702 = vsel %vm698, %v677, %v671
        %v703 = vsel %vm699, %v678, %v672
        %704 = vst [vmem:[#allocation2] sm:$0xff] %v700
        %705 = vst [vmem:[#allocation2 + $0x8] sm:$0xff] %v701
        %706 = vst [vmem:[#allocation3] sm:$0xff] %v702
        %707 = vst [vmem:[#allocation3 + $0x8] sm:$0xff] %v703
        %v708 = vpack.c.bf16 %v701, %v700
        %v710 = vunpack.c.l.b16 %v708
        %v711 = vunpack.c.h.b16 %v708
        %v712 = vpack.c.b16 %v710, %v710
        %v713 = vpack.c.b16 %v711, %v711
        %716 = vst [vmem:[%s290] sm:$0xf] %v712
        %717 = vst [vmem:[%s290 + $0x4] sm:$0xf] %v713
        %s718 = scalar_lea.vmem %s317, 32
        %v719 = vld [vmem:[%s718] sm:$0xff]
        %v720 = vld [vmem:[%s718 + $0x8] sm:$0xff]
        %v721 = vld [vmem:[%s718 + $0x10] sm:$0xff]
        %v722 = vld [vmem:[%s718 + $0x18] sm:$0xff]
        %v723 = vunpack.c.l.bf16 %v719
        %v724 = vunpack.c.h.bf16 %v719
        %v725 = vunpack.c.l.bf16 %v720
        %v726 = vunpack.c.h.bf16 %v720
        %v727 = vunpack.c.l.bf16 %v721
        %v728 = vunpack.c.h.bf16 %v721
        %v729 = vunpack.c.l.bf16 %v722
        %v730 = vunpack.c.h.bf16 %v722
        %v731 = vld [vmem:[#allocation2] sm:$0xff]
        %v732 = vld [vmem:[#allocation2 + $0x8] sm:$0xff]
        %v733 = vpack.c.bf16 %v732, %v731
        %v734 = vld [vmem:[%s323] sm:$0xff]
        %v735 = vld [vmem:[%s323 + $0x8] sm:$0xff]
        %v736 = vld [vmem:[%s323 + $0x10] sm:$0xff]
        %v737 = vld [vmem:[%s323 + $0x18] sm:$0xff]
        %v738 = vld [vmem:[%s323 + $0x20] sm:$0xff]
        %v739 = vld [vmem:[%s323 + $0x28] sm:$0xff]
        %v740 = vld [vmem:[%s323 + $0x30] sm:$0xff]
        %v741 = vld [vmem:[%s323 + $0x38] sm:$0xff]
        %v742 = vld [vmem:[%s323 + $0x40] sm:$0xff]
        %v743 = vld [vmem:[%s323 + $0x48] sm:$0xff]
        %v744 = vld [vmem:[%s323 + $0x50] sm:$0xff]
        %v745 = vld [vmem:[%s323 + $0x58] sm:$0xff]
        %v746 = vld [vmem:[%s323 + $0x60] sm:$0xff]
        %v747 = vld [vmem:[%s323 + $0x68] sm:$0xff]
        %v748 = vld [vmem:[%s323 + $0x70] sm:$0xff]
        %v749 = vld [vmem:[%s323 + $0x78] sm:$0xff]
        %v750 = vld [vmem:[%s323 + $0x80] sm:$0xff]
        %v751 = vld [vmem:[%s323 + $0x88] sm:$0xff]
        %v752 = vld [vmem:[%s323 + $0x90] sm:$0xff]
        %v753 = vld [vmem:[%s323 + $0x98] sm:$0xff]
        %v754 = vld [vmem:[%s323 + $0xa0] sm:$0xff]
        %v755 = vld [vmem:[%s323 + $0xa8] sm:$0xff]
        %v756 = vld [vmem:[%s323 + $0xb0] sm:$0xff]
        %v757 = vld [vmem:[%s323 + $0xb8] sm:$0xff]
        %v758 = vld [vmem:[%s323 + $0xc0] sm:$0xff]
        %v759 = vld [vmem:[%s323 + $0xc8] sm:$0xff]
        %v760 = vld [vmem:[%s323 + $0xd0] sm:$0xff]
        %v761 = vld [vmem:[%s323 + $0xd8] sm:$0xff]
        %v762 = vld [vmem:[%s323 + $0xe0] sm:$0xff]
        %v763 = vld [vmem:[%s323 + $0xe8] sm:$0xff]
        %v764 = vld [vmem:[%s323 + $0xf0] sm:$0xff]
        %v765 = vld [vmem:[%s323 + $0xf8] sm:$0xff]
        %v798 = vunpack.c.l.b16 %v734
        %v799 = vunpack.c.h.b16 %v734
        %v800 = vunpack.c.l.b16 %v735
        %v801 = vunpack.c.h.b16 %v735
        %v802 = vunpack.c.l.b16 %v736
        %v803 = vunpack.c.h.b16 %v736
        %v804 = vunpack.c.l.b16 %v737
        %v805 = vunpack.c.h.b16 %v737
        %v806 = vunpack.c.l.b16 %v738
        %v807 = vunpack.c.h.b16 %v738
        %v808 = vunpack.c.l.b16 %v739
        %v809 = vunpack.c.h.b16 %v739
        %v810 = vunpack.c.l.b16 %v740
        %v811 = vunpack.c.h.b16 %v740
        %v812 = vunpack.c.l.b16 %v741
        %v813 = vunpack.c.h.b16 %v741
        %v814 = vunpack.c.l.b16 %v742
        %v815 = vunpack.c.h.b16 %v742
        %v816 = vunpack.c.l.b16 %v743
        %v817 = vunpack.c.h.b16 %v743
        %v818 = vunpack.c.l.b16 %v744
        %v819 = vunpack.c.h.b16 %v744
        %v820 = vunpack.c.l.b16 %v745
        %v821 = vunpack.c.h.b16 %v745
        %v822 = vunpack.c.l.b16 %v746
        %v823 = vunpack.c.h.b16 %v746
        %v824 = vunpack.c.l.b16 %v747
        %v825 = vunpack.c.h.b16 %v747
        %v826 = vunpack.c.l.b16 %v748
        %v827 = vunpack.c.h.b16 %v748
        %v828 = vunpack.c.l.b16 %v749
        %v829 = vunpack.c.h.b16 %v749
        %v830 = vunpack.c.l.b16 %v750
        %v831 = vunpack.c.h.b16 %v750
        %v832 = vunpack.c.l.b16 %v751
        %v833 = vunpack.c.h.b16 %v751
        %v834 = vunpack.c.l.b16 %v752
        %v835 = vunpack.c.h.b16 %v752
        %v836 = vunpack.c.l.b16 %v753
        %v837 = vunpack.c.h.b16 %v753
        %v838 = vunpack.c.l.b16 %v754
        %v839 = vunpack.c.h.b16 %v754
        %v840 = vunpack.c.l.b16 %v755
        %v841 = vunpack.c.h.b16 %v755
        %v842 = vunpack.c.l.b16 %v756
        %v843 = vunpack.c.h.b16 %v756
        %v844 = vunpack.c.l.b16 %v757
        %v845 = vunpack.c.h.b16 %v757
        %v846 = vunpack.c.l.b16 %v758
        %v847 = vunpack.c.h.b16 %v758
        %v848 = vunpack.c.l.b16 %v759
        %v849 = vunpack.c.h.b16 %v759
        %v850 = vunpack.c.l.b16 %v760
        %v851 = vunpack.c.h.b16 %v760
        %v852 = vunpack.c.l.b16 %v761
        %v853 = vunpack.c.h.b16 %v761
        %v854 = vunpack.c.l.b16 %v762
        %v855 = vunpack.c.h.b16 %v762
        %v856 = vunpack.c.l.b16 %v763
        %v857 = vunpack.c.h.b16 %v763
        %v858 = vunpack.c.l.b16 %v764
        %v859 = vunpack.c.h.b16 %v764
        %v860 = vunpack.c.l.b16 %v765
        %v861 = vunpack.c.h.b16 %v765
        %v862 = vpack.c.b16 %v802, %v798
        %v863 = vpack.c.b16 %v803, %v799
        %v864 = vpack.c.b16 %v804, %v800
        %v865 = vpack.c.b16 %v805, %v801
        %v866 = vpack.c.b16 %v810, %v806
        %v867 = vpack.c.b16 %v811, %v807
        %v868 = vpack.c.b16 %v812, %v808
        %v869 = vpack.c.b16 %v813, %v809
        %v870 = vpack.c.b16 %v818, %v814
        %v871 = vpack.c.b16 %v819, %v815
        %v872 = vpack.c.b16 %v820, %v816
        %v873 = vpack.c.b16 %v821, %v817
        %v874 = vpack.c.b16 %v826, %v822
        %v875 = vpack.c.b16 %v827, %v823
        %v876 = vpack.c.b16 %v828, %v824
        %v877 = vpack.c.b16 %v829, %v825
        %v878 = vpack.c.b16 %v834, %v830
        %v879 = vpack.c.b16 %v835, %v831
        %v880 = vpack.c.b16 %v836, %v832
        %v881 = vpack.c.b16 %v837, %v833
        %v882 = vpack.c.b16 %v842, %v838
        %v883 = vpack.c.b16 %v843, %v839
        %v884 = vpack.c.b16 %v844, %v840
        %v885 = vpack.c.b16 %v845, %v841
        %v886 = vpack.c.b16 %v850, %v846
        %v887 = vpack.c.b16 %v851, %v847
        %v888 = vpack.c.b16 %v852, %v848
        %v889 = vpack.c.b16 %v853, %v849
        %v890 = vpack.c.b16 %v858, %v854
        %v891 = vpack.c.b16 %v859, %v855
        %v892 = vpack.c.b16 %v860, %v856
        %v893 = vpack.c.b16 %v861, %v857
        %926 = vmatprep.subr.bf16.mxu0 %v863
        %927 = vmatpush1.bf16.msra.mxu0 %v862
        %928 = vmatprep.subr.bf16.mxu0 %v867
        %929 = vmatpush1.bf16.msra.mxu0 %v866
        %930 = vmatprep.subr.bf16.mxu0 %v871
        %931 = vmatpush1.bf16.msra.mxu0 %v870
        %932 = vmatprep.subr.bf16.mxu0 %v875
        %933 = vmatpush1.bf16.msra.mxu0 %v874
        %934 = vmatprep.subr.bf16.mxu0 %v879
        %935 = vmatpush1.bf16.msra.mxu0 %v878
        %936 = vmatprep.subr.bf16.mxu0 %v883
        %937 = vmatpush1.bf16.msra.mxu0 %v882
        %938 = vmatprep.subr.bf16.mxu0 %v887
        %939 = vmatpush1.bf16.msra.mxu0 %v886
        %940 = vmatprep.subr.bf16.mxu0 %v891
        %941 = vmatpush1.bf16.msra.mxu0 %v890
        %942 = vmatprep.subr.bf16.mxu0 0
        %943 = vmatpush1.bf16.msra.mxu0 0
        %944 = vmatprep.subr.bf16.mxu0 0
        %945 = vmatpush1.bf16.msra.mxu0 0
        %946 = vmatprep.subr.bf16.mxu0 0
        %947 = vmatpush1.bf16.msra.mxu0 0
        %948 = vmatprep.subr.bf16.mxu0 0
        %949 = vmatpush1.bf16.msra.mxu0 0
        %950 = vmatprep.subr.bf16.mxu0 0
        %951 = vmatpush1.bf16.msra.mxu0 0
        %952 = vmatprep.subr.bf16.mxu0 0
        %953 = vmatpush1.bf16.msra.mxu0 0
        %954 = vmatprep.subr.bf16.mxu0 0
        %955 = vmatpush1.bf16.msra.mxu0 0
        %956 = vmatprep.subr.bf16.mxu0 0
        %957 = vmatpush1.bf16.msra.mxu0 0
        %958 = vmatprep.mubr.bf16.mxu0 0
        %959 = vmatmul.mubr.bf16.gmra.mrb[0].mxu0 %v733
        %v960 = vpop.f32.mrb[0].mxu0
        %v961 = vadd.f32 0.0, %v960
        %v962 = vpop.f32.mrb[0].mxu0
        %v963 = vadd.f32 0.0, %v962
        %v964 = vpop.f32.mrb[0].mxu0
        %v965 = vadd.f32 0.0, %v964
        %v966 = vpop.f32.mrb[0].mxu0
        %v967 = vadd.f32 0.0, %v966
        %968 = vdwg.mxu0
        %969 = vmatprep.subr.bf16.mxu0 %v865
        %970 = vmatpush1.bf16.msra.mxu0 %v864
        %971 = vmatprep.subr.bf16.mxu0 %v869
        %972 = vmatpush1.bf16.msra.mxu0 %v868
        %973 = vmatprep.subr.bf16.mxu0 %v873
        %974 = vmatpush1.bf16.msra.mxu0 %v872
        %975 = vmatprep.subr.bf16.mxu0 %v877
        %976 = vmatpush1.bf16.msra.mxu0 %v876
        %977 = vmatprep.subr.bf16.mxu0 %v881
        %978 = vmatpush1.bf16.msra.mxu0 %v880
        %979 = vmatprep.subr.bf16.mxu0 %v885
        %980 = vmatpush1.bf16.msra.mxu0 %v884
        %981 = vmatprep.subr.bf16.mxu0 %v889
        %982 = vmatpush1.bf16.msra.mxu0 %v888
        %983 = vmatprep.subr.bf16.mxu0 %v893
        %984 = vmatpush1.bf16.msra.mxu0 %v892
        %985 = vmatprep.subr.bf16.mxu0 0
        %986 = vmatpush1.bf16.msra.mxu0 0
        %987 = vmatprep.subr.bf16.mxu0 0
        %988 = vmatpush1.bf16.msra.mxu0 0
        %989 = vmatprep.subr.bf16.mxu0 0
        %990 = vmatpush1.bf16.msra.mxu0 0
        %991 = vmatprep.subr.bf16.mxu0 0
        %992 = vmatpush1.bf16.msra.mxu0 0
        %993 = vmatprep.subr.bf16.mxu0 0
        %994 = vmatpush1.bf16.msra.mxu0 0
        %995 = vmatprep.subr.bf16.mxu0 0
        %996 = vmatpush1.bf16.msra.mxu0 0
        %997 = vmatprep.subr.bf16.mxu0 0
        %998 = vmatpush1.bf16.msra.mxu0 0
        %999 = vmatprep.subr.bf16.mxu0 0
        %1000 = vmatpush1.bf16.msra.mxu0 0
        %1001 = vmatprep.mubr.bf16.mxu0 0
        %1002 = vmatmul.mubr.bf16.gmra.mrb[0].mxu0 %v733
        %v1003 = vpop.f32.mrb[0].mxu0
        %v1004 = vadd.f32 0.0, %v1003
        %v1005 = vpop.f32.mrb[0].mxu0
        %v1006 = vadd.f32 0.0, %v1005
        %v1007 = vpop.f32.mrb[0].mxu0
        %v1008 = vadd.f32 0.0, %v1007
        %v1009 = vpop.f32.mrb[0].mxu0
        %v1010 = vadd.f32 0.0, %v1009
        %1011 = vdwg.mxu0
        %v1012 = vadd.f32 %v723, %v961
        %v1013 = vadd.f32 %v724, %v963
        %v1014 = vadd.f32 %v725, %v1004
        %v1015 = vadd.f32 %v726, %v1006
        %v1016 = vadd.f32 %v727, %v965
        %v1017 = vadd.f32 %v728, %v967
        %v1018 = vadd.f32 %v729, %v1008
        %v1019 = vadd.f32 %v730, %v1010
        %v1020 = vmul.f32 %v1012, 0.5
        %v1021 = vmul.f32 %v1016, 0.5
        %v1022 = vtanh.pop %v1020
        %v1023 = vtanh.pop %v1021
        %v1024 = vadd.f32 %v1022, 1.0
        %v1025 = vadd.f32 %v1023, 1.0
        %v1026 = vmul.f32 %v1024, 0.5
        %v1027 = vmul.f32 %v1025, 0.5
        %v1028 = vmul.f32 %v1013, 0.5
        %v1029 = vmul.f32 %v1017, 0.5
        %v1030 = vtanh.pop %v1028
        %v1031 = vtanh.pop %v1029
        %v1032 = vadd.f32 %v1030, 1.0
        %v1033 = vadd.f32 %v1031, 1.0
        %v1034 = vmul.f32 %v1032, 0.5
        %v1035 = vmul.f32 %v1033, 0.5
        %v1036 = vtanh.pop %v1014
        %v1037 = vtanh.pop %v1018
        %v1038 = vmul.f32 %v1015, 0.5
        %v1039 = vmul.f32 %v1019, 0.5
        %v1040 = vtanh.pop %v1038
        %v1041 = vtanh.pop %v1039
        %v1042 = vadd.f32 %v1040, 1.0
        %v1043 = vadd.f32 %v1041, 1.0
        %v1044 = vmul.f32 %v1042, 0.5
        %v1045 = vmul.f32 %v1043, 0.5
        %v1046 = vld [vmem:[#allocation3] sm:$0xff]
        %v1047 = vld [vmem:[#allocation3 + $0x8] sm:$0xff]
        %v1048 = vmul.f32 %v1034, %v1046
        %v1049 = vmul.f32 %v1035, %v1047
        %v1050 = vmul.f32 %v1026, %v1036
        %v1051 = vmul.f32 %v1027, %v1037
        %v1052 = vadd.f32 %v1048, %v1050
        %v1053 = vadd.f32 %v1049, %v1051
        %v1054 = vtanh.pop %v1052
        %v1055 = vtanh.pop %v1053
        %v1056 = vmul.f32 %v1044, %v1054
        %v1057 = vmul.f32 %v1045, %v1055
        %s1058 = sadd.s32 %s343, 1
        %v1059 = vstv %s1058
        %vm1060 = vcmp.ge.s32.totalorder %v1059, %v339
        %vm1061 = vcmp.ge.s32.totalorder %v1059, %v340
        %vm1062 = vcmp.lt.s32.totalorder %v1059, %v341
        %vm1063 = vcmp.lt.s32.totalorder %v1059, %v342
        %vm1064 = vmand %vm1060, %vm1062
        %vm1065 = vmand %vm1061, %vm1063
        %v1066 = vsel %vm1064, 1, 0
        %v1067 = vsel %vm1065, 1, 0
        %1068 = vset.pattern.permute.xlu0 0
        %1069 = vperm.xlu0 %1068, %v1066
        %v1070 = vpop.permute.xlu0 %1069
        %1071 = vset.pattern.permute.xlu0 0
        %1072 = vperm.xlu0 %1071, %v1067
        %v1073 = vpop.permute.xlu0 %1072
        %vm1074 = vcmp.eq.s32.totalorder %v1070, 1
        %vm1075 = vcmp.eq.s32.totalorder %v1073, 1
        %v1076 = vsel %vm1074, %v1056, %v731
        %v1077 = vsel %vm1075, %v1057, %v732
        %v1078 = vsel %vm1074, %v1052, %v1046
        %v1079 = vsel %vm1075, %v1053, %v1047
        %1080 = vst [vmem:[#allocation2] sm:$0xff] %v1076
        %1081 = vst [vmem:[#allocation2 + $0x8] sm:$0xff] %v1077
        %1082 = vst [vmem:[#allocation3] sm:$0xff] %v1078
        %1083 = vst [vmem:[#allocation3 + $0x8] sm:$0xff] %v1079
        %v1084 = vpack.c.bf16 %v1077, %v1076
        %v1086 = vunpack.c.l.b16 %v1084
        %v1087 = vunpack.c.h.b16 %v1084
        %v1088 = vpack.c.b16 %v1086, %v1086
        %v1089 = vpack.c.b16 %v1087, %v1087
        %s1092 = scalar_lea.vmem %s290, 8 [#allocation4]
        %1093 = vst [vmem:[%s1092] sm:$0xf] %v1088
        %1094 = vst [vmem:[%s1092 + $0x4] sm:$0xf] %v1089
        %s1095 = scalar_lea.vmem %s317, 64
        %v1096 = vld [vmem:[%s1095] sm:$0xff]
        %v1097 = vld [vmem:[%s1095 + $0x8] sm:$0xff]
        %v1098 = vld [vmem:[%s1095 + $0x10] sm:$0xff]
        %v1099 = vld [vmem:[%s1095 + $0x18] sm:$0xff]
        %v1100 = vunpack.c.l.bf16 %v1096
        %v1101 = vunpack.c.h.bf16 %v1096
        %v1102 = vunpack.c.l.bf16 %v1097
        %v1103 = vunpack.c.h.bf16 %v1097
        %v1104 = vunpack.c.l.bf16 %v1098
        %v1105 = vunpack.c.h.bf16 %v1098
        %v1106 = vunpack.c.l.bf16 %v1099
        %v1107 = vunpack.c.h.bf16 %v1099
        %v1108 = vld [vmem:[#allocation2] sm:$0xff]
        %v1109 = vld [vmem:[#allocation2 + $0x8] sm:$0xff]
        %v1110 = vpack.c.bf16 %v1109, %v1108
        %v1111 = vld [vmem:[%s323] sm:$0xff]
        %v1112 = vld [vmem:[%s323 + $0x8] sm:$0xff]
        %v1113 = vld [vmem:[%s323 + $0x10] sm:$0xff]
        %v1114 = vld [vmem:[%s323 + $0x18] sm:$0xff]
        %v1115 = vld [vmem:[%s323 + $0x20] sm:$0xff]
        %v1116 = vld [vmem:[%s323 + $0x28] sm:$0xff]
        %v1117 = vld [vmem:[%s323 + $0x30] sm:$0xff]
        %v1118 = vld [vmem:[%s323 + $0x38] sm:$0xff]
        %v1119 = vld [vmem:[%s323 + $0x40] sm:$0xff]
        %v1120 = vld [vmem:[%s323 + $0x48] sm:$0xff]
        %v1121 = vld [vmem:[%s323 + $0x50] sm:$0xff]
        %v1122 = vld [vmem:[%s323 + $0x58] sm:$0xff]
        %v1123 = vld [vmem:[%s323 + $0x60] sm:$0xff]
        %v1124 = vld [vmem:[%s323 + $0x68] sm:$0xff]
        %v1125 = vld [vmem:[%s323 + $0x70] sm:$0xff]
        %v1126 = vld [vmem:[%s323 + $0x78] sm:$0xff]
        %v1127 = vld [vmem:[%s323 + $0x80] sm:$0xff]
        %v1128 = vld [vmem:[%s323 + $0x88] sm:$0xff]
        %v1129 = vld [vmem:[%s323 + $0x90] sm:$0xff]
        %v1130 = vld [vmem:[%s323 + $0x98] sm:$0xff]
        %v1131 = vld [vmem:[%s323 + $0xa0] sm:$0xff]
        %v1132 = vld [vmem:[%s323 + $0xa8] sm:$0xff]
        %v1133 = vld [vmem:[%s323 + $0xb0] sm:$0xff]
        %v1134 = vld [vmem:[%s323 + $0xb8] sm:$0xff]
        %v1135 = vld [vmem:[%s323 + $0xc0] sm:$0xff]
        %v1136 = vld [vmem:[%s323 + $0xc8] sm:$0xff]
        %v1137 = vld [vmem:[%s323 + $0xd0] sm:$0xff]
        %v1138 = vld [vmem:[%s323 + $0xd8] sm:$0xff]
        %v1139 = vld [vmem:[%s323 + $0xe0] sm:$0xff]
        %v1140 = vld [vmem:[%s323 + $0xe8] sm:$0xff]
        %v1141 = vld [vmem:[%s323 + $0xf0] sm:$0xff]
        %v1142 = vld [vmem:[%s323 + $0xf8] sm:$0xff]
        %v1175 = vunpack.c.l.b16 %v1111
        %v1176 = vunpack.c.h.b16 %v1111
        %v1177 = vunpack.c.l.b16 %v1112
        %v1178 = vunpack.c.h.b16 %v1112
        %v1179 = vunpack.c.l.b16 %v1113
        %v1180 = vunpack.c.h.b16 %v1113
        %v1181 = vunpack.c.l.b16 %v1114
        %v1182 = vunpack.c.h.b16 %v1114
        %v1183 = vunpack.c.l.b16 %v1115
        %v1184 = vunpack.c.h.b16 %v1115
        %v1185 = vunpack.c.l.b16 %v1116
        %v1186 = vunpack.c.h.b16 %v1116
        %v1187 = vunpack.c.l.b16 %v1117
        %v1188 = vunpack.c.h.b16 %v1117
        %v1189 = vunpack.c.l.b16 %v1118
        %v1190 = vunpack.c.h.b16 %v1118
        %v1191 = vunpack.c.l.b16 %v1119
        %v1192 = vunpack.c.h.b16 %v1119
        %v1193 = vunpack.c.l.b16 %v1120
        %v1194 = vunpack.c.h.b16 %v1120
        %v1195 = vunpack.c.l.b16 %v1121
        %v1196 = vunpack.c.h.b16 %v1121
        %v1197 = vunpack.c.l.b16 %v1122
        %v1198 = vunpack.c.h.b16 %v1122
        %v1199 = vunpack.c.l.b16 %v1123
        %v1200 = vunpack.c.h.b16 %v1123
        %v1201 = vunpack.c.l.b16 %v1124
        %v1202 = vunpack.c.h.b16 %v1124
        %v1203 = vunpack.c.l.b16 %v1125
        %v1204 = vunpack.c.h.b16 %v1125
        %v1205 = vunpack.c.l.b16 %v1126
        %v1206 = vunpack.c.h.b16 %v1126
        %v1207 = vunpack.c.l.b16 %v1127
        %v1208 = vunpack.c.h.b16 %v1127
        %v1209 = vunpack.c.l.b16 %v1128
        %v1210 = vunpack.c.h.b16 %v1128
        %v1211 = vunpack.c.l.b16 %v1129
        %v1212 = vunpack.c.h.b16 %v1129
        %v1213 = vunpack.c.l.b16 %v1130
        %v1214 = vunpack.c.h.b16 %v1130
        %v1215 = vunpack.c.l.b16 %v1131
        %v1216 = vunpack.c.h.b16 %v1131
        %v1217 = vunpack.c.l.b16 %v1132
        %v1218 = vunpack.c.h.b16 %v1132
        %v1219 = vunpack.c.l.b16 %v1133
        %v1220 = vunpack.c.h.b16 %v1133
        %v1221 = vunpack.c.l.b16 %v1134
        %v1222 = vunpack.c.h.b16 %v1134
        %v1223 = vunpack.c.l.b16 %v1135
        %v1224 = vunpack.c.h.b16 %v1135
        %v1225 = vunpack.c.l.b16 %v1136
        %v1226 = vunpack.c.h.b16 %v1136
        %v1227 = vunpack.c.l.b16 %v1137
        %v1228 = vunpack.c.h.b16 %v1137
        %v1229 = vunpack.c.l.b16 %v1138
        %v1230 = vunpack.c.h.b16 %v1138
        %v1231 = vunpack.c.l.b16 %v1139
        %v1232 = vunpack.c.h.b16 %v1139
        %v1233 = vunpack.c.l.b16 %v1140
        %v1234 = vunpack.c.h.b16 %v1140
        %v1235 = vunpack.c.l.b16 %v1141
        %v1236 = vunpack.c.h.b16 %v1141
        %v1237 = vunpack.c.l.b16 %v1142
        %v1238 = vunpack.c.h.b16 %v1142
        %v1239 = vpack.c.b16 %v1179, %v1175
        %v1240 = vpack.c.b16 %v1180, %v1176
        %v1241 = vpack.c.b16 %v1181, %v1177
        %v1242 = vpack.c.b16 %v1182, %v1178
        %v1243 = vpack.c.b16 %v1187, %v1183
        %v1244 = vpack.c.b16 %v1188, %v1184
        %v1245 = vpack.c.b16 %v1189, %v1185
        %v1246 = vpack.c.b16 %v1190, %v1186
        %v1247 = vpack.c.b16 %v1195, %v1191
        %v1248 = vpack.c.b16 %v1196, %v1192
        %v1249 = vpack.c.b16 %v1197, %v1193
        %v1250 = vpack.c.b16 %v1198, %v1194
        %v1251 = vpack.c.b16 %v1203, %v1199
        %v1252 = vpack.c.b16 %v1204, %v1200
        %v1253 = vpack.c.b16 %v1205, %v1201
        %v1254 = vpack.c.b16 %v1206, %v1202
        %v1255 = vpack.c.b16 %v1211, %v1207
        %v1256 = vpack.c.b16 %v1212, %v1208
        %v1257 = vpack.c.b16 %v1213, %v1209
        %v1258 = vpack.c.b16 %v1214, %v1210
        %v1259 = vpack.c.b16 %v1219, %v1215
        %v1260 = vpack.c.b16 %v1220, %v1216
        %v1261 = vpack.c.b16 %v1221, %v1217
        %v1262 = vpack.c.b16 %v1222, %v1218
        %v1263 = vpack.c.b16 %v1227, %v1223
        %v1264 = vpack.c.b16 %v1228, %v1224
        %v1265 = vpack.c.b16 %v1229, %v1225
        %v1266 = vpack.c.b16 %v1230, %v1226
        %v1267 = vpack.c.b16 %v1235, %v1231
        %v1268 = vpack.c.b16 %v1236, %v1232
        %v1269 = vpack.c.b16 %v1237, %v1233
        %v1270 = vpack.c.b16 %v1238, %v1234
        %1303 = vmatprep.subr.bf16.mxu0 %v1240
        %1304 = vmatpush1.bf16.msra.mxu0 %v1239
        %1305 = vmatprep.subr.bf16.mxu0 %v1244
        %1306 = vmatpush1.bf16.msra.mxu0 %v1243
        %1307 = vmatprep.subr.bf16.mxu0 %v1248
        %1308 = vmatpush1.bf16.msra.mxu0 %v1247
        %1309 = vmatprep.subr.bf16.mxu0 %v1252
        %1310 = vmatpush1.bf16.msra.mxu0 %v1251
        %1311 = vmatprep.subr.bf16.mxu0 %v1256
        %1312 = vmatpush1.bf16.msra.mxu0 %v1255
        %1313 = vmatprep.subr.bf16.mxu0 %v1260
        %1314 = vmatpush1.bf16.msra.mxu0 %v1259
        %1315 = vmatprep.subr.bf16.mxu0 %v1264
        %1316 = vmatpush1.bf16.msra.mxu0 %v1263
        %1317 = vmatprep.subr.bf16.mxu0 %v1268
        %1318 = vmatpush1.bf16.msra.mxu0 %v1267
        %1319 = vmatprep.subr.bf16.mxu0 0
        %1320 = vmatpush1.bf16.msra.mxu0 0
        %1321 = vmatprep.subr.bf16.mxu0 0
        %1322 = vmatpush1.bf16.msra.mxu0 0
        %1323 = vmatprep.subr.bf16.mxu0 0
        %1324 = vmatpush1.bf16.msra.mxu0 0
        %1325 = vmatprep.subr.bf16.mxu0 0
        %1326 = vmatpush1.bf16.msra.mxu0 0
        %1327 = vmatprep.subr.bf16.mxu0 0
        %1328 = vmatpush1.bf16.msra.mxu0 0
        %1329 = vmatprep.subr.bf16.mxu0 0
        %1330 = vmatpush1.bf16.msra.mxu0 0
        %1331 = vmatprep.subr.bf16.mxu0 0
        %1332 = vmatpush1.bf16.msra.mxu0 0
        %1333 = vmatprep.subr.bf16.mxu0 0
        %1334 = vmatpush1.bf16.msra.mxu0 0
        %1335 = vmatprep.mubr.bf16.mxu0 0
        %1336 = vmatmul.mubr.bf16.gmra.mrb[0].mxu0 %v1110
        %v1337 = vpop.f32.mrb[0].mxu0
        %v1338 = vadd.f32 0.0, %v1337
        %v1339 = vpop.f32.mrb[0].mxu0
        %v1340 = vadd.f32 0.0, %v1339
        %v1341 = vpop.f32.mrb[0].mxu0
        %v1342 = vadd.f32 0.0, %v1341
        %v1343 = vpop.f32.mrb[0].mxu0
        %v1344 = vadd.f32 0.0, %v1343
        %1345 = vdwg.mxu0
        %1346 = vmatprep.subr.bf16.mxu0 %v1242
        %1347 = vmatpush1.bf16.msra.mxu0 %v1241
        %1348 = vmatprep.subr.bf16.mxu0 %v1246
        %1349 = vmatpush1.bf16.msra.mxu0 %v1245
        %1350 = vmatprep.subr.bf16.mxu0 %v1250
        %1351 = vmatpush1.bf16.msra.mxu0 %v1249
        %1352 = vmatprep.subr.bf16.mxu0 %v1254
        %1353 = vmatpush1.bf16.msra.mxu0 %v1253
        %1354 = vmatprep.subr.bf16.mxu0 %v1258
        %1355 = vmatpush1.bf16.msra.mxu0 %v1257
        %1356 = vmatprep.subr.bf16.mxu0 %v1262
        %1357 = vmatpush1.bf16.msra.mxu0 %v1261
        %1358 = vmatprep.subr.bf16.mxu0 %v1266
        %1359 = vmatpush1.bf16.msra.mxu0 %v1265
        %1360 = vmatprep.subr.bf16.mxu0 %v1270
        %1361 = vmatpush1.bf16.msra.mxu0 %v1269
        %1362 = vmatprep.subr.bf16.mxu0 0
        %1363 = vmatpush1.bf16.msra.mxu0 0
        %1364 = vmatprep.subr.bf16.mxu0 0
        %1365 = vmatpush1.bf16.msra.mxu0 0
        %1366 = vmatprep.subr.bf16.mxu0 0
        %1367 = vmatpush1.bf16.msra.mxu0 0
        %1368 = vmatprep.subr.bf16.mxu0 0
        %1369 = vmatpush1.bf16.msra.mxu0 0
        %1370 = vmatprep.subr.bf16.mxu0 0
        %1371 = vmatpush1.bf16.msra.mxu0 0
        %1372 = vmatprep.subr.bf16.mxu0 0
        %1373 = vmatpush1.bf16.msra.mxu0 0
        %1374 = vmatprep.subr.bf16.mxu0 0
        %1375 = vmatpush1.bf16.msra.mxu0 0
        %1376 = vmatprep.subr.bf16.mxu0 0
        %1377 = vmatpush1.bf16.msra.mxu0 0
        %1378 = vmatprep.mubr.bf16.mxu0 0
        %1379 = vmatmul.mubr.bf16.gmra.mrb[0].mxu0 %v1110
        %v1380 = vpop.f32.mrb[0].mxu0
        %v1381 = vadd.f32 0.0, %v1380
        %v1382 = vpop.f32.mrb[0].mxu0
        %v1383 = vadd.f32 0.0, %v1382
        %v1384 = vpop.f32.mrb[0].mxu0
        %v1385 = vadd.f32 0.0, %v1384
        %v1386 = vpop.f32.mrb[0].mxu0
        %v1387 = vadd.f32 0.0, %v1386
        %1388 = vdwg.mxu0
        %v1389 = vadd.f32 %v1100, %v1338
        %v1390 = vadd.f32 %v1101, %v1340
        %v1391 = vadd.f32 %v1102, %v1381
        %v1392 = vadd.f32 %v1103, %v1383
        %v1393 = vadd.f32 %v1104, %v1342
        %v1394 = vadd.f32 %v1105, %v1344
        %v1395 = vadd.f32 %v1106, %v1385
        %v1396 = vadd.f32 %v1107, %v1387
        %v1397 = vmul.f32 %v1389, 0.5
        %v1398 = vmul.f32 %v1393, 0.5
        %v1399 = vtanh.pop %v1397
        %v1400 = vtanh.pop %v1398
        %v1401 = vadd.f32 %v1399, 1.0
        %v1402 = vadd.f32 %v1400, 1.0
        %v1403 = vmul.f32 %v1401, 0.5
        %v1404 = vmul.f32 %v1402, 0.5
        %v1405 = vmul.f32 %v1390, 0.5
        %v1406 = vmul.f32 %v1394, 0.5
        %v1407 = vtanh.pop %v1405
        %v1408 = vtanh.pop %v1406
        %v1409 = vadd.f32 %v1407, 1.0
        %v1410 = vadd.f32 %v1408, 1.0
        %v1411 = vmul.f32 %v1409, 0.5
        %v1412 = vmul.f32 %v1410, 0.5
        %v1413 = vtanh.pop %v1391
        %v1414 = vtanh.pop %v1395
        %v1415 = vmul.f32 %v1392, 0.5
        %v1416 = vmul.f32 %v1396, 0.5
        %v1417 = vtanh.pop %v1415
        %v1418 = vtanh.pop %v1416
        %v1419 = vadd.f32 %v1417, 1.0
        %v1420 = vadd.f32 %v1418, 1.0
        %v1421 = vmul.f32 %v1419, 0.5
        %v1422 = vmul.f32 %v1420, 0.5
        %v1423 = vld [vmem:[#allocation3] sm:$0xff]
        %v1424 = vld [vmem:[#allocation3 + $0x8] sm:$0xff]
        %v1425 = vmul.f32 %v1411, %v1423
        %v1426 = vmul.f32 %v1412, %v1424
        %v1427 = vmul.f32 %v1403, %v1413
        %v1428 = vmul.f32 %v1404, %v1414
        %v1429 = vadd.f32 %v1425, %v1427
        %v1430 = vadd.f32 %v1426, %v1428
        %v1431 = vtanh.pop %v1429
        %v1432 = vtanh.pop %v1430
        %v1433 = vmul.f32 %v1421, %v1431
        %v1434 = vmul.f32 %v1422, %v1432
        %s1435 = sadd.s32 %s343, 2
        %v1436 = vstv %s1435
        %vm1437 = vcmp.ge.s32.totalorder %v1436, %v339
        %vm1438 = vcmp.ge.s32.totalorder %v1436, %v340
        %vm1439 = vcmp.lt.s32.totalorder %v1436, %v341
        %vm1440 = vcmp.lt.s32.totalorder %v1436, %v342
        %vm1441 = vmand %vm1437, %vm1439
        %vm1442 = vmand %vm1438, %vm1440
        %v1443 = vsel %vm1441, 1, 0
        %v1444 = vsel %vm1442, 1, 0
        %1445 = vset.pattern.permute.xlu0 0
        %1446 = vperm.xlu0 %1445, %v1443
        %v1447 = vpop.permute.xlu0 %1446
        %1448 = vset.pattern.permute.xlu0 0
        %1449 = vperm.xlu0 %1448, %v1444
        %v1450 = vpop.permute.xlu0 %1449
        %vm1451 = vcmp.eq.s32.totalorder %v1447, 1
        %vm1452 = vcmp.eq.s32.totalorder %v1450, 1
        %v1453 = vsel %vm1451, %v1433, %v1108
        %v1454 = vsel %vm1452, %v1434, %v1109
        %v1455 = vsel %vm1451, %v1429, %v1423
        %v1456 = vsel %vm1452, %v1430, %v1424
        %1457 = vst [vmem:[#allocation2] sm:$0xff] %v1453
        %1458 = vst [vmem:[#allocation2 + $0x8] sm:$0xff] %v1454
        %1459 = vst [vmem:[#allocation3] sm:$0xff] %v1455
        %1460 = vst [vmem:[#allocation3 + $0x8] sm:$0xff] %v1456
        %v1461 = vpack.c.bf16 %v1454, %v1453
        %v1463 = vunpack.c.l.b16 %v1461
        %v1464 = vunpack.c.h.b16 %v1461
        %v1465 = vpack.c.b16 %v1463, %v1463
        %v1466 = vpack.c.b16 %v1464, %v1464
        %s1469 = scalar_lea.vmem %s290, 16 [#allocation4]
        %1470 = vst [vmem:[%s1469] sm:$0xf] %v1465
        %1471 = vst [vmem:[%s1469 + $0x4] sm:$0xf] %v1466
        %s1472 = scalar_lea.vmem %s317, 96
        %v1473 = vld [vmem:[%s1472] sm:$0xff]
        %v1474 = vld [vmem:[%s1472 + $0x8] sm:$0xff]
        %v1475 = vld [vmem:[%s1472 + $0x10] sm:$0xff]
        %v1476 = vld [vmem:[%s1472 + $0x18] sm:$0xff]
        %v1477 = vunpack.c.l.bf16 %v1473
        %v1478 = vunpack.c.h.bf16 %v1473
        %v1479 = vunpack.c.l.bf16 %v1474
        %v1480 = vunpack.c.h.bf16 %v1474
        %v1481 = vunpack.c.l.bf16 %v1475
        %v1482 = vunpack.c.h.bf16 %v1475
        %v1483 = vunpack.c.l.bf16 %v1476
        %v1484 = vunpack.c.h.bf16 %v1476
        %v1485 = vld [vmem:[#allocation2] sm:$0xff]
        %v1486 = vld [vmem:[#allocation2 + $0x8] sm:$0xff]
        %v1487 = vpack.c.bf16 %v1486, %v1485
        %v1488 = vld [vmem:[%s323] sm:$0xff]
        %v1489 = vld [vmem:[%s323 + $0x8] sm:$0xff]
        %v1490 = vld [vmem:[%s323 + $0x10] sm:$0xff]
        %v1491 = vld [vmem:[%s323 + $0x18] sm:$0xff]
        %v1492 = vld [vmem:[%s323 + $0x20] sm:$0xff]
        %v1493 = vld [vmem:[%s323 + $0x28] sm:$0xff]
        %v1494 = vld [vmem:[%s323 + $0x30] sm:$0xff]
        %v1495 = vld [vmem:[%s323 + $0x38] sm:$0xff]
        %v1496 = vld [vmem:[%s323 + $0x40] sm:$0xff]
        %v1497 = vld [vmem:[%s323 + $0x48] sm:$0xff]
        %v1498 = vld [vmem:[%s323 + $0x50] sm:$0xff]
        %v1499 = vld [vmem:[%s323 + $0x58] sm:$0xff]
        %v1500 = vld [vmem:[%s323 + $0x60] sm:$0xff]
        %v1501 = vld [vmem:[%s323 + $0x68] sm:$0xff]
        %v1502 = vld [vmem:[%s323 + $0x70] sm:$0xff]
        %v1503 = vld [vmem:[%s323 + $0x78] sm:$0xff]
        %v1504 = vld [vmem:[%s323 + $0x80] sm:$0xff]
        %v1505 = vld [vmem:[%s323 + $0x88] sm:$0xff]
        %v1506 = vld [vmem:[%s323 + $0x90] sm:$0xff]
        %v1507 = vld [vmem:[%s323 + $0x98] sm:$0xff]
        %v1508 = vld [vmem:[%s323 + $0xa0] sm:$0xff]
        %v1509 = vld [vmem:[%s323 + $0xa8] sm:$0xff]
        %v1510 = vld [vmem:[%s323 + $0xb0] sm:$0xff]
        %v1511 = vld [vmem:[%s323 + $0xb8] sm:$0xff]
        %v1512 = vld [vmem:[%s323 + $0xc0] sm:$0xff]
        %v1513 = vld [vmem:[%s323 + $0xc8] sm:$0xff]
        %v1514 = vld [vmem:[%s323 + $0xd0] sm:$0xff]
        %v1515 = vld [vmem:[%s323 + $0xd8] sm:$0xff]
        %v1516 = vld [vmem:[%s323 + $0xe0] sm:$0xff]
        %v1517 = vld [vmem:[%s323 + $0xe8] sm:$0xff]
        %v1518 = vld [vmem:[%s323 + $0xf0] sm:$0xff]
        %v1519 = vld [vmem:[%s323 + $0xf8] sm:$0xff]
        %v1552 = vunpack.c.l.b16 %v1488
        %v1553 = vunpack.c.h.b16 %v1488
        %v1554 = vunpack.c.l.b16 %v1489
        %v1555 = vunpack.c.h.b16 %v1489
        %v1556 = vunpack.c.l.b16 %v1490
        %v1557 = vunpack.c.h.b16 %v1490
        %v1558 = vunpack.c.l.b16 %v1491
        %v1559 = vunpack.c.h.b16 %v1491
        %v1560 = vunpack.c.l.b16 %v1492
        %v1561 = vunpack.c.h.b16 %v1492
        %v1562 = vunpack.c.l.b16 %v1493
        %v1563 = vunpack.c.h.b16 %v1493
        %v1564 = vunpack.c.l.b16 %v1494
        %v1565 = vunpack.c.h.b16 %v1494
        %v1566 = vunpack.c.l.b16 %v1495
        %v1567 = vunpack.c.h.b16 %v1495
        %v1568 = vunpack.c.l.b16 %v1496
        %v1569 = vunpack.c.h.b16 %v1496
        %v1570 = vunpack.c.l.b16 %v1497
        %v1571 = vunpack.c.h.b16 %v1497
        %v1572 = vunpack.c.l.b16 %v1498
        %v1573 = vunpack.c.h.b16 %v1498
        %v1574 = vunpack.c.l.b16 %v1499
        %v1575 = vunpack.c.h.b16 %v1499
        %v1576 = vunpack.c.l.b16 %v1500
        %v1577 = vunpack.c.h.b16 %v1500
        %v1578 = vunpack.c.l.b16 %v1501
        %v1579 = vunpack.c.h.b16 %v1501
        %v1580 = vunpack.c.l.b16 %v1502
        %v1581 = vunpack.c.h.b16 %v1502
        %v1582 = vunpack.c.l.b16 %v1503
        %v1583 = vunpack.c.h.b16 %v1503
        %v1584 = vunpack.c.l.b16 %v1504
        %v1585 = vunpack.c.h.b16 %v1504
        %v1586 = vunpack.c.l.b16 %v1505
        %v1587 = vunpack.c.h.b16 %v1505
        %v1588 = vunpack.c.l.b16 %v1506
        %v1589 = vunpack.c.h.b16 %v1506
        %v1590 = vunpack.c.l.b16 %v1507
        %v1591 = vunpack.c.h.b16 %v1507
        %v1592 = vunpack.c.l.b16 %v1508
        %v1593 = vunpack.c.h.b16 %v1508
        %v1594 = vunpack.c.l.b16 %v1509
        %v1595 = vunpack.c.h.b16 %v1509
        %v1596 = vunpack.c.l.b16 %v1510
        %v1597 = vunpack.c.h.b16 %v1510
        %v1598 = vunpack.c.l.b16 %v1511
        %v1599 = vunpack.c.h.b16 %v1511
        %v1600 = vunpack.c.l.b16 %v1512
        %v1601 = vunpack.c.h.b16 %v1512
        %v1602 = vunpack.c.l.b16 %v1513
        %v1603 = vunpack.c.h.b16 %v1513
        %v1604 = vunpack.c.l.b16 %v1514
        %v1605 = vunpack.c.h.b16 %v1514
        %v1606 = vunpack.c.l.b16 %v1515
        %v1607 = vunpack.c.h.b16 %v1515
        %v1608 = vunpack.c.l.b16 %v1516
        %v1609 = vunpack.c.h.b16 %v1516
        %v1610 = vunpack.c.l.b16 %v1517
        %v1611 = vunpack.c.h.b16 %v1517
        %v1612 = vunpack.c.l.b16 %v1518
        %v1613 = vunpack.c.h.b16 %v1518
        %v1614 = vunpack.c.l.b16 %v1519
        %v1615 = vunpack.c.h.b16 %v1519
        %v1616 = vpack.c.b16 %v1556, %v1552
        %v1617 = vpack.c.b16 %v1557, %v1553
        %v1618 = vpack.c.b16 %v1558, %v1554
        %v1619 = vpack.c.b16 %v1559, %v1555
        %v1620 = vpack.c.b16 %v1564, %v1560
        %v1621 = vpack.c.b16 %v1565, %v1561
        %v1622 = vpack.c.b16 %v1566, %v1562
        %v1623 = vpack.c.b16 %v1567, %v1563
        %v1624 = vpack.c.b16 %v1572, %v1568
        %v1625 = vpack.c.b16 %v1573, %v1569
        %v1626 = vpack.c.b16 %v1574, %v1570
        %v1627 = vpack.c.b16 %v1575, %v1571
        %v1628 = vpack.c.b16 %v1580, %v1576
        %v1629 = vpack.c.b16 %v1581, %v1577
        %v1630 = vpack.c.b16 %v1582, %v1578
        %v1631 = vpack.c.b16 %v1583, %v1579
        %v1632 = vpack.c.b16 %v1588, %v1584
        %v1633 = vpack.c.b16 %v1589, %v1585
        %v1634 = vpack.c.b16 %v1590, %v1586
        %v1635 = vpack.c.b16 %v1591, %v1587
        %v1636 = vpack.c.b16 %v1596, %v1592
        %v1637 = vpack.c.b16 %v1597, %v1593
        %v1638 = vpack.c.b16 %v1598, %v1594
        %v1639 = vpack.c.b16 %v1599, %v1595
        %v1640 = vpack.c.b16 %v1604, %v1600
        %v1641 = vpack.c.b16 %v1605, %v1601
        %v1642 = vpack.c.b16 %v1606, %v1602
        %v1643 = vpack.c.b16 %v1607, %v1603
        %v1644 = vpack.c.b16 %v1612, %v1608
        %v1645 = vpack.c.b16 %v1613, %v1609
        %v1646 = vpack.c.b16 %v1614, %v1610
        %v1647 = vpack.c.b16 %v1615, %v1611
        %1680 = vmatprep.subr.bf16.mxu0 %v1617
        %1681 = vmatpush1.bf16.msra.mxu0 %v1616
        %1682 = vmatprep.subr.bf16.mxu0 %v1621
        %1683 = vmatpush1.bf16.msra.mxu0 %v1620
        %1684 = vmatprep.subr.bf16.mxu0 %v1625
        %1685 = vmatpush1.bf16.msra.mxu0 %v1624
        %1686 = vmatprep.subr.bf16.mxu0 %v1629
        %1687 = vmatpush1.bf16.msra.mxu0 %v1628
        %1688 = vmatprep.subr.bf16.mxu0 %v1633
        %1689 = vmatpush1.bf16.msra.mxu0 %v1632
        %1690 = vmatprep.subr.bf16.mxu0 %v1637
        %1691 = vmatpush1.bf16.msra.mxu0 %v1636
        %1692 = vmatprep.subr.bf16.mxu0 %v1641
        %1693 = vmatpush1.bf16.msra.mxu0 %v1640
        %1694 = vmatprep.subr.bf16.mxu0 %v1645
        %1695 = vmatpush1.bf16.msra.mxu0 %v1644
        %1696 = vmatprep.subr.bf16.mxu0 0
        %1697 = vmatpush1.bf16.msra.mxu0 0
        %1698 = vmatprep.subr.bf16.mxu0 0
        %1699 = vmatpush1.bf16.msra.mxu0 0
        %1700 = vmatprep.subr.bf16.mxu0 0
        %1701 = vmatpush1.bf16.msra.mxu0 0
        %1702 = vmatprep.subr.bf16.mxu0 0
        %1703 = vmatpush1.bf16.msra.mxu0 0
        %1704 = vmatprep.subr.bf16.mxu0 0
        %1705 = vmatpush1.bf16.msra.mxu0 0
        %1706 = vmatprep.subr.bf16.mxu0 0
        %1707 = vmatpush1.bf16.msra.mxu0 0
        %1708 = vmatprep.subr.bf16.mxu0 0
        %1709 = vmatpush1.bf16.msra.mxu0 0
        %1710 = vmatprep.subr.bf16.mxu0 0
        %1711 = vmatpush1.bf16.msra.mxu0 0
        %1712 = vmatprep.mubr.bf16.mxu0 0
        %1713 = vmatmul.mubr.bf16.gmra.mrb[0].mxu0 %v1487
        %v1714 = vpop.f32.mrb[0].mxu0
        %v1715 = vadd.f32 0.0, %v1714
        %v1716 = vpop.f32.mrb[0].mxu0
        %v1717 = vadd.f32 0.0, %v1716
        %v1718 = vpop.f32.mrb[0].mxu0
        %v1719 = vadd.f32 0.0, %v1718
        %v1720 = vpop.f32.mrb[0].mxu0
        %v1721 = vadd.f32 0.0, %v1720
        %1722 = vdwg.mxu0
        %1723 = vmatprep.subr.bf16.mxu0 %v1619
        %1724 = vmatpush1.bf16.msra.mxu0 %v1618
        %1725 = vmatprep.subr.bf16.mxu0 %v1623
        %1726 = vmatpush1.bf16.msra.mxu0 %v1622
        %1727 = vmatprep.subr.bf16.mxu0 %v1627
        %1728 = vmatpush1.bf16.msra.mxu0 %v1626
        %1729 = vmatprep.subr.bf16.mxu0 %v1631
        %1730 = vmatpush1.bf16.msra.mxu0 %v1630
        %1731 = vmatprep.subr.bf16.mxu0 %v1635
        %1732 = vmatpush1.bf16.msra.mxu0 %v1634
        %1733 = vmatprep.subr.bf16.mxu0 %v1639
        %1734 = vmatpush1.bf16.msra.mxu0 %v1638
        %1735 = vmatprep.subr.bf16.mxu0 %v1643
        %1736 = vmatpush1.bf16.msra.mxu0 %v1642
        %1737 = vmatprep.subr.bf16.mxu0 %v1647
        %1738 = vmatpush1.bf16.msra.mxu0 %v1646
        %1739 = vmatprep.subr.bf16.mxu0 0
        %1740 = vmatpush1.bf16.msra.mxu0 0
        %1741 = vmatprep.subr.bf16.mxu0 0
        %1742 = vmatpush1.bf16.msra.mxu0 0
        %1743 = vmatprep.subr.bf16.mxu0 0
        %1744 = vmatpush1.bf16.msra.mxu0 0
        %1745 = vmatprep.subr.bf16.mxu0 0
        %1746 = vmatpush1.bf16.msra.mxu0 0
        %1747 = vmatprep.subr.bf16.mxu0 0
        %1748 = vmatpush1.bf16.msra.mxu0 0
        %1749 = vmatprep.subr.bf16.mxu0 0
        %1750 = vmatpush1.bf16.msra.mxu0 0
        %1751 = vmatprep.subr.bf16.mxu0 0
        %1752 = vmatpush1.bf16.msra.mxu0 0
        %1753 = vmatprep.subr.bf16.mxu0 0
        %1754 = vmatpush1.bf16.msra.mxu0 0
        %1755 = vmatprep.mubr.bf16.mxu0 0
        %1756 = vmatmul.mubr.bf16.gmra.mrb[0].mxu0 %v1487
        %v1757 = vpop.f32.mrb[0].mxu0
        %v1758 = vadd.f32 0.0, %v1757
        %v1759 = vpop.f32.mrb[0].mxu0
        %v1760 = vadd.f32 0.0, %v1759
        %v1761 = vpop.f32.mrb[0].mxu0
        %v1762 = vadd.f32 0.0, %v1761
        %v1763 = vpop.f32.mrb[0].mxu0
        %v1764 = vadd.f32 0.0, %v1763
        %1765 = vdwg.mxu0
        %v1766 = vadd.f32 %v1477, %v1715
        %v1767 = vadd.f32 %v1478, %v1717
        %v1768 = vadd.f32 %v1479, %v1758
        %v1769 = vadd.f32 %v1480, %v1760
        %v1770 = vadd.f32 %v1481, %v1719
        %v1771 = vadd.f32 %v1482, %v1721
        %v1772 = vadd.f32 %v1483, %v1762
        %v1773 = vadd.f32 %v1484, %v1764
        %v1774 = vmul.f32 %v1766, 0.5
        %v1775 = vmul.f32 %v1770, 0.5
        %v1776 = vtanh.pop %v1774
        %v1777 = vtanh.pop %v1775
        %v1778 = vadd.f32 %v1776, 1.0
        %v1779 = vadd.f32 %v1777, 1.0
        %v1780 = vmul.f32 %v1778, 0.5
        %v1781 = vmul.f32 %v1779, 0.5
        %v1782 = vmul.f32 %v1767, 0.5
        %v1783 = vmul.f32 %v1771, 0.5
        %v1784 = vtanh.pop %v1782
        %v1785 = vtanh.pop %v1783
        %v1786 = vadd.f32 %v1784, 1.0
        %v1787 = vadd.f32 %v1785, 1.0
        %v1788 = vmul.f32 %v1786, 0.5
        %v1789 = vmul.f32 %v1787, 0.5
        %v1790 = vtanh.pop %v1768
        %v1791 = vtanh.pop %v1772
        %v1792 = vmul.f32 %v1769, 0.5
        %v1793 = vmul.f32 %v1773, 0.5
        %v1794 = vtanh.pop %v1792
        %v1795 = vtanh.pop %v1793
        %v1796 = vadd.f32 %v1794, 1.0
        %v1797 = vadd.f32 %v1795, 1.0
        %v1798 = vmul.f32 %v1796, 0.5
        %v1799 = vmul.f32 %v1797, 0.5
        %v1800 = vld [vmem:[#allocation3] sm:$0xff]
        %v1801 = vld [vmem:[#allocation3 + $0x8] sm:$0xff]
        %v1802 = vmul.f32 %v1788, %v1800
        %v1803 = vmul.f32 %v1789, %v1801
        %v1804 = vmul.f32 %v1780, %v1790
        %v1805 = vmul.f32 %v1781, %v1791
        %v1806 = vadd.f32 %v1802, %v1804
        %v1807 = vadd.f32 %v1803, %v1805
        %v1808 = vtanh.pop %v1806
        %v1809 = vtanh.pop %v1807
        %v1810 = vmul.f32 %v1798, %v1808
        %v1811 = vmul.f32 %v1799, %v1809
        %s1812 = sadd.s32 %s343, 3
        %v1813 = vstv %s1812
        %vm1814 = vcmp.ge.s32.totalorder %v1813, %v339
        %vm1815 = vcmp.ge.s32.totalorder %v1813, %v340
        %vm1816 = vcmp.lt.s32.totalorder %v1813, %v341
        %vm1817 = vcmp.lt.s32.totalorder %v1813, %v342
        %vm1818 = vmand %vm1814, %vm1816
        %vm1819 = vmand %vm1815, %vm1817
        %v1820 = vsel %vm1818, 1, 0
        %v1821 = vsel %vm1819, 1, 0
        %1822 = vset.pattern.permute.xlu0 0
        %1823 = vperm.xlu0 %1822, %v1820
        %v1824 = vpop.permute.xlu0 %1823
        %1825 = vset.pattern.permute.xlu0 0
        %1826 = vperm.xlu0 %1825, %v1821
        %v1827 = vpop.permute.xlu0 %1826
        %vm1828 = vcmp.eq.s32.totalorder %v1824, 1
        %vm1829 = vcmp.eq.s32.totalorder %v1827, 1
        %v1830 = vsel %vm1828, %v1810, %v1485
        %v1831 = vsel %vm1829, %v1811, %v1486
        %v1832 = vsel %vm1828, %v1806, %v1800
        %v1833 = vsel %vm1829, %v1807, %v1801
        %1834 = vst [vmem:[#allocation2] sm:$0xff] %v1830
        %1835 = vst [vmem:[#allocation2 + $0x8] sm:$0xff] %v1831
        %1836 = vst [vmem:[#allocation3] sm:$0xff] %v1832
        %1837 = vst [vmem:[#allocation3 + $0x8] sm:$0xff] %v1833
        %v1838 = vpack.c.bf16 %v1831, %v1830
        %v1840 = vunpack.c.l.b16 %v1838
        %v1841 = vunpack.c.h.b16 %v1838
        %v1842 = vpack.c.b16 %v1840, %v1840
        %v1843 = vpack.c.b16 %v1841, %v1841
        %s1846 = scalar_lea.vmem %s290, 24 [#allocation4]
        %1847 = vst [vmem:[%s1846] sm:$0xf] %v1842
        %1848 = vst [vmem:[%s1846 + $0x4] sm:$0xf] %v1843
        %s1849 = scalar_lea.vmem %s317, 128
        %v1850 = vld [vmem:[%s1849] sm:$0xff]
        %v1851 = vld [vmem:[%s1849 + $0x8] sm:$0xff]
        %v1852 = vld [vmem:[%s1849 + $0x10] sm:$0xff]
        %v1853 = vld [vmem:[%s1849 + $0x18] sm:$0xff]
        %v1854 = vunpack.c.l.bf16 %v1850
        %v1855 = vunpack.c.h.bf16 %v1850
        %v1856 = vunpack.c.l.bf16 %v1851
        %v1857 = vunpack.c.h.bf16 %v1851
        %v1858 = vunpack.c.l.bf16 %v1852
        %v1859 = vunpack.c.h.bf16 %v1852
        %v1860 = vunpack.c.l.bf16 %v1853
        %v1861 = vunpack.c.h.bf16 %v1853
        %v1862 = vld [vmem:[#allocation2] sm:$0xff]
        %v1863 = vld [vmem:[#allocation2 + $0x8] sm:$0xff]
        %v1864 = vpack.c.bf16 %v1863, %v1862
        %v1865 = vld [vmem:[%s323] sm:$0xff]
        %v1866 = vld [vmem:[%s323 + $0x8] sm:$0xff]
        %v1867 = vld [vmem:[%s323 + $0x10] sm:$0xff]
        %v1868 = vld [vmem:[%s323 + $0x18] sm:$0xff]
        %v1869 = vld [vmem:[%s323 + $0x20] sm:$0xff]
        %v1870 = vld [vmem:[%s323 + $0x28] sm:$0xff]
        %v1871 = vld [vmem:[%s323 + $0x30] sm:$0xff]
        %v1872 = vld [vmem:[%s323 + $0x38] sm:$0xff]
        %v1873 = vld [vmem:[%s323 + $0x40] sm:$0xff]
        %v1874 = vld [vmem:[%s323 + $0x48] sm:$0xff]
        %v1875 = vld [vmem:[%s323 + $0x50] sm:$0xff]
        %v1876 = vld [vmem:[%s323 + $0x58] sm:$0xff]
        %v1877 = vld [vmem:[%s323 + $0x60] sm:$0xff]
        %v1878 = vld [vmem:[%s323 + $0x68] sm:$0xff]
        %v1879 = vld [vmem:[%s323 + $0x70] sm:$0xff]
        %v1880 = vld [vmem:[%s323 + $0x78] sm:$0xff]
        %v1881 = vld [vmem:[%s323 + $0x80] sm:$0xff]
        %v1882 = vld [vmem:[%s323 + $0x88] sm:$0xff]
        %v1883 = vld [vmem:[%s323 + $0x90] sm:$0xff]
        %v1884 = vld [vmem:[%s323 + $0x98] sm:$0xff]
        %v1885 = vld [vmem:[%s323 + $0xa0] sm:$0xff]
        %v1886 = vld [vmem:[%s323 + $0xa8] sm:$0xff]
        %v1887 = vld [vmem:[%s323 + $0xb0] sm:$0xff]
        %v1888 = vld [vmem:[%s323 + $0xb8] sm:$0xff]
        %v1889 = vld [vmem:[%s323 + $0xc0] sm:$0xff]
        %v1890 = vld [vmem:[%s323 + $0xc8] sm:$0xff]
        %v1891 = vld [vmem:[%s323 + $0xd0] sm:$0xff]
        %v1892 = vld [vmem:[%s323 + $0xd8] sm:$0xff]
        %v1893 = vld [vmem:[%s323 + $0xe0] sm:$0xff]
        %v1894 = vld [vmem:[%s323 + $0xe8] sm:$0xff]
        %v1895 = vld [vmem:[%s323 + $0xf0] sm:$0xff]
        %v1896 = vld [vmem:[%s323 + $0xf8] sm:$0xff]
        %v1929 = vunpack.c.l.b16 %v1865
        %v1930 = vunpack.c.h.b16 %v1865
        %v1931 = vunpack.c.l.b16 %v1866
        %v1932 = vunpack.c.h.b16 %v1866
        %v1933 = vunpack.c.l.b16 %v1867
        %v1934 = vunpack.c.h.b16 %v1867
        %v1935 = vunpack.c.l.b16 %v1868
        %v1936 = vunpack.c.h.b16 %v1868
        %v1937 = vunpack.c.l.b16 %v1869
        %v1938 = vunpack.c.h.b16 %v1869
        %v1939 = vunpack.c.l.b16 %v1870
        %v1940 = vunpack.c.h.b16 %v1870
        %v1941 = vunpack.c.l.b16 %v1871
        %v1942 = vunpack.c.h.b16 %v1871
        %v1943 = vunpack.c.l.b16 %v1872
        %v1944 = vunpack.c.h.b16 %v1872
        %v1945 = vunpack.c.l.b16 %v1873
        %v1946 = vunpack.c.h.b16 %v1873
        %v1947 = vunpack.c.l.b16 %v1874
        %v1948 = vunpack.c.h.b16 %v1874
        %v1949 = vunpack.c.l.b16 %v1875
        %v1950 = vunpack.c.h.b16 %v1875
        %v1951 = vunpack.c.l.b16 %v1876
        %v1952 = vunpack.c.h.b16 %v1876
        %v1953 = vunpack.c.l.b16 %v1877
        %v1954 = vunpack.c.h.b16 %v1877
        %v1955 = vunpack.c.l.b16 %v1878
        %v1956 = vunpack.c.h.b16 %v1878
        %v1957 = vunpack.c.l.b16 %v1879
        %v1958 = vunpack.c.h.b16 %v1879
        %v1959 = vunpack.c.l.b16 %v1880
        %v1960 = vunpack.c.h.b16 %v1880
        %v1961 = vunpack.c.l.b16 %v1881
        %v1962 = vunpack.c.h.b16 %v1881
        %v1963 = vunpack.c.l.b16 %v1882
        %v1964 = vunpack.c.h.b16 %v1882
        %v1965 = vunpack.c.l.b16 %v1883
        %v1966 = vunpack.c.h.b16 %v1883
        %v1967 = vunpack.c.l.b16 %v1884
        %v1968 = vunpack.c.h.b16 %v1884
        %v1969 = vunpack.c.l.b16 %v1885
        %v1970 = vunpack.c.h.b16 %v1885
        %v1971 = vunpack.c.l.b16 %v1886
        %v1972 = vunpack.c.h.b16 %v1886
        %v1973 = vunpack.c.l.b16 %v1887
        %v1974 = vunpack.c.h.b16 %v1887
        %v1975 = vunpack.c.l.b16 %v1888
        %v1976 = vunpack.c.h.b16 %v1888
        %v1977 = vunpack.c.l.b16 %v1889
        %v1978 = vunpack.c.h.b16 %v1889
        %v1979 = vunpack.c.l.b16 %v1890
        %v1980 = vunpack.c.h.b16 %v1890
        %v1981 = vunpack.c.l.b16 %v1891
        %v1982 = vunpack.c.h.b16 %v1891
        %v1983 = vunpack.c.l.b16 %v1892
        %v1984 = vunpack.c.h.b16 %v1892
        %v1985 = vunpack.c.l.b16 %v1893
        %v1986 = vunpack.c.h.b16 %v1893
        %v1987 = vunpack.c.l.b16 %v1894
        %v1988 = vunpack.c.h.b16 %v1894
        %v1989 = vunpack.c.l.b16 %v1895
        %v1990 = vunpack.c.h.b16 %v1895
        %v1991 = vunpack.c.l.b16 %v1896
        %v1992 = vunpack.c.h.b16 %v1896
        %v1993 = vpack.c.b16 %v1933, %v1929
        %v1994 = vpack.c.b16 %v1934, %v1930
        %v1995 = vpack.c.b16 %v1935, %v1931
        %v1996 = vpack.c.b16 %v1936, %v1932
        %v1997 = vpack.c.b16 %v1941, %v1937
        %v1998 = vpack.c.b16 %v1942, %v1938
        %v1999 = vpack.c.b16 %v1943, %v1939
        %v2000 = vpack.c.b16 %v1944, %v1940
        %v2001 = vpack.c.b16 %v1949, %v1945
        %v2002 = vpack.c.b16 %v1950, %v1946
        %v2003 = vpack.c.b16 %v1951, %v1947
        %v2004 = vpack.c.b16 %v1952, %v1948
        %v2005 = vpack.c.b16 %v1957, %v1953
        %v2006 = vpack.c.b16 %v1958, %v1954
        %v2007 = vpack.c.b16 %v1959, %v1955
        %v2008 = vpack.c.b16 %v1960, %v1956
        %v2009 = vpack.c.b16 %v1965, %v1961
        %v2010 = vpack.c.b16 %v1966, %v1962
        %v2011 = vpack.c.b16 %v1967, %v1963
        %v2012 = vpack.c.b16 %v1968, %v1964
        %v2013 = vpack.c.b16 %v1973, %v1969
        %v2014 = vpack.c.b16 %v1974, %v1970
        %v2015 = vpack.c.b16 %v1975, %v1971
        %v2016 = vpack.c.b16 %v1976, %v1972
        %v2017 = vpack.c.b16 %v1981, %v1977
        %v2018 = vpack.c.b16 %v1982, %v1978
        %v2019 = vpack.c.b16 %v1983, %v1979
        %v2020 = vpack.c.b16 %v1984, %v1980
        %v2021 = vpack.c.b16 %v1989, %v1985
        %v2022 = vpack.c.b16 %v1990, %v1986
        %v2023 = vpack.c.b16 %v1991, %v1987
        %v2024 = vpack.c.b16 %v1992, %v1988
        %2057 = vmatprep.subr.bf16.mxu0 %v1994
        %2058 = vmatpush1.bf16.msra.mxu0 %v1993
        %2059 = vmatprep.subr.bf16.mxu0 %v1998
        %2060 = vmatpush1.bf16.msra.mxu0 %v1997
        %2061 = vmatprep.subr.bf16.mxu0 %v2002
        %2062 = vmatpush1.bf16.msra.mxu0 %v2001
        %2063 = vmatprep.subr.bf16.mxu0 %v2006
        %2064 = vmatpush1.bf16.msra.mxu0 %v2005
        %2065 = vmatprep.subr.bf16.mxu0 %v2010
        %2066 = vmatpush1.bf16.msra.mxu0 %v2009
        %2067 = vmatprep.subr.bf16.mxu0 %v2014
        %2068 = vmatpush1.bf16.msra.mxu0 %v2013
        %2069 = vmatprep.subr.bf16.mxu0 %v2018
        %2070 = vmatpush1.bf16.msra.mxu0 %v2017
        %2071 = vmatprep.subr.bf16.mxu0 %v2022
        %2072 = vmatpush1.bf16.msra.mxu0 %v2021
        %2073 = vmatprep.subr.bf16.mxu0 0
        %2074 = vmatpush1.bf16.msra.mxu0 0
        %2075 = vmatprep.subr.bf16.mxu0 0
        %2076 = vmatpush1.bf16.msra.mxu0 0
        %2077 = vmatprep.subr.bf16.mxu0 0
        %2078 = vmatpush1.bf16.msra.mxu0 0
        %2079 = vmatprep.subr.bf16.mxu0 0
        %2080 = vmatpush1.bf16.msra.mxu0 0
        %2081 = vmatprep.subr.bf16.mxu0 0
        %2082 = vmatpush1.bf16.msra.mxu0 0
        %2083 = vmatprep.subr.bf16.mxu0 0
        %2084 = vmatpush1.bf16.msra.mxu0 0
        %2085 = vmatprep.subr.bf16.mxu0 0
        %2086 = vmatpush1.bf16.msra.mxu0 0
        %2087 = vmatprep.subr.bf16.mxu0 0
        %2088 = vmatpush1.bf16.msra.mxu0 0
        %2089 = vmatprep.mubr.bf16.mxu0 0
        %2090 = vmatmul.mubr.bf16.gmra.mrb[0].mxu0 %v1864
        %v2091 = vpop.f32.mrb[0].mxu0
        %v2092 = vadd.f32 0.0, %v2091
        %v2093 = vpop.f32.mrb[0].mxu0
        %v2094 = vadd.f32 0.0, %v2093
        %v2095 = vpop.f32.mrb[0].mxu0
        %v2096 = vadd.f32 0.0, %v2095
        %v2097 = vpop.f32.mrb[0].mxu0
        %v2098 = vadd.f32 0.0, %v2097
        %2099 = vdwg.mxu0
        %2100 = vmatprep.subr.bf16.mxu0 %v1996
        %2101 = vmatpush1.bf16.msra.mxu0 %v1995
        %2102 = vmatprep.subr.bf16.mxu0 %v2000
        %2103 = vmatpush1.bf16.msra.mxu0 %v1999
        %2104 = vmatprep.subr.bf16.mxu0 %v2004
        %2105 = vmatpush1.bf16.msra.mxu0 %v2003
        %2106 = vmatprep.subr.bf16.mxu0 %v2008
        %2107 = vmatpush1.bf16.msra.mxu0 %v2007
        %2108 = vmatprep.subr.bf16.mxu0 %v2012
        %2109 = vmatpush1.bf16.msra.mxu0 %v2011
        %2110 = vmatprep.subr.bf16.mxu0 %v2016
        %2111 = vmatpush1.bf16.msra.mxu0 %v2015
        %2112 = vmatprep.subr.bf16.mxu0 %v2020
        %2113 = vmatpush1.bf16.msra.mxu0 %v2019
        %2114 = vmatprep.subr.bf16.mxu0 %v2024
        %2115 = vmatpush1.bf16.msra.mxu0 %v2023
        %2116 = vmatprep.subr.bf16.mxu0 0
        %2117 = vmatpush1.bf16.msra.mxu0 0
        %2118 = vmatprep.subr.bf16.mxu0 0
        %2119 = vmatpush1.bf16.msra.mxu0 0
        %2120 = vmatprep.subr.bf16.mxu0 0
        %2121 = vmatpush1.bf16.msra.mxu0 0
        %2122 = vmatprep.subr.bf16.mxu0 0
        %2123 = vmatpush1.bf16.msra.mxu0 0
        %2124 = vmatprep.subr.bf16.mxu0 0
        %2125 = vmatpush1.bf16.msra.mxu0 0
        %2126 = vmatprep.subr.bf16.mxu0 0
        %2127 = vmatpush1.bf16.msra.mxu0 0
        %2128 = vmatprep.subr.bf16.mxu0 0
        %2129 = vmatpush1.bf16.msra.mxu0 0
        %2130 = vmatprep.subr.bf16.mxu0 0
        %2131 = vmatpush1.bf16.msra.mxu0 0
        %2132 = vmatprep.mubr.bf16.mxu0 0
        %2133 = vmatmul.mubr.bf16.gmra.mrb[0].mxu0 %v1864
        %v2134 = vpop.f32.mrb[0].mxu0
        %v2135 = vadd.f32 0.0, %v2134
        %v2136 = vpop.f32.mrb[0].mxu0
        %v2137 = vadd.f32 0.0, %v2136
        %v2138 = vpop.f32.mrb[0].mxu0
        %v2139 = vadd.f32 0.0, %v2138
        %v2140 = vpop.f32.mrb[0].mxu0
        %v2141 = vadd.f32 0.0, %v2140
        %2142 = vdwg.mxu0
        %v2143 = vadd.f32 %v1854, %v2092
        %v2144 = vadd.f32 %v1855, %v2094
        %v2145 = vadd.f32 %v1856, %v2135
        %v2146 = vadd.f32 %v1857, %v2137
        %v2147 = vadd.f32 %v1858, %v2096
        %v2148 = vadd.f32 %v1859, %v2098
        %v2149 = vadd.f32 %v1860, %v2139
        %v2150 = vadd.f32 %v1861, %v2141
        %v2151 = vmul.f32 %v2143, 0.5
        %v2152 = vmul.f32 %v2147, 0.5
        %v2153 = vtanh.pop %v2151
        %v2154 = vtanh.pop %v2152
        %v2155 = vadd.f32 %v2153, 1.0
        %v2156 = vadd.f32 %v2154, 1.0
        %v2157 = vmul.f32 %v2155, 0.5
        %v2158 = vmul.f32 %v2156, 0.5
        %v2159 = vmul.f32 %v2144, 0.5
        %v2160 = vmul.f32 %v2148, 0.5
        %v2161 = vtanh.pop %v2159
        %v2162 = vtanh.pop %v2160
        %v2163 = vadd.f32 %v2161, 1.0
        %v2164 = vadd.f32 %v2162, 1.0
        %v2165 = vmul.f32 %v2163, 0.5
        %v2166 = vmul.f32 %v2164, 0.5
        %v2167 = vtanh.pop %v2145
        %v2168 = vtanh.pop %v2149
        %v2169 = vmul.f32 %v2146, 0.5
        %v2170 = vmul.f32 %v2150, 0.5
        %v2171 = vtanh.pop %v2169
        %v2172 = vtanh.pop %v2170
        %v2173 = vadd.f32 %v2171, 1.0
        %v2174 = vadd.f32 %v2172, 1.0
        %v2175 = vmul.f32 %v2173, 0.5
        %v2176 = vmul.f32 %v2174, 0.5
        %v2177 = vld [vmem:[#allocation3] sm:$0xff]
        %v2178 = vld [vmem:[#allocation3 + $0x8] sm:$0xff]
        %v2179 = vmul.f32 %v2165, %v2177
        %v2180 = vmul.f32 %v2166, %v2178
        %v2181 = vmul.f32 %v2157, %v2167
        %v2182 = vmul.f32 %v2158, %v2168
        %v2183 = vadd.f32 %v2179, %v2181
        %v2184 = vadd.f32 %v2180, %v2182
        %v2185 = vtanh.pop %v2183
        %v2186 = vtanh.pop %v2184
        %v2187 = vmul.f32 %v2175, %v2185
        %v2188 = vmul.f32 %v2176, %v2186
        %s2189 = sadd.s32 %s343, 4
        %v2190 = vstv %s2189
        %vm2191 = vcmp.ge.s32.totalorder %v2190, %v339
        %vm2192 = vcmp.ge.s32.totalorder %v2190, %v340
        %vm2193 = vcmp.lt.s32.totalorder %v2190, %v341
        %vm2194 = vcmp.lt.s32.totalorder %v2190, %v342
        %vm2195 = vmand %vm2191, %vm2193
        %vm2196 = vmand %vm2192, %vm2194
        %v2197 = vsel %vm2195, 1, 0
        %v2198 = vsel %vm2196, 1, 0
        %2199 = vset.pattern.permute.xlu0 0
        %2200 = vperm.xlu0 %2199, %v2197
        %v2201 = vpop.permute.xlu0 %2200
        %2202 = vset.pattern.permute.xlu0 0
        %2203 = vperm.xlu0 %2202, %v2198
        %v2204 = vpop.permute.xlu0 %2203
        %vm2205 = vcmp.eq.s32.totalorder %v2201, 1
        %vm2206 = vcmp.eq.s32.totalorder %v2204, 1
        %v2207 = vsel %vm2205, %v2187, %v1862
        %v2208 = vsel %vm2206, %v2188, %v1863
        %v2209 = vsel %vm2205, %v2183, %v2177
        %v2210 = vsel %vm2206, %v2184, %v2178
        %2211 = vst [vmem:[#allocation2] sm:$0xff] %v2207
        %2212 = vst [vmem:[#allocation2 + $0x8] sm:$0xff] %v2208
        %2213 = vst [vmem:[#allocation3] sm:$0xff] %v2209
        %2214 = vst [vmem:[#allocation3 + $0x8] sm:$0xff] %v2210
        %v2215 = vpack.c.bf16 %v2208, %v2207
        %v2217 = vunpack.c.l.b16 %v2215
        %v2218 = vunpack.c.h.b16 %v2215
        %v2219 = vpack.c.b16 %v2217, %v2217
        %v2220 = vpack.c.b16 %v2218, %v2218
        %s2223 = scalar_lea.vmem %s290, 32 [#allocation4]
        %2224 = vst [vmem:[%s2223] sm:$0xf] %v2219
        %2225 = vst [vmem:[%s2223 + $0x4] sm:$0xf] %v2220
        %s2226 = scalar_lea.vmem %s317, 160
        %v2227 = vld [vmem:[%s2226] sm:$0xff]
        %v2228 = vld [vmem:[%s2226 + $0x8] sm:$0xff]
        %v2229 = vld [vmem:[%s2226 + $0x10] sm:$0xff]
        %v2230 = vld [vmem:[%s2226 + $0x18] sm:$0xff]
        %v2231 = vunpack.c.l.bf16 %v2227
        %v2232 = vunpack.c.h.bf16 %v2227
        %v2233 = vunpack.c.l.bf16 %v2228
        %v2234 = vunpack.c.h.bf16 %v2228
        %v2235 = vunpack.c.l.bf16 %v2229
        %v2236 = vunpack.c.h.bf16 %v2229
        %v2237 = vunpack.c.l.bf16 %v2230
        %v2238 = vunpack.c.h.bf16 %v2230
        %v2239 = vld [vmem:[#allocation2] sm:$0xff]
        %v2240 = vld [vmem:[#allocation2 + $0x8] sm:$0xff]
        %v2241 = vpack.c.bf16 %v2240, %v2239
        %v2242 = vld [vmem:[%s323] sm:$0xff]
        %v2243 = vld [vmem:[%s323 + $0x8] sm:$0xff]
        %v2244 = vld [vmem:[%s323 + $0x10] sm:$0xff]
        %v2245 = vld [vmem:[%s323 + $0x18] sm:$0xff]
        %v2246 = vld [vmem:[%s323 + $0x20] sm:$0xff]
        %v2247 = vld [vmem:[%s323 + $0x28] sm:$0xff]
        %v2248 = vld [vmem:[%s323 + $0x30] sm:$0xff]
        %v2249 = vld [vmem:[%s323 + $0x38] sm:$0xff]
        %v2250 = vld [vmem:[%s323 + $0x40] sm:$0xff]
        %v2251 = vld [vmem:[%s323 + $0x48] sm:$0xff]
        %v2252 = vld [vmem:[%s323 + $0x50] sm:$0xff]
        %v2253 = vld [vmem:[%s323 + $0x58] sm:$0xff]
        %v2254 = vld [vmem:[%s323 + $0x60] sm:$0xff]
        %v2255 = vld [vmem:[%s323 + $0x68] sm:$0xff]
        %v2256 = vld [vmem:[%s323 + $0x70] sm:$0xff]
        %v2257 = vld [vmem:[%s323 + $0x78] sm:$0xff]
        %v2258 = vld [vmem:[%s323 + $0x80] sm:$0xff]
        %v2259 = vld [vmem:[%s323 + $0x88] sm:$0xff]
        %v2260 = vld [vmem:[%s323 + $0x90] sm:$0xff]
        %v2261 = vld [vmem:[%s323 + $0x98] sm:$0xff]
        %v2262 = vld [vmem:[%s323 + $0xa0] sm:$0xff]
        %v2263 = vld [vmem:[%s323 + $0xa8] sm:$0xff]
        %v2264 = vld [vmem:[%s323 + $0xb0] sm:$0xff]
        %v2265 = vld [vmem:[%s323 + $0xb8] sm:$0xff]
        %v2266 = vld [vmem:[%s323 + $0xc0] sm:$0xff]
        %v2267 = vld [vmem:[%s323 + $0xc8] sm:$0xff]
        %v2268 = vld [vmem:[%s323 + $0xd0] sm:$0xff]
        %v2269 = vld [vmem:[%s323 + $0xd8] sm:$0xff]
        %v2270 = vld [vmem:[%s323 + $0xe0] sm:$0xff]
        %v2271 = vld [vmem:[%s323 + $0xe8] sm:$0xff]
        %v2272 = vld [vmem:[%s323 + $0xf0] sm:$0xff]
        %v2273 = vld [vmem:[%s323 + $0xf8] sm:$0xff]
        %v2306 = vunpack.c.l.b16 %v2242
        %v2307 = vunpack.c.h.b16 %v2242
        %v2308 = vunpack.c.l.b16 %v2243
        %v2309 = vunpack.c.h.b16 %v2243
        %v2310 = vunpack.c.l.b16 %v2244
        %v2311 = vunpack.c.h.b16 %v2244
        %v2312 = vunpack.c.l.b16 %v2245
        %v2313 = vunpack.c.h.b16 %v2245
        %v2314 = vunpack.c.l.b16 %v2246
        %v2315 = vunpack.c.h.b16 %v2246
        %v2316 = vunpack.c.l.b16 %v2247
        %v2317 = vunpack.c.h.b16 %v2247
        %v2318 = vunpack.c.l.b16 %v2248
        %v2319 = vunpack.c.h.b16 %v2248
        %v2320 = vunpack.c.l.b16 %v2249
        %v2321 = vunpack.c.h.b16 %v2249
        %v2322 = vunpack.c.l.b16 %v2250
        %v2323 = vunpack.c.h.b16 %v2250
        %v2324 = vunpack.c.l.b16 %v2251
        %v2325 = vunpack.c.h.b16 %v2251
        %v2326 = vunpack.c.l.b16 %v2252
        %v2327 = vunpack.c.h.b16 %v2252
        %v2328 = vunpack.c.l.b16 %v2253
        %v2329 = vunpack.c.h.b16 %v2253
        %v2330 = vunpack.c.l.b16 %v2254
        %v2331 = vunpack.c.h.b16 %v2254
        %v2332 = vunpack.c.l.b16 %v2255
        %v2333 = vunpack.c.h.b16 %v2255
        %v2334 = vunpack.c.l.b16 %v2256
        %v2335 = vunpack.c.h.b16 %v2256
        %v2336 = vunpack.c.l.b16 %v2257
        %v2337 = vunpack.c.h.b16 %v2257
        %v2338 = vunpack.c.l.b16 %v2258
        %v2339 = vunpack.c.h.b16 %v2258
        %v2340 = vunpack.c.l.b16 %v2259
        %v2341 = vunpack.c.h.b16 %v2259
        %v2342 = vunpack.c.l.b16 %v2260
        %v2343 = vunpack.c.h.b16 %v2260
        %v2344 = vunpack.c.l.b16 %v2261
        %v2345 = vunpack.c.h.b16 %v2261
        %v2346 = vunpack.c.l.b16 %v2262
        %v2347 = vunpack.c.h.b16 %v2262
        %v2348 = vunpack.c.l.b16 %v2263
        %v2349 = vunpack.c.h.b16 %v2263
        %v2350 = vunpack.c.l.b16 %v2264
        %v2351 = vunpack.c.h.b16 %v2264
        %v2352 = vunpack.c.l.b16 %v2265
        %v2353 = vunpack.c.h.b16 %v2265
        %v2354 = vunpack.c.l.b16 %v2266
        %v2355 = vunpack.c.h.b16 %v2266
        %v2356 = vunpack.c.l.b16 %v2267
        %v2357 = vunpack.c.h.b16 %v2267
        %v2358 = vunpack.c.l.b16 %v2268
        %v2359 = vunpack.c.h.b16 %v2268
        %v2360 = vunpack.c.l.b16 %v2269
        %v2361 = vunpack.c.h.b16 %v2269
        %v2362 = vunpack.c.l.b16 %v2270
        %v2363 = vunpack.c.h.b16 %v2270
        %v2364 = vunpack.c.l.b16 %v2271
        %v2365 = vunpack.c.h.b16 %v2271
        %v2366 = vunpack.c.l.b16 %v2272
        %v2367 = vunpack.c.h.b16 %v2272
        %v2368 = vunpack.c.l.b16 %v2273
        %v2369 = vunpack.c.h.b16 %v2273
        %v2370 = vpack.c.b16 %v2310, %v2306
        %v2371 = vpack.c.b16 %v2311, %v2307
        %v2372 = vpack.c.b16 %v2312, %v2308
        %v2373 = vpack.c.b16 %v2313, %v2309
        %v2374 = vpack.c.b16 %v2318, %v2314
        %v2375 = vpack.c.b16 %v2319, %v2315
        %v2376 = vpack.c.b16 %v2320, %v2316
        %v2377 = vpack.c.b16 %v2321, %v2317
        %v2378 = vpack.c.b16 %v2326, %v2322
        %v2379 = vpack.c.b16 %v2327, %v2323
        %v2380 = vpack.c.b16 %v2328, %v2324
        %v2381 = vpack.c.b16 %v2329, %v2325
        %v2382 = vpack.c.b16 %v2334, %v2330
        %v2383 = vpack.c.b16 %v2335, %v2331
        %v2384 = vpack.c.b16 %v2336, %v2332
        %v2385 = vpack.c.b16 %v2337, %v2333
        %v2386 = vpack.c.b16 %v2342, %v2338
        %v2387 = vpack.c.b16 %v2343, %v2339
        %v2388 = vpack.c.b16 %v2344, %v2340
        %v2389 = vpack.c.b16 %v2345, %v2341
        %v2390 = vpack.c.b16 %v2350, %v2346
        %v2391 = vpack.c.b16 %v2351, %v2347
        %v2392 = vpack.c.b16 %v2352, %v2348
        %v2393 = vpack.c.b16 %v2353, %v2349
        %v2394 = vpack.c.b16 %v2358, %v2354
        %v2395 = vpack.c.b16 %v2359, %v2355
        %v2396 = vpack.c.b16 %v2360, %v2356
        %v2397 = vpack.c.b16 %v2361, %v2357
        %v2398 = vpack.c.b16 %v2366, %v2362
        %v2399 = vpack.c.b16 %v2367, %v2363
        %v2400 = vpack.c.b16 %v2368, %v2364
        %v2401 = vpack.c.b16 %v2369, %v2365
        %2434 = vmatprep.subr.bf16.mxu0 %v2371
        %2435 = vmatpush1.bf16.msra.mxu0 %v2370
        %2436 = vmatprep.subr.bf16.mxu0 %v2375
        %2437 = vmatpush1.bf16.msra.mxu0 %v2374
        %2438 = vmatprep.subr.bf16.mxu0 %v2379
        %2439 = vmatpush1.bf16.msra.mxu0 %v2378
        %2440 = vmatprep.subr.bf16.mxu0 %v2383
        %2441 = vmatpush1.bf16.msra.mxu0 %v2382
        %2442 = vmatprep.subr.bf16.mxu0 %v2387
        %2443 = vmatpush1.bf16.msra.mxu0 %v2386
        %2444 = vmatprep.subr.bf16.mxu0 %v2391
        %2445 = vmatpush1.bf16.msra.mxu0 %v2390
        %2446 = vmatprep.subr.bf16.mxu0 %v2395
        %2447 = vmatpush1.bf16.msra.mxu0 %v2394
        %2448 = vmatprep.subr.bf16.mxu0 %v2399
        %2449 = vmatpush1.bf16.msra.mxu0 %v2398
        %2450 = vmatprep.subr.bf16.mxu0 0
        %2451 = vmatpush1.bf16.msra.mxu0 0
        %2452 = vmatprep.subr.bf16.mxu0 0
        %2453 = vmatpush1.bf16.msra.mxu0 0
        %2454 = vmatprep.subr.bf16.mxu0 0
        %2455 = vmatpush1.bf16.msra.mxu0 0
        %2456 = vmatprep.subr.bf16.mxu0 0
        %2457 = vmatpush1.bf16.msra.mxu0 0
        %2458 = vmatprep.subr.bf16.mxu0 0
        %2459 = vmatpush1.bf16.msra.mxu0 0
        %2460 = vmatprep.subr.bf16.mxu0 0
        %2461 = vmatpush1.bf16.msra.mxu0 0
        %2462 = vmatprep.subr.bf16.mxu0 0
        %2463 = vmatpush1.bf16.msra.mxu0 0
        %2464 = vmatprep.subr.bf16.mxu0 0
        %2465 = vmatpush1.bf16.msra.mxu0 0
        %2466 = vmatprep.mubr.bf16.mxu0 0
        %2467 = vmatmul.mubr.bf16.gmra.mrb[0].mxu0 %v2241
        %v2468 = vpop.f32.mrb[0].mxu0
        %v2469 = vadd.f32 0.0, %v2468
        %v2470 = vpop.f32.mrb[0].mxu0
        %v2471 = vadd.f32 0.0, %v2470
        %v2472 = vpop.f32.mrb[0].mxu0
        %v2473 = vadd.f32 0.0, %v2472
        %v2474 = vpop.f32.mrb[0].mxu0
        %v2475 = vadd.f32 0.0, %v2474
        %2476 = vdwg.mxu0
        %2477 = vmatprep.subr.bf16.mxu0 %v2373
        %2478 = vmatpush1.bf16.msra.mxu0 %v2372
        %2479 = vmatprep.subr.bf16.mxu0 %v2377
        %2480 = vmatpush1.bf16.msra.mxu0 %v2376
        %2481 = vmatprep.subr.bf16.mxu0 %v2381
        %2482 = vmatpush1.bf16.msra.mxu0 %v2380
        %2483 = vmatprep.subr.bf16.mxu0 %v2385
        %2484 = vmatpush1.bf16.msra.mxu0 %v2384
        %2485 = vmatprep.subr.bf16.mxu0 %v2389
        %2486 = vmatpush1.bf16.msra.mxu0 %v2388
        %2487 = vmatprep.subr.bf16.mxu0 %v2393
        %2488 = vmatpush1.bf16.msra.mxu0 %v2392
        %2489 = vmatprep.subr.bf16.mxu0 %v2397
        %2490 = vmatpush1.bf16.msra.mxu0 %v2396
        %2491 = vmatprep.subr.bf16.mxu0 %v2401
        %2492 = vmatpush1.bf16.msra.mxu0 %v2400
        %2493 = vmatprep.subr.bf16.mxu0 0
        %2494 = vmatpush1.bf16.msra.mxu0 0
        %2495 = vmatprep.subr.bf16.mxu0 0
        %2496 = vmatpush1.bf16.msra.mxu0 0
        %2497 = vmatprep.subr.bf16.mxu0 0
        %2498 = vmatpush1.bf16.msra.mxu0 0
        %2499 = vmatprep.subr.bf16.mxu0 0
        %2500 = vmatpush1.bf16.msra.mxu0 0
        %2501 = vmatprep.subr.bf16.mxu0 0
        %2502 = vmatpush1.bf16.msra.mxu0 0
        %2503 = vmatprep.subr.bf16.mxu0 0
        %2504 = vmatpush1.bf16.msra.mxu0 0
        %2505 = vmatprep.subr.bf16.mxu0 0
        %2506 = vmatpush1.bf16.msra.mxu0 0
        %2507 = vmatprep.subr.bf16.mxu0 0
        %2508 = vmatpush1.bf16.msra.mxu0 0
        %2509 = vmatprep.mubr.bf16.mxu0 0
        %2510 = vmatmul.mubr.bf16.gmra.mrb[0].mxu0 %v2241
        %v2511 = vpop.f32.mrb[0].mxu0
        %v2512 = vadd.f32 0.0, %v2511
        %v2513 = vpop.f32.mrb[0].mxu0
        %v2514 = vadd.f32 0.0, %v2513
        %v2515 = vpop.f32.mrb[0].mxu0
        %v2516 = vadd.f32 0.0, %v2515
        %v2517 = vpop.f32.mrb[0].mxu0
        %v2518 = vadd.f32 0.0, %v2517
        %2519 = vdwg.mxu0
        %v2520 = vadd.f32 %v2231, %v2469
        %v2521 = vadd.f32 %v2232, %v2471
        %v2522 = vadd.f32 %v2233, %v2512
        %v2523 = vadd.f32 %v2234, %v2514
        %v2524 = vadd.f32 %v2235, %v2473
        %v2525 = vadd.f32 %v2236, %v2475
        %v2526 = vadd.f32 %v2237, %v2516
        %v2527 = vadd.f32 %v2238, %v2518
        %v2528 = vmul.f32 %v2520, 0.5
        %v2529 = vmul.f32 %v2524, 0.5
        %v2530 = vtanh.pop %v2528
        %v2531 = vtanh.pop %v2529
        %v2532 = vadd.f32 %v2530, 1.0
        %v2533 = vadd.f32 %v2531, 1.0
        %v2534 = vmul.f32 %v2532, 0.5
        %v2535 = vmul.f32 %v2533, 0.5
        %v2536 = vmul.f32 %v2521, 0.5
        %v2537 = vmul.f32 %v2525, 0.5
        %v2538 = vtanh.pop %v2536
        %v2539 = vtanh.pop %v2537
        %v2540 = vadd.f32 %v2538, 1.0
        %v2541 = vadd.f32 %v2539, 1.0
        %v2542 = vmul.f32 %v2540, 0.5
        %v2543 = vmul.f32 %v2541, 0.5
        %v2544 = vtanh.pop %v2522
        %v2545 = vtanh.pop %v2526
        %v2546 = vmul.f32 %v2523, 0.5
        %v2547 = vmul.f32 %v2527, 0.5
        %v2548 = vtanh.pop %v2546
        %v2549 = vtanh.pop %v2547
        %v2550 = vadd.f32 %v2548, 1.0
        %v2551 = vadd.f32 %v2549, 1.0
        %v2552 = vmul.f32 %v2550, 0.5
        %v2553 = vmul.f32 %v2551, 0.5
        %v2554 = vld [vmem:[#allocation3] sm:$0xff]
        %v2555 = vld [vmem:[#allocation3 + $0x8] sm:$0xff]
        %v2556 = vmul.f32 %v2542, %v2554
        %v2557 = vmul.f32 %v2543, %v2555
        %v2558 = vmul.f32 %v2534, %v2544
        %v2559 = vmul.f32 %v2535, %v2545
        %v2560 = vadd.f32 %v2556, %v2558
        %v2561 = vadd.f32 %v2557, %v2559
        %v2562 = vtanh.pop %v2560
        %v2563 = vtanh.pop %v2561
        %v2564 = vmul.f32 %v2552, %v2562
        %v2565 = vmul.f32 %v2553, %v2563
        %s2566 = sadd.s32 %s343, 5
        %v2567 = vstv %s2566
        %vm2568 = vcmp.ge.s32.totalorder %v2567, %v339
        %vm2569 = vcmp.ge.s32.totalorder %v2567, %v340
        %vm2570 = vcmp.lt.s32.totalorder %v2567, %v341
        %vm2571 = vcmp.lt.s32.totalorder %v2567, %v342
        %vm2572 = vmand %vm2568, %vm2570
        %vm2573 = vmand %vm2569, %vm2571
        %v2574 = vsel %vm2572, 1, 0
        %v2575 = vsel %vm2573, 1, 0
        %2576 = vset.pattern.permute.xlu0 0
        %2577 = vperm.xlu0 %2576, %v2574
        %v2578 = vpop.permute.xlu0 %2577
        %2579 = vset.pattern.permute.xlu0 0
        %2580 = vperm.xlu0 %2579, %v2575
        %v2581 = vpop.permute.xlu0 %2580
        %vm2582 = vcmp.eq.s32.totalorder %v2578, 1
        %vm2583 = vcmp.eq.s32.totalorder %v2581, 1
        %v2584 = vsel %vm2582, %v2564, %v2239
        %v2585 = vsel %vm2583, %v2565, %v2240
        %v2586 = vsel %vm2582, %v2560, %v2554
        %v2587 = vsel %vm2583, %v2561, %v2555
        %2588 = vst [vmem:[#allocation2] sm:$0xff] %v2584
        %2589 = vst [vmem:[#allocation2 + $0x8] sm:$0xff] %v2585
        %2590 = vst [vmem:[#allocation3] sm:$0xff] %v2586
        %2591 = vst [vmem:[#allocation3 + $0x8] sm:$0xff] %v2587
        %v2592 = vpack.c.bf16 %v2585, %v2584
        %v2594 = vunpack.c.l.b16 %v2592
        %v2595 = vunpack.c.h.b16 %v2592
        %v2596 = vpack.c.b16 %v2594, %v2594
        %v2597 = vpack.c.b16 %v2595, %v2595
        %s2600 = scalar_lea.vmem %s290, 40 [#allocation4]
        %2601 = vst [vmem:[%s2600] sm:$0xf] %v2596
        %2602 = vst [vmem:[%s2600 + $0x4] sm:$0xf] %v2597
        %s2603 = scalar_lea.vmem %s317, 192
        %v2604 = vld [vmem:[%s2603] sm:$0xff]
        %v2605 = vld [vmem:[%s2603 + $0x8] sm:$0xff]
        %v2606 = vld [vmem:[%s2603 + $0x10] sm:$0xff]
        %v2607 = vld [vmem:[%s2603 + $0x18] sm:$0xff]
        %v2608 = vunpack.c.l.bf16 %v2604
        %v2609 = vunpack.c.h.bf16 %v2604
        %v2610 = vunpack.c.l.bf16 %v2605
        %v2611 = vunpack.c.h.bf16 %v2605
        %v2612 = vunpack.c.l.bf16 %v2606
        %v2613 = vunpack.c.h.bf16 %v2606
        %v2614 = vunpack.c.l.bf16 %v2607
        %v2615 = vunpack.c.h.bf16 %v2607
        %v2616 = vld [vmem:[#allocation2] sm:$0xff]
        %v2617 = vld [vmem:[#allocation2 + $0x8] sm:$0xff]
        %v2618 = vpack.c.bf16 %v2617, %v2616
        %v2619 = vld [vmem:[%s323] sm:$0xff]
        %v2620 = vld [vmem:[%s323 + $0x8] sm:$0xff]
        %v2621 = vld [vmem:[%s323 + $0x10] sm:$0xff]
        %v2622 = vld [vmem:[%s323 + $0x18] sm:$0xff]
        %v2623 = vld [vmem:[%s323 + $0x20] sm:$0xff]
        %v2624 = vld [vmem:[%s323 + $0x28] sm:$0xff]
        %v2625 = vld [vmem:[%s323 + $0x30] sm:$0xff]
        %v2626 = vld [vmem:[%s323 + $0x38] sm:$0xff]
        %v2627 = vld [vmem:[%s323 + $0x40] sm:$0xff]
        %v2628 = vld [vmem:[%s323 + $0x48] sm:$0xff]
        %v2629 = vld [vmem:[%s323 + $0x50] sm:$0xff]
        %v2630 = vld [vmem:[%s323 + $0x58] sm:$0xff]
        %v2631 = vld [vmem:[%s323 + $0x60] sm:$0xff]
        %v2632 = vld [vmem:[%s323 + $0x68] sm:$0xff]
        %v2633 = vld [vmem:[%s323 + $0x70] sm:$0xff]
        %v2634 = vld [vmem:[%s323 + $0x78] sm:$0xff]
        %v2635 = vld [vmem:[%s323 + $0x80] sm:$0xff]
        %v2636 = vld [vmem:[%s323 + $0x88] sm:$0xff]
        %v2637 = vld [vmem:[%s323 + $0x90] sm:$0xff]
        %v2638 = vld [vmem:[%s323 + $0x98] sm:$0xff]
        %v2639 = vld [vmem:[%s323 + $0xa0] sm:$0xff]
        %v2640 = vld [vmem:[%s323 + $0xa8] sm:$0xff]
        %v2641 = vld [vmem:[%s323 + $0xb0] sm:$0xff]
        %v2642 = vld [vmem:[%s323 + $0xb8] sm:$0xff]
        %v2643 = vld [vmem:[%s323 + $0xc0] sm:$0xff]
        %v2644 = vld [vmem:[%s323 + $0xc8] sm:$0xff]
        %v2645 = vld [vmem:[%s323 + $0xd0] sm:$0xff]
        %v2646 = vld [vmem:[%s323 + $0xd8] sm:$0xff]
        %v2647 = vld [vmem:[%s323 + $0xe0] sm:$0xff]
        %v2648 = vld [vmem:[%s323 + $0xe8] sm:$0xff]
        %v2649 = vld [vmem:[%s323 + $0xf0] sm:$0xff]
        %v2650 = vld [vmem:[%s323 + $0xf8] sm:$0xff]
        %v2683 = vunpack.c.l.b16 %v2619
        %v2684 = vunpack.c.h.b16 %v2619
        %v2685 = vunpack.c.l.b16 %v2620
        %v2686 = vunpack.c.h.b16 %v2620
        %v2687 = vunpack.c.l.b16 %v2621
        %v2688 = vunpack.c.h.b16 %v2621
        %v2689 = vunpack.c.l.b16 %v2622
        %v2690 = vunpack.c.h.b16 %v2622
        %v2691 = vunpack.c.l.b16 %v2623
        %v2692 = vunpack.c.h.b16 %v2623
        %v2693 = vunpack.c.l.b16 %v2624
        %v2694 = vunpack.c.h.b16 %v2624
        %v2695 = vunpack.c.l.b16 %v2625
        %v2696 = vunpack.c.h.b16 %v2625
        %v2697 = vunpack.c.l.b16 %v2626
        %v2698 = vunpack.c.h.b16 %v2626
        %v2699 = vunpack.c.l.b16 %v2627
        %v2700 = vunpack.c.h.b16 %v2627
        %v2701 = vunpack.c.l.b16 %v2628
        %v2702 = vunpack.c.h.b16 %v2628
        %v2703 = vunpack.c.l.b16 %v2629
        %v2704 = vunpack.c.h.b16 %v2629
        %v2705 = vunpack.c.l.b16 %v2630
        %v2706 = vunpack.c.h.b16 %v2630
        %v2707 = vunpack.c.l.b16 %v2631
        %v2708 = vunpack.c.h.b16 %v2631
        %v2709 = vunpack.c.l.b16 %v2632
        %v2710 = vunpack.c.h.b16 %v2632
        %v2711 = vunpack.c.l.b16 %v2633
        %v2712 = vunpack.c.h.b16 %v2633
        %v2713 = vunpack.c.l.b16 %v2634
        %v2714 = vunpack.c.h.b16 %v2634
        %v2715 = vunpack.c.l.b16 %v2635
        %v2716 = vunpack.c.h.b16 %v2635
        %v2717 = vunpack.c.l.b16 %v2636
        %v2718 = vunpack.c.h.b16 %v2636
        %v2719 = vunpack.c.l.b16 %v2637
        %v2720 = vunpack.c.h.b16 %v2637
        %v2721 = vunpack.c.l.b16 %v2638
        %v2722 = vunpack.c.h.b16 %v2638
        %v2723 = vunpack.c.l.b16 %v2639
        %v2724 = vunpack.c.h.b16 %v2639
        %v2725 = vunpack.c.l.b16 %v2640
        %v2726 = vunpack.c.h.b16 %v2640
        %v2727 = vunpack.c.l.b16 %v2641
        %v2728 = vunpack.c.h.b16 %v2641
        %v2729 = vunpack.c.l.b16 %v2642
        %v2730 = vunpack.c.h.b16 %v2642
        %v2731 = vunpack.c.l.b16 %v2643
        %v2732 = vunpack.c.h.b16 %v2643
        %v2733 = vunpack.c.l.b16 %v2644
        %v2734 = vunpack.c.h.b16 %v2644
        %v2735 = vunpack.c.l.b16 %v2645
        %v2736 = vunpack.c.h.b16 %v2645
        %v2737 = vunpack.c.l.b16 %v2646
        %v2738 = vunpack.c.h.b16 %v2646
        %v2739 = vunpack.c.l.b16 %v2647
        %v2740 = vunpack.c.h.b16 %v2647
        %v2741 = vunpack.c.l.b16 %v2648
        %v2742 = vunpack.c.h.b16 %v2648
        %v2743 = vunpack.c.l.b16 %v2649
        %v2744 = vunpack.c.h.b16 %v2649
        %v2745 = vunpack.c.l.b16 %v2650
        %v2746 = vunpack.c.h.b16 %v2650
        %v2747 = vpack.c.b16 %v2687, %v2683
        %v2748 = vpack.c.b16 %v2688, %v2684
        %v2749 = vpack.c.b16 %v2689, %v2685
        %v2750 = vpack.c.b16 %v2690, %v2686
        %v2751 = vpack.c.b16 %v2695, %v2691
        %v2752 = vpack.c.b16 %v2696, %v2692
        %v2753 = vpack.c.b16 %v2697, %v2693
        %v2754 = vpack.c.b16 %v2698, %v2694
        %v2755 = vpack.c.b16 %v2703, %v2699
        %v2756 = vpack.c.b16 %v2704, %v2700
        %v2757 = vpack.c.b16 %v2705, %v2701
        %v2758 = vpack.c.b16 %v2706, %v2702
        %v2759 = vpack.c.b16 %v2711, %v2707
        %v2760 = vpack.c.b16 %v2712, %v2708
        %v2761 = vpack.c.b16 %v2713, %v2709
        %v2762 = vpack.c.b16 %v2714, %v2710
        %v2763 = vpack.c.b16 %v2719, %v2715
        %v2764 = vpack.c.b16 %v2720, %v2716
        %v2765 = vpack.c.b16 %v2721, %v2717
        %v2766 = vpack.c.b16 %v2722, %v2718
        %v2767 = vpack.c.b16 %v2727, %v2723
        %v2768 = vpack.c.b16 %v2728, %v2724
        %v2769 = vpack.c.b16 %v2729, %v2725
        %v2770 = vpack.c.b16 %v2730, %v2726
        %v2771 = vpack.c.b16 %v2735, %v2731
        %v2772 = vpack.c.b16 %v2736, %v2732
        %v2773 = vpack.c.b16 %v2737, %v2733
        %v2774 = vpack.c.b16 %v2738, %v2734
        %v2775 = vpack.c.b16 %v2743, %v2739
        %v2776 = vpack.c.b16 %v2744, %v2740
        %v2777 = vpack.c.b16 %v2745, %v2741
        %v2778 = vpack.c.b16 %v2746, %v2742
        %2811 = vmatprep.subr.bf16.mxu0 %v2748
        %2812 = vmatpush1.bf16.msra.mxu0 %v2747
        %2813 = vmatprep.subr.bf16.mxu0 %v2752
        %2814 = vmatpush1.bf16.msra.mxu0 %v2751
        %2815 = vmatprep.subr.bf16.mxu0 %v2756
        %2816 = vmatpush1.bf16.msra.mxu0 %v2755
        %2817 = vmatprep.subr.bf16.mxu0 %v2760
        %2818 = vmatpush1.bf16.msra.mxu0 %v2759
        %2819 = vmatprep.subr.bf16.mxu0 %v2764
        %2820 = vmatpush1.bf16.msra.mxu0 %v2763
        %2821 = vmatprep.subr.bf16.mxu0 %v2768
        %2822 = vmatpush1.bf16.msra.mxu0 %v2767
        %2823 = vmatprep.subr.bf16.mxu0 %v2772
        %2824 = vmatpush1.bf16.msra.mxu0 %v2771
        %2825 = vmatprep.subr.bf16.mxu0 %v2776
        %2826 = vmatpush1.bf16.msra.mxu0 %v2775
        %2827 = vmatprep.subr.bf16.mxu0 0
        %2828 = vmatpush1.bf16.msra.mxu0 0
        %2829 = vmatprep.subr.bf16.mxu0 0
        %2830 = vmatpush1.bf16.msra.mxu0 0
        %2831 = vmatprep.subr.bf16.mxu0 0
        %2832 = vmatpush1.bf16.msra.mxu0 0
        %2833 = vmatprep.subr.bf16.mxu0 0
        %2834 = vmatpush1.bf16.msra.mxu0 0
        %2835 = vmatprep.subr.bf16.mxu0 0
        %2836 = vmatpush1.bf16.msra.mxu0 0
        %2837 = vmatprep.subr.bf16.mxu0 0
        %2838 = vmatpush1.bf16.msra.mxu0 0
        %2839 = vmatprep.subr.bf16.mxu0 0
        %2840 = vmatpush1.bf16.msra.mxu0 0
        %2841 = vmatprep.subr.bf16.mxu0 0
        %2842 = vmatpush1.bf16.msra.mxu0 0
        %2843 = vmatprep.mubr.bf16.mxu0 0
        %2844 = vmatmul.mubr.bf16.gmra.mrb[0].mxu0 %v2618
        %v2845 = vpop.f32.mrb[0].mxu0
        %v2846 = vadd.f32 0.0, %v2845
        %v2847 = vpop.f32.mrb[0].mxu0
        %v2848 = vadd.f32 0.0, %v2847
        %v2849 = vpop.f32.mrb[0].mxu0
        %v2850 = vadd.f32 0.0, %v2849
        %v2851 = vpop.f32.mrb[0].mxu0
        %v2852 = vadd.f32 0.0, %v2851
        %2853 = vdwg.mxu0
        %2854 = vmatprep.subr.bf16.mxu0 %v2750
        %2855 = vmatpush1.bf16.msra.mxu0 %v2749
        %2856 = vmatprep.subr.bf16.mxu0 %v2754
        %2857 = vmatpush1.bf16.msra.mxu0 %v2753
        %2858 = vmatprep.subr.bf16.mxu0 %v2758
        %2859 = vmatpush1.bf16.msra.mxu0 %v2757
        %2860 = vmatprep.subr.bf16.mxu0 %v2762
        %2861 = vmatpush1.bf16.msra.mxu0 %v2761
        %2862 = vmatprep.subr.bf16.mxu0 %v2766
        %2863 = vmatpush1.bf16.msra.mxu0 %v2765
        %2864 = vmatprep.subr.bf16.mxu0 %v2770
        %2865 = vmatpush1.bf16.msra.mxu0 %v2769
        %2866 = vmatprep.subr.bf16.mxu0 %v2774
        %2867 = vmatpush1.bf16.msra.mxu0 %v2773
        %2868 = vmatprep.subr.bf16.mxu0 %v2778
        %2869 = vmatpush1.bf16.msra.mxu0 %v2777
        %2870 = vmatprep.subr.bf16.mxu0 0
        %2871 = vmatpush1.bf16.msra.mxu0 0
        %2872 = vmatprep.subr.bf16.mxu0 0
        %2873 = vmatpush1.bf16.msra.mxu0 0
        %2874 = vmatprep.subr.bf16.mxu0 0
        %2875 = vmatpush1.bf16.msra.mxu0 0
        %2876 = vmatprep.subr.bf16.mxu0 0
        %2877 = vmatpush1.bf16.msra.mxu0 0
        %2878 = vmatprep.subr.bf16.mxu0 0
        %2879 = vmatpush1.bf16.msra.mxu0 0
        %2880 = vmatprep.subr.bf16.mxu0 0
        %2881 = vmatpush1.bf16.msra.mxu0 0
        %2882 = vmatprep.subr.bf16.mxu0 0
        %2883 = vmatpush1.bf16.msra.mxu0 0
        %2884 = vmatprep.subr.bf16.mxu0 0
        %2885 = vmatpush1.bf16.msra.mxu0 0
        %2886 = vmatprep.mubr.bf16.mxu0 0
        %2887 = vmatmul.mubr.bf16.gmra.mrb[0].mxu0 %v2618
        %v2888 = vpop.f32.mrb[0].mxu0
        %v2889 = vadd.f32 0.0, %v2888
        %v2890 = vpop.f32.mrb[0].mxu0
        %v2891 = vadd.f32 0.0, %v2890
        %v2892 = vpop.f32.mrb[0].mxu0
        %v2893 = vadd.f32 0.0, %v2892
        %v2894 = vpop.f32.mrb[0].mxu0
        %v2895 = vadd.f32 0.0, %v2894
        %2896 = vdwg.mxu0
        %v2897 = vadd.f32 %v2608, %v2846
        %v2898 = vadd.f32 %v2609, %v2848
        %v2899 = vadd.f32 %v2610, %v2889
        %v2900 = vadd.f32 %v2611, %v2891
        %v2901 = vadd.f32 %v2612, %v2850
        %v2902 = vadd.f32 %v2613, %v2852
        %v2903 = vadd.f32 %v2614, %v2893
        %v2904 = vadd.f32 %v2615, %v2895
        %v2905 = vmul.f32 %v2897, 0.5
        %v2906 = vmul.f32 %v2901, 0.5
        %v2907 = vtanh.pop %v2905
        %v2908 = vtanh.pop %v2906
        %v2909 = vadd.f32 %v2907, 1.0
        %v2910 = vadd.f32 %v2908, 1.0
        %v2911 = vmul.f32 %v2909, 0.5
        %v2912 = vmul.f32 %v2910, 0.5
        %v2913 = vmul.f32 %v2898, 0.5
        %v2914 = vmul.f32 %v2902, 0.5
        %v2915 = vtanh.pop %v2913
        %v2916 = vtanh.pop %v2914
        %v2917 = vadd.f32 %v2915, 1.0
        %v2918 = vadd.f32 %v2916, 1.0
        %v2919 = vmul.f32 %v2917, 0.5
        %v2920 = vmul.f32 %v2918, 0.5
        %v2921 = vtanh.pop %v2899
        %v2922 = vtanh.pop %v2903
        %v2923 = vmul.f32 %v2900, 0.5
        %v2924 = vmul.f32 %v2904, 0.5
        %v2925 = vtanh.pop %v2923
        %v2926 = vtanh.pop %v2924
        %v2927 = vadd.f32 %v2925, 1.0
        %v2928 = vadd.f32 %v2926, 1.0
        %v2929 = vmul.f32 %v2927, 0.5
        %v2930 = vmul.f32 %v2928, 0.5
        %v2931 = vld [vmem:[#allocation3] sm:$0xff]
        %v2932 = vld [vmem:[#allocation3 + $0x8] sm:$0xff]
        %v2933 = vmul.f32 %v2919, %v2931
        %v2934 = vmul.f32 %v2920, %v2932
        %v2935 = vmul.f32 %v2911, %v2921
        %v2936 = vmul.f32 %v2912, %v2922
        %v2937 = vadd.f32 %v2933, %v2935
        %v2938 = vadd.f32 %v2934, %v2936
        %v2939 = vtanh.pop %v2937
        %v2940 = vtanh.pop %v2938
        %v2941 = vmul.f32 %v2929, %v2939
        %v2942 = vmul.f32 %v2930, %v2940
        %s2943 = sadd.s32 %s343, 6
        %v2944 = vstv %s2943
        %vm2945 = vcmp.ge.s32.totalorder %v2944, %v339
        %vm2946 = vcmp.ge.s32.totalorder %v2944, %v340
        %vm2947 = vcmp.lt.s32.totalorder %v2944, %v341
        %vm2948 = vcmp.lt.s32.totalorder %v2944, %v342
        %vm2949 = vmand %vm2945, %vm2947
        %vm2950 = vmand %vm2946, %vm2948
        %v2951 = vsel %vm2949, 1, 0
        %v2952 = vsel %vm2950, 1, 0
        %2953 = vset.pattern.permute.xlu0 0
        %2954 = vperm.xlu0 %2953, %v2951
        %v2955 = vpop.permute.xlu0 %2954
        %2956 = vset.pattern.permute.xlu0 0
        %2957 = vperm.xlu0 %2956, %v2952
        %v2958 = vpop.permute.xlu0 %2957
        %vm2959 = vcmp.eq.s32.totalorder %v2955, 1
        %vm2960 = vcmp.eq.s32.totalorder %v2958, 1
        %v2961 = vsel %vm2959, %v2941, %v2616
        %v2962 = vsel %vm2960, %v2942, %v2617
        %v2963 = vsel %vm2959, %v2937, %v2931
        %v2964 = vsel %vm2960, %v2938, %v2932
        %2965 = vst [vmem:[#allocation2] sm:$0xff] %v2961
        %2966 = vst [vmem:[#allocation2 + $0x8] sm:$0xff] %v2962
        %2967 = vst [vmem:[#allocation3] sm:$0xff] %v2963
        %2968 = vst [vmem:[#allocation3 + $0x8] sm:$0xff] %v2964
        %v2969 = vpack.c.bf16 %v2962, %v2961
        %v2971 = vunpack.c.l.b16 %v2969
        %v2972 = vunpack.c.h.b16 %v2969
        %v2973 = vpack.c.b16 %v2971, %v2971
        %v2974 = vpack.c.b16 %v2972, %v2972
        %s2977 = scalar_lea.vmem %s290, 48 [#allocation4]
        %2978 = vst [vmem:[%s2977] sm:$0xf] %v2973
        %2979 = vst [vmem:[%s2977 + $0x4] sm:$0xf] %v2974
        %s2980 = scalar_lea.vmem %s317, 224
        %v2981 = vld [vmem:[%s2980] sm:$0xff]
        %v2982 = vld [vmem:[%s2980 + $0x8] sm:$0xff]
        %v2983 = vld [vmem:[%s2980 + $0x10] sm:$0xff]
        %v2984 = vld [vmem:[%s2980 + $0x18] sm:$0xff]
        %v2985 = vunpack.c.l.bf16 %v2981
        %v2986 = vunpack.c.h.bf16 %v2981
        %v2987 = vunpack.c.l.bf16 %v2982
        %v2988 = vunpack.c.h.bf16 %v2982
        %v2989 = vunpack.c.l.bf16 %v2983
        %v2990 = vunpack.c.h.bf16 %v2983
        %v2991 = vunpack.c.l.bf16 %v2984
        %v2992 = vunpack.c.h.bf16 %v2984
        %v2993 = vld [vmem:[#allocation2] sm:$0xff]
        %v2994 = vld [vmem:[#allocation2 + $0x8] sm:$0xff]
        %v2995 = vpack.c.bf16 %v2994, %v2993
        %v2996 = vld [vmem:[%s323] sm:$0xff]
        %v2997 = vld [vmem:[%s323 + $0x8] sm:$0xff]
        %v2998 = vld [vmem:[%s323 + $0x10] sm:$0xff]
        %v2999 = vld [vmem:[%s323 + $0x18] sm:$0xff]
        %v3000 = vld [vmem:[%s323 + $0x20] sm:$0xff]
        %v3001 = vld [vmem:[%s323 + $0x28] sm:$0xff]
        %v3002 = vld [vmem:[%s323 + $0x30] sm:$0xff]
        %v3003 = vld [vmem:[%s323 + $0x38] sm:$0xff]
        %v3004 = vld [vmem:[%s323 + $0x40] sm:$0xff]
        %v3005 = vld [vmem:[%s323 + $0x48] sm:$0xff]
        %v3006 = vld [vmem:[%s323 + $0x50] sm:$0xff]
        %v3007 = vld [vmem:[%s323 + $0x58] sm:$0xff]
        %v3008 = vld [vmem:[%s323 + $0x60] sm:$0xff]
        %v3009 = vld [vmem:[%s323 + $0x68] sm:$0xff]
        %v3010 = vld [vmem:[%s323 + $0x70] sm:$0xff]
        %v3011 = vld [vmem:[%s323 + $0x78] sm:$0xff]
        %v3012 = vld [vmem:[%s323 + $0x80] sm:$0xff]
        %v3013 = vld [vmem:[%s323 + $0x88] sm:$0xff]
        %v3014 = vld [vmem:[%s323 + $0x90] sm:$0xff]
        %v3015 = vld [vmem:[%s323 + $0x98] sm:$0xff]
        %v3016 = vld [vmem:[%s323 + $0xa0] sm:$0xff]
        %v3017 = vld [vmem:[%s323 + $0xa8] sm:$0xff]
        %v3018 = vld [vmem:[%s323 + $0xb0] sm:$0xff]
        %v3019 = vld [vmem:[%s323 + $0xb8] sm:$0xff]
        %v3020 = vld [vmem:[%s323 + $0xc0] sm:$0xff]
        %v3021 = vld [vmem:[%s323 + $0xc8] sm:$0xff]
        %v3022 = vld [vmem:[%s323 + $0xd0] sm:$0xff]
        %v3023 = vld [vmem:[%s323 + $0xd8] sm:$0xff]
        %v3024 = vld [vmem:[%s323 + $0xe0] sm:$0xff]
        %v3025 = vld [vmem:[%s323 + $0xe8] sm:$0xff]
        %v3026 = vld [vmem:[%s323 + $0xf0] sm:$0xff]
        %v3027 = vld [vmem:[%s323 + $0xf8] sm:$0xff]
        %v3060 = vunpack.c.l.b16 %v2996
        %v3061 = vunpack.c.h.b16 %v2996
        %v3062 = vunpack.c.l.b16 %v2997
        %v3063 = vunpack.c.h.b16 %v2997
        %v3064 = vunpack.c.l.b16 %v2998
        %v3065 = vunpack.c.h.b16 %v2998
        %v3066 = vunpack.c.l.b16 %v2999
        %v3067 = vunpack.c.h.b16 %v2999
        %v3068 = vunpack.c.l.b16 %v3000
        %v3069 = vunpack.c.h.b16 %v3000
        %v3070 = vunpack.c.l.b16 %v3001
        %v3071 = vunpack.c.h.b16 %v3001
        %v3072 = vunpack.c.l.b16 %v3002
        %v3073 = vunpack.c.h.b16 %v3002
        %v3074 = vunpack.c.l.b16 %v3003
        %v3075 = vunpack.c.h.b16 %v3003
        %v3076 = vunpack.c.l.b16 %v3004
        %v3077 = vunpack.c.h.b16 %v3004
        %v3078 = vunpack.c.l.b16 %v3005
        %v3079 = vunpack.c.h.b16 %v3005
        %v3080 = vunpack.c.l.b16 %v3006
        %v3081 = vunpack.c.h.b16 %v3006
        %v3082 = vunpack.c.l.b16 %v3007
        %v3083 = vunpack.c.h.b16 %v3007
        %v3084 = vunpack.c.l.b16 %v3008
        %v3085 = vunpack.c.h.b16 %v3008
        %v3086 = vunpack.c.l.b16 %v3009
        %v3087 = vunpack.c.h.b16 %v3009
        %v3088 = vunpack.c.l.b16 %v3010
        %v3089 = vunpack.c.h.b16 %v3010
        %v3090 = vunpack.c.l.b16 %v3011
        %v3091 = vunpack.c.h.b16 %v3011
        %v3092 = vunpack.c.l.b16 %v3012
        %v3093 = vunpack.c.h.b16 %v3012
        %v3094 = vunpack.c.l.b16 %v3013
        %v3095 = vunpack.c.h.b16 %v3013
        %v3096 = vunpack.c.l.b16 %v3014
        %v3097 = vunpack.c.h.b16 %v3014
        %v3098 = vunpack.c.l.b16 %v3015
        %v3099 = vunpack.c.h.b16 %v3015
        %v3100 = vunpack.c.l.b16 %v3016
        %v3101 = vunpack.c.h.b16 %v3016
        %v3102 = vunpack.c.l.b16 %v3017
        %v3103 = vunpack.c.h.b16 %v3017
        %v3104 = vunpack.c.l.b16 %v3018
        %v3105 = vunpack.c.h.b16 %v3018
        %v3106 = vunpack.c.l.b16 %v3019
        %v3107 = vunpack.c.h.b16 %v3019
        %v3108 = vunpack.c.l.b16 %v3020
        %v3109 = vunpack.c.h.b16 %v3020
        %v3110 = vunpack.c.l.b16 %v3021
        %v3111 = vunpack.c.h.b16 %v3021
        %v3112 = vunpack.c.l.b16 %v3022
        %v3113 = vunpack.c.h.b16 %v3022
        %v3114 = vunpack.c.l.b16 %v3023
        %v3115 = vunpack.c.h.b16 %v3023
        %v3116 = vunpack.c.l.b16 %v3024
        %v3117 = vunpack.c.h.b16 %v3024
        %v3118 = vunpack.c.l.b16 %v3025
        %v3119 = vunpack.c.h.b16 %v3025
        %v3120 = vunpack.c.l.b16 %v3026
        %v3121 = vunpack.c.h.b16 %v3026
        %v3122 = vunpack.c.l.b16 %v3027
        %v3123 = vunpack.c.h.b16 %v3027
        %v3124 = vpack.c.b16 %v3064, %v3060
        %v3125 = vpack.c.b16 %v3065, %v3061
        %v3126 = vpack.c.b16 %v3066, %v3062
        %v3127 = vpack.c.b16 %v3067, %v3063
        %v3128 = vpack.c.b16 %v3072, %v3068
        %v3129 = vpack.c.b16 %v3073, %v3069
        %v3130 = vpack.c.b16 %v3074, %v3070
        %v3131 = vpack.c.b16 %v3075, %v3071
        %v3132 = vpack.c.b16 %v3080, %v3076
        %v3133 = vpack.c.b16 %v3081, %v3077
        %v3134 = vpack.c.b16 %v3082, %v3078
        %v3135 = vpack.c.b16 %v3083, %v3079
        %v3136 = vpack.c.b16 %v3088, %v3084
        %v3137 = vpack.c.b16 %v3089, %v3085
        %v3138 = vpack.c.b16 %v3090, %v3086
        %v3139 = vpack.c.b16 %v3091, %v3087
        %v3140 = vpack.c.b16 %v3096, %v3092
        %v3141 = vpack.c.b16 %v3097, %v3093
        %v3142 = vpack.c.b16 %v3098, %v3094
        %v3143 = vpack.c.b16 %v3099, %v3095
        %v3144 = vpack.c.b16 %v3104, %v3100
        %v3145 = vpack.c.b16 %v3105, %v3101
        %v3146 = vpack.c.b16 %v3106, %v3102
        %v3147 = vpack.c.b16 %v3107, %v3103
        %v3148 = vpack.c.b16 %v3112, %v3108
        %v3149 = vpack.c.b16 %v3113, %v3109
        %v3150 = vpack.c.b16 %v3114, %v3110
        %v3151 = vpack.c.b16 %v3115, %v3111
        %v3152 = vpack.c.b16 %v3120, %v3116
        %v3153 = vpack.c.b16 %v3121, %v3117
        %v3154 = vpack.c.b16 %v3122, %v3118
        %v3155 = vpack.c.b16 %v3123, %v3119
        %3188 = vmatprep.subr.bf16.mxu0 %v3125
        %3189 = vmatpush1.bf16.msra.mxu0 %v3124
        %3190 = vmatprep.subr.bf16.mxu0 %v3129
        %3191 = vmatpush1.bf16.msra.mxu0 %v3128
        %3192 = vmatprep.subr.bf16.mxu0 %v3133
        %3193 = vmatpush1.bf16.msra.mxu0 %v3132
        %3194 = vmatprep.subr.bf16.mxu0 %v3137
        %3195 = vmatpush1.bf16.msra.mxu0 %v3136
        %3196 = vmatprep.subr.bf16.mxu0 %v3141
        %3197 = vmatpush1.bf16.msra.mxu0 %v3140
        %3198 = vmatprep.subr.bf16.mxu0 %v3145
        %3199 = vmatpush1.bf16.msra.mxu0 %v3144
        %3200 = vmatprep.subr.bf16.mxu0 %v3149
        %3201 = vmatpush1.bf16.msra.mxu0 %v3148
        %3202 = vmatprep.subr.bf16.mxu0 %v3153
        %3203 = vmatpush1.bf16.msra.mxu0 %v3152
        %3204 = vmatprep.subr.bf16.mxu0 0
        %3205 = vmatpush1.bf16.msra.mxu0 0
        %3206 = vmatprep.subr.bf16.mxu0 0
        %3207 = vmatpush1.bf16.msra.mxu0 0
        %3208 = vmatprep.subr.bf16.mxu0 0
        %3209 = vmatpush1.bf16.msra.mxu0 0
        %3210 = vmatprep.subr.bf16.mxu0 0
        %3211 = vmatpush1.bf16.msra.mxu0 0
        %3212 = vmatprep.subr.bf16.mxu0 0
        %3213 = vmatpush1.bf16.msra.mxu0 0
        %3214 = vmatprep.subr.bf16.mxu0 0
        %3215 = vmatpush1.bf16.msra.mxu0 0
        %3216 = vmatprep.subr.bf16.mxu0 0
        %3217 = vmatpush1.bf16.msra.mxu0 0
        %3218 = vmatprep.subr.bf16.mxu0 0
        %3219 = vmatpush1.bf16.msra.mxu0 0
        %3220 = vmatprep.mubr.bf16.mxu0 0
        %3221 = vmatmul.mubr.bf16.gmra.mrb[0].mxu0 %v2995
        %v3222 = vpop.f32.mrb[0].mxu0
        %v3223 = vadd.f32 0.0, %v3222
        %v3224 = vpop.f32.mrb[0].mxu0
        %v3225 = vadd.f32 0.0, %v3224
        %v3226 = vpop.f32.mrb[0].mxu0
        %v3227 = vadd.f32 0.0, %v3226
        %v3228 = vpop.f32.mrb[0].mxu0
        %v3229 = vadd.f32 0.0, %v3228
        %3230 = vdwg.mxu0
        %3231 = vmatprep.subr.bf16.mxu0 %v3127
        %3232 = vmatpush1.bf16.msra.mxu0 %v3126
        %3233 = vmatprep.subr.bf16.mxu0 %v3131
        %3234 = vmatpush1.bf16.msra.mxu0 %v3130
        %3235 = vmatprep.subr.bf16.mxu0 %v3135
        %3236 = vmatpush1.bf16.msra.mxu0 %v3134
        %3237 = vmatprep.subr.bf16.mxu0 %v3139
        %3238 = vmatpush1.bf16.msra.mxu0 %v3138
        %3239 = vmatprep.subr.bf16.mxu0 %v3143
        %3240 = vmatpush1.bf16.msra.mxu0 %v3142
        %3241 = vmatprep.subr.bf16.mxu0 %v3147
        %3242 = vmatpush1.bf16.msra.mxu0 %v3146
        %3243 = vmatprep.subr.bf16.mxu0 %v3151
        %3244 = vmatpush1.bf16.msra.mxu0 %v3150
        %3245 = vmatprep.subr.bf16.mxu0 %v3155
        %3246 = vmatpush1.bf16.msra.mxu0 %v3154
        %3247 = vmatprep.subr.bf16.mxu0 0
        %3248 = vmatpush1.bf16.msra.mxu0 0
        %3249 = vmatprep.subr.bf16.mxu0 0
        %3250 = vmatpush1.bf16.msra.mxu0 0
        %3251 = vmatprep.subr.bf16.mxu0 0
        %3252 = vmatpush1.bf16.msra.mxu0 0
        %3253 = vmatprep.subr.bf16.mxu0 0
        %3254 = vmatpush1.bf16.msra.mxu0 0
        %3255 = vmatprep.subr.bf16.mxu0 0
        %3256 = vmatpush1.bf16.msra.mxu0 0
        %3257 = vmatprep.subr.bf16.mxu0 0
        %3258 = vmatpush1.bf16.msra.mxu0 0
        %3259 = vmatprep.subr.bf16.mxu0 0
        %3260 = vmatpush1.bf16.msra.mxu0 0
        %3261 = vmatprep.subr.bf16.mxu0 0
        %3262 = vmatpush1.bf16.msra.mxu0 0
        %3263 = vmatprep.mubr.bf16.mxu0 0
        %3264 = vmatmul.mubr.bf16.gmra.mrb[0].mxu0 %v2995
        %v3265 = vpop.f32.mrb[0].mxu0
        %v3266 = vadd.f32 0.0, %v3265
        %v3267 = vpop.f32.mrb[0].mxu0
        %v3268 = vadd.f32 0.0, %v3267
        %v3269 = vpop.f32.mrb[0].mxu0
        %v3270 = vadd.f32 0.0, %v3269
        %v3271 = vpop.f32.mrb[0].mxu0
        %v3272 = vadd.f32 0.0, %v3271
        %3273 = vdwg.mxu0
        %v3274 = vadd.f32 %v2985, %v3223
        %v3275 = vadd.f32 %v2986, %v3225
        %v3276 = vadd.f32 %v2987, %v3266
        %v3277 = vadd.f32 %v2988, %v3268
        %v3278 = vadd.f32 %v2989, %v3227
        %v3279 = vadd.f32 %v2990, %v3229
        %v3280 = vadd.f32 %v2991, %v3270
        %v3281 = vadd.f32 %v2992, %v3272
        %v3282 = vmul.f32 %v3274, 0.5
        %v3283 = vmul.f32 %v3278, 0.5
        %v3284 = vtanh.pop %v3282
        %v3285 = vtanh.pop %v3283
        %v3286 = vadd.f32 %v3284, 1.0
        %v3287 = vadd.f32 %v3285, 1.0
        %v3288 = vmul.f32 %v3286, 0.5
        %v3289 = vmul.f32 %v3287, 0.5
        %v3290 = vmul.f32 %v3275, 0.5
        %v3291 = vmul.f32 %v3279, 0.5
        %v3292 = vtanh.pop %v3290
        %v3293 = vtanh.pop %v3291
        %v3294 = vadd.f32 %v3292, 1.0
        %v3295 = vadd.f32 %v3293, 1.0
        %v3296 = vmul.f32 %v3294, 0.5
        %v3297 = vmul.f32 %v3295, 0.5
        %v3298 = vtanh.pop %v3276
        %v3299 = vtanh.pop %v3280
        %v3300 = vmul.f32 %v3277, 0.5
        %v3301 = vmul.f32 %v3281, 0.5
        %v3302 = vtanh.pop %v3300
        %v3303 = vtanh.pop %v3301
        %v3304 = vadd.f32 %v3302, 1.0
        %v3305 = vadd.f32 %v3303, 1.0
        %v3306 = vmul.f32 %v3304, 0.5
        %v3307 = vmul.f32 %v3305, 0.5
        %v3308 = vld [vmem:[#allocation3] sm:$0xff]
        %v3309 = vld [vmem:[#allocation3 + $0x8] sm:$0xff]
        %v3310 = vmul.f32 %v3296, %v3308
        %v3311 = vmul.f32 %v3297, %v3309
        %v3312 = vmul.f32 %v3288, %v3298
        %v3313 = vmul.f32 %v3289, %v3299
        %v3314 = vadd.f32 %v3310, %v3312
        %v3315 = vadd.f32 %v3311, %v3313
        %v3316 = vtanh.pop %v3314
        %v3317 = vtanh.pop %v3315
        %v3318 = vmul.f32 %v3306, %v3316
        %v3319 = vmul.f32 %v3307, %v3317
        %s3320 = sadd.s32 %s343, 7
        %v3321 = vstv %s3320
        %vm3322 = vcmp.ge.s32.totalorder %v3321, %v339
        %vm3323 = vcmp.ge.s32.totalorder %v3321, %v340
        %vm3324 = vcmp.lt.s32.totalorder %v3321, %v341
        %vm3325 = vcmp.lt.s32.totalorder %v3321, %v342
        %vm3326 = vmand %vm3322, %vm3324
        %vm3327 = vmand %vm3323, %vm3325
        %v3328 = vsel %vm3326, 1, 0
        %v3329 = vsel %vm3327, 1, 0
        %3330 = vset.pattern.permute.xlu0 0
        %3331 = vperm.xlu0 %3330, %v3328
        %v3332 = vpop.permute.xlu0 %3331
        %3333 = vset.pattern.permute.xlu0 0
        %3334 = vperm.xlu0 %3333, %v3329
        %v3335 = vpop.permute.xlu0 %3334
        %vm3336 = vcmp.eq.s32.totalorder %v3332, 1
        %vm3337 = vcmp.eq.s32.totalorder %v3335, 1
        %v3338 = vsel %vm3336, %v3318, %v2993
        %v3339 = vsel %vm3337, %v3319, %v2994
        %v3340 = vsel %vm3336, %v3314, %v3308
        %v3341 = vsel %vm3337, %v3315, %v3309
        %3342 = vst [vmem:[#allocation2] sm:$0xff] %v3338
        %3343 = vst [vmem:[#allocation2 + $0x8] sm:$0xff] %v3339
        %3344 = vst [vmem:[#allocation3] sm:$0xff] %v3340
        %3345 = vst [vmem:[#allocation3 + $0x8] sm:$0xff] %v3341
        %v3346 = vpack.c.bf16 %v3339, %v3338
        %v3348 = vunpack.c.l.b16 %v3346
        %v3349 = vunpack.c.h.b16 %v3346
        %v3350 = vpack.c.b16 %v3348, %v3348
        %v3351 = vpack.c.b16 %v3349, %v3349
        %s3354 = scalar_lea.vmem %s290, 56 [#allocation4]
        %3355 = vst [vmem:[%s3354] sm:$0xf] %v3350
        %3356 = vst [vmem:[%s3354 + $0x4] sm:$0xf] %v3351
        %v3357 = vld [vmem:[#allocation2] sm:$0xff]
        %v3358 = vld [vmem:[#allocation2 + $0x8] sm:$0xff]
        %3359 = vst [vmem:[%s329] sm:$0xff] %v3357
        %3360 = vst [vmem:[%s329 + $0x8] sm:$0xff] %v3358
        %s3361 = sand.u32 %s148, 1
        %s3362 = scalar_lea.sflag [#allocation5], %s3361
        %s3363 = sand.u32 %s148, 1
        %s3364 = smul.addr %s3363, 64
        %s3365 = scalar_lea.vmem [#allocation4], %s3364
        %p3366 = scmp.lt.s32.totalorder %s24, 1
        %s3367 = scalar_select %p3366, %s24, 1
        %s3368 = smul.addr %s3367, 2
        %s3369 = smul.addr %s3368, 8
        %s3370 = scalar_lea.vmem %s5, %s3369
        // Predicated region
        $region41: #{_lambda_.3} parent=35 // pred_check
          %p3371 = pneg %p158
        $region42: #{_lambda_.3} parent=35 // pred_check_branch
          %3373 = sbr.rel (%p3371) target = $region44
        $region43: #{_lambda_.3} parent=35 // pred_region
          %s3374 = smul.u32 8, %s25
          %s3376 = ssub.s32 1024, 1024
          %3377 = vsyncadd %s3362, %s3376
          %s3378 = smul.addr %s3374, 2
          %s3379 = smul.addr %s24, 16
          %s3380 = sadd.s32 %s3378, %s3379
          %s3381 = smul.addr %s3380, 64
          %s3382 = scalar_lea.hbm %s4, %s3381
          %s3383 = sshll.u32 %s3365, 4
          %s3384 = int_to_ptr.vmem [resolvable:$true] %s3383
          %3389 = dma.vmem_to_hbm [thread:$0]  %s3384, 1024, %s3382, %s3362, 64, 64, 4
        $region44: #{_lambda_.3} parent=35 // pred_fallthru
          _
        // Predicated region
        $region45: #{_lambda_.3} parent=35 // pred_check
          %p3390 = pneg %p184
        $region46: #{_lambda_.3} parent=35 // pred_check_branch
          %3392 = sbr.rel (%p3390) target = $region48
        $region47: #{_lambda_.3} parent=35 // pred_region
          _
        $region48: #{_lambda_.3} parent=35 // pred_fallthru
          _
      $region36: #{_lambda_.3} parent=5 // pred_fallthru
        _
      %p3393 = scmp.le.s32.totalorder 2, %s15
      // Predicated region
      $region49: #{_lambda_.3} parent=5 // pred_check
        %p3394 = pneg %p3393
      $region50: #{_lambda_.3} parent=5 // pred_check_branch
        %3396 = sbr.rel (%p3394) target = $region52
      $region51: #{_lambda_.3} parent=5 // pred_region
        %s3397 = ssub.s32 %s15, 2
        // Predicated region
        $region53: #{_lambda_.3} parent=51 // pred_check
          %p3398 = pneg %p164
        $region54: #{_lambda_.3} parent=51 // pred_check_branch
          %3400 = sbr.rel (%p3398) target = $region56
        $region55: #{_lambda_.3} parent=51 // pred_region
          %s3401 = sand.u32 %s149, 1
          %s3402 = scalar_lea.sflag [#allocation5], %s3401
          %s3403 = sand.u32 %s149, 1
          %s3404 = smul.addr %s3403, 64
          %s3405 = scalar_lea.vmem [#allocation4], %s3404
          %3406 = dma.done %s3402, 1024
        $region56: #{_lambda_.3} parent=51 // pred_fallthru
          _
        // Predicated region
        $region57: #{_lambda_.3} parent=51 // pred_check
          %p3407 = pneg %p190
        $region58: #{_lambda_.3} parent=51 // pred_check_branch
          %3409 = sbr.rel (%p3407) target = $region60
        $region59: #{_lambda_.3} parent=51 // pred_region
          %p3410 = scmp.lt.s32.totalorder %s26, 1
          %s3411 = scalar_select %p3410, %s26, 1
          %s3412 = smul.addr %s3411, 2
          %s3413 = smul.addr %s3412, 8
          %s3414 = scalar_lea.vmem %s5, %s3413
        $region60: #{_lambda_.3} parent=51 // pred_fallthru
          _
      $region52: #{_lambda_.3} parent=5 // pred_fallthru
        _
    $region6: #{_lambda_.3} parent=1 // loop_footer
      %s19 = sadd.s32 1, %s15
    $region7: #{_lambda_.3} parent=1 // loop_footer_branch
      %14 = sbr.rel target = $region3
    $region8: #{_lambda_.3} parent=1 // loop_exit
      _
    %3415 = vsyncpa [#allocation5], 1
    %s3416 = scalar_lea.sflag [#allocation5], 1
    %3417 = vsyncpa %s3416, 1

// kernel: _lambda_.2
$region0: #{_lambda_.2}
  #allocation0 [shape = 'u32[]', space=smem, size = 0x4, offset = 0x4, fixed_abs, tag = 'smem constant byte address 0x4 - core index']
  #allocation1 [shape = 'u32[144,128]{1,0:T(1,128)}', space=vmem, size = 0x12000, scoped, tag = 'internal scratch']
  #allocation2 [shape = 'f32[16,128]{1,0:T(8,128)}', space=vmem, size = 0x2000, scoped, tag = 'scratch operand']
  #allocation3 [shape = 'f32[16,128]{1,0:T(8,128)}', space=vmem, size = 0x2000, scoped, tag = 'scratch operand']
  %s0 = inlined_call_operand.vmem [shape: s32[2,16,1], index: 0, kind: input, shape index: {}]
  %s1 = inlined_call_operand.vmem [shape: s32[2,16,1], index: 1, kind: input, shape index: {}]
  %s2 = inlined_call_operand.vmem [shape: bf16[2,8,16,512], index: 2, kind: input, shape index: {}]
  %s3 = inlined_call_operand.vmem [shape: bf16[2,128,512], index: 3, kind: input, shape index: {}]
  %s4 = inlined_call_operand.vmem [shape: bf16[2,8,16,128], index: 4, kind: output, shape index: {0}]
  %s5 = inlined_call_operand.hbm [shape: f32[2,16,128], index: 5, kind: output, shape index: {1}]
  %6 = xla_tuple %s4, %s5
  %s7 = sld [smem:[#allocation0]]
  $region61: #{_lambda_.2} parent=0
    _
  %s9 = ssub.s32 1, %s7
  %s10 = scalar_select 0, %s9, %s7
  $region1: #{_lambda_.2} parent=0
    #allocation4 [shape = 'u8[16384]{0}', space=vmem, size = 0x4000, scoped, tag = 'output window, operand 1']
    #allocation5 [shape = 's32[2]{0}', space=sflag, size = 0x8, scoped, tag = 'scoped memory for _lambda_.2']
    %11 = vsyncpa [#allocation5], 0
    %s12 = scalar_lea.sflag [#allocation5], 1
    %13 = vsyncpa %s12, 0
    loop: start=0, step=1, limit=4
    $region2: #{_lambda_.2} parent=1 // loop_pre_header
      _
    $region3: #{_lambda_.2} parent=1 // loop_header
      %s15 = sphi 0, %s19
      %p16 = scmp.ge.s32.totalorder %s15, 4
      %s22 = sphi 0, %s34
      %s23 = sphi 0, %s30
      %s24 = sphi 0, %s22
      %s25 = sphi 0, %s23
      %s26 = sphi 0, %s24
      %s27 = sphi 0, %s25
      %s37 = sphi 0, %s39
      %s40 = sphi 0, %s37
      %s41 = sphi 0, %s40
      %s57 = sphi 0, %s41
      %s63 = sphi 0, %s65
      %s66 = sphi 0, %s63
      %s67 = sphi 0, %s66
      %s83 = sphi 0, %s67
      %s91 = sphi 0, %s93
      %s94 = sphi 0, %s91
      %s95 = sphi 0, %s94
      %s111 = sphi 0, %s95
      %s117 = sphi 0, %s119
      %s120 = sphi 0, %s117
      %s121 = sphi 0, %s120
      %s137 = sphi 0, %s121
      %s145 = sphi 0, %s147
      %s148 = sphi 0, %s145
      %s149 = sphi 0, %s148
      %s165 = sphi 0, %s149
      %s171 = sphi 0, %s173
      %s174 = sphi 0, %s171
      %s175 = sphi 0, %s174
      %s191 = sphi 0, %s175
    $region4: #{_lambda_.2} parent=1 // loop_header_branch
      %18 = sbr.rel (%p16) target = $region8
    $region5: #{_lambda_.2} parent=1 // loop_body
      %s20 = ssub.s32 %s15, 1
      %s21 = ssub.s32 %s15, 2
      %s28 = sadd.s32 1, %s23
      %p29 = scmp.ge.s32.totalorder %s28, 1
      %s30 = scalar_select %p29, 0, %s28
      %s31 = sadd.s32 1, %s22
      %s32 = scalar_select %p29, %s31, %s22
      %p33 = scmp.ge.s32.totalorder %s32, 2
      %s34 = scalar_select %p33, 0, %s32
      %s35 = ssub.s32 %s22, %s34
      %p36 = scmp.eq.s32.totalorder %s35, 0
      %s38 = sadd.s32 %s37, 1
      %s39 = scalar_select %p36, %s37, %s38
      %p42 = pneg %p36
      %p43 = scmp.eq.s32.totalorder %s15, 1
      %p44 = por %p42, %p43
      %p45 = scmp.ne.s32.totalorder %s37, %s40
      %p46 = scmp.eq.s32.totalorder %s15, 0
      %p47 = por %p45, %p46
      %p48 = scmp.ne.s32.totalorder %s37, %s40
      %p49 = scmp.eq.s32.totalorder %s20, 1
      %p50 = por %p48, %p49
      %p51 = scmp.ne.s32.totalorder %s40, %s41
      %p52 = scmp.eq.s32.totalorder %s20, 0
      %p53 = por %p51, %p52
      %p54 = scmp.ne.s32.totalorder %s40, %s41
      %p55 = scmp.eq.s32.totalorder %s21, 1
      %p56 = por %p54, %p55
      %p58 = scmp.ne.s32.totalorder %s41, %s57
      %p59 = scmp.eq.s32.totalorder %s21, 0
      %p60 = por %p58, %p59
      %s61 = ssub.s32 %s22, %s34
      %p62 = scmp.eq.s32.totalorder %s61, 0
      %s64 = sadd.s32 %s63, 1
      %s65 = scalar_select %p62, %s63, %s64
      %p68 = pneg %p62
      %p69 = scmp.eq.s32.totalorder %s15, 1
      %p70 = por %p68, %p69
      %p71 = scmp.ne.s32.totalorder %s63, %s66
      %p72 = scmp.eq.s32.totalorder %s15, 0
      %p73 = por %p71, %p72
      %p74 = scmp.ne.s32.totalorder %s63, %s66
      %p75 = scmp.eq.s32.totalorder %s20, 1
      %p76 = por %p74, %p75
      %p77 = scmp.ne.s32.totalorder %s66, %s67
      %p78 = scmp.eq.s32.totalorder %s20, 0
      %p79 = por %p77, %p78
      %p80 = scmp.ne.s32.totalorder %s66, %s67
      %p81 = scmp.eq.s32.totalorder %s21, 1
      %p82 = por %p80, %p81
      %p84 = scmp.ne.s32.totalorder %s67, %s83
      %p85 = scmp.eq.s32.totalorder %s21, 0
      %p86 = por %p84, %p85
      %s87 = ssub.s32 %s22, %s34
      %s88 = ssub.s32 %s23, %s30
      %s89 = sor.u32 %s87, %s88
      %p90 = scmp.eq.s32.totalorder %s89, 0
      %s92 = sadd.s32 %s91, 1
      %s93 = scalar_select %p90, %s91, %s92
      %p96 = pneg %p90
      %p97 = scmp.eq.s32.totalorder %s15, 1
      %p98 = por %p96, %p97
      %p99 = scmp.ne.s32.totalorder %s91, %s94
      %p100 = scmp.eq.s32.totalorder %s15, 0
      %p101 = por %p99, %p100
      %p102 = scmp.ne.s32.totalorder %s91, %s94
      %p103 = scmp.eq.s32.totalorder %s20, 1
      %p104 = por %p102, %p103
      %p105 = scmp.ne.s32.totalorder %s94, %s95
      %p106 = scmp.eq.s32.totalorder %s20, 0
      %p107 = por %p105, %p106
      %p108 = scmp.ne.s32.totalorder %s94, %s95
      %p109 = scmp.eq.s32.totalorder %s21, 1
      %p110 = por %p108, %p109
      %p112 = scmp.ne.s32.totalorder %s95, %s111
      %p113 = scmp.eq.s32.totalorder %s21, 0
      %p114 = por %p112, %p113
      %s115 = ssub.s32 %s22, %s34
      %p116 = scmp.eq.s32.totalorder %s115, 0
      %s118 = sadd.s32 %s117, 1
      %s119 = scalar_select %p116, %s117, %s118
      %p122 = pneg %p116
      %p123 = scmp.eq.s32.totalorder %s15, 1
      %p124 = por %p122, %p123
      %p125 = scmp.ne.s32.totalorder %s117, %s120
      %p126 = scmp.eq.s32.totalorder %s15, 0
      %p127 = por %p125, %p126
      %p128 = scmp.ne.s32.totalorder %s117, %s120
      %p129 = scmp.eq.s32.totalorder %s20, 1
      %p130 = por %p128, %p129
      %p131 = scmp.ne.s32.totalorder %s120, %s121
      %p132 = scmp.eq.s32.totalorder %s20, 0
      %p133 = por %p131, %p132
      %p134 = scmp.ne.s32.totalorder %s120, %s121
      %p135 = scmp.eq.s32.totalorder %s21, 1
      %p136 = por %p134, %p135
      %p138 = scmp.ne.s32.totalorder %s121, %s137
      %p139 = scmp.eq.s32.totalorder %s21, 0
      %p140 = por %p138, %p139
      %s141 = ssub.s32 %s22, %s34
      %s142 = ssub.s32 %s23, %s30
      %s143 = sor.u32 %s141, %s142
      %p144 = scmp.eq.s32.totalorder %s143, 0
      %s146 = sadd.s32 %s145, 1
      %s147 = scalar_select %p144, %s145, %s146
      %p150 = pneg %p144
      %p151 = scmp.eq.s32.totalorder %s15, 1
      %p152 = por %p150, %p151
      %p153 = scmp.ne.s32.totalorder %s145, %s148
      %p154 = scmp.eq.s32.totalorder %s15, 0
      %p155 = por %p153, %p154
      %p156 = scmp.ne.s32.totalorder %s145, %s148
      %p157 = scmp.eq.s32.totalorder %s20, 1
      %p158 = por %p156, %p157
      %p159 = scmp.ne.s32.totalorder %s148, %s149
      %p160 = scmp.eq.s32.totalorder %s20, 0
      %p161 = por %p159, %p160
      %p162 = scmp.ne.s32.totalorder %s148, %s149
      %p163 = scmp.eq.s32.totalorder %s21, 1
      %p164 = por %p162, %p163
      %p166 = scmp.ne.s32.totalorder %s149, %s165
      %p167 = scmp.eq.s32.totalorder %s21, 0
      %p168 = por %p166, %p167
      %s169 = ssub.s32 %s22, %s34
      %p170 = scmp.eq.s32.totalorder %s169, 0
      %s172 = sadd.s32 %s171, 1
      %s173 = scalar_select %p170, %s171, %s172
      %p176 = pneg %p170
      %p177 = scmp.eq.s32.totalorder %s15, 1
      %p178 = por %p176, %p177
      %p179 = scmp.ne.s32.totalorder %s171, %s174
      %p180 = scmp.eq.s32.totalorder %s15, 0
      %p181 = por %p179, %p180
      %p182 = scmp.ne.s32.totalorder %s171, %s174
      %p183 = scmp.eq.s32.totalorder %s20, 1
      %p184 = por %p182, %p183
      %p185 = scmp.ne.s32.totalorder %s174, %s175
      %p186 = scmp.eq.s32.totalorder %s20, 0
      %p187 = por %p185, %p186
      %p188 = scmp.ne.s32.totalorder %s174, %s175
      %p189 = scmp.eq.s32.totalorder %s21, 1
      %p190 = por %p188, %p189
      %p192 = scmp.ne.s32.totalorder %s175, %s191
      %p193 = scmp.eq.s32.totalorder %s21, 0
      %p194 = por %p192, %p193
      %p195 = scmp.le.s32.totalorder 1, %s15
      %p196 = scmp.lt.s32.totalorder %s15, 3
      %p197 = pnand %p195, %p196
      %p198 = pneg %p197
      // Predicated region
      $region9: #{_lambda_.2} parent=5 // pred_check
        _
      $region10: #{_lambda_.2} parent=5 // pred_check_branch
        %200 = sbr.rel (%p197) target = $region12
      $region11: #{_lambda_.2} parent=5 // pred_region
        %s201 = ssub.s32 %s15, 1
      $region12: #{_lambda_.2} parent=5 // pred_fallthru
        _
      %p202 = scmp.lt.s32.totalorder %s15, 2
      // Predicated region
      $region13: #{_lambda_.2} parent=5 // pred_check
        %p203 = pneg %p202
      $region14: #{_lambda_.2} parent=5 // pred_check_branch
        %205 = sbr.rel (%p203) target = $region16
      $region15: #{_lambda_.2} parent=5 // pred_region
        // Predicated region
        $region17: #{_lambda_.2} parent=15 // pred_check
          %p206 = pneg %p47
        $region18: #{_lambda_.2} parent=15 // pred_check_branch
          %208 = sbr.rel (%p206) target = $region20
        $region19: #{_lambda_.2} parent=15 // pred_region
          %p209 = scmp.lt.s32.totalorder %s22, 1
          %s210 = scalar_select %p209, %s22, 1
          %s211 = smul.addr %s210, 2
          %s212 = smul.addr %s211, 8
          %s213 = scalar_lea.vmem %s0, %s212
        $region20: #{_lambda_.2} parent=15 // pred_fallthru
          _
        // Predicated region
        $region21: #{_lambda_.2} parent=15 // pred_check
          %p214 = pneg %p73
        $region22: #{_lambda_.2} parent=15 // pred_check_branch
          %216 = sbr.rel (%p214) target = $region24
        $region23: #{_lambda_.2} parent=15 // pred_region
          %p217 = scmp.lt.s32.totalorder %s22, 1
          %s218 = scalar_select %p217, %s22, 1
          %s219 = smul.addr %s218, 2
          %s220 = smul.addr %s219, 8
          %s221 = scalar_lea.vmem %s1, %s220
        $region24: #{_lambda_.2} parent=15 // pred_fallthru
          _
        // Predicated region
        $region25: #{_lambda_.2} parent=15 // pred_check
          %p222 = pneg %p101
        $region26: #{_lambda_.2} parent=15 // pred_check_branch
          %224 = sbr.rel (%p222) target = $region28
        $region27: #{_lambda_.2} parent=15 // pred_region
          %s225 = smul.u32 8, %s23
          %p226 = scmp.lt.s32.totalorder %s22, 1
          %s227 = scalar_select %p226, %s22, 1
          %p228 = scmp.lt.s32.totalorder %s225, 7
          %s229 = scalar_select %p228, %s225, 7
          %s230 = smul.addr %s229, 8
          %s231 = smul.addr %s227, 64
          %s232 = sadd.s32 %s230, %s231
          %s233 = smul.addr %s232, 4
          %s234 = scalar_lea.vmem %s2, %s233
          %s235 = smul.u32 8, %s23
        $region28: #{_lambda_.2} parent=15 // pred_fallthru
          _
        // Predicated region
        $region29: #{_lambda_.2} parent=15 // pred_check
          %p236 = pneg %p127
        $region30: #{_lambda_.2} parent=15 // pred_check_branch
          %238 = sbr.rel (%p236) target = $region32
        $region31: #{_lambda_.2} parent=15 // pred_region
          %p239 = scmp.lt.s32.totalorder %s22, 1
          %s240 = scalar_select %p239, %s22, 1
          %s241 = smul.addr %s240, 64
          %s242 = smul.addr %s241, 4
          %s243 = scalar_lea.vmem %s3, %s242
        $region32: #{_lambda_.2} parent=15 // pred_fallthru
          _
      $region16: #{_lambda_.2} parent=5 // pred_fallthru
        _
      %p244 = scmp.le.s32.totalorder 1, %s15
      %p245 = scmp.lt.s32.totalorder %s15, 3
      %p246 = pnand %p244, %p245
      %p247 = pneg %p246
      // Predicated region
      $region33: #{_lambda_.2} parent=5 // pred_check
        _
      $region34: #{_lambda_.2} parent=5 // pred_check_branch
        %249 = sbr.rel (%p246) target = $region36
      $region35: #{_lambda_.2} parent=5 // pred_region
        %s250 = ssub.s32 %s15, 1
        %p251 = scmp.lt.s32.totalorder %s24, 1
        %s252 = scalar_select %p251, %s24, 1
        %s253 = smul.addr %s252, 2
        %s254 = smul.addr %s253, 8
        %s255 = scalar_lea.vmem %s0, %s254
        %p256 = pneg %p53
        %p257 = pneg %p50
        %p258 = scmp.lt.s32.totalorder %s24, 1
        %s259 = scalar_select %p258, %s24, 1
        %s260 = smul.addr %s259, 2
        %s261 = smul.addr %s260, 8
        %s262 = scalar_lea.vmem %s1, %s261
        %p263 = pneg %p79
        %p264 = pneg %p76
        %s265 = smul.u32 8, %s25
        %p266 = scmp.lt.s32.totalorder %s24, 1
        %s267 = scalar_select %p266, %s24, 1
        %p268 = scmp.lt.s32.totalorder %s265, 7
        %s269 = scalar_select %p268, %s265, 7
        %s270 = smul.addr %s269, 8
        %s271 = smul.addr %s267, 64
        %s272 = sadd.s32 %s270, %s271
        %s273 = smul.addr %s272, 4
        %s274 = scalar_lea.vmem %s2, %s273
        %p275 = pneg %p107
        %p276 = pneg %p104
        %p277 = scmp.lt.s32.totalorder %s24, 1
        %s278 = scalar_select %p277, %s24, 1
        %s279 = smul.addr %s278, 64
        %s280 = smul.addr %s279, 4
        %s281 = scalar_lea.vmem %s3, %s280
        %p282 = pneg %p133
        %p283 = pneg %p130
        %p284 = pneg %p161
        %p285 = pneg %p158
        %s286 = smul.u32 8, %s25
        %p287 = scmp.lt.s32.totalorder %s24, 1
        %s288 = scalar_select %p287, %s24, 1
        %p289 = scmp.lt.s32.totalorder %s286, 7
        %s290 = scalar_select %p289, %s286, 7
        %s291 = smul.addr %s288, 8
        %s292 = sadd.s32 %s290, %s291
        %s293 = smul.addr %s292, 8
        %s294 = scalar_lea.vmem %s4, %s293
        %p295 = pneg %p187
        %p296 = pneg %p184
        %s297 = sand.u32 %s174, 1
        %s298 = scalar_lea.sflag [#allocation5], %s297
        %s299 = sand.u32 %s174, 1
        %s300 = smul.addr %s299, 16
        %s301 = scalar_lea.vmem [#allocation4], %s300
        %p302 = scmp.lt.s32.totalorder %s24, 1
        %s303 = scalar_select %p302, %s24, 1
        %s304 = smul.addr %s303, 2
        %s305 = smul.addr %s304, 8
        %s306 = scalar_lea.vmem %s0, %s305
        %p307 = scmp.lt.s32.totalorder %s24, 1
        %s308 = scalar_select %p307, %s24, 1
        %s309 = smul.addr %s308, 2
        %s310 = smul.addr %s309, 8
        %s311 = scalar_lea.vmem %s1, %s310
        %s312 = smul.u32 8, %s25
        %p313 = scmp.lt.s32.totalorder %s24, 1
        %s314 = scalar_select %p313, %s24, 1
        %p315 = scmp.lt.s32.totalorder %s312, 7
        %s316 = scalar_select %p315, %s312, 7
        %s317 = smul.addr %s316, 8
        %s318 = smul.addr %s314, 64
        %s319 = sadd.s32 %s317, %s318
        %s320 = smul.addr %s319, 4
        %s321 = scalar_lea.vmem %s2, %s320
        %s322 = smul.u32 8, %s25
        %p323 = scmp.lt.s32.totalorder %s24, 1
        %s324 = scalar_select %p323, %s24, 1
        %s325 = smul.addr %s324, 64
        %s326 = smul.addr %s325, 4
        %s327 = scalar_lea.vmem %s3, %s326
        %s328 = smul.u32 8, %s25
        %p329 = scmp.lt.s32.totalorder %s24, 1
        %s330 = scalar_select %p329, %s24, 1
        %p331 = scmp.lt.s32.totalorder %s328, 7
        %s332 = scalar_select %p331, %s328, 7
        %s333 = smul.addr %s330, 8
        %s334 = sadd.s32 %s332, %s333
        %s335 = smul.addr %s334, 8
        %s336 = scalar_lea.vmem %s4, %s335
        %s337 = smul.u32 8, %s25
        %p339 = scmp.eq.s32.totalorder %s25, 0
        // Predicated region
        $region37: #{_lambda_.2} parent=35 // pred_check
          %p340 = pneg %p339
        $region38: #{_lambda_.2} parent=35 // pred_check_branch
          %342 = sbr.rel (%p340) target = $region40
        $region39: #{_lambda_.2} parent=35 // pred_region
          %343 = vst [vmem:[#allocation2] sm:$0xff] 0.0
          %344 = vst [vmem:[#allocation2 + $0x8] sm:$0xff] 0.0
          %345 = vst [vmem:[#allocation3] sm:$0xff] 0.0
          %346 = vst [vmem:[#allocation3 + $0x8] sm:$0xff] 0.0
        $region40: #{_lambda_.2} parent=35 // pred_fallthru
          _
        %v347 = vld [vmem:[%s306] sm:$0xff]
        %v348 = vld [vmem:[%s306 + $0x8] sm:$0xff]
        %v349 = vld [vmem:[%s311] sm:$0xff]
        %v350 = vld [vmem:[%s311 + $0x8] sm:$0xff]
        %s351 = smul.u32 %s25, 8
        %v352 = vld [vmem:[%s321] sm:$0xff]
        %v353 = vld [vmem:[%s321 + $0x8] sm:$0xff]
        %v354 = vld [vmem:[%s321 + $0x10] sm:$0xff]
        %v355 = vld [vmem:[%s321 + $0x18] sm:$0xff]
        %v356 = vunpack.c.l.bf16 %v352
        %v357 = vunpack.c.h.bf16 %v352
        %v358 = vunpack.c.l.bf16 %v353
        %v359 = vunpack.c.h.bf16 %v353
        %v360 = vunpack.c.l.bf16 %v354
        %v361 = vunpack.c.h.bf16 %v354
        %v362 = vunpack.c.l.bf16 %v355
        %v363 = vunpack.c.h.bf16 %v355
        %v364 = vld [vmem:[#allocation2] sm:$0xff]
        %v365 = vld [vmem:[#allocation2 + $0x8] sm:$0xff]
        %v366 = vpack.c.bf16 %v365, %v364
        %v367 = vld [vmem:[%s327] sm:$0xff]
        %v368 = vld [vmem:[%s327 + $0x8] sm:$0xff]
        %v369 = vld [vmem:[%s327 + $0x10] sm:$0xff]
        %v370 = vld [vmem:[%s327 + $0x18] sm:$0xff]
        %v371 = vld [vmem:[%s327 + $0x20] sm:$0xff]
        %v372 = vld [vmem:[%s327 + $0x28] sm:$0xff]
        %v373 = vld [vmem:[%s327 + $0x30] sm:$0xff]
        %v374 = vld [vmem:[%s327 + $0x38] sm:$0xff]
        %v375 = vld [vmem:[%s327 + $0x40] sm:$0xff]
        %v376 = vld [vmem:[%s327 + $0x48] sm:$0xff]
        %v377 = vld [vmem:[%s327 + $0x50] sm:$0xff]
        %v378 = vld [vmem:[%s327 + $0x58] sm:$0xff]
        %v379 = vld [vmem:[%s327 + $0x60] sm:$0xff]
        %v380 = vld [vmem:[%s327 + $0x68] sm:$0xff]
        %v381 = vld [vmem:[%s327 + $0x70] sm:$0xff]
        %v382 = vld [vmem:[%s327 + $0x78] sm:$0xff]
        %v383 = vld [vmem:[%s327 + $0x80] sm:$0xff]
        %v384 = vld [vmem:[%s327 + $0x88] sm:$0xff]
        %v385 = vld [vmem:[%s327 + $0x90] sm:$0xff]
        %v386 = vld [vmem:[%s327 + $0x98] sm:$0xff]
        %v387 = vld [vmem:[%s327 + $0xa0] sm:$0xff]
        %v388 = vld [vmem:[%s327 + $0xa8] sm:$0xff]
        %v389 = vld [vmem:[%s327 + $0xb0] sm:$0xff]
        %v390 = vld [vmem:[%s327 + $0xb8] sm:$0xff]
        %v391 = vld [vmem:[%s327 + $0xc0] sm:$0xff]
        %v392 = vld [vmem:[%s327 + $0xc8] sm:$0xff]
        %v393 = vld [vmem:[%s327 + $0xd0] sm:$0xff]
        %v394 = vld [vmem:[%s327 + $0xd8] sm:$0xff]
        %v395 = vld [vmem:[%s327 + $0xe0] sm:$0xff]
        %v396 = vld [vmem:[%s327 + $0xe8] sm:$0xff]
        %v397 = vld [vmem:[%s327 + $0xf0] sm:$0xff]
        %v398 = vld [vmem:[%s327 + $0xf8] sm:$0xff]
        %v431 = vunpack.c.l.b16 %v367
        %v432 = vunpack.c.h.b16 %v367
        %v433 = vunpack.c.l.b16 %v368
        %v434 = vunpack.c.h.b16 %v368
        %v435 = vunpack.c.l.b16 %v369
        %v436 = vunpack.c.h.b16 %v369
        %v437 = vunpack.c.l.b16 %v370
        %v438 = vunpack.c.h.b16 %v370
        %v439 = vunpack.c.l.b16 %v371
        %v440 = vunpack.c.h.b16 %v371
        %v441 = vunpack.c.l.b16 %v372
        %v442 = vunpack.c.h.b16 %v372
        %v443 = vunpack.c.l.b16 %v373
        %v444 = vunpack.c.h.b16 %v373
        %v445 = vunpack.c.l.b16 %v374
        %v446 = vunpack.c.h.b16 %v374
        %v447 = vunpack.c.l.b16 %v375
        %v448 = vunpack.c.h.b16 %v375
        %v449 = vunpack.c.l.b16 %v376
        %v450 = vunpack.c.h.b16 %v376
        %v451 = vunpack.c.l.b16 %v377
        %v452 = vunpack.c.h.b16 %v377
        %v453 = vunpack.c.l.b16 %v378
        %v454 = vunpack.c.h.b16 %v378
        %v455 = vunpack.c.l.b16 %v379
        %v456 = vunpack.c.h.b16 %v379
        %v457 = vunpack.c.l.b16 %v380
        %v458 = vunpack.c.h.b16 %v380
        %v459 = vunpack.c.l.b16 %v381
        %v460 = vunpack.c.h.b16 %v381
        %v461 = vunpack.c.l.b16 %v382
        %v462 = vunpack.c.h.b16 %v382
        %v463 = vunpack.c.l.b16 %v383
        %v464 = vunpack.c.h.b16 %v383
        %v465 = vunpack.c.l.b16 %v384
        %v466 = vunpack.c.h.b16 %v384
        %v467 = vunpack.c.l.b16 %v385
        %v468 = vunpack.c.h.b16 %v385
        %v469 = vunpack.c.l.b16 %v386
        %v470 = vunpack.c.h.b16 %v386
        %v471 = vunpack.c.l.b16 %v387
        %v472 = vunpack.c.h.b16 %v387
        %v473 = vunpack.c.l.b16 %v388
        %v474 = vunpack.c.h.b16 %v388
        %v475 = vunpack.c.l.b16 %v389
        %v476 = vunpack.c.h.b16 %v389
        %v477 = vunpack.c.l.b16 %v390
        %v478 = vunpack.c.h.b16 %v390
        %v479 = vunpack.c.l.b16 %v391
        %v480 = vunpack.c.h.b16 %v391
        %v481 = vunpack.c.l.b16 %v392
        %v482 = vunpack.c.h.b16 %v392
        %v483 = vunpack.c.l.b16 %v393
        %v484 = vunpack.c.h.b16 %v393
        %v485 = vunpack.c.l.b16 %v394
        %v486 = vunpack.c.h.b16 %v394
        %v487 = vunpack.c.l.b16 %v395
        %v488 = vunpack.c.h.b16 %v395
        %v489 = vunpack.c.l.b16 %v396
        %v490 = vunpack.c.h.b16 %v396
        %v491 = vunpack.c.l.b16 %v397
        %v492 = vunpack.c.h.b16 %v397
        %v493 = vunpack.c.l.b16 %v398
        %v494 = vunpack.c.h.b16 %v398
        %v495 = vpack.c.b16 %v435, %v431
        %v496 = vpack.c.b16 %v436, %v432
        %v497 = vpack.c.b16 %v437, %v433
        %v498 = vpack.c.b16 %v438, %v434
        %v499 = vpack.c.b16 %v443, %v439
        %v500 = vpack.c.b16 %v444, %v440
        %v501 = vpack.c.b16 %v445, %v441
        %v502 = vpack.c.b16 %v446, %v442
        %v503 = vpack.c.b16 %v451, %v447
        %v504 = vpack.c.b16 %v452, %v448
        %v505 = vpack.c.b16 %v453, %v449
        %v506 = vpack.c.b16 %v454, %v450
        %v507 = vpack.c.b16 %v459, %v455
        %v508 = vpack.c.b16 %v460, %v456
        %v509 = vpack.c.b16 %v461, %v457
        %v510 = vpack.c.b16 %v462, %v458
        %v511 = vpack.c.b16 %v467, %v463
        %v512 = vpack.c.b16 %v468, %v464
        %v513 = vpack.c.b16 %v469, %v465
        %v514 = vpack.c.b16 %v470, %v466
        %v515 = vpack.c.b16 %v475, %v471
        %v516 = vpack.c.b16 %v476, %v472
        %v517 = vpack.c.b16 %v477, %v473
        %v518 = vpack.c.b16 %v478, %v474
        %v519 = vpack.c.b16 %v483, %v479
        %v520 = vpack.c.b16 %v484, %v480
        %v521 = vpack.c.b16 %v485, %v481
        %v522 = vpack.c.b16 %v486, %v482
        %v523 = vpack.c.b16 %v491, %v487
        %v524 = vpack.c.b16 %v492, %v488
        %v525 = vpack.c.b16 %v493, %v489
        %v526 = vpack.c.b16 %v494, %v490
        %559 = vmatprep.subr.bf16.mxu0 %v496
        %560 = vmatpush1.bf16.msra.mxu0 %v495
        %561 = vmatprep.subr.bf16.mxu0 %v500
        %562 = vmatpush1.bf16.msra.mxu0 %v499
        %563 = vmatprep.subr.bf16.mxu0 %v504
        %564 = vmatpush1.bf16.msra.mxu0 %v503
        %565 = vmatprep.subr.bf16.mxu0 %v508
        %566 = vmatpush1.bf16.msra.mxu0 %v507
        %567 = vmatprep.subr.bf16.mxu0 %v512
        %568 = vmatpush1.bf16.msra.mxu0 %v511
        %569 = vmatprep.subr.bf16.mxu0 %v516
        %570 = vmatpush1.bf16.msra.mxu0 %v515
        %571 = vmatprep.subr.bf16.mxu0 %v520
        %572 = vmatpush1.bf16.msra.mxu0 %v519
        %573 = vmatprep.subr.bf16.mxu0 %v524
        %574 = vmatpush1.bf16.msra.mxu0 %v523
        %575 = vmatprep.subr.bf16.mxu0 0
        %576 = vmatpush1.bf16.msra.mxu0 0
        %577 = vmatprep.subr.bf16.mxu0 0
        %578 = vmatpush1.bf16.msra.mxu0 0
        %579 = vmatprep.subr.bf16.mxu0 0
        %580 = vmatpush1.bf16.msra.mxu0 0
        %581 = vmatprep.subr.bf16.mxu0 0
        %582 = vmatpush1.bf16.msra.mxu0 0
        %583 = vmatprep.subr.bf16.mxu0 0
        %584 = vmatpush1.bf16.msra.mxu0 0
        %585 = vmatprep.subr.bf16.mxu0 0
        %586 = vmatpush1.bf16.msra.mxu0 0
        %587 = vmatprep.subr.bf16.mxu0 0
        %588 = vmatpush1.bf16.msra.mxu0 0
        %589 = vmatprep.subr.bf16.mxu0 0
        %590 = vmatpush1.bf16.msra.mxu0 0
        %591 = vmatprep.mubr.bf16.mxu0 0
        %592 = vmatmul.mubr.bf16.gmra.mrb[0].mxu0 %v366
        %v593 = vpop.f32.mrb[0].mxu0
        %v594 = vadd.f32 0.0, %v593
        %v595 = vpop.f32.mrb[0].mxu0
        %v596 = vadd.f32 0.0, %v595
        %v597 = vpop.f32.mrb[0].mxu0
        %v598 = vadd.f32 0.0, %v597
        %v599 = vpop.f32.mrb[0].mxu0
        %v600 = vadd.f32 0.0, %v599
        %601 = vdwg.mxu0
        %602 = vmatprep.subr.bf16.mxu0 %v498
        %603 = vmatpush1.bf16.msra.mxu0 %v497
        %604 = vmatprep.subr.bf16.mxu0 %v502
        %605 = vmatpush1.bf16.msra.mxu0 %v501
        %606 = vmatprep.subr.bf16.mxu0 %v506
        %607 = vmatpush1.bf16.msra.mxu0 %v505
        %608 = vmatprep.subr.bf16.mxu0 %v510
        %609 = vmatpush1.bf16.msra.mxu0 %v509
        %610 = vmatprep.subr.bf16.mxu0 %v514
        %611 = vmatpush1.bf16.msra.mxu0 %v513
        %612 = vmatprep.subr.bf16.mxu0 %v518
        %613 = vmatpush1.bf16.msra.mxu0 %v517
        %614 = vmatprep.subr.bf16.mxu0 %v522
        %615 = vmatpush1.bf16.msra.mxu0 %v521
        %616 = vmatprep.subr.bf16.mxu0 %v526
        %617 = vmatpush1.bf16.msra.mxu0 %v525
        %618 = vmatprep.subr.bf16.mxu0 0
        %619 = vmatpush1.bf16.msra.mxu0 0
        %620 = vmatprep.subr.bf16.mxu0 0
        %621 = vmatpush1.bf16.msra.mxu0 0
        %622 = vmatprep.subr.bf16.mxu0 0
        %623 = vmatpush1.bf16.msra.mxu0 0
        %624 = vmatprep.subr.bf16.mxu0 0
        %625 = vmatpush1.bf16.msra.mxu0 0
        %626 = vmatprep.subr.bf16.mxu0 0
        %627 = vmatpush1.bf16.msra.mxu0 0
        %628 = vmatprep.subr.bf16.mxu0 0
        %629 = vmatpush1.bf16.msra.mxu0 0
        %630 = vmatprep.subr.bf16.mxu0 0
        %631 = vmatpush1.bf16.msra.mxu0 0
        %632 = vmatprep.subr.bf16.mxu0 0
        %633 = vmatpush1.bf16.msra.mxu0 0
        %634 = vmatprep.mubr.bf16.mxu0 0
        %635 = vmatmul.mubr.bf16.gmra.mrb[0].mxu0 %v366
        %v636 = vpop.f32.mrb[0].mxu0
        %v637 = vadd.f32 0.0, %v636
        %v638 = vpop.f32.mrb[0].mxu0
        %v639 = vadd.f32 0.0, %v638
        %v640 = vpop.f32.mrb[0].mxu0
        %v641 = vadd.f32 0.0, %v640
        %v642 = vpop.f32.mrb[0].mxu0
        %v643 = vadd.f32 0.0, %v642
        %644 = vdwg.mxu0
        %v645 = vadd.f32 %v356, %v594
        %v646 = vadd.f32 %v357, %v596
        %v647 = vadd.f32 %v358, %v637
        %v648 = vadd.f32 %v359, %v639
        %v649 = vadd.f32 %v360, %v598
        %v650 = vadd.f32 %v361, %v600
        %v651 = vadd.f32 %v362, %v641
        %v652 = vadd.f32 %v363, %v643
        %v653 = vmul.f32 %v645, 0.5
        %v654 = vmul.f32 %v649, 0.5
        %v655 = vtanh.pop %v653
        %v656 = vtanh.pop %v654
        %v657 = vadd.f32 %v655, 1.0
        %v658 = vadd.f32 %v656, 1.0
        %v659 = vmul.f32 %v657, 0.5
        %v660 = vmul.f32 %v658, 0.5
        %v661 = vmul.f32 %v646, 0.5
        %v662 = vmul.f32 %v650, 0.5
        %v663 = vtanh.pop %v661
        %v664 = vtanh.pop %v662
        %v665 = vadd.f32 %v663, 1.0
        %v666 = vadd.f32 %v664, 1.0
        %v667 = vmul.f32 %v665, 0.5
        %v668 = vmul.f32 %v666, 0.5
        %v669 = vtanh.pop %v647
        %v670 = vtanh.pop %v651
        %v671 = vmul.f32 %v648, 0.5
        %v672 = vmul.f32 %v652, 0.5
        %v673 = vtanh.pop %v671
        %v674 = vtanh.pop %v672
        %v675 = vadd.f32 %v673, 1.0
        %v676 = vadd.f32 %v674, 1.0
        %v677 = vmul.f32 %v675, 0.5
        %v678 = vmul.f32 %v676, 0.5
        %v679 = vld [vmem:[#allocation3] sm:$0xff]
        %v680 = vld [vmem:[#allocation3 + $0x8] sm:$0xff]
        %v681 = vmul.f32 %v667, %v679
        %v682 = vmul.f32 %v668, %v680
        %v683 = vmul.f32 %v659, %v669
        %v684 = vmul.f32 %v660, %v670
        %v685 = vadd.f32 %v681, %v683
        %v686 = vadd.f32 %v682, %v684
        %v687 = vtanh.pop %v685
        %v688 = vtanh.pop %v686
        %v689 = vmul.f32 %v677, %v687
        %v690 = vmul.f32 %v678, %v688
        %v691 = vstv %s351
        %vm692 = vcmp.ge.s32.totalorder %v691, %v347
        %vm693 = vcmp.ge.s32.totalorder %v691, %v348
        %vm694 = vcmp.lt.s32.totalorder %v691, %v349
        %vm695 = vcmp.lt.s32.totalorder %v691, %v350
        %vm696 = vmand %vm692, %vm694
        %vm697 = vmand %vm693, %vm695
        %v698 = vsel %vm696, 1, 0
        %v699 = vsel %vm697, 1, 0
        %700 = vset.pattern.permute.xlu0 0
        %701 = vperm.xlu0 %700, %v698
        %v702 = vpop.permute.xlu0 %701
        %703 = vset.pattern.permute.xlu0 0
        %704 = vperm.xlu0 %703, %v699
        %v705 = vpop.permute.xlu0 %704
        %vm706 = vcmp.eq.s32.totalorder %v702, 1
        %vm707 = vcmp.eq.s32.totalorder %v705, 1
        %v708 = vsel %vm706, %v689, %v364
        %v709 = vsel %vm707, %v690, %v365
        %v710 = vsel %vm706, %v685, %v679
        %v711 = vsel %vm707, %v686, %v680
        %712 = vst [vmem:[#allocation2] sm:$0xff] %v708
        %713 = vst [vmem:[#allocation2 + $0x8] sm:$0xff] %v709
        %714 = vst [vmem:[#allocation3] sm:$0xff] %v710
        %715 = vst [vmem:[#allocation3 + $0x8] sm:$0xff] %v711
        %v716 = vpack.c.bf16 %v709, %v708
        %717 = vst [vmem:[%s336] sm:$0xff] %v716
        %s718 = scalar_lea.vmem %s321, 32
        %v719 = vld [vmem:[%s718] sm:$0xff]
        %v720 = vld [vmem:[%s718 + $0x8] sm:$0xff]
        %v721 = vld [vmem:[%s718 + $0x10] sm:$0xff]
        %v722 = vld [vmem:[%s718 + $0x18] sm:$0xff]
        %v723 = vunpack.c.l.bf16 %v719
        %v724 = vunpack.c.h.bf16 %v719
        %v725 = vunpack.c.l.bf16 %v720
        %v726 = vunpack.c.h.bf16 %v720
        %v727 = vunpack.c.l.bf16 %v721
        %v728 = vunpack.c.h.bf16 %v721
        %v729 = vunpack.c.l.bf16 %v722
        %v730 = vunpack.c.h.bf16 %v722
        %v731 = vld [vmem:[#allocation2] sm:$0xff]
        %v732 = vld [vmem:[#allocation2 + $0x8] sm:$0xff]
        %v733 = vpack.c.bf16 %v732, %v731
        %v734 = vld [vmem:[%s327] sm:$0xff]
        %v735 = vld [vmem:[%s327 + $0x8] sm:$0xff]
        %v736 = vld [vmem:[%s327 + $0x10] sm:$0xff]
        %v737 = vld [vmem:[%s327 + $0x18] sm:$0xff]
        %v738 = vld [vmem:[%s327 + $0x20] sm:$0xff]
        %v739 = vld [vmem:[%s327 + $0x28] sm:$0xff]
        %v740 = vld [vmem:[%s327 + $0x30] sm:$0xff]
        %v741 = vld [vmem:[%s327 + $0x38] sm:$0xff]
        %v742 = vld [vmem:[%s327 + $0x40] sm:$0xff]
        %v743 = vld [vmem:[%s327 + $0x48] sm:$0xff]
        %v744 = vld [vmem:[%s327 + $0x50] sm:$0xff]
        %v745 = vld [vmem:[%s327 + $0x58] sm:$0xff]
        %v746 = vld [vmem:[%s327 + $0x60] sm:$0xff]
        %v747 = vld [vmem:[%s327 + $0x68] sm:$0xff]
        %v748 = vld [vmem:[%s327 + $0x70] sm:$0xff]
        %v749 = vld [vmem:[%s327 + $0x78] sm:$0xff]
        %v750 = vld [vmem:[%s327 + $0x80] sm:$0xff]
        %v751 = vld [vmem:[%s327 + $0x88] sm:$0xff]
        %v752 = vld [vmem:[%s327 + $0x90] sm:$0xff]
        %v753 = vld [vmem:[%s327 + $0x98] sm:$0xff]
        %v754 = vld [vmem:[%s327 + $0xa0] sm:$0xff]
        %v755 = vld [vmem:[%s327 + $0xa8] sm:$0xff]
        %v756 = vld [vmem:[%s327 + $0xb0] sm:$0xff]
        %v757 = vld [vmem:[%s327 + $0xb8] sm:$0xff]
        %v758 = vld [vmem:[%s327 + $0xc0] sm:$0xff]
        %v759 = vld [vmem:[%s327 + $0xc8] sm:$0xff]
        %v760 = vld [vmem:[%s327 + $0xd0] sm:$0xff]
        %v761 = vld [vmem:[%s327 + $0xd8] sm:$0xff]
        %v762 = vld [vmem:[%s327 + $0xe0] sm:$0xff]
        %v763 = vld [vmem:[%s327 + $0xe8] sm:$0xff]
        %v764 = vld [vmem:[%s327 + $0xf0] sm:$0xff]
        %v765 = vld [vmem:[%s327 + $0xf8] sm:$0xff]
        %v798 = vunpack.c.l.b16 %v734
        %v799 = vunpack.c.h.b16 %v734
        %v800 = vunpack.c.l.b16 %v735
        %v801 = vunpack.c.h.b16 %v735
        %v802 = vunpack.c.l.b16 %v736
        %v803 = vunpack.c.h.b16 %v736
        %v804 = vunpack.c.l.b16 %v737
        %v805 = vunpack.c.h.b16 %v737
        %v806 = vunpack.c.l.b16 %v738
        %v807 = vunpack.c.h.b16 %v738
        %v808 = vunpack.c.l.b16 %v739
        %v809 = vunpack.c.h.b16 %v739
        %v810 = vunpack.c.l.b16 %v740
        %v811 = vunpack.c.h.b16 %v740
        %v812 = vunpack.c.l.b16 %v741
        %v813 = vunpack.c.h.b16 %v741
        %v814 = vunpack.c.l.b16 %v742
        %v815 = vunpack.c.h.b16 %v742
        %v816 = vunpack.c.l.b16 %v743
        %v817 = vunpack.c.h.b16 %v743
        %v818 = vunpack.c.l.b16 %v744
        %v819 = vunpack.c.h.b16 %v744
        %v820 = vunpack.c.l.b16 %v745
        %v821 = vunpack.c.h.b16 %v745
        %v822 = vunpack.c.l.b16 %v746
        %v823 = vunpack.c.h.b16 %v746
        %v824 = vunpack.c.l.b16 %v747
        %v825 = vunpack.c.h.b16 %v747
        %v826 = vunpack.c.l.b16 %v748
        %v827 = vunpack.c.h.b16 %v748
        %v828 = vunpack.c.l.b16 %v749
        %v829 = vunpack.c.h.b16 %v749
        %v830 = vunpack.c.l.b16 %v750
        %v831 = vunpack.c.h.b16 %v750
        %v832 = vunpack.c.l.b16 %v751
        %v833 = vunpack.c.h.b16 %v751
        %v834 = vunpack.c.l.b16 %v752
        %v835 = vunpack.c.h.b16 %v752
        %v836 = vunpack.c.l.b16 %v753
        %v837 = vunpack.c.h.b16 %v753
        %v838 = vunpack.c.l.b16 %v754
        %v839 = vunpack.c.h.b16 %v754
        %v840 = vunpack.c.l.b16 %v755
        %v841 = vunpack.c.h.b16 %v755
        %v842 = vunpack.c.l.b16 %v756
        %v843 = vunpack.c.h.b16 %v756
        %v844 = vunpack.c.l.b16 %v757
        %v845 = vunpack.c.h.b16 %v757
        %v846 = vunpack.c.l.b16 %v758
        %v847 = vunpack.c.h.b16 %v758
        %v848 = vunpack.c.l.b16 %v759
        %v849 = vunpack.c.h.b16 %v759
        %v850 = vunpack.c.l.b16 %v760
        %v851 = vunpack.c.h.b16 %v760
        %v852 = vunpack.c.l.b16 %v761
        %v853 = vunpack.c.h.b16 %v761
        %v854 = vunpack.c.l.b16 %v762
        %v855 = vunpack.c.h.b16 %v762
        %v856 = vunpack.c.l.b16 %v763
        %v857 = vunpack.c.h.b16 %v763
        %v858 = vunpack.c.l.b16 %v764
        %v859 = vunpack.c.h.b16 %v764
        %v860 = vunpack.c.l.b16 %v765
        %v861 = vunpack.c.h.b16 %v765
        %v862 = vpack.c.b16 %v802, %v798
        %v863 = vpack.c.b16 %v803, %v799
        %v864 = vpack.c.b16 %v804, %v800
        %v865 = vpack.c.b16 %v805, %v801
        %v866 = vpack.c.b16 %v810, %v806
        %v867 = vpack.c.b16 %v811, %v807
        %v868 = vpack.c.b16 %v812, %v808
        %v869 = vpack.c.b16 %v813, %v809
        %v870 = vpack.c.b16 %v818, %v814
        %v871 = vpack.c.b16 %v819, %v815
        %v872 = vpack.c.b16 %v820, %v816
        %v873 = vpack.c.b16 %v821, %v817
        %v874 = vpack.c.b16 %v826, %v822
        %v875 = vpack.c.b16 %v827, %v823
        %v876 = vpack.c.b16 %v828, %v824
        %v877 = vpack.c.b16 %v829, %v825
        %v878 = vpack.c.b16 %v834, %v830
        %v879 = vpack.c.b16 %v835, %v831
        %v880 = vpack.c.b16 %v836, %v832
        %v881 = vpack.c.b16 %v837, %v833
        %v882 = vpack.c.b16 %v842, %v838
        %v883 = vpack.c.b16 %v843, %v839
        %v884 = vpack.c.b16 %v844, %v840
        %v885 = vpack.c.b16 %v845, %v841
        %v886 = vpack.c.b16 %v850, %v846
        %v887 = vpack.c.b16 %v851, %v847
        %v888 = vpack.c.b16 %v852, %v848
        %v889 = vpack.c.b16 %v853, %v849
        %v890 = vpack.c.b16 %v858, %v854
        %v891 = vpack.c.b16 %v859, %v855
        %v892 = vpack.c.b16 %v860, %v856
        %v893 = vpack.c.b16 %v861, %v857
        %926 = vmatprep.subr.bf16.mxu0 %v863
        %927 = vmatpush1.bf16.msra.mxu0 %v862
        %928 = vmatprep.subr.bf16.mxu0 %v867
        %929 = vmatpush1.bf16.msra.mxu0 %v866
        %930 = vmatprep.subr.bf16.mxu0 %v871
        %931 = vmatpush1.bf16.msra.mxu0 %v870
        %932 = vmatprep.subr.bf16.mxu0 %v875
        %933 = vmatpush1.bf16.msra.mxu0 %v874
        %934 = vmatprep.subr.bf16.mxu0 %v879
        %935 = vmatpush1.bf16.msra.mxu0 %v878
        %936 = vmatprep.subr.bf16.mxu0 %v883
        %937 = vmatpush1.bf16.msra.mxu0 %v882
        %938 = vmatprep.subr.bf16.mxu0 %v887
        %939 = vmatpush1.bf16.msra.mxu0 %v886
        %940 = vmatprep.subr.bf16.mxu0 %v891
        %941 = vmatpush1.bf16.msra.mxu0 %v890
        %942 = vmatprep.subr.bf16.mxu0 0
        %943 = vmatpush1.bf16.msra.mxu0 0
        %944 = vmatprep.subr.bf16.mxu0 0
        %945 = vmatpush1.bf16.msra.mxu0 0
        %946 = vmatprep.subr.bf16.mxu0 0
        %947 = vmatpush1.bf16.msra.mxu0 0
        %948 = vmatprep.subr.bf16.mxu0 0
        %949 = vmatpush1.bf16.msra.mxu0 0
        %950 = vmatprep.subr.bf16.mxu0 0
        %951 = vmatpush1.bf16.msra.mxu0 0
        %952 = vmatprep.subr.bf16.mxu0 0
        %953 = vmatpush1.bf16.msra.mxu0 0
        %954 = vmatprep.subr.bf16.mxu0 0
        %955 = vmatpush1.bf16.msra.mxu0 0
        %956 = vmatprep.subr.bf16.mxu0 0
        %957 = vmatpush1.bf16.msra.mxu0 0
        %958 = vmatprep.mubr.bf16.mxu0 0
        %959 = vmatmul.mubr.bf16.gmra.mrb[0].mxu0 %v733
        %v960 = vpop.f32.mrb[0].mxu0
        %v961 = vadd.f32 0.0, %v960
        %v962 = vpop.f32.mrb[0].mxu0
        %v963 = vadd.f32 0.0, %v962
        %v964 = vpop.f32.mrb[0].mxu0
        %v965 = vadd.f32 0.0, %v964
        %v966 = vpop.f32.mrb[0].mxu0
        %v967 = vadd.f32 0.0, %v966
        %968 = vdwg.mxu0
        %969 = vmatprep.subr.bf16.mxu0 %v865
        %970 = vmatpush1.bf16.msra.mxu0 %v864
        %971 = vmatprep.subr.bf16.mxu0 %v869
        %972 = vmatpush1.bf16.msra.mxu0 %v868
        %973 = vmatprep.subr.bf16.mxu0 %v873
        %974 = vmatpush1.bf16.msra.mxu0 %v872
        %975 = vmatprep.subr.bf16.mxu0 %v877
        %976 = vmatpush1.bf16.msra.mxu0 %v876
        %977 = vmatprep.subr.bf16.mxu0 %v881
        %978 = vmatpush1.bf16.msra.mxu0 %v880
        %979 = vmatprep.subr.bf16.mxu0 %v885
        %980 = vmatpush1.bf16.msra.mxu0 %v884
        %981 = vmatprep.subr.bf16.mxu0 %v889
        %982 = vmatpush1.bf16.msra.mxu0 %v888
        %983 = vmatprep.subr.bf16.mxu0 %v893
        %984 = vmatpush1.bf16.msra.mxu0 %v892
        %985 = vmatprep.subr.bf16.mxu0 0
        %986 = vmatpush1.bf16.msra.mxu0 0
        %987 = vmatprep.subr.bf16.mxu0 0
        %988 = vmatpush1.bf16.msra.mxu0 0
        %989 = vmatprep.subr.bf16.mxu0 0
        %990 = vmatpush1.bf16.msra.mxu0 0
        %991 = vmatprep.subr.bf16.mxu0 0
        %992 = vmatpush1.bf16.msra.mxu0 0
        %993 = vmatprep.subr.bf16.mxu0 0
        %994 = vmatpush1.bf16.msra.mxu0 0
        %995 = vmatprep.subr.bf16.mxu0 0
        %996 = vmatpush1.bf16.msra.mxu0 0
        %997 = vmatprep.subr.bf16.mxu0 0
        %998 = vmatpush1.bf16.msra.mxu0 0
        %999 = vmatprep.subr.bf16.mxu0 0
        %1000 = vmatpush1.bf16.msra.mxu0 0
        %1001 = vmatprep.mubr.bf16.mxu0 0
        %1002 = vmatmul.mubr.bf16.gmra.mrb[0].mxu0 %v733
        %v1003 = vpop.f32.mrb[0].mxu0
        %v1004 = vadd.f32 0.0, %v1003
        %v1005 = vpop.f32.mrb[0].mxu0
        %v1006 = vadd.f32 0.0, %v1005
        %v1007 = vpop.f32.mrb[0].mxu0
        %v1008 = vadd.f32 0.0, %v1007
        %v1009 = vpop.f32.mrb[0].mxu0
        %v1010 = vadd.f32 0.0, %v1009
        %1011 = vdwg.mxu0
        %v1012 = vadd.f32 %v723, %v961
        %v1013 = vadd.f32 %v724, %v963
        %v1014 = vadd.f32 %v725, %v1004
        %v1015 = vadd.f32 %v726, %v1006
        %v1016 = vadd.f32 %v727, %v965
        %v1017 = vadd.f32 %v728, %v967
        %v1018 = vadd.f32 %v729, %v1008
        %v1019 = vadd.f32 %v730, %v1010
        %v1020 = vmul.f32 %v1012, 0.5
        %v1021 = vmul.f32 %v1016, 0.5
        %v1022 = vtanh.pop %v1020
        %v1023 = vtanh.pop %v1021
        %v1024 = vadd.f32 %v1022, 1.0
        %v1025 = vadd.f32 %v1023, 1.0
        %v1026 = vmul.f32 %v1024, 0.5
        %v1027 = vmul.f32 %v1025, 0.5
        %v1028 = vmul.f32 %v1013, 0.5
        %v1029 = vmul.f32 %v1017, 0.5
        %v1030 = vtanh.pop %v1028
        %v1031 = vtanh.pop %v1029
        %v1032 = vadd.f32 %v1030, 1.0
        %v1033 = vadd.f32 %v1031, 1.0
        %v1034 = vmul.f32 %v1032, 0.5
        %v1035 = vmul.f32 %v1033, 0.5
        %v1036 = vtanh.pop %v1014
        %v1037 = vtanh.pop %v1018
        %v1038 = vmul.f32 %v1015, 0.5
        %v1039 = vmul.f32 %v1019, 0.5
        %v1040 = vtanh.pop %v1038
        %v1041 = vtanh.pop %v1039
        %v1042 = vadd.f32 %v1040, 1.0
        %v1043 = vadd.f32 %v1041, 1.0
        %v1044 = vmul.f32 %v1042, 0.5
        %v1045 = vmul.f32 %v1043, 0.5
        %v1046 = vld [vmem:[#allocation3] sm:$0xff]
        %v1047 = vld [vmem:[#allocation3 + $0x8] sm:$0xff]
        %v1048 = vmul.f32 %v1034, %v1046
        %v1049 = vmul.f32 %v1035, %v1047
        %v1050 = vmul.f32 %v1026, %v1036
        %v1051 = vmul.f32 %v1027, %v1037
        %v1052 = vadd.f32 %v1048, %v1050
        %v1053 = vadd.f32 %v1049, %v1051
        %v1054 = vtanh.pop %v1052
        %v1055 = vtanh.pop %v1053
        %v1056 = vmul.f32 %v1044, %v1054
        %v1057 = vmul.f32 %v1045, %v1055
        %s1058 = sadd.s32 %s351, 1
        %v1059 = vstv %s1058
        %vm1060 = vcmp.ge.s32.totalorder %v1059, %v347
        %vm1061 = vcmp.ge.s32.totalorder %v1059, %v348
        %vm1062 = vcmp.lt.s32.totalorder %v1059, %v349
        %vm1063 = vcmp.lt.s32.totalorder %v1059, %v350
        %vm1064 = vmand %vm1060, %vm1062
        %vm1065 = vmand %vm1061, %vm1063
        %v1066 = vsel %vm1064, 1, 0
        %v1067 = vsel %vm1065, 1, 0
        %1068 = vset.pattern.permute.xlu0 0
        %1069 = vperm.xlu0 %1068, %v1066
        %v1070 = vpop.permute.xlu0 %1069
        %1071 = vset.pattern.permute.xlu0 0
        %1072 = vperm.xlu0 %1071, %v1067
        %v1073 = vpop.permute.xlu0 %1072
        %vm1074 = vcmp.eq.s32.totalorder %v1070, 1
        %vm1075 = vcmp.eq.s32.totalorder %v1073, 1
        %v1076 = vsel %vm1074, %v1056, %v731
        %v1077 = vsel %vm1075, %v1057, %v732
        %v1078 = vsel %vm1074, %v1052, %v1046
        %v1079 = vsel %vm1075, %v1053, %v1047
        %1080 = vst [vmem:[#allocation2] sm:$0xff] %v1076
        %1081 = vst [vmem:[#allocation2 + $0x8] sm:$0xff] %v1077
        %1082 = vst [vmem:[#allocation3] sm:$0xff] %v1078
        %1083 = vst [vmem:[#allocation3 + $0x8] sm:$0xff] %v1079
        %v1084 = vpack.c.bf16 %v1077, %v1076
        %s1085 = scalar_lea.vmem %s336, 8
        %1086 = vst [vmem:[%s1085] sm:$0xff] %v1084
        %s1087 = scalar_lea.vmem %s321, 64
        %v1088 = vld [vmem:[%s1087] sm:$0xff]
        %v1089 = vld [vmem:[%s1087 + $0x8] sm:$0xff]
        %v1090 = vld [vmem:[%s1087 + $0x10] sm:$0xff]
        %v1091 = vld [vmem:[%s1087 + $0x18] sm:$0xff]
        %v1092 = vunpack.c.l.bf16 %v1088
        %v1093 = vunpack.c.h.bf16 %v1088
        %v1094 = vunpack.c.l.bf16 %v1089
        %v1095 = vunpack.c.h.bf16 %v1089
        %v1096 = vunpack.c.l.bf16 %v1090
        %v1097 = vunpack.c.h.bf16 %v1090
        %v1098 = vunpack.c.l.bf16 %v1091
        %v1099 = vunpack.c.h.bf16 %v1091
        %v1100 = vld [vmem:[#allocation2] sm:$0xff]
        %v1101 = vld [vmem:[#allocation2 + $0x8] sm:$0xff]
        %v1102 = vpack.c.bf16 %v1101, %v1100
        %v1103 = vld [vmem:[%s327] sm:$0xff]
        %v1104 = vld [vmem:[%s327 + $0x8] sm:$0xff]
        %v1105 = vld [vmem:[%s327 + $0x10] sm:$0xff]
        %v1106 = vld [vmem:[%s327 + $0x18] sm:$0xff]
        %v1107 = vld [vmem:[%s327 + $0x20] sm:$0xff]
        %v1108 = vld [vmem:[%s327 + $0x28] sm:$0xff]
        %v1109 = vld [vmem:[%s327 + $0x30] sm:$0xff]
        %v1110 = vld [vmem:[%s327 + $0x38] sm:$0xff]
        %v1111 = vld [vmem:[%s327 + $0x40] sm:$0xff]
        %v1112 = vld [vmem:[%s327 + $0x48] sm:$0xff]
        %v1113 = vld [vmem:[%s327 + $0x50] sm:$0xff]
        %v1114 = vld [vmem:[%s327 + $0x58] sm:$0xff]
        %v1115 = vld [vmem:[%s327 + $0x60] sm:$0xff]
        %v1116 = vld [vmem:[%s327 + $0x68] sm:$0xff]
        %v1117 = vld [vmem:[%s327 + $0x70] sm:$0xff]
        %v1118 = vld [vmem:[%s327 + $0x78] sm:$0xff]
        %v1119 = vld [vmem:[%s327 + $0x80] sm:$0xff]
        %v1120 = vld [vmem:[%s327 + $0x88] sm:$0xff]
        %v1121 = vld [vmem:[%s327 + $0x90] sm:$0xff]
        %v1122 = vld [vmem:[%s327 + $0x98] sm:$0xff]
        %v1123 = vld [vmem:[%s327 + $0xa0] sm:$0xff]
        %v1124 = vld [vmem:[%s327 + $0xa8] sm:$0xff]
        %v1125 = vld [vmem:[%s327 + $0xb0] sm:$0xff]
        %v1126 = vld [vmem:[%s327 + $0xb8] sm:$0xff]
        %v1127 = vld [vmem:[%s327 + $0xc0] sm:$0xff]
        %v1128 = vld [vmem:[%s327 + $0xc8] sm:$0xff]
        %v1129 = vld [vmem:[%s327 + $0xd0] sm:$0xff]
        %v1130 = vld [vmem:[%s327 + $0xd8] sm:$0xff]
        %v1131 = vld [vmem:[%s327 + $0xe0] sm:$0xff]
        %v1132 = vld [vmem:[%s327 + $0xe8] sm:$0xff]
        %v1133 = vld [vmem:[%s327 + $0xf0] sm:$0xff]
        %v1134 = vld [vmem:[%s327 + $0xf8] sm:$0xff]
        %v1167 = vunpack.c.l.b16 %v1103
        %v1168 = vunpack.c.h.b16 %v1103
        %v1169 = vunpack.c.l.b16 %v1104
        %v1170 = vunpack.c.h.b16 %v1104
        %v1171 = vunpack.c.l.b16 %v1105
        %v1172 = vunpack.c.h.b16 %v1105
        %v1173 = vunpack.c.l.b16 %v1106
        %v1174 = vunpack.c.h.b16 %v1106
        %v1175 = vunpack.c.l.b16 %v1107
        %v1176 = vunpack.c.h.b16 %v1107
        %v1177 = vunpack.c.l.b16 %v1108
        %v1178 = vunpack.c.h.b16 %v1108
        %v1179 = vunpack.c.l.b16 %v1109
        %v1180 = vunpack.c.h.b16 %v1109
        %v1181 = vunpack.c.l.b16 %v1110
        %v1182 = vunpack.c.h.b16 %v1110
        %v1183 = vunpack.c.l.b16 %v1111
        %v1184 = vunpack.c.h.b16 %v1111
        %v1185 = vunpack.c.l.b16 %v1112
        %v1186 = vunpack.c.h.b16 %v1112
        %v1187 = vunpack.c.l.b16 %v1113
        %v1188 = vunpack.c.h.b16 %v1113
        %v1189 = vunpack.c.l.b16 %v1114
        %v1190 = vunpack.c.h.b16 %v1114
        %v1191 = vunpack.c.l.b16 %v1115
        %v1192 = vunpack.c.h.b16 %v1115
        %v1193 = vunpack.c.l.b16 %v1116
        %v1194 = vunpack.c.h.b16 %v1116
        %v1195 = vunpack.c.l.b16 %v1117
        %v1196 = vunpack.c.h.b16 %v1117
        %v1197 = vunpack.c.l.b16 %v1118
        %v1198 = vunpack.c.h.b16 %v1118
        %v1199 = vunpack.c.l.b16 %v1119
        %v1200 = vunpack.c.h.b16 %v1119
        %v1201 = vunpack.c.l.b16 %v1120
        %v1202 = vunpack.c.h.b16 %v1120
        %v1203 = vunpack.c.l.b16 %v1121
        %v1204 = vunpack.c.h.b16 %v1121
        %v1205 = vunpack.c.l.b16 %v1122
        %v1206 = vunpack.c.h.b16 %v1122
        %v1207 = vunpack.c.l.b16 %v1123
        %v1208 = vunpack.c.h.b16 %v1123
        %v1209 = vunpack.c.l.b16 %v1124
        %v1210 = vunpack.c.h.b16 %v1124
        %v1211 = vunpack.c.l.b16 %v1125
        %v1212 = vunpack.c.h.b16 %v1125
        %v1213 = vunpack.c.l.b16 %v1126
        %v1214 = vunpack.c.h.b16 %v1126
        %v1215 = vunpack.c.l.b16 %v1127
        %v1216 = vunpack.c.h.b16 %v1127
        %v1217 = vunpack.c.l.b16 %v1128
        %v1218 = vunpack.c.h.b16 %v1128
        %v1219 = vunpack.c.l.b16 %v1129
        %v1220 = vunpack.c.h.b16 %v1129
        %v1221 = vunpack.c.l.b16 %v1130
        %v1222 = vunpack.c.h.b16 %v1130
        %v1223 = vunpack.c.l.b16 %v1131
        %v1224 = vunpack.c.h.b16 %v1131
        %v1225 = vunpack.c.l.b16 %v1132
        %v1226 = vunpack.c.h.b16 %v1132
        %v1227 = vunpack.c.l.b16 %v1133
        %v1228 = vunpack.c.h.b16 %v1133
        %v1229 = vunpack.c.l.b16 %v1134
        %v1230 = vunpack.c.h.b16 %v1134
        %v1231 = vpack.c.b16 %v1171, %v1167
        %v1232 = vpack.c.b16 %v1172, %v1168
        %v1233 = vpack.c.b16 %v1173, %v1169
        %v1234 = vpack.c.b16 %v1174, %v1170
        %v1235 = vpack.c.b16 %v1179, %v1175
        %v1236 = vpack.c.b16 %v1180, %v1176
        %v1237 = vpack.c.b16 %v1181, %v1177
        %v1238 = vpack.c.b16 %v1182, %v1178
        %v1239 = vpack.c.b16 %v1187, %v1183
        %v1240 = vpack.c.b16 %v1188, %v1184
        %v1241 = vpack.c.b16 %v1189, %v1185
        %v1242 = vpack.c.b16 %v1190, %v1186
        %v1243 = vpack.c.b16 %v1195, %v1191
        %v1244 = vpack.c.b16 %v1196, %v1192
        %v1245 = vpack.c.b16 %v1197, %v1193
        %v1246 = vpack.c.b16 %v1198, %v1194
        %v1247 = vpack.c.b16 %v1203, %v1199
        %v1248 = vpack.c.b16 %v1204, %v1200
        %v1249 = vpack.c.b16 %v1205, %v1201
        %v1250 = vpack.c.b16 %v1206, %v1202
        %v1251 = vpack.c.b16 %v1211, %v1207
        %v1252 = vpack.c.b16 %v1212, %v1208
        %v1253 = vpack.c.b16 %v1213, %v1209
        %v1254 = vpack.c.b16 %v1214, %v1210
        %v1255 = vpack.c.b16 %v1219, %v1215
        %v1256 = vpack.c.b16 %v1220, %v1216
        %v1257 = vpack.c.b16 %v1221, %v1217
        %v1258 = vpack.c.b16 %v1222, %v1218
        %v1259 = vpack.c.b16 %v1227, %v1223
        %v1260 = vpack.c.b16 %v1228, %v1224
        %v1261 = vpack.c.b16 %v1229, %v1225
        %v1262 = vpack.c.b16 %v1230, %v1226
        %1295 = vmatprep.subr.bf16.mxu0 %v1232
        %1296 = vmatpush1.bf16.msra.mxu0 %v1231
        %1297 = vmatprep.subr.bf16.mxu0 %v1236
        %1298 = vmatpush1.bf16.msra.mxu0 %v1235
        %1299 = vmatprep.subr.bf16.mxu0 %v1240
        %1300 = vmatpush1.bf16.msra.mxu0 %v1239
        %1301 = vmatprep.subr.bf16.mxu0 %v1244
        %1302 = vmatpush1.bf16.msra.mxu0 %v1243
        %1303 = vmatprep.subr.bf16.mxu0 %v1248
        %1304 = vmatpush1.bf16.msra.mxu0 %v1247
        %1305 = vmatprep.subr.bf16.mxu0 %v1252
        %1306 = vmatpush1.bf16.msra.mxu0 %v1251
        %1307 = vmatprep.subr.bf16.mxu0 %v1256
        %1308 = vmatpush1.bf16.msra.mxu0 %v1255
        %1309 = vmatprep.subr.bf16.mxu0 %v1260
        %1310 = vmatpush1.bf16.msra.mxu0 %v1259
        %1311 = vmatprep.subr.bf16.mxu0 0
        %1312 = vmatpush1.bf16.msra.mxu0 0
        %1313 = vmatprep.subr.bf16.mxu0 0
        %1314 = vmatpush1.bf16.msra.mxu0 0
        %1315 = vmatprep.subr.bf16.mxu0 0
        %1316 = vmatpush1.bf16.msra.mxu0 0
        %1317 = vmatprep.subr.bf16.mxu0 0
        %1318 = vmatpush1.bf16.msra.mxu0 0
        %1319 = vmatprep.subr.bf16.mxu0 0
        %1320 = vmatpush1.bf16.msra.mxu0 0
        %1321 = vmatprep.subr.bf16.mxu0 0
        %1322 = vmatpush1.bf16.msra.mxu0 0
        %1323 = vmatprep.subr.bf16.mxu0 0
        %1324 = vmatpush1.bf16.msra.mxu0 0
        %1325 = vmatprep.subr.bf16.mxu0 0
        %1326 = vmatpush1.bf16.msra.mxu0 0
        %1327 = vmatprep.mubr.bf16.mxu0 0
        %1328 = vmatmul.mubr.bf16.gmra.mrb[0].mxu0 %v1102
        %v1329 = vpop.f32.mrb[0].mxu0
        %v1330 = vadd.f32 0.0, %v1329
        %v1331 = vpop.f32.mrb[0].mxu0
        %v1332 = vadd.f32 0.0, %v1331
        %v1333 = vpop.f32.mrb[0].mxu0
        %v1334 = vadd.f32 0.0, %v1333
        %v1335 = vpop.f32.mrb[0].mxu0
        %v1336 = vadd.f32 0.0, %v1335
        %1337 = vdwg.mxu0
        %1338 = vmatprep.subr.bf16.mxu0 %v1234
        %1339 = vmatpush1.bf16.msra.mxu0 %v1233
        %1340 = vmatprep.subr.bf16.mxu0 %v1238
        %1341 = vmatpush1.bf16.msra.mxu0 %v1237
        %1342 = vmatprep.subr.bf16.mxu0 %v1242
        %1343 = vmatpush1.bf16.msra.mxu0 %v1241
        %1344 = vmatprep.subr.bf16.mxu0 %v1246
        %1345 = vmatpush1.bf16.msra.mxu0 %v1245
        %1346 = vmatprep.subr.bf16.mxu0 %v1250
        %1347 = vmatpush1.bf16.msra.mxu0 %v1249
        %1348 = vmatprep.subr.bf16.mxu0 %v1254
        %1349 = vmatpush1.bf16.msra.mxu0 %v1253
        %1350 = vmatprep.subr.bf16.mxu0 %v1258
        %1351 = vmatpush1.bf16.msra.mxu0 %v1257
        %1352 = vmatprep.subr.bf16.mxu0 %v1262
        %1353 = vmatpush1.bf16.msra.mxu0 %v1261
        %1354 = vmatprep.subr.bf16.mxu0 0
        %1355 = vmatpush1.bf16.msra.mxu0 0
        %1356 = vmatprep.subr.bf16.mxu0 0
        %1357 = vmatpush1.bf16.msra.mxu0 0
        %1358 = vmatprep.subr.bf16.mxu0 0
        %1359 = vmatpush1.bf16.msra.mxu0 0
        %1360 = vmatprep.subr.bf16.mxu0 0
        %1361 = vmatpush1.bf16.msra.mxu0 0
        %1362 = vmatprep.subr.bf16.mxu0 0
        %1363 = vmatpush1.bf16.msra.mxu0 0
        %1364 = vmatprep.subr.bf16.mxu0 0
        %1365 = vmatpush1.bf16.msra.mxu0 0
        %1366 = vmatprep.subr.bf16.mxu0 0
        %1367 = vmatpush1.bf16.msra.mxu0 0
        %1368 = vmatprep.subr.bf16.mxu0 0
        %1369 = vmatpush1.bf16.msra.mxu0 0
        %1370 = vmatprep.mubr.bf16.mxu0 0
        %1371 = vmatmul.mubr.bf16.gmra.mrb[0].mxu0 %v1102
        %v1372 = vpop.f32.mrb[0].mxu0
        %v1373 = vadd.f32 0.0, %v1372
        %v1374 = vpop.f32.mrb[0].mxu0
        %v1375 = vadd.f32 0.0, %v1374
        %v1376 = vpop.f32.mrb[0].mxu0
        %v1377 = vadd.f32 0.0, %v1376
        %v1378 = vpop.f32.mrb[0].mxu0
        %v1379 = vadd.f32 0.0, %v1378
        %1380 = vdwg.mxu0
        %v1381 = vadd.f32 %v1092, %v1330
        %v1382 = vadd.f32 %v1093, %v1332
        %v1383 = vadd.f32 %v1094, %v1373
        %v1384 = vadd.f32 %v1095, %v1375
        %v1385 = vadd.f32 %v1096, %v1334
        %v1386 = vadd.f32 %v1097, %v1336
        %v1387 = vadd.f32 %v1098, %v1377
        %v1388 = vadd.f32 %v1099, %v1379
        %v1389 = vmul.f32 %v1381, 0.5
        %v1390 = vmul.f32 %v1385, 0.5
        %v1391 = vtanh.pop %v1389
        %v1392 = vtanh.pop %v1390
        %v1393 = vadd.f32 %v1391, 1.0
        %v1394 = vadd.f32 %v1392, 1.0
        %v1395 = vmul.f32 %v1393, 0.5
        %v1396 = vmul.f32 %v1394, 0.5
        %v1397 = vmul.f32 %v1382, 0.5
        %v1398 = vmul.f32 %v1386, 0.5
        %v1399 = vtanh.pop %v1397
        %v1400 = vtanh.pop %v1398
        %v1401 = vadd.f32 %v1399, 1.0
        %v1402 = vadd.f32 %v1400, 1.0
        %v1403 = vmul.f32 %v1401, 0.5
        %v1404 = vmul.f32 %v1402, 0.5
        %v1405 = vtanh.pop %v1383
        %v1406 = vtanh.pop %v1387
        %v1407 = vmul.f32 %v1384, 0.5
        %v1408 = vmul.f32 %v1388, 0.5
        %v1409 = vtanh.pop %v1407
        %v1410 = vtanh.pop %v1408
        %v1411 = vadd.f32 %v1409, 1.0
        %v1412 = vadd.f32 %v1410, 1.0
        %v1413 = vmul.f32 %v1411, 0.5
        %v1414 = vmul.f32 %v1412, 0.5
        %v1415 = vld [vmem:[#allocation3] sm:$0xff]
        %v1416 = vld [vmem:[#allocation3 + $0x8] sm:$0xff]
        %v1417 = vmul.f32 %v1403, %v1415
        %v1418 = vmul.f32 %v1404, %v1416
        %v1419 = vmul.f32 %v1395, %v1405
        %v1420 = vmul.f32 %v1396, %v1406
        %v1421 = vadd.f32 %v1417, %v1419
        %v1422 = vadd.f32 %v1418, %v1420
        %v1423 = vtanh.pop %v1421
        %v1424 = vtanh.pop %v1422
        %v1425 = vmul.f32 %v1413, %v1423
        %v1426 = vmul.f32 %v1414, %v1424
        %s1427 = sadd.s32 %s351, 2
        %v1428 = vstv %s1427
        %vm1429 = vcmp.ge.s32.totalorder %v1428, %v347
        %vm1430 = vcmp.ge.s32.totalorder %v1428, %v348
        %vm1431 = vcmp.lt.s32.totalorder %v1428, %v349
        %vm1432 = vcmp.lt.s32.totalorder %v1428, %v350
        %vm1433 = vmand %vm1429, %vm1431
        %vm1434 = vmand %vm1430, %vm1432
        %v1435 = vsel %vm1433, 1, 0
        %v1436 = vsel %vm1434, 1, 0
        %1437 = vset.pattern.permute.xlu0 0
        %1438 = vperm.xlu0 %1437, %v1435
        %v1439 = vpop.permute.xlu0 %1438
        %1440 = vset.pattern.permute.xlu0 0
        %1441 = vperm.xlu0 %1440, %v1436
        %v1442 = vpop.permute.xlu0 %1441
        %vm1443 = vcmp.eq.s32.totalorder %v1439, 1
        %vm1444 = vcmp.eq.s32.totalorder %v1442, 1
        %v1445 = vsel %vm1443, %v1425, %v1100
        %v1446 = vsel %vm1444, %v1426, %v1101
        %v1447 = vsel %vm1443, %v1421, %v1415
        %v1448 = vsel %vm1444, %v1422, %v1416
        %1449 = vst [vmem:[#allocation2] sm:$0xff] %v1445
        %1450 = vst [vmem:[#allocation2 + $0x8] sm:$0xff] %v1446
        %1451 = vst [vmem:[#allocation3] sm:$0xff] %v1447
        %1452 = vst [vmem:[#allocation3 + $0x8] sm:$0xff] %v1448
        %v1453 = vpack.c.bf16 %v1446, %v1445
        %s1454 = scalar_lea.vmem %s336, 16
        %1455 = vst [vmem:[%s1454] sm:$0xff] %v1453
        %s1456 = scalar_lea.vmem %s321, 96
        %v1457 = vld [vmem:[%s1456] sm:$0xff]
        %v1458 = vld [vmem:[%s1456 + $0x8] sm:$0xff]
        %v1459 = vld [vmem:[%s1456 + $0x10] sm:$0xff]
        %v1460 = vld [vmem:[%s1456 + $0x18] sm:$0xff]
        %v1461 = vunpack.c.l.bf16 %v1457
        %v1462 = vunpack.c.h.bf16 %v1457
        %v1463 = vunpack.c.l.bf16 %v1458
        %v1464 = vunpack.c.h.bf16 %v1458
        %v1465 = vunpack.c.l.bf16 %v1459
        %v1466 = vunpack.c.h.bf16 %v1459
        %v1467 = vunpack.c.l.bf16 %v1460
        %v1468 = vunpack.c.h.bf16 %v1460
        %v1469 = vld [vmem:[#allocation2] sm:$0xff]
        %v1470 = vld [vmem:[#allocation2 + $0x8] sm:$0xff]
        %v1471 = vpack.c.bf16 %v1470, %v1469
        %v1472 = vld [vmem:[%s327] sm:$0xff]
        %v1473 = vld [vmem:[%s327 + $0x8] sm:$0xff]
        %v1474 = vld [vmem:[%s327 + $0x10] sm:$0xff]
        %v1475 = vld [vmem:[%s327 + $0x18] sm:$0xff]
        %v1476 = vld [vmem:[%s327 + $0x20] sm:$0xff]
        %v1477 = vld [vmem:[%s327 + $0x28] sm:$0xff]
        %v1478 = vld [vmem:[%s327 + $0x30] sm:$0xff]
        %v1479 = vld [vmem:[%s327 + $0x38] sm:$0xff]
        %v1480 = vld [vmem:[%s327 + $0x40] sm:$0xff]
        %v1481 = vld [vmem:[%s327 + $0x48] sm:$0xff]
        %v1482 = vld [vmem:[%s327 + $0x50] sm:$0xff]
        %v1483 = vld [vmem:[%s327 + $0x58] sm:$0xff]
        %v1484 = vld [vmem:[%s327 + $0x60] sm:$0xff]
        %v1485 = vld [vmem:[%s327 + $0x68] sm:$0xff]
        %v1486 = vld [vmem:[%s327 + $0x70] sm:$0xff]
        %v1487 = vld [vmem:[%s327 + $0x78] sm:$0xff]
        %v1488 = vld [vmem:[%s327 + $0x80] sm:$0xff]
        %v1489 = vld [vmem:[%s327 + $0x88] sm:$0xff]
        %v1490 = vld [vmem:[%s327 + $0x90] sm:$0xff]
        %v1491 = vld [vmem:[%s327 + $0x98] sm:$0xff]
        %v1492 = vld [vmem:[%s327 + $0xa0] sm:$0xff]
        %v1493 = vld [vmem:[%s327 + $0xa8] sm:$0xff]
        %v1494 = vld [vmem:[%s327 + $0xb0] sm:$0xff]
        %v1495 = vld [vmem:[%s327 + $0xb8] sm:$0xff]
        %v1496 = vld [vmem:[%s327 + $0xc0] sm:$0xff]
        %v1497 = vld [vmem:[%s327 + $0xc8] sm:$0xff]
        %v1498 = vld [vmem:[%s327 + $0xd0] sm:$0xff]
        %v1499 = vld [vmem:[%s327 + $0xd8] sm:$0xff]
        %v1500 = vld [vmem:[%s327 + $0xe0] sm:$0xff]
        %v1501 = vld [vmem:[%s327 + $0xe8] sm:$0xff]
        %v1502 = vld [vmem:[%s327 + $0xf0] sm:$0xff]
        %v1503 = vld [vmem:[%s327 + $0xf8] sm:$0xff]
        %v1536 = vunpack.c.l.b16 %v1472
        %v1537 = vunpack.c.h.b16 %v1472
        %v1538 = vunpack.c.l.b16 %v1473
        %v1539 = vunpack.c.h.b16 %v1473
        %v1540 = vunpack.c.l.b16 %v1474
        %v1541 = vunpack.c.h.b16 %v1474
        %v1542 = vunpack.c.l.b16 %v1475
        %v1543 = vunpack.c.h.b16 %v1475
        %v1544 = vunpack.c.l.b16 %v1476
        %v1545 = vunpack.c.h.b16 %v1476
        %v1546 = vunpack.c.l.b16 %v1477
        %v1547 = vunpack.c.h.b16 %v1477
        %v1548 = vunpack.c.l.b16 %v1478
        %v1549 = vunpack.c.h.b16 %v1478
        %v1550 = vunpack.c.l.b16 %v1479
        %v1551 = vunpack.c.h.b16 %v1479
        %v1552 = vunpack.c.l.b16 %v1480
        %v1553 = vunpack.c.h.b16 %v1480
        %v1554 = vunpack.c.l.b16 %v1481
        %v1555 = vunpack.c.h.b16 %v1481
        %v1556 = vunpack.c.l.b16 %v1482
        %v1557 = vunpack.c.h.b16 %v1482
        %v1558 = vunpack.c.l.b16 %v1483
        %v1559 = vunpack.c.h.b16 %v1483
        %v1560 = vunpack.c.l.b16 %v1484
        %v1561 = vunpack.c.h.b16 %v1484
        %v1562 = vunpack.c.l.b16 %v1485
        %v1563 = vunpack.c.h.b16 %v1485
        %v1564 = vunpack.c.l.b16 %v1486
        %v1565 = vunpack.c.h.b16 %v1486
        %v1566 = vunpack.c.l.b16 %v1487
        %v1567 = vunpack.c.h.b16 %v1487
        %v1568 = vunpack.c.l.b16 %v1488
        %v1569 = vunpack.c.h.b16 %v1488
        %v1570 = vunpack.c.l.b16 %v1489
        %v1571 = vunpack.c.h.b16 %v1489
        %v1572 = vunpack.c.l.b16 %v1490
        %v1573 = vunpack.c.h.b16 %v1490
        %v1574 = vunpack.c.l.b16 %v1491
        %v1575 = vunpack.c.h.b16 %v1491
        %v1576 = vunpack.c.l.b16 %v1492
        %v1577 = vunpack.c.h.b16 %v1492
        %v1578 = vunpack.c.l.b16 %v1493
        %v1579 = vunpack.c.h.b16 %v1493
        %v1580 = vunpack.c.l.b16 %v1494
        %v1581 = vunpack.c.h.b16 %v1494
        %v1582 = vunpack.c.l.b16 %v1495
        %v1583 = vunpack.c.h.b16 %v1495
        %v1584 = vunpack.c.l.b16 %v1496
        %v1585 = vunpack.c.h.b16 %v1496
        %v1586 = vunpack.c.l.b16 %v1497
        %v1587 = vunpack.c.h.b16 %v1497
        %v1588 = vunpack.c.l.b16 %v1498
        %v1589 = vunpack.c.h.b16 %v1498
        %v1590 = vunpack.c.l.b16 %v1499
        %v1591 = vunpack.c.h.b16 %v1499
        %v1592 = vunpack.c.l.b16 %v1500
        %v1593 = vunpack.c.h.b16 %v1500
        %v1594 = vunpack.c.l.b16 %v1501
        %v1595 = vunpack.c.h.b16 %v1501
        %v1596 = vunpack.c.l.b16 %v1502
        %v1597 = vunpack.c.h.b16 %v1502
        %v1598 = vunpack.c.l.b16 %v1503
        %v1599 = vunpack.c.h.b16 %v1503
        %v1600 = vpack.c.b16 %v1540, %v1536
        %v1601 = vpack.c.b16 %v1541, %v1537
        %v1602 = vpack.c.b16 %v1542, %v1538
        %v1603 = vpack.c.b16 %v1543, %v1539
        %v1604 = vpack.c.b16 %v1548, %v1544
        %v1605 = vpack.c.b16 %v1549, %v1545
        %v1606 = vpack.c.b16 %v1550, %v1546
        %v1607 = vpack.c.b16 %v1551, %v1547
        %v1608 = vpack.c.b16 %v1556, %v1552
        %v1609 = vpack.c.b16 %v1557, %v1553
        %v1610 = vpack.c.b16 %v1558, %v1554
        %v1611 = vpack.c.b16 %v1559, %v1555
        %v1612 = vpack.c.b16 %v1564, %v1560
        %v1613 = vpack.c.b16 %v1565, %v1561
        %v1614 = vpack.c.b16 %v1566, %v1562
        %v1615 = vpack.c.b16 %v1567, %v1563
        %v1616 = vpack.c.b16 %v1572, %v1568
        %v1617 = vpack.c.b16 %v1573, %v1569
        %v1618 = vpack.c.b16 %v1574, %v1570
        %v1619 = vpack.c.b16 %v1575, %v1571
        %v1620 = vpack.c.b16 %v1580, %v1576
        %v1621 = vpack.c.b16 %v1581, %v1577
        %v1622 = vpack.c.b16 %v1582, %v1578
        %v1623 = vpack.c.b16 %v1583, %v1579
        %v1624 = vpack.c.b16 %v1588, %v1584
        %v1625 = vpack.c.b16 %v1589, %v1585
        %v1626 = vpack.c.b16 %v1590, %v1586
        %v1627 = vpack.c.b16 %v1591, %v1587
        %v1628 = vpack.c.b16 %v1596, %v1592
        %v1629 = vpack.c.b16 %v1597, %v1593
        %v1630 = vpack.c.b16 %v1598, %v1594
        %v1631 = vpack.c.b16 %v1599, %v1595
        %1664 = vmatprep.subr.bf16.mxu0 %v1601
        %1665 = vmatpush1.bf16.msra.mxu0 %v1600
        %1666 = vmatprep.subr.bf16.mxu0 %v1605
        %1667 = vmatpush1.bf16.msra.mxu0 %v1604
        %1668 = vmatprep.subr.bf16.mxu0 %v1609
        %1669 = vmatpush1.bf16.msra.mxu0 %v1608
        %1670 = vmatprep.subr.bf16.mxu0 %v1613
        %1671 = vmatpush1.bf16.msra.mxu0 %v1612
        %1672 = vmatprep.subr.bf16.mxu0 %v1617
        %1673 = vmatpush1.bf16.msra.mxu0 %v1616
        %1674 = vmatprep.subr.bf16.mxu0 %v1621
        %1675 = vmatpush1.bf16.msra.mxu0 %v1620
        %1676 = vmatprep.subr.bf16.mxu0 %v1625
        %1677 = vmatpush1.bf16.msra.mxu0 %v1624
        %1678 = vmatprep.subr.bf16.mxu0 %v1629
        %1679 = vmatpush1.bf16.msra.mxu0 %v1628
        %1680 = vmatprep.subr.bf16.mxu0 0
        %1681 = vmatpush1.bf16.msra.mxu0 0
        %1682 = vmatprep.subr.bf16.mxu0 0
        %1683 = vmatpush1.bf16.msra.mxu0 0
        %1684 = vmatprep.subr.bf16.mxu0 0
        %1685 = vmatpush1.bf16.msra.mxu0 0
        %1686 = vmatprep.subr.bf16.mxu0 0
        %1687 = vmatpush1.bf16.msra.mxu0 0
        %1688 = vmatprep.subr.bf16.mxu0 0
        %1689 = vmatpush1.bf16.msra.mxu0 0
        %1690 = vmatprep.subr.bf16.mxu0 0
        %1691 = vmatpush1.bf16.msra.mxu0 0
        %1692 = vmatprep.subr.bf16.mxu0 0
        %1693 = vmatpush1.bf16.msra.mxu0 0
        %1694 = vmatprep.subr.bf16.mxu0 0
        %1695 = vmatpush1.bf16.msra.mxu0 0
        %1696 = vmatprep.mubr.bf16.mxu0 0
        %1697 = vmatmul.mubr.bf16.gmra.mrb[0].mxu0 %v1471
        %v1698 = vpop.f32.mrb[0].mxu0
        %v1699 = vadd.f32 0.0, %v1698
        %v1700 = vpop.f32.mrb[0].mxu0
        %v1701 = vadd.f32 0.0, %v1700
        %v1702 = vpop.f32.mrb[0].mxu0
        %v1703 = vadd.f32 0.0, %v1702
        %v1704 = vpop.f32.mrb[0].mxu0
        %v1705 = vadd.f32 0.0, %v1704
        %1706 = vdwg.mxu0
        %1707 = vmatprep.subr.bf16.mxu0 %v1603
        %1708 = vmatpush1.bf16.msra.mxu0 %v1602
        %1709 = vmatprep.subr.bf16.mxu0 %v1607
        %1710 = vmatpush1.bf16.msra.mxu0 %v1606
        %1711 = vmatprep.subr.bf16.mxu0 %v1611
        %1712 = vmatpush1.bf16.msra.mxu0 %v1610
        %1713 = vmatprep.subr.bf16.mxu0 %v1615
        %1714 = vmatpush1.bf16.msra.mxu0 %v1614
        %1715 = vmatprep.subr.bf16.mxu0 %v1619
        %1716 = vmatpush1.bf16.msra.mxu0 %v1618
        %1717 = vmatprep.subr.bf16.mxu0 %v1623
        %1718 = vmatpush1.bf16.msra.mxu0 %v1622
        %1719 = vmatprep.subr.bf16.mxu0 %v1627
        %1720 = vmatpush1.bf16.msra.mxu0 %v1626
        %1721 = vmatprep.subr.bf16.mxu0 %v1631
        %1722 = vmatpush1.bf16.msra.mxu0 %v1630
        %1723 = vmatprep.subr.bf16.mxu0 0
        %1724 = vmatpush1.bf16.msra.mxu0 0
        %1725 = vmatprep.subr.bf16.mxu0 0
        %1726 = vmatpush1.bf16.msra.mxu0 0
        %1727 = vmatprep.subr.bf16.mxu0 0
        %1728 = vmatpush1.bf16.msra.mxu0 0
        %1729 = vmatprep.subr.bf16.mxu0 0
        %1730 = vmatpush1.bf16.msra.mxu0 0
        %1731 = vmatprep.subr.bf16.mxu0 0
        %1732 = vmatpush1.bf16.msra.mxu0 0
        %1733 = vmatprep.subr.bf16.mxu0 0
        %1734 = vmatpush1.bf16.msra.mxu0 0
        %1735 = vmatprep.subr.bf16.mxu0 0
        %1736 = vmatpush1.bf16.msra.mxu0 0
        %1737 = vmatprep.subr.bf16.mxu0 0
        %1738 = vmatpush1.bf16.msra.mxu0 0
        %1739 = vmatprep.mubr.bf16.mxu0 0
        %1740 = vmatmul.mubr.bf16.gmra.mrb[0].mxu0 %v1471
        %v1741 = vpop.f32.mrb[0].mxu0
        %v1742 = vadd.f32 0.0, %v1741
        %v1743 = vpop.f32.mrb[0].mxu0
        %v1744 = vadd.f32 0.0, %v1743
        %v1745 = vpop.f32.mrb[0].mxu0
        %v1746 = vadd.f32 0.0, %v1745
        %v1747 = vpop.f32.mrb[0].mxu0
        %v1748 = vadd.f32 0.0, %v1747
        %1749 = vdwg.mxu0
        %v1750 = vadd.f32 %v1461, %v1699
        %v1751 = vadd.f32 %v1462, %v1701
        %v1752 = vadd.f32 %v1463, %v1742
        %v1753 = vadd.f32 %v1464, %v1744
        %v1754 = vadd.f32 %v1465, %v1703
        %v1755 = vadd.f32 %v1466, %v1705
        %v1756 = vadd.f32 %v1467, %v1746
        %v1757 = vadd.f32 %v1468, %v1748
        %v1758 = vmul.f32 %v1750, 0.5
        %v1759 = vmul.f32 %v1754, 0.5
        %v1760 = vtanh.pop %v1758
        %v1761 = vtanh.pop %v1759
        %v1762 = vadd.f32 %v1760, 1.0
        %v1763 = vadd.f32 %v1761, 1.0
        %v1764 = vmul.f32 %v1762, 0.5
        %v1765 = vmul.f32 %v1763, 0.5
        %v1766 = vmul.f32 %v1751, 0.5
        %v1767 = vmul.f32 %v1755, 0.5
        %v1768 = vtanh.pop %v1766
        %v1769 = vtanh.pop %v1767
        %v1770 = vadd.f32 %v1768, 1.0
        %v1771 = vadd.f32 %v1769, 1.0
        %v1772 = vmul.f32 %v1770, 0.5
        %v1773 = vmul.f32 %v1771, 0.5
        %v1774 = vtanh.pop %v1752
        %v1775 = vtanh.pop %v1756
        %v1776 = vmul.f32 %v1753, 0.5
        %v1777 = vmul.f32 %v1757, 0.5
        %v1778 = vtanh.pop %v1776
        %v1779 = vtanh.pop %v1777
        %v1780 = vadd.f32 %v1778, 1.0
        %v1781 = vadd.f32 %v1779, 1.0
        %v1782 = vmul.f32 %v1780, 0.5
        %v1783 = vmul.f32 %v1781, 0.5
        %v1784 = vld [vmem:[#allocation3] sm:$0xff]
        %v1785 = vld [vmem:[#allocation3 + $0x8] sm:$0xff]
        %v1786 = vmul.f32 %v1772, %v1784
        %v1787 = vmul.f32 %v1773, %v1785
        %v1788 = vmul.f32 %v1764, %v1774
        %v1789 = vmul.f32 %v1765, %v1775
        %v1790 = vadd.f32 %v1786, %v1788
        %v1791 = vadd.f32 %v1787, %v1789
        %v1792 = vtanh.pop %v1790
        %v1793 = vtanh.pop %v1791
        %v1794 = vmul.f32 %v1782, %v1792
        %v1795 = vmul.f32 %v1783, %v1793
        %s1796 = sadd.s32 %s351, 3
        %v1797 = vstv %s1796
        %vm1798 = vcmp.ge.s32.totalorder %v1797, %v347
        %vm1799 = vcmp.ge.s32.totalorder %v1797, %v348
        %vm1800 = vcmp.lt.s32.totalorder %v1797, %v349
        %vm1801 = vcmp.lt.s32.totalorder %v1797, %v350
        %vm1802 = vmand %vm1798, %vm1800
        %vm1803 = vmand %vm1799, %vm1801
        %v1804 = vsel %vm1802, 1, 0
        %v1805 = vsel %vm1803, 1, 0
        %1806 = vset.pattern.permute.xlu0 0
        %1807 = vperm.xlu0 %1806, %v1804
        %v1808 = vpop.permute.xlu0 %1807
        %1809 = vset.pattern.permute.xlu0 0
        %1810 = vperm.xlu0 %1809, %v1805
        %v1811 = vpop.permute.xlu0 %1810
        %vm1812 = vcmp.eq.s32.totalorder %v1808, 1
        %vm1813 = vcmp.eq.s32.totalorder %v1811, 1
        %v1814 = vsel %vm1812, %v1794, %v1469
        %v1815 = vsel %vm1813, %v1795, %v1470
        %v1816 = vsel %vm1812, %v1790, %v1784
        %v1817 = vsel %vm1813, %v1791, %v1785
        %1818 = vst [vmem:[#allocation2] sm:$0xff] %v1814
        %1819 = vst [vmem:[#allocation2 + $0x8] sm:$0xff] %v1815
        %1820 = vst [vmem:[#allocation3] sm:$0xff] %v1816
        %1821 = vst [vmem:[#allocation3 + $0x8] sm:$0xff] %v1817
        %v1822 = vpack.c.bf16 %v1815, %v1814
        %s1823 = scalar_lea.vmem %s336, 24
        %1824 = vst [vmem:[%s1823] sm:$0xff] %v1822
        %s1825 = scalar_lea.vmem %s321, 128
        %v1826 = vld [vmem:[%s1825] sm:$0xff]
        %v1827 = vld [vmem:[%s1825 + $0x8] sm:$0xff]
        %v1828 = vld [vmem:[%s1825 + $0x10] sm:$0xff]
        %v1829 = vld [vmem:[%s1825 + $0x18] sm:$0xff]
        %v1830 = vunpack.c.l.bf16 %v1826
        %v1831 = vunpack.c.h.bf16 %v1826
        %v1832 = vunpack.c.l.bf16 %v1827
        %v1833 = vunpack.c.h.bf16 %v1827
        %v1834 = vunpack.c.l.bf16 %v1828
        %v1835 = vunpack.c.h.bf16 %v1828
        %v1836 = vunpack.c.l.bf16 %v1829
        %v1837 = vunpack.c.h.bf16 %v1829
        %v1838 = vld [vmem:[#allocation2] sm:$0xff]
        %v1839 = vld [vmem:[#allocation2 + $0x8] sm:$0xff]
        %v1840 = vpack.c.bf16 %v1839, %v1838
        %v1841 = vld [vmem:[%s327] sm:$0xff]
        %v1842 = vld [vmem:[%s327 + $0x8] sm:$0xff]
        %v1843 = vld [vmem:[%s327 + $0x10] sm:$0xff]
        %v1844 = vld [vmem:[%s327 + $0x18] sm:$0xff]
        %v1845 = vld [vmem:[%s327 + $0x20] sm:$0xff]
        %v1846 = vld [vmem:[%s327 + $0x28] sm:$0xff]
        %v1847 = vld [vmem:[%s327 + $0x30] sm:$0xff]
        %v1848 = vld [vmem:[%s327 + $0x38] sm:$0xff]
        %v1849 = vld [vmem:[%s327 + $0x40] sm:$0xff]
        %v1850 = vld [vmem:[%s327 + $0x48] sm:$0xff]
        %v1851 = vld [vmem:[%s327 + $0x50] sm:$0xff]
        %v1852 = vld [vmem:[%s327 + $0x58] sm:$0xff]
        %v1853 = vld [vmem:[%s327 + $0x60] sm:$0xff]
        %v1854 = vld [vmem:[%s327 + $0x68] sm:$0xff]
        %v1855 = vld [vmem:[%s327 + $0x70] sm:$0xff]
        %v1856 = vld [vmem:[%s327 + $0x78] sm:$0xff]
        %v1857 = vld [vmem:[%s327 + $0x80] sm:$0xff]
        %v1858 = vld [vmem:[%s327 + $0x88] sm:$0xff]
        %v1859 = vld [vmem:[%s327 + $0x90] sm:$0xff]
        %v1860 = vld [vmem:[%s327 + $0x98] sm:$0xff]
        %v1861 = vld [vmem:[%s327 + $0xa0] sm:$0xff]
        %v1862 = vld [vmem:[%s327 + $0xa8] sm:$0xff]
        %v1863 = vld [vmem:[%s327 + $0xb0] sm:$0xff]
        %v1864 = vld [vmem:[%s327 + $0xb8] sm:$0xff]
        %v1865 = vld [vmem:[%s327 + $0xc0] sm:$0xff]
        %v1866 = vld [vmem:[%s327 + $0xc8] sm:$0xff]
        %v1867 = vld [vmem:[%s327 + $0xd0] sm:$0xff]
        %v1868 = vld [vmem:[%s327 + $0xd8] sm:$0xff]
        %v1869 = vld [vmem:[%s327 + $0xe0] sm:$0xff]
        %v1870 = vld [vmem:[%s327 + $0xe8] sm:$0xff]
        %v1871 = vld [vmem:[%s327 + $0xf0] sm:$0xff]
        %v1872 = vld [vmem:[%s327 + $0xf8] sm:$0xff]
        %v1905 = vunpack.c.l.b16 %v1841
        %v1906 = vunpack.c.h.b16 %v1841
        %v1907 = vunpack.c.l.b16 %v1842
        %v1908 = vunpack.c.h.b16 %v1842
        %v1909 = vunpack.c.l.b16 %v1843
        %v1910 = vunpack.c.h.b16 %v1843
        %v1911 = vunpack.c.l.b16 %v1844
        %v1912 = vunpack.c.h.b16 %v1844
        %v1913 = vunpack.c.l.b16 %v1845
        %v1914 = vunpack.c.h.b16 %v1845
        %v1915 = vunpack.c.l.b16 %v1846
        %v1916 = vunpack.c.h.b16 %v1846
        %v1917 = vunpack.c.l.b16 %v1847
        %v1918 = vunpack.c.h.b16 %v1847
        %v1919 = vunpack.c.l.b16 %v1848
        %v1920 = vunpack.c.h.b16 %v1848
        %v1921 = vunpack.c.l.b16 %v1849
        %v1922 = vunpack.c.h.b16 %v1849
        %v1923 = vunpack.c.l.b16 %v1850
        %v1924 = vunpack.c.h.b16 %v1850
        %v1925 = vunpack.c.l.b16 %v1851
        %v1926 = vunpack.c.h.b16 %v1851
        %v1927 = vunpack.c.l.b16 %v1852
        %v1928 = vunpack.c.h.b16 %v1852
        %v1929 = vunpack.c.l.b16 %v1853
        %v1930 = vunpack.c.h.b16 %v1853
        %v1931 = vunpack.c.l.b16 %v1854
        %v1932 = vunpack.c.h.b16 %v1854
        %v1933 = vunpack.c.l.b16 %v1855
        %v1934 = vunpack.c.h.b16 %v1855
        %v1935 = vunpack.c.l.b16 %v1856
        %v1936 = vunpack.c.h.b16 %v1856
        %v1937 = vunpack.c.l.b16 %v1857
        %v1938 = vunpack.c.h.b16 %v1857
        %v1939 = vunpack.c.l.b16 %v1858
        %v1940 = vunpack.c.h.b16 %v1858
        %v1941 = vunpack.c.l.b16 %v1859
        %v1942 = vunpack.c.h.b16 %v1859
        %v1943 = vunpack.c.l.b16 %v1860
        %v1944 = vunpack.c.h.b16 %v1860
        %v1945 = vunpack.c.l.b16 %v1861
        %v1946 = vunpack.c.h.b16 %v1861
        %v1947 = vunpack.c.l.b16 %v1862
        %v1948 = vunpack.c.h.b16 %v1862
        %v1949 = vunpack.c.l.b16 %v1863
        %v1950 = vunpack.c.h.b16 %v1863
        %v1951 = vunpack.c.l.b16 %v1864
        %v1952 = vunpack.c.h.b16 %v1864
        %v1953 = vunpack.c.l.b16 %v1865
        %v1954 = vunpack.c.h.b16 %v1865
        %v1955 = vunpack.c.l.b16 %v1866
        %v1956 = vunpack.c.h.b16 %v1866
        %v1957 = vunpack.c.l.b16 %v1867
        %v1958 = vunpack.c.h.b16 %v1867
        %v1959 = vunpack.c.l.b16 %v1868
        %v1960 = vunpack.c.h.b16 %v1868
        %v1961 = vunpack.c.l.b16 %v1869
        %v1962 = vunpack.c.h.b16 %v1869
        %v1963 = vunpack.c.l.b16 %v1870
        %v1964 = vunpack.c.h.b16 %v1870
        %v1965 = vunpack.c.l.b16 %v1871
        %v1966 = vunpack.c.h.b16 %v1871
        %v1967 = vunpack.c.l.b16 %v1872
        %v1968 = vunpack.c.h.b16 %v1872
        %v1969 = vpack.c.b16 %v1909, %v1905
        %v1970 = vpack.c.b16 %v1910, %v1906
        %v1971 = vpack.c.b16 %v1911, %v1907
        %v1972 = vpack.c.b16 %v1912, %v1908
        %v1973 = vpack.c.b16 %v1917, %v1913
        %v1974 = vpack.c.b16 %v1918, %v1914
        %v1975 = vpack.c.b16 %v1919, %v1915
        %v1976 = vpack.c.b16 %v1920, %v1916
        %v1977 = vpack.c.b16 %v1925, %v1921
        %v1978 = vpack.c.b16 %v1926, %v1922
        %v1979 = vpack.c.b16 %v1927, %v1923
        %v1980 = vpack.c.b16 %v1928, %v1924
        %v1981 = vpack.c.b16 %v1933, %v1929
        %v1982 = vpack.c.b16 %v1934, %v1930
        %v1983 = vpack.c.b16 %v1935, %v1931
        %v1984 = vpack.c.b16 %v1936, %v1932
        %v1985 = vpack.c.b16 %v1941, %v1937
        %v1986 = vpack.c.b16 %v1942, %v1938
        %v1987 = vpack.c.b16 %v1943, %v1939
        %v1988 = vpack.c.b16 %v1944, %v1940
        %v1989 = vpack.c.b16 %v1949, %v1945
        %v1990 = vpack.c.b16 %v1950, %v1946
        %v1991 = vpack.c.b16 %v1951, %v1947
        %v1992 = vpack.c.b16 %v1952, %v1948
        %v1993 = vpack.c.b16 %v1957, %v1953
        %v1994 = vpack.c.b16 %v1958, %v1954
        %v1995 = vpack.c.b16 %v1959, %v1955
        %v1996 = vpack.c.b16 %v1960, %v1956
        %v1997 = vpack.c.b16 %v1965, %v1961
        %v1998 = vpack.c.b16 %v1966, %v1962
        %v1999 = vpack.c.b16 %v1967, %v1963
        %v2000 = vpack.c.b16 %v1968, %v1964
        %2033 = vmatprep.subr.bf16.mxu0 %v1970
        %2034 = vmatpush1.bf16.msra.mxu0 %v1969
        %2035 = vmatprep.subr.bf16.mxu0 %v1974
        %2036 = vmatpush1.bf16.msra.mxu0 %v1973
        %2037 = vmatprep.subr.bf16.mxu0 %v1978
        %2038 = vmatpush1.bf16.msra.mxu0 %v1977
        %2039 = vmatprep.subr.bf16.mxu0 %v1982
        %2040 = vmatpush1.bf16.msra.mxu0 %v1981
        %2041 = vmatprep.subr.bf16.mxu0 %v1986
        %2042 = vmatpush1.bf16.msra.mxu0 %v1985
        %2043 = vmatprep.subr.bf16.mxu0 %v1990
        %2044 = vmatpush1.bf16.msra.mxu0 %v1989
        %2045 = vmatprep.subr.bf16.mxu0 %v1994
        %2046 = vmatpush1.bf16.msra.mxu0 %v1993
        %2047 = vmatprep.subr.bf16.mxu0 %v1998
        %2048 = vmatpush1.bf16.msra.mxu0 %v1997
        %2049 = vmatprep.subr.bf16.mxu0 0
        %2050 = vmatpush1.bf16.msra.mxu0 0
        %2051 = vmatprep.subr.bf16.mxu0 0
        %2052 = vmatpush1.bf16.msra.mxu0 0
        %2053 = vmatprep.subr.bf16.mxu0 0
        %2054 = vmatpush1.bf16.msra.mxu0 0
        %2055 = vmatprep.subr.bf16.mxu0 0
        %2056 = vmatpush1.bf16.msra.mxu0 0
        %2057 = vmatprep.subr.bf16.mxu0 0
        %2058 = vmatpush1.bf16.msra.mxu0 0
        %2059 = vmatprep.subr.bf16.mxu0 0
        %2060 = vmatpush1.bf16.msra.mxu0 0
        %2061 = vmatprep.subr.bf16.mxu0 0
        %2062 = vmatpush1.bf16.msra.mxu0 0
        %2063 = vmatprep.subr.bf16.mxu0 0
        %2064 = vmatpush1.bf16.msra.mxu0 0
        %2065 = vmatprep.mubr.bf16.mxu0 0
        %2066 = vmatmul.mubr.bf16.gmra.mrb[0].mxu0 %v1840
        %v2067 = vpop.f32.mrb[0].mxu0
        %v2068 = vadd.f32 0.0, %v2067
        %v2069 = vpop.f32.mrb[0].mxu0
        %v2070 = vadd.f32 0.0, %v2069
        %v2071 = vpop.f32.mrb[0].mxu0
        %v2072 = vadd.f32 0.0, %v2071
        %v2073 = vpop.f32.mrb[0].mxu0
        %v2074 = vadd.f32 0.0, %v2073
        %2075 = vdwg.mxu0
        %2076 = vmatprep.subr.bf16.mxu0 %v1972
        %2077 = vmatpush1.bf16.msra.mxu0 %v1971
        %2078 = vmatprep.subr.bf16.mxu0 %v1976
        %2079 = vmatpush1.bf16.msra.mxu0 %v1975
        %2080 = vmatprep.subr.bf16.mxu0 %v1980
        %2081 = vmatpush1.bf16.msra.mxu0 %v1979
        %2082 = vmatprep.subr.bf16.mxu0 %v1984
        %2083 = vmatpush1.bf16.msra.mxu0 %v1983
        %2084 = vmatprep.subr.bf16.mxu0 %v1988
        %2085 = vmatpush1.bf16.msra.mxu0 %v1987
        %2086 = vmatprep.subr.bf16.mxu0 %v1992
        %2087 = vmatpush1.bf16.msra.mxu0 %v1991
        %2088 = vmatprep.subr.bf16.mxu0 %v1996
        %2089 = vmatpush1.bf16.msra.mxu0 %v1995
        %2090 = vmatprep.subr.bf16.mxu0 %v2000
        %2091 = vmatpush1.bf16.msra.mxu0 %v1999
        %2092 = vmatprep.subr.bf16.mxu0 0
        %2093 = vmatpush1.bf16.msra.mxu0 0
        %2094 = vmatprep.subr.bf16.mxu0 0
        %2095 = vmatpush1.bf16.msra.mxu0 0
        %2096 = vmatprep.subr.bf16.mxu0 0
        %2097 = vmatpush1.bf16.msra.mxu0 0
        %2098 = vmatprep.subr.bf16.mxu0 0
        %2099 = vmatpush1.bf16.msra.mxu0 0
        %2100 = vmatprep.subr.bf16.mxu0 0
        %2101 = vmatpush1.bf16.msra.mxu0 0
        %2102 = vmatprep.subr.bf16.mxu0 0
        %2103 = vmatpush1.bf16.msra.mxu0 0
        %2104 = vmatprep.subr.bf16.mxu0 0
        %2105 = vmatpush1.bf16.msra.mxu0 0
        %2106 = vmatprep.subr.bf16.mxu0 0
        %2107 = vmatpush1.bf16.msra.mxu0 0
        %2108 = vmatprep.mubr.bf16.mxu0 0
        %2109 = vmatmul.mubr.bf16.gmra.mrb[0].mxu0 %v1840
        %v2110 = vpop.f32.mrb[0].mxu0
        %v2111 = vadd.f32 0.0, %v2110
        %v2112 = vpop.f32.mrb[0].mxu0
        %v2113 = vadd.f32 0.0, %v2112
        %v2114 = vpop.f32.mrb[0].mxu0
        %v2115 = vadd.f32 0.0, %v2114
        %v2116 = vpop.f32.mrb[0].mxu0
        %v2117 = vadd.f32 0.0, %v2116
        %2118 = vdwg.mxu0
        %v2119 = vadd.f32 %v1830, %v2068
        %v2120 = vadd.f32 %v1831, %v2070
        %v2121 = vadd.f32 %v1832, %v2111
        %v2122 = vadd.f32 %v1833, %v2113
        %v2123 = vadd.f32 %v1834, %v2072
        %v2124 = vadd.f32 %v1835, %v2074
        %v2125 = vadd.f32 %v1836, %v2115
        %v2126 = vadd.f32 %v1837, %v2117
        %v2127 = vmul.f32 %v2119, 0.5
        %v2128 = vmul.f32 %v2123, 0.5
        %v2129 = vtanh.pop %v2127
        %v2130 = vtanh.pop %v2128
        %v2131 = vadd.f32 %v2129, 1.0
        %v2132 = vadd.f32 %v2130, 1.0
        %v2133 = vmul.f32 %v2131, 0.5
        %v2134 = vmul.f32 %v2132, 0.5
        %v2135 = vmul.f32 %v2120, 0.5
        %v2136 = vmul.f32 %v2124, 0.5
        %v2137 = vtanh.pop %v2135
        %v2138 = vtanh.pop %v2136
        %v2139 = vadd.f32 %v2137, 1.0
        %v2140 = vadd.f32 %v2138, 1.0
        %v2141 = vmul.f32 %v2139, 0.5
        %v2142 = vmul.f32 %v2140, 0.5
        %v2143 = vtanh.pop %v2121
        %v2144 = vtanh.pop %v2125
        %v2145 = vmul.f32 %v2122, 0.5
        %v2146 = vmul.f32 %v2126, 0.5
        %v2147 = vtanh.pop %v2145
        %v2148 = vtanh.pop %v2146
        %v2149 = vadd.f32 %v2147, 1.0
        %v2150 = vadd.f32 %v2148, 1.0
        %v2151 = vmul.f32 %v2149, 0.5
        %v2152 = vmul.f32 %v2150, 0.5
        %v2153 = vld [vmem:[#allocation3] sm:$0xff]
        %v2154 = vld [vmem:[#allocation3 + $0x8] sm:$0xff]
        %v2155 = vmul.f32 %v2141, %v2153
        %v2156 = vmul.f32 %v2142, %v2154
        %v2157 = vmul.f32 %v2133, %v2143
        %v2158 = vmul.f32 %v2134, %v2144
        %v2159 = vadd.f32 %v2155, %v2157
        %v2160 = vadd.f32 %v2156, %v2158
        %v2161 = vtanh.pop %v2159
        %v2162 = vtanh.pop %v2160
        %v2163 = vmul.f32 %v2151, %v2161
        %v2164 = vmul.f32 %v2152, %v2162
        %s2165 = sadd.s32 %s351, 4
        %v2166 = vstv %s2165
        %vm2167 = vcmp.ge.s32.totalorder %v2166, %v347
        %vm2168 = vcmp.ge.s32.totalorder %v2166, %v348
        %vm2169 = vcmp.lt.s32.totalorder %v2166, %v349
        %vm2170 = vcmp.lt.s32.totalorder %v2166, %v350
        %vm2171 = vmand %vm2167, %vm2169
        %vm2172 = vmand %vm2168, %vm2170
        %v2173 = vsel %vm2171, 1, 0
        %v2174 = vsel %vm2172, 1, 0
        %2175 = vset.pattern.permute.xlu0 0
        %2176 = vperm.xlu0 %2175, %v2173
        %v2177 = vpop.permute.xlu0 %2176
        %2178 = vset.pattern.permute.xlu0 0
        %2179 = vperm.xlu0 %2178, %v2174
        %v2180 = vpop.permute.xlu0 %2179
        %vm2181 = vcmp.eq.s32.totalorder %v2177, 1
        %vm2182 = vcmp.eq.s32.totalorder %v2180, 1
        %v2183 = vsel %vm2181, %v2163, %v1838
        %v2184 = vsel %vm2182, %v2164, %v1839
        %v2185 = vsel %vm2181, %v2159, %v2153
        %v2186 = vsel %vm2182, %v2160, %v2154
        %2187 = vst [vmem:[#allocation2] sm:$0xff] %v2183
        %2188 = vst [vmem:[#allocation2 + $0x8] sm:$0xff] %v2184
        %2189 = vst [vmem:[#allocation3] sm:$0xff] %v2185
        %2190 = vst [vmem:[#allocation3 + $0x8] sm:$0xff] %v2186
        %v2191 = vpack.c.bf16 %v2184, %v2183
        %s2192 = scalar_lea.vmem %s336, 32
        %2193 = vst [vmem:[%s2192] sm:$0xff] %v2191
        %s2194 = scalar_lea.vmem %s321, 160
        %v2195 = vld [vmem:[%s2194] sm:$0xff]
        %v2196 = vld [vmem:[%s2194 + $0x8] sm:$0xff]
        %v2197 = vld [vmem:[%s2194 + $0x10] sm:$0xff]
        %v2198 = vld [vmem:[%s2194 + $0x18] sm:$0xff]
        %v2199 = vunpack.c.l.bf16 %v2195
        %v2200 = vunpack.c.h.bf16 %v2195
        %v2201 = vunpack.c.l.bf16 %v2196
        %v2202 = vunpack.c.h.bf16 %v2196
        %v2203 = vunpack.c.l.bf16 %v2197
        %v2204 = vunpack.c.h.bf16 %v2197
        %v2205 = vunpack.c.l.bf16 %v2198
        %v2206 = vunpack.c.h.bf16 %v2198
        %v2207 = vld [vmem:[#allocation2] sm:$0xff]
        %v2208 = vld [vmem:[#allocation2 + $0x8] sm:$0xff]
        %v2209 = vpack.c.bf16 %v2208, %v2207
        %v2210 = vld [vmem:[%s327] sm:$0xff]
        %v2211 = vld [vmem:[%s327 + $0x8] sm:$0xff]
        %v2212 = vld [vmem:[%s327 + $0x10] sm:$0xff]
        %v2213 = vld [vmem:[%s327 + $0x18] sm:$0xff]
        %v2214 = vld [vmem:[%s327 + $0x20] sm:$0xff]
        %v2215 = vld [vmem:[%s327 + $0x28] sm:$0xff]
        %v2216 = vld [vmem:[%s327 + $0x30] sm:$0xff]
        %v2217 = vld [vmem:[%s327 + $0x38] sm:$0xff]
        %v2218 = vld [vmem:[%s327 + $0x40] sm:$0xff]
        %v2219 = vld [vmem:[%s327 + $0x48] sm:$0xff]
        %v2220 = vld [vmem:[%s327 + $0x50] sm:$0xff]
        %v2221 = vld [vmem:[%s327 + $0x58] sm:$0xff]
        %v2222 = vld [vmem:[%s327 + $0x60] sm:$0xff]
        %v2223 = vld [vmem:[%s327 + $0x68] sm:$0xff]
        %v2224 = vld [vmem:[%s327 + $0x70] sm:$0xff]
        %v2225 = vld [vmem:[%s327 + $0x78] sm:$0xff]
        %v2226 = vld [vmem:[%s327 + $0x80] sm:$0xff]
        %v2227 = vld [vmem:[%s327 + $0x88] sm:$0xff]
        %v2228 = vld [vmem:[%s327 + $0x90] sm:$0xff]
        %v2229 = vld [vmem:[%s327 + $0x98] sm:$0xff]
        %v2230 = vld [vmem:[%s327 + $0xa0] sm:$0xff]
        %v2231 = vld [vmem:[%s327 + $0xa8] sm:$0xff]
        %v2232 = vld [vmem:[%s327 + $0xb0] sm:$0xff]
        %v2233 = vld [vmem:[%s327 + $0xb8] sm:$0xff]
        %v2234 = vld [vmem:[%s327 + $0xc0] sm:$0xff]
        %v2235 = vld [vmem:[%s327 + $0xc8] sm:$0xff]
        %v2236 = vld [vmem:[%s327 + $0xd0] sm:$0xff]
        %v2237 = vld [vmem:[%s327 + $0xd8] sm:$0xff]
        %v2238 = vld [vmem:[%s327 + $0xe0] sm:$0xff]
        %v2239 = vld [vmem:[%s327 + $0xe8] sm:$0xff]
        %v2240 = vld [vmem:[%s327 + $0xf0] sm:$0xff]
        %v2241 = vld [vmem:[%s327 + $0xf8] sm:$0xff]
        %v2274 = vunpack.c.l.b16 %v2210
        %v2275 = vunpack.c.h.b16 %v2210
        %v2276 = vunpack.c.l.b16 %v2211
        %v2277 = vunpack.c.h.b16 %v2211
        %v2278 = vunpack.c.l.b16 %v2212
        %v2279 = vunpack.c.h.b16 %v2212
        %v2280 = vunpack.c.l.b16 %v2213
        %v2281 = vunpack.c.h.b16 %v2213
        %v2282 = vunpack.c.l.b16 %v2214
        %v2283 = vunpack.c.h.b16 %v2214
        %v2284 = vunpack.c.l.b16 %v2215
        %v2285 = vunpack.c.h.b16 %v2215
        %v2286 = vunpack.c.l.b16 %v2216
        %v2287 = vunpack.c.h.b16 %v2216
        %v2288 = vunpack.c.l.b16 %v2217
        %v2289 = vunpack.c.h.b16 %v2217
        %v2290 = vunpack.c.l.b16 %v2218
        %v2291 = vunpack.c.h.b16 %v2218
        %v2292 = vunpack.c.l.b16 %v2219
        %v2293 = vunpack.c.h.b16 %v2219
        %v2294 = vunpack.c.l.b16 %v2220
        %v2295 = vunpack.c.h.b16 %v2220
        %v2296 = vunpack.c.l.b16 %v2221
        %v2297 = vunpack.c.h.b16 %v2221
        %v2298 = vunpack.c.l.b16 %v2222
        %v2299 = vunpack.c.h.b16 %v2222
        %v2300 = vunpack.c.l.b16 %v2223
        %v2301 = vunpack.c.h.b16 %v2223
        %v2302 = vunpack.c.l.b16 %v2224
        %v2303 = vunpack.c.h.b16 %v2224
        %v2304 = vunpack.c.l.b16 %v2225
        %v2305 = vunpack.c.h.b16 %v2225
        %v2306 = vunpack.c.l.b16 %v2226
        %v2307 = vunpack.c.h.b16 %v2226
        %v2308 = vunpack.c.l.b16 %v2227
        %v2309 = vunpack.c.h.b16 %v2227
        %v2310 = vunpack.c.l.b16 %v2228
        %v2311 = vunpack.c.h.b16 %v2228
        %v2312 = vunpack.c.l.b16 %v2229
        %v2313 = vunpack.c.h.b16 %v2229
        %v2314 = vunpack.c.l.b16 %v2230
        %v2315 = vunpack.c.h.b16 %v2230
        %v2316 = vunpack.c.l.b16 %v2231
        %v2317 = vunpack.c.h.b16 %v2231
        %v2318 = vunpack.c.l.b16 %v2232
        %v2319 = vunpack.c.h.b16 %v2232
        %v2320 = vunpack.c.l.b16 %v2233
        %v2321 = vunpack.c.h.b16 %v2233
        %v2322 = vunpack.c.l.b16 %v2234
        %v2323 = vunpack.c.h.b16 %v2234
        %v2324 = vunpack.c.l.b16 %v2235
        %v2325 = vunpack.c.h.b16 %v2235
        %v2326 = vunpack.c.l.b16 %v2236
        %v2327 = vunpack.c.h.b16 %v2236
        %v2328 = vunpack.c.l.b16 %v2237
        %v2329 = vunpack.c.h.b16 %v2237
        %v2330 = vunpack.c.l.b16 %v2238
        %v2331 = vunpack.c.h.b16 %v2238
        %v2332 = vunpack.c.l.b16 %v2239
        %v2333 = vunpack.c.h.b16 %v2239
        %v2334 = vunpack.c.l.b16 %v2240
        %v2335 = vunpack.c.h.b16 %v2240
        %v2336 = vunpack.c.l.b16 %v2241
        %v2337 = vunpack.c.h.b16 %v2241
        %v2338 = vpack.c.b16 %v2278, %v2274
        %v2339 = vpack.c.b16 %v2279, %v2275
        %v2340 = vpack.c.b16 %v2280, %v2276
        %v2341 = vpack.c.b16 %v2281, %v2277
        %v2342 = vpack.c.b16 %v2286, %v2282
        %v2343 = vpack.c.b16 %v2287, %v2283
        %v2344 = vpack.c.b16 %v2288, %v2284
        %v2345 = vpack.c.b16 %v2289, %v2285
        %v2346 = vpack.c.b16 %v2294, %v2290
        %v2347 = vpack.c.b16 %v2295, %v2291
        %v2348 = vpack.c.b16 %v2296, %v2292
        %v2349 = vpack.c.b16 %v2297, %v2293
        %v2350 = vpack.c.b16 %v2302, %v2298
        %v2351 = vpack.c.b16 %v2303, %v2299
        %v2352 = vpack.c.b16 %v2304, %v2300
        %v2353 = vpack.c.b16 %v2305, %v2301
        %v2354 = vpack.c.b16 %v2310, %v2306
        %v2355 = vpack.c.b16 %v2311, %v2307
        %v2356 = vpack.c.b16 %v2312, %v2308
        %v2357 = vpack.c.b16 %v2313, %v2309
        %v2358 = vpack.c.b16 %v2318, %v2314
        %v2359 = vpack.c.b16 %v2319, %v2315
        %v2360 = vpack.c.b16 %v2320, %v2316
        %v2361 = vpack.c.b16 %v2321, %v2317
        %v2362 = vpack.c.b16 %v2326, %v2322
        %v2363 = vpack.c.b16 %v2327, %v2323
        %v2364 = vpack.c.b16 %v2328, %v2324
        %v2365 = vpack.c.b16 %v2329, %v2325
        %v2366 = vpack.c.b16 %v2334, %v2330
        %v2367 = vpack.c.b16 %v2335, %v2331
        %v2368 = vpack.c.b16 %v2336, %v2332
        %v2369 = vpack.c.b16 %v2337, %v2333
        %2402 = vmatprep.subr.bf16.mxu0 %v2339
        %2403 = vmatpush1.bf16.msra.mxu0 %v2338
        %2404 = vmatprep.subr.bf16.mxu0 %v2343
        %2405 = vmatpush1.bf16.msra.mxu0 %v2342
        %2406 = vmatprep.subr.bf16.mxu0 %v2347
        %2407 = vmatpush1.bf16.msra.mxu0 %v2346
        %2408 = vmatprep.subr.bf16.mxu0 %v2351
        %2409 = vmatpush1.bf16.msra.mxu0 %v2350
        %2410 = vmatprep.subr.bf16.mxu0 %v2355
        %2411 = vmatpush1.bf16.msra.mxu0 %v2354
        %2412 = vmatprep.subr.bf16.mxu0 %v2359
        %2413 = vmatpush1.bf16.msra.mxu0 %v2358
        %2414 = vmatprep.subr.bf16.mxu0 %v2363
        %2415 = vmatpush1.bf16.msra.mxu0 %v2362
        %2416 = vmatprep.subr.bf16.mxu0 %v2367
        %2417 = vmatpush1.bf16.msra.mxu0 %v2366
        %2418 = vmatprep.subr.bf16.mxu0 0
        %2419 = vmatpush1.bf16.msra.mxu0 0
        %2420 = vmatprep.subr.bf16.mxu0 0
        %2421 = vmatpush1.bf16.msra.mxu0 0
        %2422 = vmatprep.subr.bf16.mxu0 0
        %2423 = vmatpush1.bf16.msra.mxu0 0
        %2424 = vmatprep.subr.bf16.mxu0 0
        %2425 = vmatpush1.bf16.msra.mxu0 0
        %2426 = vmatprep.subr.bf16.mxu0 0
        %2427 = vmatpush1.bf16.msra.mxu0 0
        %2428 = vmatprep.subr.bf16.mxu0 0
        %2429 = vmatpush1.bf16.msra.mxu0 0
        %2430 = vmatprep.subr.bf16.mxu0 0
        %2431 = vmatpush1.bf16.msra.mxu0 0
        %2432 = vmatprep.subr.bf16.mxu0 0
        %2433 = vmatpush1.bf16.msra.mxu0 0
        %2434 = vmatprep.mubr.bf16.mxu0 0
        %2435 = vmatmul.mubr.bf16.gmra.mrb[0].mxu0 %v2209
        %v2436 = vpop.f32.mrb[0].mxu0
        %v2437 = vadd.f32 0.0, %v2436
        %v2438 = vpop.f32.mrb[0].mxu0
        %v2439 = vadd.f32 0.0, %v2438
        %v2440 = vpop.f32.mrb[0].mxu0
        %v2441 = vadd.f32 0.0, %v2440
        %v2442 = vpop.f32.mrb[0].mxu0
        %v2443 = vadd.f32 0.0, %v2442
        %2444 = vdwg.mxu0
        %2445 = vmatprep.subr.bf16.mxu0 %v2341
        %2446 = vmatpush1.bf16.msra.mxu0 %v2340
        %2447 = vmatprep.subr.bf16.mxu0 %v2345
        %2448 = vmatpush1.bf16.msra.mxu0 %v2344
        %2449 = vmatprep.subr.bf16.mxu0 %v2349
        %2450 = vmatpush1.bf16.msra.mxu0 %v2348
        %2451 = vmatprep.subr.bf16.mxu0 %v2353
        %2452 = vmatpush1.bf16.msra.mxu0 %v2352
        %2453 = vmatprep.subr.bf16.mxu0 %v2357
        %2454 = vmatpush1.bf16.msra.mxu0 %v2356
        %2455 = vmatprep.subr.bf16.mxu0 %v2361
        %2456 = vmatpush1.bf16.msra.mxu0 %v2360
        %2457 = vmatprep.subr.bf16.mxu0 %v2365
        %2458 = vmatpush1.bf16.msra.mxu0 %v2364
        %2459 = vmatprep.subr.bf16.mxu0 %v2369
        %2460 = vmatpush1.bf16.msra.mxu0 %v2368
        %2461 = vmatprep.subr.bf16.mxu0 0
        %2462 = vmatpush1.bf16.msra.mxu0 0
        %2463 = vmatprep.subr.bf16.mxu0 0
        %2464 = vmatpush1.bf16.msra.mxu0 0
        %2465 = vmatprep.subr.bf16.mxu0 0
        %2466 = vmatpush1.bf16.msra.mxu0 0
        %2467 = vmatprep.subr.bf16.mxu0 0
        %2468 = vmatpush1.bf16.msra.mxu0 0
        %2469 = vmatprep.subr.bf16.mxu0 0
        %2470 = vmatpush1.bf16.msra.mxu0 0
        %2471 = vmatprep.subr.bf16.mxu0 0
        %2472 = vmatpush1.bf16.msra.mxu0 0
        %2473 = vmatprep.subr.bf16.mxu0 0
        %2474 = vmatpush1.bf16.msra.mxu0 0
        %2475 = vmatprep.subr.bf16.mxu0 0
        %2476 = vmatpush1.bf16.msra.mxu0 0
        %2477 = vmatprep.mubr.bf16.mxu0 0
        %2478 = vmatmul.mubr.bf16.gmra.mrb[0].mxu0 %v2209
        %v2479 = vpop.f32.mrb[0].mxu0
        %v2480 = vadd.f32 0.0, %v2479
        %v2481 = vpop.f32.mrb[0].mxu0
        %v2482 = vadd.f32 0.0, %v2481
        %v2483 = vpop.f32.mrb[0].mxu0
        %v2484 = vadd.f32 0.0, %v2483
        %v2485 = vpop.f32.mrb[0].mxu0
        %v2486 = vadd.f32 0.0, %v2485
        %2487 = vdwg.mxu0
        %v2488 = vadd.f32 %v2199, %v2437
        %v2489 = vadd.f32 %v2200, %v2439
        %v2490 = vadd.f32 %v2201, %v2480
        %v2491 = vadd.f32 %v2202, %v2482
        %v2492 = vadd.f32 %v2203, %v2441
        %v2493 = vadd.f32 %v2204, %v2443
        %v2494 = vadd.f32 %v2205, %v2484
        %v2495 = vadd.f32 %v2206, %v2486
        %v2496 = vmul.f32 %v2488, 0.5
        %v2497 = vmul.f32 %v2492, 0.5
        %v2498 = vtanh.pop %v2496
        %v2499 = vtanh.pop %v2497
        %v2500 = vadd.f32 %v2498, 1.0
        %v2501 = vadd.f32 %v2499, 1.0
        %v2502 = vmul.f32 %v2500, 0.5
        %v2503 = vmul.f32 %v2501, 0.5
        %v2504 = vmul.f32 %v2489, 0.5
        %v2505 = vmul.f32 %v2493, 0.5
        %v2506 = vtanh.pop %v2504
        %v2507 = vtanh.pop %v2505
        %v2508 = vadd.f32 %v2506, 1.0
        %v2509 = vadd.f32 %v2507, 1.0
        %v2510 = vmul.f32 %v2508, 0.5
        %v2511 = vmul.f32 %v2509, 0.5
        %v2512 = vtanh.pop %v2490
        %v2513 = vtanh.pop %v2494
        %v2514 = vmul.f32 %v2491, 0.5
        %v2515 = vmul.f32 %v2495, 0.5
        %v2516 = vtanh.pop %v2514
        %v2517 = vtanh.pop %v2515
        %v2518 = vadd.f32 %v2516, 1.0
        %v2519 = vadd.f32 %v2517, 1.0
        %v2520 = vmul.f32 %v2518, 0.5
        %v2521 = vmul.f32 %v2519, 0.5
        %v2522 = vld [vmem:[#allocation3] sm:$0xff]
        %v2523 = vld [vmem:[#allocation3 + $0x8] sm:$0xff]
        %v2524 = vmul.f32 %v2510, %v2522
        %v2525 = vmul.f32 %v2511, %v2523
        %v2526 = vmul.f32 %v2502, %v2512
        %v2527 = vmul.f32 %v2503, %v2513
        %v2528 = vadd.f32 %v2524, %v2526
        %v2529 = vadd.f32 %v2525, %v2527
        %v2530 = vtanh.pop %v2528
        %v2531 = vtanh.pop %v2529
        %v2532 = vmul.f32 %v2520, %v2530
        %v2533 = vmul.f32 %v2521, %v2531
        %s2534 = sadd.s32 %s351, 5
        %v2535 = vstv %s2534
        %vm2536 = vcmp.ge.s32.totalorder %v2535, %v347
        %vm2537 = vcmp.ge.s32.totalorder %v2535, %v348
        %vm2538 = vcmp.lt.s32.totalorder %v2535, %v349
        %vm2539 = vcmp.lt.s32.totalorder %v2535, %v350
        %vm2540 = vmand %vm2536, %vm2538
        %vm2541 = vmand %vm2537, %vm2539
        %v2542 = vsel %vm2540, 1, 0
        %v2543 = vsel %vm2541, 1, 0
        %2544 = vset.pattern.permute.xlu0 0
        %2545 = vperm.xlu0 %2544, %v2542
        %v2546 = vpop.permute.xlu0 %2545
        %2547 = vset.pattern.permute.xlu0 0
        %2548 = vperm.xlu0 %2547, %v2543
        %v2549 = vpop.permute.xlu0 %2548
        %vm2550 = vcmp.eq.s32.totalorder %v2546, 1
        %vm2551 = vcmp.eq.s32.totalorder %v2549, 1
        %v2552 = vsel %vm2550, %v2532, %v2207
        %v2553 = vsel %vm2551, %v2533, %v2208
        %v2554 = vsel %vm2550, %v2528, %v2522
        %v2555 = vsel %vm2551, %v2529, %v2523
        %2556 = vst [vmem:[#allocation2] sm:$0xff] %v2552
        %2557 = vst [vmem:[#allocation2 + $0x8] sm:$0xff] %v2553
        %2558 = vst [vmem:[#allocation3] sm:$0xff] %v2554
        %2559 = vst [vmem:[#allocation3 + $0x8] sm:$0xff] %v2555
        %v2560 = vpack.c.bf16 %v2553, %v2552
        %s2561 = scalar_lea.vmem %s336, 40
        %2562 = vst [vmem:[%s2561] sm:$0xff] %v2560
        %s2563 = scalar_lea.vmem %s321, 192
        %v2564 = vld [vmem:[%s2563] sm:$0xff]
        %v2565 = vld [vmem:[%s2563 + $0x8] sm:$0xff]
        %v2566 = vld [vmem:[%s2563 + $0x10] sm:$0xff]
        %v2567 = vld [vmem:[%s2563 + $0x18] sm:$0xff]
        %v2568 = vunpack.c.l.bf16 %v2564
        %v2569 = vunpack.c.h.bf16 %v2564
        %v2570 = vunpack.c.l.bf16 %v2565
        %v2571 = vunpack.c.h.bf16 %v2565
        %v2572 = vunpack.c.l.bf16 %v2566
        %v2573 = vunpack.c.h.bf16 %v2566
        %v2574 = vunpack.c.l.bf16 %v2567
        %v2575 = vunpack.c.h.bf16 %v2567
        %v2576 = vld [vmem:[#allocation2] sm:$0xff]
        %v2577 = vld [vmem:[#allocation2 + $0x8] sm:$0xff]
        %v2578 = vpack.c.bf16 %v2577, %v2576
        %v2579 = vld [vmem:[%s327] sm:$0xff]
        %v2580 = vld [vmem:[%s327 + $0x8] sm:$0xff]
        %v2581 = vld [vmem:[%s327 + $0x10] sm:$0xff]
        %v2582 = vld [vmem:[%s327 + $0x18] sm:$0xff]
        %v2583 = vld [vmem:[%s327 + $0x20] sm:$0xff]
        %v2584 = vld [vmem:[%s327 + $0x28] sm:$0xff]
        %v2585 = vld [vmem:[%s327 + $0x30] sm:$0xff]
        %v2586 = vld [vmem:[%s327 + $0x38] sm:$0xff]
        %v2587 = vld [vmem:[%s327 + $0x40] sm:$0xff]
        %v2588 = vld [vmem:[%s327 + $0x48] sm:$0xff]
        %v2589 = vld [vmem:[%s327 + $0x50] sm:$0xff]
        %v2590 = vld [vmem:[%s327 + $0x58] sm:$0xff]
        %v2591 = vld [vmem:[%s327 + $0x60] sm:$0xff]
        %v2592 = vld [vmem:[%s327 + $0x68] sm:$0xff]
        %v2593 = vld [vmem:[%s327 + $0x70] sm:$0xff]
        %v2594 = vld [vmem:[%s327 + $0x78] sm:$0xff]
        %v2595 = vld [vmem:[%s327 + $0x80] sm:$0xff]
        %v2596 = vld [vmem:[%s327 + $0x88] sm:$0xff]
        %v2597 = vld [vmem:[%s327 + $0x90] sm:$0xff]
        %v2598 = vld [vmem:[%s327 + $0x98] sm:$0xff]
        %v2599 = vld [vmem:[%s327 + $0xa0] sm:$0xff]
        %v2600 = vld [vmem:[%s327 + $0xa8] sm:$0xff]
        %v2601 = vld [vmem:[%s327 + $0xb0] sm:$0xff]
        %v2602 = vld [vmem:[%s327 + $0xb8] sm:$0xff]
        %v2603 = vld [vmem:[%s327 + $0xc0] sm:$0xff]
        %v2604 = vld [vmem:[%s327 + $0xc8] sm:$0xff]
        %v2605 = vld [vmem:[%s327 + $0xd0] sm:$0xff]
        %v2606 = vld [vmem:[%s327 + $0xd8] sm:$0xff]
        %v2607 = vld [vmem:[%s327 + $0xe0] sm:$0xff]
        %v2608 = vld [vmem:[%s327 + $0xe8] sm:$0xff]
        %v2609 = vld [vmem:[%s327 + $0xf0] sm:$0xff]
        %v2610 = vld [vmem:[%s327 + $0xf8] sm:$0xff]
        %v2643 = vunpack.c.l.b16 %v2579
        %v2644 = vunpack.c.h.b16 %v2579
        %v2645 = vunpack.c.l.b16 %v2580
        %v2646 = vunpack.c.h.b16 %v2580
        %v2647 = vunpack.c.l.b16 %v2581
        %v2648 = vunpack.c.h.b16 %v2581
        %v2649 = vunpack.c.l.b16 %v2582
        %v2650 = vunpack.c.h.b16 %v2582
        %v2651 = vunpack.c.l.b16 %v2583
        %v2652 = vunpack.c.h.b16 %v2583
        %v2653 = vunpack.c.l.b16 %v2584
        %v2654 = vunpack.c.h.b16 %v2584
        %v2655 = vunpack.c.l.b16 %v2585
        %v2656 = vunpack.c.h.b16 %v2585
        %v2657 = vunpack.c.l.b16 %v2586
        %v2658 = vunpack.c.h.b16 %v2586
        %v2659 = vunpack.c.l.b16 %v2587
        %v2660 = vunpack.c.h.b16 %v2587
        %v2661 = vunpack.c.l.b16 %v2588
        %v2662 = vunpack.c.h.b16 %v2588
        %v2663 = vunpack.c.l.b16 %v2589
        %v2664 = vunpack.c.h.b16 %v2589
        %v2665 = vunpack.c.l.b16 %v2590
        %v2666 = vunpack.c.h.b16 %v2590
        %v2667 = vunpack.c.l.b16 %v2591
        %v2668 = vunpack.c.h.b16 %v2591
        %v2669 = vunpack.c.l.b16 %v2592
        %v2670 = vunpack.c.h.b16 %v2592
        %v2671 = vunpack.c.l.b16 %v2593
        %v2672 = vunpack.c.h.b16 %v2593
        %v2673 = vunpack.c.l.b16 %v2594
        %v2674 = vunpack.c.h.b16 %v2594
        %v2675 = vunpack.c.l.b16 %v2595
        %v2676 = vunpack.c.h.b16 %v2595
        %v2677 = vunpack.c.l.b16 %v2596
        %v2678 = vunpack.c.h.b16 %v2596
        %v2679 = vunpack.c.l.b16 %v2597
        %v2680 = vunpack.c.h.b16 %v2597
        %v2681 = vunpack.c.l.b16 %v2598
        %v2682 = vunpack.c.h.b16 %v2598
        %v2683 = vunpack.c.l.b16 %v2599
        %v2684 = vunpack.c.h.b16 %v2599
        %v2685 = vunpack.c.l.b16 %v2600
        %v2686 = vunpack.c.h.b16 %v2600
        %v2687 = vunpack.c.l.b16 %v2601
        %v2688 = vunpack.c.h.b16 %v2601
        %v2689 = vunpack.c.l.b16 %v2602
        %v2690 = vunpack.c.h.b16 %v2602
        %v2691 = vunpack.c.l.b16 %v2603
        %v2692 = vunpack.c.h.b16 %v2603
        %v2693 = vunpack.c.l.b16 %v2604
        %v2694 = vunpack.c.h.b16 %v2604
        %v2695 = vunpack.c.l.b16 %v2605
        %v2696 = vunpack.c.h.b16 %v2605
        %v2697 = vunpack.c.l.b16 %v2606
        %v2698 = vunpack.c.h.b16 %v2606
        %v2699 = vunpack.c.l.b16 %v2607
        %v2700 = vunpack.c.h.b16 %v2607
        %v2701 = vunpack.c.l.b16 %v2608
        %v2702 = vunpack.c.h.b16 %v2608
        %v2703 = vunpack.c.l.b16 %v2609
        %v2704 = vunpack.c.h.b16 %v2609
        %v2705 = vunpack.c.l.b16 %v2610
        %v2706 = vunpack.c.h.b16 %v2610
        %v2707 = vpack.c.b16 %v2647, %v2643
        %v2708 = vpack.c.b16 %v2648, %v2644
        %v2709 = vpack.c.b16 %v2649, %v2645
        %v2710 = vpack.c.b16 %v2650, %v2646
        %v2711 = vpack.c.b16 %v2655, %v2651
        %v2712 = vpack.c.b16 %v2656, %v2652
        %v2713 = vpack.c.b16 %v2657, %v2653
        %v2714 = vpack.c.b16 %v2658, %v2654
        %v2715 = vpack.c.b16 %v2663, %v2659
        %v2716 = vpack.c.b16 %v2664, %v2660
        %v2717 = vpack.c.b16 %v2665, %v2661
        %v2718 = vpack.c.b16 %v2666, %v2662
        %v2719 = vpack.c.b16 %v2671, %v2667
        %v2720 = vpack.c.b16 %v2672, %v2668
        %v2721 = vpack.c.b16 %v2673, %v2669
        %v2722 = vpack.c.b16 %v2674, %v2670
        %v2723 = vpack.c.b16 %v2679, %v2675
        %v2724 = vpack.c.b16 %v2680, %v2676
        %v2725 = vpack.c.b16 %v2681, %v2677
        %v2726 = vpack.c.b16 %v2682, %v2678
        %v2727 = vpack.c.b16 %v2687, %v2683
        %v2728 = vpack.c.b16 %v2688, %v2684
        %v2729 = vpack.c.b16 %v2689, %v2685
        %v2730 = vpack.c.b16 %v2690, %v2686
        %v2731 = vpack.c.b16 %v2695, %v2691
        %v2732 = vpack.c.b16 %v2696, %v2692
        %v2733 = vpack.c.b16 %v2697, %v2693
        %v2734 = vpack.c.b16 %v2698, %v2694
        %v2735 = vpack.c.b16 %v2703, %v2699
        %v2736 = vpack.c.b16 %v2704, %v2700
        %v2737 = vpack.c.b16 %v2705, %v2701
        %v2738 = vpack.c.b16 %v2706, %v2702
        %2771 = vmatprep.subr.bf16.mxu0 %v2708
        %2772 = vmatpush1.bf16.msra.mxu0 %v2707
        %2773 = vmatprep.subr.bf16.mxu0 %v2712
        %2774 = vmatpush1.bf16.msra.mxu0 %v2711
        %2775 = vmatprep.subr.bf16.mxu0 %v2716
        %2776 = vmatpush1.bf16.msra.mxu0 %v2715
        %2777 = vmatprep.subr.bf16.mxu0 %v2720
        %2778 = vmatpush1.bf16.msra.mxu0 %v2719
        %2779 = vmatprep.subr.bf16.mxu0 %v2724
        %2780 = vmatpush1.bf16.msra.mxu0 %v2723
        %2781 = vmatprep.subr.bf16.mxu0 %v2728
        %2782 = vmatpush1.bf16.msra.mxu0 %v2727
        %2783 = vmatprep.subr.bf16.mxu0 %v2732
        %2784 = vmatpush1.bf16.msra.mxu0 %v2731
        %2785 = vmatprep.subr.bf16.mxu0 %v2736
        %2786 = vmatpush1.bf16.msra.mxu0 %v2735
        %2787 = vmatprep.subr.bf16.mxu0 0
        %2788 = vmatpush1.bf16.msra.mxu0 0
        %2789 = vmatprep.subr.bf16.mxu0 0
        %2790 = vmatpush1.bf16.msra.mxu0 0
        %2791 = vmatprep.subr.bf16.mxu0 0
        %2792 = vmatpush1.bf16.msra.mxu0 0
        %2793 = vmatprep.subr.bf16.mxu0 0
        %2794 = vmatpush1.bf16.msra.mxu0 0
        %2795 = vmatprep.subr.bf16.mxu0 0
        %2796 = vmatpush1.bf16.msra.mxu0 0
        %2797 = vmatprep.subr.bf16.mxu0 0
        %2798 = vmatpush1.bf16.msra.mxu0 0
        %2799 = vmatprep.subr.bf16.mxu0 0
        %2800 = vmatpush1.bf16.msra.mxu0 0
        %2801 = vmatprep.subr.bf16.mxu0 0
        %2802 = vmatpush1.bf16.msra.mxu0 0
        %2803 = vmatprep.mubr.bf16.mxu0 0
        %2804 = vmatmul.mubr.bf16.gmra.mrb[0].mxu0 %v2578
        %v2805 = vpop.f32.mrb[0].mxu0
        %v2806 = vadd.f32 0.0, %v2805
        %v2807 = vpop.f32.mrb[0].mxu0
        %v2808 = vadd.f32 0.0, %v2807
        %v2809 = vpop.f32.mrb[0].mxu0
        %v2810 = vadd.f32 0.0, %v2809
        %v2811 = vpop.f32.mrb[0].mxu0
        %v2812 = vadd.f32 0.0, %v2811
        %2813 = vdwg.mxu0
        %2814 = vmatprep.subr.bf16.mxu0 %v2710
        %2815 = vmatpush1.bf16.msra.mxu0 %v2709
        %2816 = vmatprep.subr.bf16.mxu0 %v2714
        %2817 = vmatpush1.bf16.msra.mxu0 %v2713
        %2818 = vmatprep.subr.bf16.mxu0 %v2718
        %2819 = vmatpush1.bf16.msra.mxu0 %v2717
        %2820 = vmatprep.subr.bf16.mxu0 %v2722
        %2821 = vmatpush1.bf16.msra.mxu0 %v2721
        %2822 = vmatprep.subr.bf16.mxu0 %v2726
        %2823 = vmatpush1.bf16.msra.mxu0 %v2725
        %2824 = vmatprep.subr.bf16.mxu0 %v2730
        %2825 = vmatpush1.bf16.msra.mxu0 %v2729
        %2826 = vmatprep.subr.bf16.mxu0 %v2734
        %2827 = vmatpush1.bf16.msra.mxu0 %v2733
        %2828 = vmatprep.subr.bf16.mxu0 %v2738
        %2829 = vmatpush1.bf16.msra.mxu0 %v2737
        %2830 = vmatprep.subr.bf16.mxu0 0
        %2831 = vmatpush1.bf16.msra.mxu0 0
        %2832 = vmatprep.subr.bf16.mxu0 0
        %2833 = vmatpush1.bf16.msra.mxu0 0
        %2834 = vmatprep.subr.bf16.mxu0 0
        %2835 = vmatpush1.bf16.msra.mxu0 0
        %2836 = vmatprep.subr.bf16.mxu0 0
        %2837 = vmatpush1.bf16.msra.mxu0 0
        %2838 = vmatprep.subr.bf16.mxu0 0
        %2839 = vmatpush1.bf16.msra.mxu0 0
        %2840 = vmatprep.subr.bf16.mxu0 0
        %2841 = vmatpush1.bf16.msra.mxu0 0
        %2842 = vmatprep.subr.bf16.mxu0 0
        %2843 = vmatpush1.bf16.msra.mxu0 0
        %2844 = vmatprep.subr.bf16.mxu0 0
        %2845 = vmatpush1.bf16.msra.mxu0 0
        %2846 = vmatprep.mubr.bf16.mxu0 0
        %2847 = vmatmul.mubr.bf16.gmra.mrb[0].mxu0 %v2578
        %v2848 = vpop.f32.mrb[0].mxu0
        %v2849 = vadd.f32 0.0, %v2848
        %v2850 = vpop.f32.mrb[0].mxu0
        %v2851 = vadd.f32 0.0, %v2850
        %v2852 = vpop.f32.mrb[0].mxu0
        %v2853 = vadd.f32 0.0, %v2852
        %v2854 = vpop.f32.mrb[0].mxu0
        %v2855 = vadd.f32 0.0, %v2854
        %2856 = vdwg.mxu0
        %v2857 = vadd.f32 %v2568, %v2806
        %v2858 = vadd.f32 %v2569, %v2808
        %v2859 = vadd.f32 %v2570, %v2849
        %v2860 = vadd.f32 %v2571, %v2851
        %v2861 = vadd.f32 %v2572, %v2810
        %v2862 = vadd.f32 %v2573, %v2812
        %v2863 = vadd.f32 %v2574, %v2853
        %v2864 = vadd.f32 %v2575, %v2855
        %v2865 = vmul.f32 %v2857, 0.5
        %v2866 = vmul.f32 %v2861, 0.5
        %v2867 = vtanh.pop %v2865
        %v2868 = vtanh.pop %v2866
        %v2869 = vadd.f32 %v2867, 1.0
        %v2870 = vadd.f32 %v2868, 1.0
        %v2871 = vmul.f32 %v2869, 0.5
        %v2872 = vmul.f32 %v2870, 0.5
        %v2873 = vmul.f32 %v2858, 0.5
        %v2874 = vmul.f32 %v2862, 0.5
        %v2875 = vtanh.pop %v2873
        %v2876 = vtanh.pop %v2874
        %v2877 = vadd.f32 %v2875, 1.0
        %v2878 = vadd.f32 %v2876, 1.0
        %v2879 = vmul.f32 %v2877, 0.5
        %v2880 = vmul.f32 %v2878, 0.5
        %v2881 = vtanh.pop %v2859
        %v2882 = vtanh.pop %v2863
        %v2883 = vmul.f32 %v2860, 0.5
        %v2884 = vmul.f32 %v2864, 0.5
        %v2885 = vtanh.pop %v2883
        %v2886 = vtanh.pop %v2884
        %v2887 = vadd.f32 %v2885, 1.0
        %v2888 = vadd.f32 %v2886, 1.0
        %v2889 = vmul.f32 %v2887, 0.5
        %v2890 = vmul.f32 %v2888, 0.5
        %v2891 = vld [vmem:[#allocation3] sm:$0xff]
        %v2892 = vld [vmem:[#allocation3 + $0x8] sm:$0xff]
        %v2893 = vmul.f32 %v2879, %v2891
        %v2894 = vmul.f32 %v2880, %v2892
        %v2895 = vmul.f32 %v2871, %v2881
        %v2896 = vmul.f32 %v2872, %v2882
        %v2897 = vadd.f32 %v2893, %v2895
        %v2898 = vadd.f32 %v2894, %v2896
        %v2899 = vtanh.pop %v2897
        %v2900 = vtanh.pop %v2898
        %v2901 = vmul.f32 %v2889, %v2899
        %v2902 = vmul.f32 %v2890, %v2900
        %s2903 = sadd.s32 %s351, 6
        %v2904 = vstv %s2903
        %vm2905 = vcmp.ge.s32.totalorder %v2904, %v347
        %vm2906 = vcmp.ge.s32.totalorder %v2904, %v348
        %vm2907 = vcmp.lt.s32.totalorder %v2904, %v349
        %vm2908 = vcmp.lt.s32.totalorder %v2904, %v350
        %vm2909 = vmand %vm2905, %vm2907
        %vm2910 = vmand %vm2906, %vm2908
        %v2911 = vsel %vm2909, 1, 0
        %v2912 = vsel %vm2910, 1, 0
        %2913 = vset.pattern.permute.xlu0 0
        %2914 = vperm.xlu0 %2913, %v2911
        %v2915 = vpop.permute.xlu0 %2914
        %2916 = vset.pattern.permute.xlu0 0
        %2917 = vperm.xlu0 %2916, %v2912
        %v2918 = vpop.permute.xlu0 %2917
        %vm2919 = vcmp.eq.s32.totalorder %v2915, 1
        %vm2920 = vcmp.eq.s32.totalorder %v2918, 1
        %v2921 = vsel %vm2919, %v2901, %v2576
        %v2922 = vsel %vm2920, %v2902, %v2577
        %v2923 = vsel %vm2919, %v2897, %v2891
        %v2924 = vsel %vm2920, %v2898, %v2892
        %2925 = vst [vmem:[#allocation2] sm:$0xff] %v2921
        %2926 = vst [vmem:[#allocation2 + $0x8] sm:$0xff] %v2922
        %2927 = vst [vmem:[#allocation3] sm:$0xff] %v2923
        %2928 = vst [vmem:[#allocation3 + $0x8] sm:$0xff] %v2924
        %v2929 = vpack.c.bf16 %v2922, %v2921
        %s2930 = scalar_lea.vmem %s336, 48
        %2931 = vst [vmem:[%s2930] sm:$0xff] %v2929
        %s2932 = scalar_lea.vmem %s321, 224
        %v2933 = vld [vmem:[%s2932] sm:$0xff]
        %v2934 = vld [vmem:[%s2932 + $0x8] sm:$0xff]
        %v2935 = vld [vmem:[%s2932 + $0x10] sm:$0xff]
        %v2936 = vld [vmem:[%s2932 + $0x18] sm:$0xff]
        %v2937 = vunpack.c.l.bf16 %v2933
        %v2938 = vunpack.c.h.bf16 %v2933
        %v2939 = vunpack.c.l.bf16 %v2934
        %v2940 = vunpack.c.h.bf16 %v2934
        %v2941 = vunpack.c.l.bf16 %v2935
        %v2942 = vunpack.c.h.bf16 %v2935
        %v2943 = vunpack.c.l.bf16 %v2936
        %v2944 = vunpack.c.h.bf16 %v2936
        %v2945 = vld [vmem:[#allocation2] sm:$0xff]
        %v2946 = vld [vmem:[#allocation2 + $0x8] sm:$0xff]
        %v2947 = vpack.c.bf16 %v2946, %v2945
        %v2948 = vld [vmem:[%s327] sm:$0xff]
        %v2949 = vld [vmem:[%s327 + $0x8] sm:$0xff]
        %v2950 = vld [vmem:[%s327 + $0x10] sm:$0xff]
        %v2951 = vld [vmem:[%s327 + $0x18] sm:$0xff]
        %v2952 = vld [vmem:[%s327 + $0x20] sm:$0xff]
        %v2953 = vld [vmem:[%s327 + $0x28] sm:$0xff]
        %v2954 = vld [vmem:[%s327 + $0x30] sm:$0xff]
        %v2955 = vld [vmem:[%s327 + $0x38] sm:$0xff]
        %v2956 = vld [vmem:[%s327 + $0x40] sm:$0xff]
        %v2957 = vld [vmem:[%s327 + $0x48] sm:$0xff]
        %v2958 = vld [vmem:[%s327 + $0x50] sm:$0xff]
        %v2959 = vld [vmem:[%s327 + $0x58] sm:$0xff]
        %v2960 = vld [vmem:[%s327 + $0x60] sm:$0xff]
        %v2961 = vld [vmem:[%s327 + $0x68] sm:$0xff]
        %v2962 = vld [vmem:[%s327 + $0x70] sm:$0xff]
        %v2963 = vld [vmem:[%s327 + $0x78] sm:$0xff]
        %v2964 = vld [vmem:[%s327 + $0x80] sm:$0xff]
        %v2965 = vld [vmem:[%s327 + $0x88] sm:$0xff]
        %v2966 = vld [vmem:[%s327 + $0x90] sm:$0xff]
        %v2967 = vld [vmem:[%s327 + $0x98] sm:$0xff]
        %v2968 = vld [vmem:[%s327 + $0xa0] sm:$0xff]
        %v2969 = vld [vmem:[%s327 + $0xa8] sm:$0xff]
        %v2970 = vld [vmem:[%s327 + $0xb0] sm:$0xff]
        %v2971 = vld [vmem:[%s327 + $0xb8] sm:$0xff]
        %v2972 = vld [vmem:[%s327 + $0xc0] sm:$0xff]
        %v2973 = vld [vmem:[%s327 + $0xc8] sm:$0xff]
        %v2974 = vld [vmem:[%s327 + $0xd0] sm:$0xff]
        %v2975 = vld [vmem:[%s327 + $0xd8] sm:$0xff]
        %v2976 = vld [vmem:[%s327 + $0xe0] sm:$0xff]
        %v2977 = vld [vmem:[%s327 + $0xe8] sm:$0xff]
        %v2978 = vld [vmem:[%s327 + $0xf0] sm:$0xff]
        %v2979 = vld [vmem:[%s327 + $0xf8] sm:$0xff]
        %v3012 = vunpack.c.l.b16 %v2948
        %v3013 = vunpack.c.h.b16 %v2948
        %v3014 = vunpack.c.l.b16 %v2949
        %v3015 = vunpack.c.h.b16 %v2949
        %v3016 = vunpack.c.l.b16 %v2950
        %v3017 = vunpack.c.h.b16 %v2950
        %v3018 = vunpack.c.l.b16 %v2951
        %v3019 = vunpack.c.h.b16 %v2951
        %v3020 = vunpack.c.l.b16 %v2952
        %v3021 = vunpack.c.h.b16 %v2952
        %v3022 = vunpack.c.l.b16 %v2953
        %v3023 = vunpack.c.h.b16 %v2953
        %v3024 = vunpack.c.l.b16 %v2954
        %v3025 = vunpack.c.h.b16 %v2954
        %v3026 = vunpack.c.l.b16 %v2955
        %v3027 = vunpack.c.h.b16 %v2955
        %v3028 = vunpack.c.l.b16 %v2956
        %v3029 = vunpack.c.h.b16 %v2956
        %v3030 = vunpack.c.l.b16 %v2957
        %v3031 = vunpack.c.h.b16 %v2957
        %v3032 = vunpack.c.l.b16 %v2958
        %v3033 = vunpack.c.h.b16 %v2958
        %v3034 = vunpack.c.l.b16 %v2959
        %v3035 = vunpack.c.h.b16 %v2959
        %v3036 = vunpack.c.l.b16 %v2960
        %v3037 = vunpack.c.h.b16 %v2960
        %v3038 = vunpack.c.l.b16 %v2961
        %v3039 = vunpack.c.h.b16 %v2961
        %v3040 = vunpack.c.l.b16 %v2962
        %v3041 = vunpack.c.h.b16 %v2962
        %v3042 = vunpack.c.l.b16 %v2963
        %v3043 = vunpack.c.h.b16 %v2963
        %v3044 = vunpack.c.l.b16 %v2964
        %v3045 = vunpack.c.h.b16 %v2964
        %v3046 = vunpack.c.l.b16 %v2965
        %v3047 = vunpack.c.h.b16 %v2965
        %v3048 = vunpack.c.l.b16 %v2966
        %v3049 = vunpack.c.h.b16 %v2966
        %v3050 = vunpack.c.l.b16 %v2967
        %v3051 = vunpack.c.h.b16 %v2967
        %v3052 = vunpack.c.l.b16 %v2968
        %v3053 = vunpack.c.h.b16 %v2968
        %v3054 = vunpack.c.l.b16 %v2969
        %v3055 = vunpack.c.h.b16 %v2969
        %v3056 = vunpack.c.l.b16 %v2970
        %v3057 = vunpack.c.h.b16 %v2970
        %v3058 = vunpack.c.l.b16 %v2971
        %v3059 = vunpack.c.h.b16 %v2971
        %v3060 = vunpack.c.l.b16 %v2972
        %v3061 = vunpack.c.h.b16 %v2972
        %v3062 = vunpack.c.l.b16 %v2973
        %v3063 = vunpack.c.h.b16 %v2973
        %v3064 = vunpack.c.l.b16 %v2974
        %v3065 = vunpack.c.h.b16 %v2974
        %v3066 = vunpack.c.l.b16 %v2975
        %v3067 = vunpack.c.h.b16 %v2975
        %v3068 = vunpack.c.l.b16 %v2976
        %v3069 = vunpack.c.h.b16 %v2976
        %v3070 = vunpack.c.l.b16 %v2977
        %v3071 = vunpack.c.h.b16 %v2977
        %v3072 = vunpack.c.l.b16 %v2978
        %v3073 = vunpack.c.h.b16 %v2978
        %v3074 = vunpack.c.l.b16 %v2979
        %v3075 = vunpack.c.h.b16 %v2979
        %v3076 = vpack.c.b16 %v3016, %v3012
        %v3077 = vpack.c.b16 %v3017, %v3013
        %v3078 = vpack.c.b16 %v3018, %v3014
        %v3079 = vpack.c.b16 %v3019, %v3015
        %v3080 = vpack.c.b16 %v3024, %v3020
        %v3081 = vpack.c.b16 %v3025, %v3021
        %v3082 = vpack.c.b16 %v3026, %v3022
        %v3083 = vpack.c.b16 %v3027, %v3023
        %v3084 = vpack.c.b16 %v3032, %v3028
        %v3085 = vpack.c.b16 %v3033, %v3029
        %v3086 = vpack.c.b16 %v3034, %v3030
        %v3087 = vpack.c.b16 %v3035, %v3031
        %v3088 = vpack.c.b16 %v3040, %v3036
        %v3089 = vpack.c.b16 %v3041, %v3037
        %v3090 = vpack.c.b16 %v3042, %v3038
        %v3091 = vpack.c.b16 %v3043, %v3039
        %v3092 = vpack.c.b16 %v3048, %v3044
        %v3093 = vpack.c.b16 %v3049, %v3045
        %v3094 = vpack.c.b16 %v3050, %v3046
        %v3095 = vpack.c.b16 %v3051, %v3047
        %v3096 = vpack.c.b16 %v3056, %v3052
        %v3097 = vpack.c.b16 %v3057, %v3053
        %v3098 = vpack.c.b16 %v3058, %v3054
        %v3099 = vpack.c.b16 %v3059, %v3055
        %v3100 = vpack.c.b16 %v3064, %v3060
        %v3101 = vpack.c.b16 %v3065, %v3061
        %v3102 = vpack.c.b16 %v3066, %v3062
        %v3103 = vpack.c.b16 %v3067, %v3063
        %v3104 = vpack.c.b16 %v3072, %v3068
        %v3105 = vpack.c.b16 %v3073, %v3069
        %v3106 = vpack.c.b16 %v3074, %v3070
        %v3107 = vpack.c.b16 %v3075, %v3071
        %3140 = vmatprep.subr.bf16.mxu0 %v3077
        %3141 = vmatpush1.bf16.msra.mxu0 %v3076
        %3142 = vmatprep.subr.bf16.mxu0 %v3081
        %3143 = vmatpush1.bf16.msra.mxu0 %v3080
        %3144 = vmatprep.subr.bf16.mxu0 %v3085
        %3145 = vmatpush1.bf16.msra.mxu0 %v3084
        %3146 = vmatprep.subr.bf16.mxu0 %v3089
        %3147 = vmatpush1.bf16.msra.mxu0 %v3088
        %3148 = vmatprep.subr.bf16.mxu0 %v3093
        %3149 = vmatpush1.bf16.msra.mxu0 %v3092
        %3150 = vmatprep.subr.bf16.mxu0 %v3097
        %3151 = vmatpush1.bf16.msra.mxu0 %v3096
        %3152 = vmatprep.subr.bf16.mxu0 %v3101
        %3153 = vmatpush1.bf16.msra.mxu0 %v3100
        %3154 = vmatprep.subr.bf16.mxu0 %v3105
        %3155 = vmatpush1.bf16.msra.mxu0 %v3104
        %3156 = vmatprep.subr.bf16.mxu0 0
        %3157 = vmatpush1.bf16.msra.mxu0 0
        %3158 = vmatprep.subr.bf16.mxu0 0
        %3159 = vmatpush1.bf16.msra.mxu0 0
        %3160 = vmatprep.subr.bf16.mxu0 0
        %3161 = vmatpush1.bf16.msra.mxu0 0
        %3162 = vmatprep.subr.bf16.mxu0 0
        %3163 = vmatpush1.bf16.msra.mxu0 0
        %3164 = vmatprep.subr.bf16.mxu0 0
        %3165 = vmatpush1.bf16.msra.mxu0 0
        %3166 = vmatprep.subr.bf16.mxu0 0
        %3167 = vmatpush1.bf16.msra.mxu0 0
        %3168 = vmatprep.subr.bf16.mxu0 0
        %3169 = vmatpush1.bf16.msra.mxu0 0
        %3170 = vmatprep.subr.bf16.mxu0 0
        %3171 = vmatpush1.bf16.msra.mxu0 0
        %3172 = vmatprep.mubr.bf16.mxu0 0
        %3173 = vmatmul.mubr.bf16.gmra.mrb[0].mxu0 %v2947
        %v3174 = vpop.f32.mrb[0].mxu0
        %v3175 = vadd.f32 0.0, %v3174
        %v3176 = vpop.f32.mrb[0].mxu0
        %v3177 = vadd.f32 0.0, %v3176
        %v3178 = vpop.f32.mrb[0].mxu0
        %v3179 = vadd.f32 0.0, %v3178
        %v3180 = vpop.f32.mrb[0].mxu0
        %v3181 = vadd.f32 0.0, %v3180
        %3182 = vdwg.mxu0
        %3183 = vmatprep.subr.bf16.mxu0 %v3079
        %3184 = vmatpush1.bf16.msra.mxu0 %v3078
        %3185 = vmatprep.subr.bf16.mxu0 %v3083
        %3186 = vmatpush1.bf16.msra.mxu0 %v3082
        %3187 = vmatprep.subr.bf16.mxu0 %v3087
        %3188 = vmatpush1.bf16.msra.mxu0 %v3086
        %3189 = vmatprep.subr.bf16.mxu0 %v3091
        %3190 = vmatpush1.bf16.msra.mxu0 %v3090
        %3191 = vmatprep.subr.bf16.mxu0 %v3095
        %3192 = vmatpush1.bf16.msra.mxu0 %v3094
        %3193 = vmatprep.subr.bf16.mxu0 %v3099
        %3194 = vmatpush1.bf16.msra.mxu0 %v3098
        %3195 = vmatprep.subr.bf16.mxu0 %v3103
        %3196 = vmatpush1.bf16.msra.mxu0 %v3102
        %3197 = vmatprep.subr.bf16.mxu0 %v3107
        %3198 = vmatpush1.bf16.msra.mxu0 %v3106
        %3199 = vmatprep.subr.bf16.mxu0 0
        %3200 = vmatpush1.bf16.msra.mxu0 0
        %3201 = vmatprep.subr.bf16.mxu0 0
        %3202 = vmatpush1.bf16.msra.mxu0 0
        %3203 = vmatprep.subr.bf16.mxu0 0
        %3204 = vmatpush1.bf16.msra.mxu0 0
        %3205 = vmatprep.subr.bf16.mxu0 0
        %3206 = vmatpush1.bf16.msra.mxu0 0
        %3207 = vmatprep.subr.bf16.mxu0 0
        %3208 = vmatpush1.bf16.msra.mxu0 0
        %3209 = vmatprep.subr.bf16.mxu0 0
        %3210 = vmatpush1.bf16.msra.mxu0 0
        %3211 = vmatprep.subr.bf16.mxu0 0
        %3212 = vmatpush1.bf16.msra.mxu0 0
        %3213 = vmatprep.subr.bf16.mxu0 0
        %3214 = vmatpush1.bf16.msra.mxu0 0
        %3215 = vmatprep.mubr.bf16.mxu0 0
        %3216 = vmatmul.mubr.bf16.gmra.mrb[0].mxu0 %v2947
        %v3217 = vpop.f32.mrb[0].mxu0
        %v3218 = vadd.f32 0.0, %v3217
        %v3219 = vpop.f32.mrb[0].mxu0
        %v3220 = vadd.f32 0.0, %v3219
        %v3221 = vpop.f32.mrb[0].mxu0
        %v3222 = vadd.f32 0.0, %v3221
        %v3223 = vpop.f32.mrb[0].mxu0
        %v3224 = vadd.f32 0.0, %v3223
        %3225 = vdwg.mxu0
        %v3226 = vadd.f32 %v2937, %v3175
        %v3227 = vadd.f32 %v2938, %v3177
        %v3228 = vadd.f32 %v2939, %v3218
        %v3229 = vadd.f32 %v2940, %v3220
        %v3230 = vadd.f32 %v2941, %v3179
        %v3231 = vadd.f32 %v2942, %v3181
        %v3232 = vadd.f32 %v2943, %v3222
        %v3233 = vadd.f32 %v2944, %v3224
        %v3234 = vmul.f32 %v3226, 0.5
        %v3235 = vmul.f32 %v3230, 0.5
        %v3236 = vtanh.pop %v3234
        %v3237 = vtanh.pop %v3235
        %v3238 = vadd.f32 %v3236, 1.0
        %v3239 = vadd.f32 %v3237, 1.0
        %v3240 = vmul.f32 %v3238, 0.5
        %v3241 = vmul.f32 %v3239, 0.5
        %v3242 = vmul.f32 %v3227, 0.5
        %v3243 = vmul.f32 %v3231, 0.5
        %v3244 = vtanh.pop %v3242
        %v3245 = vtanh.pop %v3243
        %v3246 = vadd.f32 %v3244, 1.0
        %v3247 = vadd.f32 %v3245, 1.0
        %v3248 = vmul.f32 %v3246, 0.5
        %v3249 = vmul.f32 %v3247, 0.5
        %v3250 = vtanh.pop %v3228
        %v3251 = vtanh.pop %v3232
        %v3252 = vmul.f32 %v3229, 0.5
        %v3253 = vmul.f32 %v3233, 0.5
        %v3254 = vtanh.pop %v3252
        %v3255 = vtanh.pop %v3253
        %v3256 = vadd.f32 %v3254, 1.0
        %v3257 = vadd.f32 %v3255, 1.0
        %v3258 = vmul.f32 %v3256, 0.5
        %v3259 = vmul.f32 %v3257, 0.5
        %v3260 = vld [vmem:[#allocation3] sm:$0xff]
        %v3261 = vld [vmem:[#allocation3 + $0x8] sm:$0xff]
        %v3262 = vmul.f32 %v3248, %v3260
        %v3263 = vmul.f32 %v3249, %v3261
        %v3264 = vmul.f32 %v3240, %v3250
        %v3265 = vmul.f32 %v3241, %v3251
        %v3266 = vadd.f32 %v3262, %v3264
        %v3267 = vadd.f32 %v3263, %v3265
        %v3268 = vtanh.pop %v3266
        %v3269 = vtanh.pop %v3267
        %v3270 = vmul.f32 %v3258, %v3268
        %v3271 = vmul.f32 %v3259, %v3269
        %s3272 = sadd.s32 %s351, 7
        %v3273 = vstv %s3272
        %vm3274 = vcmp.ge.s32.totalorder %v3273, %v347
        %vm3275 = vcmp.ge.s32.totalorder %v3273, %v348
        %vm3276 = vcmp.lt.s32.totalorder %v3273, %v349
        %vm3277 = vcmp.lt.s32.totalorder %v3273, %v350
        %vm3278 = vmand %vm3274, %vm3276
        %vm3279 = vmand %vm3275, %vm3277
        %v3280 = vsel %vm3278, 1, 0
        %v3281 = vsel %vm3279, 1, 0
        %3282 = vset.pattern.permute.xlu0 0
        %3283 = vperm.xlu0 %3282, %v3280
        %v3284 = vpop.permute.xlu0 %3283
        %3285 = vset.pattern.permute.xlu0 0
        %3286 = vperm.xlu0 %3285, %v3281
        %v3287 = vpop.permute.xlu0 %3286
        %vm3288 = vcmp.eq.s32.totalorder %v3284, 1
        %vm3289 = vcmp.eq.s32.totalorder %v3287, 1
        %v3290 = vsel %vm3288, %v3270, %v2945
        %v3291 = vsel %vm3289, %v3271, %v2946
        %v3292 = vsel %vm3288, %v3266, %v3260
        %v3293 = vsel %vm3289, %v3267, %v3261
        %3294 = vst [vmem:[#allocation2] sm:$0xff] %v3290
        %3295 = vst [vmem:[#allocation2 + $0x8] sm:$0xff] %v3291
        %3296 = vst [vmem:[#allocation3] sm:$0xff] %v3292
        %3297 = vst [vmem:[#allocation3 + $0x8] sm:$0xff] %v3293
        %v3298 = vpack.c.bf16 %v3291, %v3290
        %s3299 = scalar_lea.vmem %s336, 56
        %3300 = vst [vmem:[%s3299] sm:$0xff] %v3298
        %v3301 = vld [vmem:[#allocation2] sm:$0xff]
        %v3302 = vld [vmem:[#allocation2 + $0x8] sm:$0xff]
        %3303 = vst [vmem:[%s301] sm:$0xff] %v3301
        %3304 = vst [vmem:[%s301 + $0x8] sm:$0xff] %v3302
        %s3305 = smul.u32 8, %s25
        %p3306 = scmp.lt.s32.totalorder %s24, 1
        %s3307 = scalar_select %p3306, %s24, 1
        %p3308 = scmp.lt.s32.totalorder %s3305, 7
        %s3309 = scalar_select %p3308, %s3305, 7
        %s3310 = smul.addr %s3307, 8
        %s3311 = sadd.s32 %s3309, %s3310
        %s3312 = smul.addr %s3311, 8
        %s3313 = scalar_lea.vmem %s4, %s3312
        %s3314 = sand.u32 %s174, 1
        %s3315 = scalar_lea.sflag [#allocation5], %s3314
        %s3316 = sand.u32 %s174, 1
        %s3317 = smul.addr %s3316, 16
        %s3318 = scalar_lea.vmem [#allocation4], %s3317
        // Predicated region
        $region41: #{_lambda_.2} parent=35 // pred_check
          %p3319 = pneg %p158
        $region42: #{_lambda_.2} parent=35 // pred_check_branch
          %3321 = sbr.rel (%p3319) target = $region44
        $region43: #{_lambda_.2} parent=35 // pred_region
          %s3322 = smul.u32 8, %s25
        $region44: #{_lambda_.2} parent=35 // pred_fallthru
          _
        // Predicated region
        $region45: #{_lambda_.2} parent=35 // pred_check
          %p3323 = pneg %p184
        $region46: #{_lambda_.2} parent=35 // pred_check_branch
          %3325 = sbr.rel (%p3323) target = $region48
        $region47: #{_lambda_.2} parent=35 // pred_region
          %s3327 = ssub.s32 256, 256
          %3328 = vsyncadd %s3315, %s3327
          %s3329 = smul.addr %s24, 2
          %s3330 = smul.addr %s3329, 128
          %s3331 = scalar_lea.hbm %s5, %s3330
          %s3332 = sshll.u32 %s3318, 4
          %s3333 = int_to_ptr.vmem [resolvable:$true] %s3332
          %3338 = dma.vmem_to_hbm [thread:$0]  %s3333, 256, %s3331, %s3315, 128, 128, 8
        $region48: #{_lambda_.2} parent=35 // pred_fallthru
          _
      $region36: #{_lambda_.2} parent=5 // pred_fallthru
        _
      %p3339 = scmp.le.s32.totalorder 2, %s15
      // Predicated region
      $region49: #{_lambda_.2} parent=5 // pred_check
        %p3340 = pneg %p3339
      $region50: #{_lambda_.2} parent=5 // pred_check_branch
        %3342 = sbr.rel (%p3340) target = $region52
      $region51: #{_lambda_.2} parent=5 // pred_region
        %s3343 = ssub.s32 %s15, 2
        // Predicated region
        $region53: #{_lambda_.2} parent=51 // pred_check
          %p3344 = pneg %p164
        $region54: #{_lambda_.2} parent=51 // pred_check_branch
          %3346 = sbr.rel (%p3344) target = $region56
        $region55: #{_lambda_.2} parent=51 // pred_region
          %s3347 = smul.u32 8, %s27
          %p3348 = scmp.lt.s32.totalorder %s26, 1
          %s3349 = scalar_select %p3348, %s26, 1
          %p3350 = scmp.lt.s32.totalorder %s3347, 7
          %s3351 = scalar_select %p3350, %s3347, 7
          %s3352 = smul.addr %s3349, 8
          %s3353 = sadd.s32 %s3351, %s3352
          %s3354 = smul.addr %s3353, 8
          %s3355 = scalar_lea.vmem %s4, %s3354
        $region56: #{_lambda_.2} parent=51 // pred_fallthru
          _
        // Predicated region
        $region57: #{_lambda_.2} parent=51 // pred_check
          %p3356 = pneg %p190
        $region58: #{_lambda_.2} parent=51 // pred_check_branch
          %3358 = sbr.rel (%p3356) target = $region60
        $region59: #{_lambda_.2} parent=51 // pred_region
          %s3359 = sand.u32 %s175, 1
          %s3360 = scalar_lea.sflag [#allocation5], %s3359
          %s3361 = sand.u32 %s175, 1
          %s3362 = smul.addr %s3361, 16
          %s3363 = scalar_lea.vmem [#allocation4], %s3362
          %3364 = dma.done %s3360, 256
        $region60: #{_lambda_.2} parent=51 // pred_fallthru
          _
      $region52: #{_lambda_.2} parent=5 // pred_fallthru
        _
    $region6: #{_lambda_.2} parent=1 // loop_footer
      %s19 = sadd.s32 1, %s15
    $region7: #{_lambda_.2} parent=1 // loop_footer_branch
      %14 = sbr.rel target = $region3
    $region8: #{_lambda_.2} parent=1 // loop_exit
      _
    %3365 = vsyncpa [#allocation5], 1
    %s3366 = scalar_lea.sflag [#allocation5], 1
    %3367 = vsyncpa %s3366, 1

</llo_original>
